<compile_context>
chip_gen: v6e
topology: v6e:2x2x1
jax: 0.10.0
libtpu: 0.0.40
codegen_flags: <defaults>
</compile_context>

<pallas_src>
import math

import jax
import jax.numpy as jnp
import numpy as np
from jax.experimental import pallas as pl
from jax.experimental.pallas import tpu as pltpu

# ---- model config (i_dim_model, i_dim_hidden, i_dim_v, i_n_layers, i_n_head)
DIM_MODEL = 32
DIM_HIDDEN = 64
DIM_V = 16          # dim_k == dim_v
N_LAYERS = 2
N_HEAD = 2
LN_EPS = 1e-5

MXU_DTYPE = jnp.bfloat16   # matmul operand dtype (accumulation stays f32)


def _round_up(x, m):
    return (x + m - 1) // m * m


def _layer_norm(v, g, b):
    # v: (R, D), g/b: (1, D)
    mu = jnp.mean(v, axis=-1, keepdims=True)
    var = jnp.mean((v - mu) ** 2, axis=-1, keepdims=True)
    return (v - mu) * jax.lax.rsqrt(var + LN_EPS) * g + b


def _critic_kernel(problems_ref, sol_ref, pe_tab_ref, w_emb_ref,
                   wq_ref, wk_ref, wv_ref, wo_ref,
                   ln1g_ref, ln1b_ref,
                   w1_ref, b1_ref, w2_ref, b2_ref,
                   ln2g_ref, ln2b_ref,
                   wg_ref, wn_ref, wd1_ref, wd2_ref,
                   out_ref):
    bt, n, _ = problems_ref.shape      # tours in this block, nodes per tour
    d = DIM_MODEL
    r = bt * n                         # folded row count for all linear layers

    mx = lambda a: a.astype(MXU_DTYPE)

    # ---- graph embedding: coords @ W_emb + positional encoding --------------
    coords = problems_ref[...].reshape(r, 2)                        # (R, 2)
    w_emb = w_emb_ref[...]                                          # (2, D)
    x = coords[:, 0:1] * w_emb[0:1, :] + coords[:, 1:2] * w_emb[1:2, :]

    # PE of node j is pe_table[position of j in the tour]; gather it with a
    # one-hot matmul built from the int32 tour (no (B, N, D) HBM input).
    sol = sol_ref[...]                                              # (Bt, N) i32
    node_ids = jax.lax.broadcasted_iota(jnp.int32, (bt, n, n), 1)   # node index
    onehot = (node_ids == sol[:, None, :]).astype(jnp.float32)      # [b, node, pos]
    x = x + jnp.dot(onehot.reshape(r, n), pe_tab_ref[...],
                    preferred_element_type=jnp.float32)             # (R, D)

    scale = 1.0 / math.sqrt(DIM_V)

    for l in range(N_LAYERS):          # static loop over encoder layers
        xb = mx(x)                                                   # (R, D)
        attn = None
        for h in range(N_HEAD):        # static loop over heads
            q = jnp.dot(xb, wq_ref[l, h], preferred_element_type=jnp.float32)
            k = jnp.dot(xb, wk_ref[l, h], preferred_element_type=jnp.float32)
            v = jnp.dot(xb, wv_ref[l, h], preferred_element_type=jnp.float32)
            q3 = q.reshape(bt, n, DIM_V)
            k3 = k.reshape(bt, n, DIM_V)
            v3 = v.reshape(bt, n, DIM_V)
            # batched over the tour axis (N=8, dk=16 per tour)
            s = jnp.einsum("bqd,bkd->bqk", q3, k3,
                           preferred_element_type=jnp.float32) * scale
            s = s - jnp.max(s, axis=-1, keepdims=True)
            p = jnp.exp(s)
            p = p * pl.reciprocal(jnp.sum(p, axis=-1, keepdims=True), approx=True)
            o = jnp.einsum("bqk,bkd->bqd", p, v3,
                           preferred_element_type=jnp.float32)       # (Bt, N, dv)
            proj = jnp.dot(mx(o.reshape(r, DIM_V)), wo_ref[l, h],
                           preferred_element_type=jnp.float32)       # (R, D)
            attn = proj if attn is None else attn + proj

        y = _layer_norm(x + attn, ln1g_ref[l], ln1b_ref[l])
        f = jnp.dot(mx(y), w1_ref[l],
                    preferred_element_type=jnp.float32) + b1_ref[l]
        f = jnp.maximum(f, 0.0)
        f = jnp.dot(mx(f), w2_ref[l],
                    preferred_element_type=jnp.float32) + b2_ref[l]
        x = _layer_norm(y + f, ln2g_ref[l], ln2b_ref[l])

    # ---- pooling + projections + decoder -------------------------------------
    x3 = x.reshape(bt, n, d)
    maxpool = jnp.max(x3, axis=1)                                    # (Bt, D)
    graph_feat = jnp.dot(mx(maxpool), wg_ref[...],
                         preferred_element_type=jnp.float32)         # (Bt, D)
    node_feat = jnp.dot(mx(x), wn_ref[...],
                        preferred_element_type=jnp.float32)          # (R, D)
    fusion = node_feat.reshape(bt, n, d) + graph_feat[:, None, :]
    mean_f = jnp.mean(fusion, axis=1)                                # (Bt, D)
    h1 = jnp.maximum(
        jnp.dot(mx(mean_f), wd1_ref[...], preferred_element_type=jnp.float32),
        0.0)                                                         # (Bt, H)
    # final (H -> 1) projection as a VPU multiply-reduce (wd2 stored as (1, H))
    out_ref[...] = jnp.sum(h1 * wd2_ref[...], axis=1, keepdims=True)  # (Bt, 1)


def _sinusoidal_pe(n, d):
    pos = np.arange(n, dtype=np.float32)[:, None]
    i = np.arange(d, dtype=np.float32)[None, :]
    angle = pos / np.power(10000.0, (2.0 * np.floor(i / 2.0)) / d)
    pe = np.where((np.arange(d) % 2) == 0, np.sin(angle), np.cos(angle))
    return jnp.asarray(pe, jnp.float32)


def tsp_improve_critic_pallas(problems, solution_indexes, params, *, block_b=None):
    problems = jnp.asarray(problems, jnp.float32)
    sol = jnp.asarray(solution_indexes, jnp.int32)
    B, N, _ = problems.shape
    D, Hid = DIM_MODEL, DIM_HIDDEN
    L, H, DK = N_LAYERS, N_HEAD, DIM_V

    # Batch block per grid step: up to 16 tours => ~128 activation rows at N=8.
    if block_b is None:
        block_b = min(16, _round_up(B, 8))
    Bp = _round_up(B, block_b)
    if Bp != B:
        problems = jnp.pad(problems, ((0, Bp - B), (0, 0), (0, 0)))
        sol = jnp.pad(sol, ((0, Bp - B), (0, 0)))
    nblk = Bp // block_b

    pe_table = _sinusoidal_pe(N, D)

    c_mx = lambda k: params[k].astype(MXU_DTYPE)     # MXU operand weights
    c_f32 = lambda k: params[k].astype(jnp.float32)  # VPU-side params

    rep = lambda rank: (lambda b: (0,) * rank)       # replicated (constant) blocks
    in_specs = [
        pl.BlockSpec((block_b, N, 2), lambda b: (b, 0, 0)),   # problems (coords)
        pl.BlockSpec((block_b, N), lambda b: (b, 0)),         # tour indexes
        pl.BlockSpec((N, D), rep(2)),                         # sinusoidal PE table
        pl.BlockSpec((2, D), rep(2)),                         # w_emb
        pl.BlockSpec((L, H, D, DK), rep(4)),                  # wq
        pl.BlockSpec((L, H, D, DK), rep(4)),                  # wk
        pl.BlockSpec((L, H, D, DK), rep(4)),                  # wv
        pl.BlockSpec((L, H, DK, D), rep(4)),                  # wo
        pl.BlockSpec((L, 1, D), rep(3)),                      # ln1 gamma
        pl.BlockSpec((L, 1, D), rep(3)),                      # ln1 beta
        pl.BlockSpec((L, D, Hid), rep(3)),                    # ffn w1
        pl.BlockSpec((L, 1, Hid), rep(3)),                    # ffn b1
        pl.BlockSpec((L, Hid, D), rep(3)),                    # ffn w2
        pl.BlockSpec((L, 1, D), rep(3)),                      # ffn b2
        pl.BlockSpec((L, 1, D), rep(3)),                      # ln2 gamma
        pl.BlockSpec((L, 1, D), rep(3)),                      # ln2 beta
        pl.BlockSpec((D, D), rep(2)),                         # L_project_graph
        pl.BlockSpec((D, D), rep(2)),                         # L_project_node
        pl.BlockSpec((D, Hid), rep(2)),                       # decoder w1
        pl.BlockSpec((1, Hid), rep(2)),                       # decoder w2 (row)
    ]

    out = pl.pallas_call(
        _critic_kernel,
        out_shape=jax.ShapeDtypeStruct((Bp, 1), jnp.float32),
        grid=(nblk,),
        in_specs=in_specs,
        out_specs=pl.BlockSpec((block_b, 1), lambda b: (b, 0)),
        compiler_params=pltpu.CompilerParams(
            dimension_semantics=("parallel",)),
    )(problems, sol, pe_table,
      c_f32("w_emb"),
      c_mx("wq"), c_mx("wk"), c_mx("wv"), c_mx("wo"),
      c_f32("ln1g"), c_f32("ln1b"),
      c_mx("w1"), c_f32("b1"), c_mx("w2"), c_f32("b2"),
      c_f32("ln2g"), c_f32("ln2b"),
      c_mx("wg"), c_mx("wn"), c_mx("wd1"), c_f32("wd2"))
    return out[:B]


def tsp_improve_critic_reference(problems, solution_indexes, params):
    """Pure-JAX f32 reference (same math) for correctness checking."""
    B, N, _ = problems.shape
    D = DIM_MODEL
    pe = _sinusoidal_pe(N, D)[jnp.argsort(solution_indexes, axis=1)]
    x = jnp.einsum("bnc,cd->bnd", problems, params["w_emb"]) + pe

    def ln(v, g, b):
        mu = jnp.mean(v, axis=-1, keepdims=True)
        var = jnp.mean((v - mu) ** 2, axis=-1, keepdims=True)
        return (v - mu) * jax.lax.rsqrt(var + LN_EPS) * g + b

    for l in range(N_LAYERS):
        attn = jnp.zeros_like(x)
        for h in range(N_HEAD):
            q = x @ params["wq"][l, h]
            k = x @ params["wk"][l, h]
            v = x @ params["wv"][l, h]
            s = jnp.einsum("bqd,bkd->bqk", q, k) / math.sqrt(DIM_V)
            p = jax.nn.softmax(s, axis=-1)
            attn = attn + jnp.einsum("bqk,bkd->bqd", p, v) @ params["wo"][l, h]
        y = ln(x + attn, params["ln1g"][l], params["ln1b"][l])
        f = jax.nn.relu(y @ params["w1"][l] + params["b1"][l]) @ params["w2"][l] \
            + params["b2"][l]
        x = ln(y + f, params["ln2g"][l], params["ln2b"][l])

    maxp = x.max(axis=1)                               # (B, D)
    gfeat = maxp @ params["wg"]                        # (B, D)
    nfeat = x @ params["wn"]                           # (B, N, D)
    fusion = nfeat + gfeat[:, None, :]
    h1 = jax.nn.relu(fusion.mean(axis=1) @ params["wd1"])
    return jnp.sum(h1 * params["wd2"], axis=1, keepdims=True)   # (B, 1)


def _init_params(key):
    ks = jax.random.split(key, 12)
    r = lambda k, s: jax.random.normal(k, s, jnp.float32) * 0.1
    L, D, Hid, H, DK = N_LAYERS, DIM_MODEL, DIM_HIDDEN, N_HEAD, DIM_V
    return {
        "w_emb": r(ks[0], (2, D)),
        "wq": r(ks[1], (L, H, D, DK)),
        "wk": r(ks[2], (L, H, D, DK)),
        "wv": r(ks[3], (L, H, D, DK)),
        "wo": r(ks[4], (L, H, DK, D)),
        "ln1g": jnp.ones((L, 1, D), jnp.float32),
        "ln1b": jnp.zeros((L, 1, D), jnp.float32),
        "w1": r(ks[5], (L, D, Hid)),
        "b1": jnp.zeros((L, 1, Hid), jnp.float32),
        "w2": r(ks[6], (L, Hid, D)),
        "b2": jnp.zeros((L, 1, D), jnp.float32),
        "ln2g": jnp.ones((L, 1, D), jnp.float32),
        "ln2b": jnp.zeros((L, 1, D), jnp.float32),
        "wg": r(ks[7], (D, D)),
        "wn": r(ks[8], (D, D)),
        "wd1": r(ks[9], (D, Hid)),
        "wd2": r(ks[10], (1, Hid)),
    }


if __name__ == "__main__":
    B, N = 2, 8
    key = jax.random.PRNGKey(0)
    k_param, k_prob, k_sol = jax.random.split(key, 3)

    params = _init_params(k_param)
    problems = jax.random.uniform(k_prob, (B, N, 2), jnp.float32)   # node coords
    sol_keys = jax.random.split(k_sol, B)
    solution_indexes = jnp.stack(
        [jax.random.permutation(k, N).astype(jnp.int32) for k in sol_keys])

    value = jax.block_until_ready(
        tsp_improve_critic_pallas(problems, solution_indexes, params))
    ref = jax.block_until_ready(
        tsp_improve_critic_reference(problems, solution_indexes, params))

    assert value.shape == (B, 1), value.shape
    assert bool(jnp.all(jnp.isfinite(value)))
    # bf16 MXU operands + approx reciprocal vs. f32 reference
    assert bool(jnp.allclose(value, ref, rtol=5e-2, atol=2e-2)), (value, ref)

    print("KERNEL_OK")
</pallas_src>

<mosaic_0001>
module attributes {stable_mosaic.version = 11 : i64} {
  func.func @_critic_kernel(%arg0: i32, %arg1: memref<8x8x2xf32, #tpu.memory_space<vmem>>, %arg2: memref<8x8xi32, #tpu.memory_space<vmem>>, %arg3: memref<8x32xf32, #tpu.memory_space<vmem>>, %arg4: memref<2x32xf32, #tpu.memory_space<vmem>>, %arg5: memref<2x2x32x16xbf16, #tpu.memory_space<vmem>>, %arg6: memref<2x2x32x16xbf16, #tpu.memory_space<vmem>>, %arg7: memref<2x2x32x16xbf16, #tpu.memory_space<vmem>>, %arg8: memref<2x2x16x32xbf16, #tpu.memory_space<vmem>>, %arg9: memref<2x1x32xf32, #tpu.memory_space<vmem>>, %arg10: memref<2x1x32xf32, #tpu.memory_space<vmem>>, %arg11: memref<2x32x64xbf16, #tpu.memory_space<vmem>>, %arg12: memref<2x1x64xf32, #tpu.memory_space<vmem>>, %arg13: memref<2x64x32xbf16, #tpu.memory_space<vmem>>, %arg14: memref<2x1x32xf32, #tpu.memory_space<vmem>>, %arg15: memref<2x1x32xf32, #tpu.memory_space<vmem>>, %arg16: memref<2x1x32xf32, #tpu.memory_space<vmem>>, %arg17: memref<32x32xbf16, #tpu.memory_space<vmem>>, %arg18: memref<32x32xbf16, #tpu.memory_space<vmem>>, %arg19: memref<32x64xbf16, #tpu.memory_space<vmem>>, %arg20: memref<1x64xf32, #tpu.memory_space<vmem>>, %arg21: memref<8x1xf32, #tpu.memory_space<vmem>>) attributes {dimension_semantics = [#tpu.dimension_semantics<parallel>], iteration_bounds = array<i64: 1>, scalar_prefetch = 0 : i64, scratch_operands = 0 : i64, tpu.core_type = #tpu.core_type<tc>, window_params = [{transform_indices = @transform_0, window_bounds = array<i64: 8, 8, 2>}, {transform_indices = @transform_1, window_bounds = array<i64: 8, 8>}, {pipeline_mode = #tpu.pipeline_mode<synchronous>, transform_indices = @transform_2, window_bounds = array<i64: 8, 32>}, {pipeline_mode = #tpu.pipeline_mode<synchronous>, transform_indices = @transform_3, window_bounds = array<i64: 2, 32>}, {pipeline_mode = #tpu.pipeline_mode<synchronous>, transform_indices = @transform_4, window_bounds = array<i64: 2, 2, 32, 16>}, {pipeline_mode = #tpu.pipeline_mode<synchronous>, transform_indices = @transform_5, window_bounds = array<i64: 2, 2, 32, 16>}, {pipeline_mode = #tpu.pipeline_mode<synchronous>, transform_indices = @transform_6, window_bounds = array<i64: 2, 2, 32, 16>}, {pipeline_mode = #tpu.pipeline_mode<synchronous>, transform_indices = @transform_7, window_bounds = array<i64: 2, 2, 16, 32>}, {pipeline_mode = #tpu.pipeline_mode<synchronous>, transform_indices = @transform_8, window_bounds = array<i64: 2, 1, 32>}, {pipeline_mode = #tpu.pipeline_mode<synchronous>, transform_indices = @transform_9, window_bounds = array<i64: 2, 1, 32>}, {pipeline_mode = #tpu.pipeline_mode<synchronous>, transform_indices = @transform_10, window_bounds = array<i64: 2, 32, 64>}, {pipeline_mode = #tpu.pipeline_mode<synchronous>, transform_indices = @transform_11, window_bounds = array<i64: 2, 1, 64>}, {pipeline_mode = #tpu.pipeline_mode<synchronous>, transform_indices = @transform_12, window_bounds = array<i64: 2, 64, 32>}, {pipeline_mode = #tpu.pipeline_mode<synchronous>, transform_indices = @transform_13, window_bounds = array<i64: 2, 1, 32>}, {pipeline_mode = #tpu.pipeline_mode<synchronous>, transform_indices = @transform_14, window_bounds = array<i64: 2, 1, 32>}, {pipeline_mode = #tpu.pipeline_mode<synchronous>, transform_indices = @transform_15, window_bounds = array<i64: 2, 1, 32>}, {pipeline_mode = #tpu.pipeline_mode<synchronous>, transform_indices = @transform_16, window_bounds = array<i64: 32, 32>}, {pipeline_mode = #tpu.pipeline_mode<synchronous>, transform_indices = @transform_17, window_bounds = array<i64: 32, 32>}, {pipeline_mode = #tpu.pipeline_mode<synchronous>, transform_indices = @transform_18, window_bounds = array<i64: 32, 64>}, {pipeline_mode = #tpu.pipeline_mode<synchronous>, transform_indices = @transform_19, window_bounds = array<i64: 1, 64>}, {transform_indices = @transform_20, window_bounds = array<i64: 8, 1>}]} {
    %c0 = arith.constant 0 : index
    %c0_0 = arith.constant 0 : index
    %c0_1 = arith.constant 0 : index
    %0 = vector.load %arg1[%c0, %c0_0, %c0_1] : memref<8x8x2xf32, #tpu.memory_space<vmem>>, vector<8x8x2xf32>
    %1 = vector.shape_cast %0 : vector<8x8x2xf32> to vector<64x2xf32>
    %c0_2 = arith.constant 0 : index
    %c0_3 = arith.constant 0 : index
    %2 = vector.load %arg4[%c0_2, %c0_3] : memref<2x32xf32, #tpu.memory_space<vmem>>, vector<2x32xf32>
    %3 = vector.extract_strided_slice %1 {offsets = [0, 0], sizes = [64, 1], strides = [1, 1]} : vector<64x2xf32> to vector<64x1xf32>
    %4 = vector.extract_strided_slice %2 {offsets = [0, 0], sizes = [1, 32], strides = [1, 1]} : vector<2x32xf32> to vector<1x32xf32>
    %5 = vector.broadcast %3 : vector<64x1xf32> to vector<64x32xf32>
    %6 = vector.broadcast %4 : vector<1x32xf32> to vector<64x32xf32>
    %7 = arith.mulf %5, %6 : vector<64x32xf32>
    %8 = vector.extract_strided_slice %1 {offsets = [0, 1], sizes = [64, 1], strides = [1, 1]} : vector<64x2xf32> to vector<64x1xf32>
    %9 = vector.extract_strided_slice %2 {offsets = [1, 0], sizes = [1, 32], strides = [1, 1]} : vector<2x32xf32> to vector<1x32xf32>
    %10 = vector.broadcast %8 : vector<64x1xf32> to vector<64x32xf32>
    %11 = vector.broadcast %9 : vector<1x32xf32> to vector<64x32xf32>
    %12 = arith.mulf %10, %11 : vector<64x32xf32>
    %13 = arith.addf %7, %12 : vector<64x32xf32>
    %c0_4 = arith.constant 0 : index
    %c0_5 = arith.constant 0 : index
    %14 = vector.load %arg2[%c0_4, %c0_5] : memref<8x8xi32, #tpu.memory_space<vmem>>, vector<8x8xi32>
    %15 = tpu.iota {dimensions = array<i32: 1>} : vector<8x8x8xi32>
    %16 = vector.shape_cast %14 : vector<8x8xi32> to vector<8x1x8xi32>
    %17 = vector.broadcast %16 : vector<8x1x8xi32> to vector<8x8x8xi32>
    %18 = arith.cmpi eq, %15, %17 : vector<8x8x8xi32>
    %19 = arith.extui %18 : vector<8x8x8xi1> to vector<8x8x8xi32>
    %20 = arith.sitofp %19 : vector<8x8x8xi32> to vector<8x8x8xf32>
    %21 = vector.shape_cast %20 : vector<8x8x8xf32> to vector<64x8xf32>
    %c0_6 = arith.constant 0 : index
    %c0_7 = arith.constant 0 : index
    %22 = vector.load %arg3[%c0_6, %c0_7] : memref<8x32xf32, #tpu.memory_space<vmem>>, vector<8x32xf32>
    %cst = arith.constant dense<0.000000e+00> : vector<64x32xf32>
    %23 = tpu.matmul %21, %22, %cst {dimension_numbers = #tpu.dot_dimension_numbers<[1], [0], [0], [1], [0, 0, 1, 1], [], []>} : vector<64x8xf32>, vector<8x32xf32>, vector<64x32xf32> -> vector<64x32xf32>
    %24 = arith.addf %13, %23 : vector<64x32xf32>
    %25 = arith.truncf %24 : vector<64x32xf32> to vector<64x32xbf16>
    %c0_8 = arith.constant 0 : index
    %c0_9 = arith.constant 0 : index
    %c0_10 = arith.constant 0 : index
    %c0_11 = arith.constant 0 : index
    %26 = vector.load %arg5[%c0_8, %c0_9, %c0_10, %c0_11] : memref<2x2x32x16xbf16, #tpu.memory_space<vmem>>, vector<1x1x32x16xbf16>
    %27 = vector.shape_cast %26 : vector<1x1x32x16xbf16> to vector<32x16xbf16>
    %cst_12 = arith.constant dense<0.000000e+00> : vector<64x16xf32>
    %28 = tpu.matmul %25, %27, %cst_12 {dimension_numbers = #tpu.dot_dimension_numbers<[1], [0], [0], [1], [0, 0, 1, 1], [], []>} : vector<64x32xbf16>, vector<32x16xbf16>, vector<64x16xf32> -> vector<64x16xf32>
    %c0_13 = arith.constant 0 : index
    %c0_14 = arith.constant 0 : index
    %c0_15 = arith.constant 0 : index
    %c0_16 = arith.constant 0 : index
    %29 = vector.load %arg6[%c0_13, %c0_14, %c0_15, %c0_16] : memref<2x2x32x16xbf16, #tpu.memory_space<vmem>>, vector<1x1x32x16xbf16>
    %30 = vector.shape_cast %29 : vector<1x1x32x16xbf16> to vector<32x16xbf16>
    %cst_17 = arith.constant dense<0.000000e+00> : vector<64x16xf32>
    %31 = tpu.matmul %25, %30, %cst_17 {dimension_numbers = #tpu.dot_dimension_numbers<[1], [0], [0], [1], [0, 0, 1, 1], [], []>} : vector<64x32xbf16>, vector<32x16xbf16>, vector<64x16xf32> -> vector<64x16xf32>
    %c0_18 = arith.constant 0 : index
    %c0_19 = arith.constant 0 : index
    %c0_20 = arith.constant 0 : index
    %c0_21 = arith.constant 0 : index
    %32 = vector.load %arg7[%c0_18, %c0_19, %c0_20, %c0_21] : memref<2x2x32x16xbf16, #tpu.memory_space<vmem>>, vector<1x1x32x16xbf16>
    %33 = vector.shape_cast %32 : vector<1x1x32x16xbf16> to vector<32x16xbf16>
    %cst_22 = arith.constant dense<0.000000e+00> : vector<64x16xf32>
    %34 = tpu.matmul %25, %33, %cst_22 {dimension_numbers = #tpu.dot_dimension_numbers<[1], [0], [0], [1], [0, 0, 1, 1], [], []>} : vector<64x32xbf16>, vector<32x16xbf16>, vector<64x16xf32> -> vector<64x16xf32>
    %35 = vector.shape_cast %28 : vector<64x16xf32> to vector<8x8x16xf32>
    %36 = vector.shape_cast %31 : vector<64x16xf32> to vector<8x8x16xf32>
    %37 = vector.shape_cast %34 : vector<64x16xf32> to vector<8x8x16xf32>
    "tpu.trace_start"() <{level = 10 : i32, message = "bqd,bkd->bqk"}> : () -> ()
    %cst_23 = arith.constant dense<0.000000e+00> : vector<8x8x8xf32>
    %38 = tpu.matmul %35, %36, %cst_23 {dimension_numbers = #tpu.dot_dimension_numbers<[2], [2], [1], [1], [0, 0, 0, 1, 1, 1], [0], [0]>} : vector<8x8x16xf32>, vector<8x8x16xf32>, vector<8x8x8xf32> -> vector<8x8x8xf32>
    "tpu.trace_stop"() : () -> ()
    %cst_24 = arith.constant 2.500000e-01 : f32
    %39 = vector.broadcast %cst_24 : f32 to vector<8x8x8xf32>
    %40 = arith.mulf %38, %39 : vector<8x8x8xf32>
    %cst_25 = arith.constant dense<0xFF800000> : vector<8x8xf32>
    %41 = vector.multi_reduction <maximumf>, %40, %cst_25 [2] : vector<8x8x8xf32> to vector<8x8xf32>
    %42 = vector.shape_cast %41 : vector<8x8xf32> to vector<8x8x1xf32>
    %43 = vector.broadcast %42 : vector<8x8x1xf32> to vector<8x8x8xf32>
    %44 = arith.subf %40, %43 : vector<8x8x8xf32>
    %45 = math.exp %44 : vector<8x8x8xf32>
    %cst_26 = arith.constant dense<0.000000e+00> : vector<8x8xf32>
    %46 = vector.multi_reduction <add>, %45, %cst_26 [2] : vector<8x8x8xf32> to vector<8x8xf32>
    %47 = vector.shape_cast %46 : vector<8x8xf32> to vector<8x8x1xf32>
    %48 = tpu.reciprocal %47 {approx = true} : vector<8x8x1xf32> -> vector<8x8x1xf32>
    %49 = vector.broadcast %48 : vector<8x8x1xf32> to vector<8x8x8xf32>
    %50 = arith.mulf %45, %49 : vector<8x8x8xf32>
    "tpu.trace_start"() <{level = 10 : i32, message = "bqk,bkd->bqd"}> : () -> ()
    %cst_27 = arith.constant dense<0.000000e+00> : vector<8x8x16xf32>
    %51 = tpu.matmul %50, %37, %cst_27 {dimension_numbers = #tpu.dot_dimension_numbers<[2], [1], [1], [2], [0, 0, 0, 1, 1, 2], [0], [0]>} : vector<8x8x8xf32>, vector<8x8x16xf32>, vector<8x8x16xf32> -> vector<8x8x16xf32>
    "tpu.trace_stop"() : () -> ()
    %52 = vector.shape_cast %51 : vector<8x8x16xf32> to vector<64x16xf32>
    %53 = arith.truncf %52 : vector<64x16xf32> to vector<64x16xbf16>
    %c0_28 = arith.constant 0 : index
    %c0_29 = arith.constant 0 : index
    %c0_30 = arith.constant 0 : index
    %c0_31 = arith.constant 0 : index
    %54 = vector.load %arg8[%c0_28, %c0_29, %c0_30, %c0_31] : memref<2x2x16x32xbf16, #tpu.memory_space<vmem>>, vector<1x1x16x32xbf16>
    %55 = vector.shape_cast %54 : vector<1x1x16x32xbf16> to vector<16x32xbf16>
    %cst_32 = arith.constant dense<0.000000e+00> : vector<64x32xf32>
    %56 = tpu.matmul %53, %55, %cst_32 {dimension_numbers = #tpu.dot_dimension_numbers<[1], [0], [0], [1], [0, 0, 1, 1], [], []>} : vector<64x16xbf16>, vector<16x32xbf16>, vector<64x32xf32> -> vector<64x32xf32>
    %c0_33 = arith.constant 0 : index
    %c1 = arith.constant 1 : index
    %c0_34 = arith.constant 0 : index
    %c0_35 = arith.constant 0 : index
    %57 = vector.load %arg5[%c0_33, %c1, %c0_34, %c0_35] : memref<2x2x32x16xbf16, #tpu.memory_space<vmem>>, vector<1x1x32x16xbf16>
    %58 = vector.shape_cast %57 : vector<1x1x32x16xbf16> to vector<32x16xbf16>
    %cst_36 = arith.constant dense<0.000000e+00> : vector<64x16xf32>
    %59 = tpu.matmul %25, %58, %cst_36 {dimension_numbers = #tpu.dot_dimension_numbers<[1], [0], [0], [1], [0, 0, 1, 1], [], []>} : vector<64x32xbf16>, vector<32x16xbf16>, vector<64x16xf32> -> vector<64x16xf32>
    %c0_37 = arith.constant 0 : index
    %c1_38 = arith.constant 1 : index
    %c0_39 = arith.constant 0 : index
    %c0_40 = arith.constant 0 : index
    %60 = vector.load %arg6[%c0_37, %c1_38, %c0_39, %c0_40] : memref<2x2x32x16xbf16, #tpu.memory_space<vmem>>, vector<1x1x32x16xbf16>
    %61 = vector.shape_cast %60 : vector<1x1x32x16xbf16> to vector<32x16xbf16>
    %cst_41 = arith.constant dense<0.000000e+00> : vector<64x16xf32>
    %62 = tpu.matmul %25, %61, %cst_41 {dimension_numbers = #tpu.dot_dimension_numbers<[1], [0], [0], [1], [0, 0, 1, 1], [], []>} : vector<64x32xbf16>, vector<32x16xbf16>, vector<64x16xf32> -> vector<64x16xf32>
    %c0_42 = arith.constant 0 : index
    %c1_43 = arith.constant 1 : index
    %c0_44 = arith.constant 0 : index
    %c0_45 = arith.constant 0 : index
    %63 = vector.load %arg7[%c0_42, %c1_43, %c0_44, %c0_45] : memref<2x2x32x16xbf16, #tpu.memory_space<vmem>>, vector<1x1x32x16xbf16>
    %64 = vector.shape_cast %63 : vector<1x1x32x16xbf16> to vector<32x16xbf16>
    %cst_46 = arith.constant dense<0.000000e+00> : vector<64x16xf32>
    %65 = tpu.matmul %25, %64, %cst_46 {dimension_numbers = #tpu.dot_dimension_numbers<[1], [0], [0], [1], [0, 0, 1, 1], [], []>} : vector<64x32xbf16>, vector<32x16xbf16>, vector<64x16xf32> -> vector<64x16xf32>
    %66 = vector.shape_cast %59 : vector<64x16xf32> to vector<8x8x16xf32>
    %67 = vector.shape_cast %62 : vector<64x16xf32> to vector<8x8x16xf32>
    %68 = vector.shape_cast %65 : vector<64x16xf32> to vector<8x8x16xf32>
    "tpu.trace_start"() <{level = 10 : i32, message = "bqd,bkd->bqk"}> : () -> ()
    %cst_47 = arith.constant dense<0.000000e+00> : vector<8x8x8xf32>
    %69 = tpu.matmul %66, %67, %cst_47 {dimension_numbers = #tpu.dot_dimension_numbers<[2], [2], [1], [1], [0, 0, 0, 1, 1, 1], [0], [0]>} : vector<8x8x16xf32>, vector<8x8x16xf32>, vector<8x8x8xf32> -> vector<8x8x8xf32>
    "tpu.trace_stop"() : () -> ()
    %cst_48 = arith.constant 2.500000e-01 : f32
    %70 = vector.broadcast %cst_48 : f32 to vector<8x8x8xf32>
    %71 = arith.mulf %69, %70 : vector<8x8x8xf32>
    %cst_49 = arith.constant dense<0xFF800000> : vector<8x8xf32>
    %72 = vector.multi_reduction <maximumf>, %71, %cst_49 [2] : vector<8x8x8xf32> to vector<8x8xf32>
    %73 = vector.shape_cast %72 : vector<8x8xf32> to vector<8x8x1xf32>
    %74 = vector.broadcast %73 : vector<8x8x1xf32> to vector<8x8x8xf32>
    %75 = arith.subf %71, %74 : vector<8x8x8xf32>
    %76 = math.exp %75 : vector<8x8x8xf32>
    %cst_50 = arith.constant dense<0.000000e+00> : vector<8x8xf32>
    %77 = vector.multi_reduction <add>, %76, %cst_50 [2] : vector<8x8x8xf32> to vector<8x8xf32>
    %78 = vector.shape_cast %77 : vector<8x8xf32> to vector<8x8x1xf32>
    %79 = tpu.reciprocal %78 {approx = true} : vector<8x8x1xf32> -> vector<8x8x1xf32>
    %80 = vector.broadcast %79 : vector<8x8x1xf32> to vector<8x8x8xf32>
    %81 = arith.mulf %76, %80 : vector<8x8x8xf32>
    "tpu.trace_start"() <{level = 10 : i32, message = "bqk,bkd->bqd"}> : () -> ()
    %cst_51 = arith.constant dense<0.000000e+00> : vector<8x8x16xf32>
    %82 = tpu.matmul %81, %68, %cst_51 {dimension_numbers = #tpu.dot_dimension_numbers<[2], [1], [1], [2], [0, 0, 0, 1, 1, 2], [0], [0]>} : vector<8x8x8xf32>, vector<8x8x16xf32>, vector<8x8x16xf32> -> vector<8x8x16xf32>
    "tpu.trace_stop"() : () -> ()
    %83 = vector.shape_cast %82 : vector<8x8x16xf32> to vector<64x16xf32>
    %84 = arith.truncf %83 : vector<64x16xf32> to vector<64x16xbf16>
    %c0_52 = arith.constant 0 : index
    %c1_53 = arith.constant 1 : index
    %c0_54 = arith.constant 0 : index
    %c0_55 = arith.constant 0 : index
    %85 = vector.load %arg8[%c0_52, %c1_53, %c0_54, %c0_55] : memref<2x2x16x32xbf16, #tpu.memory_space<vmem>>, vector<1x1x16x32xbf16>
    %86 = vector.shape_cast %85 : vector<1x1x16x32xbf16> to vector<16x32xbf16>
    %cst_56 = arith.constant dense<0.000000e+00> : vector<64x32xf32>
    %87 = tpu.matmul %84, %86, %cst_56 {dimension_numbers = #tpu.dot_dimension_numbers<[1], [0], [0], [1], [0, 0, 1, 1], [], []>} : vector<64x16xbf16>, vector<16x32xbf16>, vector<64x32xf32> -> vector<64x32xf32>
    %88 = arith.addf %56, %87 : vector<64x32xf32>
    %89 = arith.addf %24, %88 : vector<64x32xf32>
    %c0_57 = arith.constant 0 : index
    %c0_58 = arith.constant 0 : index
    %c0_59 = arith.constant 0 : index
    %90 = vector.load %arg9[%c0_57, %c0_58, %c0_59] : memref<2x1x32xf32, #tpu.memory_space<vmem>>, vector<1x1x32xf32>
    %91 = vector.shape_cast %90 : vector<1x1x32xf32> to vector<1x32xf32>
    %c0_60 = arith.constant 0 : index
    %c0_61 = arith.constant 0 : index
    %c0_62 = arith.constant 0 : index
    %92 = vector.load %arg10[%c0_60, %c0_61, %c0_62] : memref<2x1x32xf32, #tpu.memory_space<vmem>>, vector<1x1x32xf32>
    %93 = vector.shape_cast %92 : vector<1x1x32xf32> to vector<1x32xf32>
    %cst_63 = arith.constant dense<0.000000e+00> : vector<64xf32>
    %94 = vector.multi_reduction <add>, %89, %cst_63 [1] : vector<64x32xf32> to vector<64xf32>
    %95 = vector.shape_cast %94 : vector<64xf32> to vector<64x1xf32>
    %cst_64 = arith.constant 3.200000e+01 : f32
    %96 = vector.broadcast %cst_64 : f32 to vector<64x1xf32>
    %97 = arith.divf %95, %96 : vector<64x1xf32>
    %98 = vector.broadcast %97 : vector<64x1xf32> to vector<64x32xf32>
    %99 = arith.subf %89, %98 : vector<64x32xf32>
    %100 = arith.mulf %99, %99 : vector<64x32xf32>
    %cst_65 = arith.constant dense<0.000000e+00> : vector<64xf32>
    %101 = vector.multi_reduction <add>, %100, %cst_65 [1] : vector<64x32xf32> to vector<64xf32>
    %102 = vector.shape_cast %101 : vector<64xf32> to vector<64x1xf32>
    %cst_66 = arith.constant 3.200000e+01 : f32
    %103 = vector.broadcast %cst_66 : f32 to vector<64x1xf32>
    %104 = arith.divf %102, %103 : vector<64x1xf32>
    %105 = vector.broadcast %97 : vector<64x1xf32> to vector<64x32xf32>
    %106 = arith.subf %89, %105 : vector<64x32xf32>
    %cst_67 = arith.constant 9.99999974E-6 : f32
    %107 = vector.broadcast %cst_67 : f32 to vector<64x1xf32>
    %108 = arith.addf %104, %107 : vector<64x1xf32>
    %109 = math.rsqrt %108 : vector<64x1xf32>
    %110 = vector.broadcast %109 : vector<64x1xf32> to vector<64x32xf32>
    %111 = arith.mulf %106, %110 : vector<64x32xf32>
    %112 = vector.broadcast %91 : vector<1x32xf32> to vector<64x32xf32>
    %113 = arith.mulf %111, %112 : vector<64x32xf32>
    %114 = vector.broadcast %93 : vector<1x32xf32> to vector<64x32xf32>
    %115 = arith.addf %113, %114 : vector<64x32xf32>
    %116 = arith.truncf %115 : vector<64x32xf32> to vector<64x32xbf16>
    %c0_68 = arith.constant 0 : index
    %c0_69 = arith.constant 0 : index
    %c0_70 = arith.constant 0 : index
    %117 = vector.load %arg11[%c0_68, %c0_69, %c0_70] : memref<2x32x64xbf16, #tpu.memory_space<vmem>>, vector<1x32x64xbf16>
    %118 = vector.shape_cast %117 : vector<1x32x64xbf16> to vector<32x64xbf16>
    %cst_71 = arith.constant dense<0.000000e+00> : vector<64x64xf32>
    %119 = tpu.matmul %116, %118, %cst_71 {dimension_numbers = #tpu.dot_dimension_numbers<[1], [0], [0], [1], [0, 0, 1, 1], [], []>} : vector<64x32xbf16>, vector<32x64xbf16>, vector<64x64xf32> -> vector<64x64xf32>
    %c0_72 = arith.constant 0 : index
    %c0_73 = arith.constant 0 : index
    %c0_74 = arith.constant 0 : index
    %120 = vector.load %arg12[%c0_72, %c0_73, %c0_74] : memref<2x1x64xf32, #tpu.memory_space<vmem>>, vector<1x1x64xf32>
    %121 = vector.shape_cast %120 : vector<1x1x64xf32> to vector<1x64xf32>
    %122 = vector.broadcast %121 : vector<1x64xf32> to vector<64x64xf32>
    %123 = arith.addf %119, %122 : vector<64x64xf32>
    %cst_75 = arith.constant 0.000000e+00 : f32
    %124 = vector.broadcast %cst_75 : f32 to vector<64x64xf32>
    %125 = arith.maximumf %123, %124 : vector<64x64xf32>
    %126 = arith.truncf %125 : vector<64x64xf32> to vector<64x64xbf16>
    %c0_76 = arith.constant 0 : index
    %c0_77 = arith.constant 0 : index
    %c0_78 = arith.constant 0 : index
    %127 = vector.load %arg13[%c0_76, %c0_77, %c0_78] : memref<2x64x32xbf16, #tpu.memory_space<vmem>>, vector<1x64x32xbf16>
    %128 = vector.shape_cast %127 : vector<1x64x32xbf16> to vector<64x32xbf16>
    %cst_79 = arith.constant dense<0.000000e+00> : vector<64x32xf32>
    %129 = tpu.matmul %126, %128, %cst_79 {dimension_numbers = #tpu.dot_dimension_numbers<[1], [0], [0], [1], [0, 0, 1, 1], [], []>} : vector<64x64xbf16>, vector<64x32xbf16>, vector<64x32xf32> -> vector<64x32xf32>
    %c0_80 = arith.constant 0 : index
    %c0_81 = arith.constant 0 : index
    %c0_82 = arith.constant 0 : index
    %130 = vector.load %arg14[%c0_80, %c0_81, %c0_82] : memref<2x1x32xf32, #tpu.memory_space<vmem>>, vector<1x1x32xf32>
    %131 = vector.shape_cast %130 : vector<1x1x32xf32> to vector<1x32xf32>
    %132 = vector.broadcast %131 : vector<1x32xf32> to vector<64x32xf32>
    %133 = arith.addf %129, %132 : vector<64x32xf32>
    %134 = arith.addf %115, %133 : vector<64x32xf32>
    %c0_83 = arith.constant 0 : index
    %c0_84 = arith.constant 0 : index
    %c0_85 = arith.constant 0 : index
    %135 = vector.load %arg15[%c0_83, %c0_84, %c0_85] : memref<2x1x32xf32, #tpu.memory_space<vmem>>, vector<1x1x32xf32>
    %136 = vector.shape_cast %135 : vector<1x1x32xf32> to vector<1x32xf32>
    %c0_86 = arith.constant 0 : index
    %c0_87 = arith.constant 0 : index
    %c0_88 = arith.constant 0 : index
    %137 = vector.load %arg16[%c0_86, %c0_87, %c0_88] : memref<2x1x32xf32, #tpu.memory_space<vmem>>, vector<1x1x32xf32>
    %138 = vector.shape_cast %137 : vector<1x1x32xf32> to vector<1x32xf32>
    %cst_89 = arith.constant dense<0.000000e+00> : vector<64xf32>
    %139 = vector.multi_reduction <add>, %134, %cst_89 [1] : vector<64x32xf32> to vector<64xf32>
    %140 = vector.shape_cast %139 : vector<64xf32> to vector<64x1xf32>
    %cst_90 = arith.constant 3.200000e+01 : f32
    %141 = vector.broadcast %cst_90 : f32 to vector<64x1xf32>
    %142 = arith.divf %140, %141 : vector<64x1xf32>
    %143 = vector.broadcast %142 : vector<64x1xf32> to vector<64x32xf32>
    %144 = arith.subf %134, %143 : vector<64x32xf32>
    %145 = arith.mulf %144, %144 : vector<64x32xf32>
    %cst_91 = arith.constant dense<0.000000e+00> : vector<64xf32>
    %146 = vector.multi_reduction <add>, %145, %cst_91 [1] : vector<64x32xf32> to vector<64xf32>
    %147 = vector.shape_cast %146 : vector<64xf32> to vector<64x1xf32>
    %cst_92 = arith.constant 3.200000e+01 : f32
    %148 = vector.broadcast %cst_92 : f32 to vector<64x1xf32>
    %149 = arith.divf %147, %148 : vector<64x1xf32>
    %150 = vector.broadcast %142 : vector<64x1xf32> to vector<64x32xf32>
    %151 = arith.subf %134, %150 : vector<64x32xf32>
    %cst_93 = arith.constant 9.99999974E-6 : f32
    %152 = vector.broadcast %cst_93 : f32 to vector<64x1xf32>
    %153 = arith.addf %149, %152 : vector<64x1xf32>
    %154 = math.rsqrt %153 : vector<64x1xf32>
    %155 = vector.broadcast %154 : vector<64x1xf32> to vector<64x32xf32>
    %156 = arith.mulf %151, %155 : vector<64x32xf32>
    %157 = vector.broadcast %136 : vector<1x32xf32> to vector<64x32xf32>
    %158 = arith.mulf %156, %157 : vector<64x32xf32>
    %159 = vector.broadcast %138 : vector<1x32xf32> to vector<64x32xf32>
    %160 = arith.addf %158, %159 : vector<64x32xf32>
    %161 = arith.truncf %160 : vector<64x32xf32> to vector<64x32xbf16>
    %c1_94 = arith.constant 1 : index
    %c0_95 = arith.constant 0 : index
    %c0_96 = arith.constant 0 : index
    %c0_97 = arith.constant 0 : index
    %162 = vector.load %arg5[%c1_94, %c0_95, %c0_96, %c0_97] : memref<2x2x32x16xbf16, #tpu.memory_space<vmem>>, vector<1x1x32x16xbf16>
    %163 = vector.shape_cast %162 : vector<1x1x32x16xbf16> to vector<32x16xbf16>
    %cst_98 = arith.constant dense<0.000000e+00> : vector<64x16xf32>
    %164 = tpu.matmul %161, %163, %cst_98 {dimension_numbers = #tpu.dot_dimension_numbers<[1], [0], [0], [1], [0, 0, 1, 1], [], []>} : vector<64x32xbf16>, vector<32x16xbf16>, vector<64x16xf32> -> vector<64x16xf32>
    %c1_99 = arith.constant 1 : index
    %c0_100 = arith.constant 0 : index
    %c0_101 = arith.constant 0 : index
    %c0_102 = arith.constant 0 : index
    %165 = vector.load %arg6[%c1_99, %c0_100, %c0_101, %c0_102] : memref<2x2x32x16xbf16, #tpu.memory_space<vmem>>, vector<1x1x32x16xbf16>
    %166 = vector.shape_cast %165 : vector<1x1x32x16xbf16> to vector<32x16xbf16>
    %cst_103 = arith.constant dense<0.000000e+00> : vector<64x16xf32>
    %167 = tpu.matmul %161, %166, %cst_103 {dimension_numbers = #tpu.dot_dimension_numbers<[1], [0], [0], [1], [0, 0, 1, 1], [], []>} : vector<64x32xbf16>, vector<32x16xbf16>, vector<64x16xf32> -> vector<64x16xf32>
    %c1_104 = arith.constant 1 : index
    %c0_105 = arith.constant 0 : index
    %c0_106 = arith.constant 0 : index
    %c0_107 = arith.constant 0 : index
    %168 = vector.load %arg7[%c1_104, %c0_105, %c0_106, %c0_107] : memref<2x2x32x16xbf16, #tpu.memory_space<vmem>>, vector<1x1x32x16xbf16>
    %169 = vector.shape_cast %168 : vector<1x1x32x16xbf16> to vector<32x16xbf16>
    %cst_108 = arith.constant dense<0.000000e+00> : vector<64x16xf32>
    %170 = tpu.matmul %161, %169, %cst_108 {dimension_numbers = #tpu.dot_dimension_numbers<[1], [0], [0], [1], [0, 0, 1, 1], [], []>} : vector<64x32xbf16>, vector<32x16xbf16>, vector<64x16xf32> -> vector<64x16xf32>
    %171 = vector.shape_cast %164 : vector<64x16xf32> to vector<8x8x16xf32>
    %172 = vector.shape_cast %167 : vector<64x16xf32> to vector<8x8x16xf32>
    %173 = vector.shape_cast %170 : vector<64x16xf32> to vector<8x8x16xf32>
    "tpu.trace_start"() <{level = 10 : i32, message = "bqd,bkd->bqk"}> : () -> ()
    %cst_109 = arith.constant dense<0.000000e+00> : vector<8x8x8xf32>
    %174 = tpu.matmul %171, %172, %cst_109 {dimension_numbers = #tpu.dot_dimension_numbers<[2], [2], [1], [1], [0, 0, 0, 1, 1, 1], [0], [0]>} : vector<8x8x16xf32>, vector<8x8x16xf32>, vector<8x8x8xf32> -> vector<8x8x8xf32>
    "tpu.trace_stop"() : () -> ()
    %cst_110 = arith.constant 2.500000e-01 : f32
    %175 = vector.broadcast %cst_110 : f32 to vector<8x8x8xf32>
    %176 = arith.mulf %174, %175 : vector<8x8x8xf32>
    %cst_111 = arith.constant dense<0xFF800000> : vector<8x8xf32>
    %177 = vector.multi_reduction <maximumf>, %176, %cst_111 [2] : vector<8x8x8xf32> to vector<8x8xf32>
    %178 = vector.shape_cast %177 : vector<8x8xf32> to vector<8x8x1xf32>
    %179 = vector.broadcast %178 : vector<8x8x1xf32> to vector<8x8x8xf32>
    %180 = arith.subf %176, %179 : vector<8x8x8xf32>
    %181 = math.exp %180 : vector<8x8x8xf32>
    %cst_112 = arith.constant dense<0.000000e+00> : vector<8x8xf32>
    %182 = vector.multi_reduction <add>, %181, %cst_112 [2] : vector<8x8x8xf32> to vector<8x8xf32>
    %183 = vector.shape_cast %182 : vector<8x8xf32> to vector<8x8x1xf32>
    %184 = tpu.reciprocal %183 {approx = true} : vector<8x8x1xf32> -> vector<8x8x1xf32>
    %185 = vector.broadcast %184 : vector<8x8x1xf32> to vector<8x8x8xf32>
    %186 = arith.mulf %181, %185 : vector<8x8x8xf32>
    "tpu.trace_start"() <{level = 10 : i32, message = "bqk,bkd->bqd"}> : () -> ()
    %cst_113 = arith.constant dense<0.000000e+00> : vector<8x8x16xf32>
    %187 = tpu.matmul %186, %173, %cst_113 {dimension_numbers = #tpu.dot_dimension_numbers<[2], [1], [1], [2], [0, 0, 0, 1, 1, 2], [0], [0]>} : vector<8x8x8xf32>, vector<8x8x16xf32>, vector<8x8x16xf32> -> vector<8x8x16xf32>
    "tpu.trace_stop"() : () -> ()
    %188 = vector.shape_cast %187 : vector<8x8x16xf32> to vector<64x16xf32>
    %189 = arith.truncf %188 : vector<64x16xf32> to vector<64x16xbf16>
    %c1_114 = arith.constant 1 : index
    %c0_115 = arith.constant 0 : index
    %c0_116 = arith.constant 0 : index
    %c0_117 = arith.constant 0 : index
    %190 = vector.load %arg8[%c1_114, %c0_115, %c0_116, %c0_117] : memref<2x2x16x32xbf16, #tpu.memory_space<vmem>>, vector<1x1x16x32xbf16>
    %191 = vector.shape_cast %190 : vector<1x1x16x32xbf16> to vector<16x32xbf16>
    %cst_118 = arith.constant dense<0.000000e+00> : vector<64x32xf32>
    %192 = tpu.matmul %189, %191, %cst_118 {dimension_numbers = #tpu.dot_dimension_numbers<[1], [0], [0], [1], [0, 0, 1, 1], [], []>} : vector<64x16xbf16>, vector<16x32xbf16>, vector<64x32xf32> -> vector<64x32xf32>
    %c1_119 = arith.constant 1 : index
    %c1_120 = arith.constant 1 : index
    %c0_121 = arith.constant 0 : index
    %c0_122 = arith.constant 0 : index
    %193 = vector.load %arg5[%c1_119, %c1_120, %c0_121, %c0_122] : memref<2x2x32x16xbf16, #tpu.memory_space<vmem>>, vector<1x1x32x16xbf16>
    %194 = vector.shape_cast %193 : vector<1x1x32x16xbf16> to vector<32x16xbf16>
    %cst_123 = arith.constant dense<0.000000e+00> : vector<64x16xf32>
    %195 = tpu.matmul %161, %194, %cst_123 {dimension_numbers = #tpu.dot_dimension_numbers<[1], [0], [0], [1], [0, 0, 1, 1], [], []>} : vector<64x32xbf16>, vector<32x16xbf16>, vector<64x16xf32> -> vector<64x16xf32>
    %c1_124 = arith.constant 1 : index
    %c1_125 = arith.constant 1 : index
    %c0_126 = arith.constant 0 : index
    %c0_127 = arith.constant 0 : index
    %196 = vector.load %arg6[%c1_124, %c1_125, %c0_126, %c0_127] : memref<2x2x32x16xbf16, #tpu.memory_space<vmem>>, vector<1x1x32x16xbf16>
    %197 = vector.shape_cast %196 : vector<1x1x32x16xbf16> to vector<32x16xbf16>
    %cst_128 = arith.constant dense<0.000000e+00> : vector<64x16xf32>
    %198 = tpu.matmul %161, %197, %cst_128 {dimension_numbers = #tpu.dot_dimension_numbers<[1], [0], [0], [1], [0, 0, 1, 1], [], []>} : vector<64x32xbf16>, vector<32x16xbf16>, vector<64x16xf32> -> vector<64x16xf32>
    %c1_129 = arith.constant 1 : index
    %c1_130 = arith.constant 1 : index
    %c0_131 = arith.constant 0 : index
    %c0_132 = arith.constant 0 : index
    %199 = vector.load %arg7[%c1_129, %c1_130, %c0_131, %c0_132] : memref<2x2x32x16xbf16, #tpu.memory_space<vmem>>, vector<1x1x32x16xbf16>
    %200 = vector.shape_cast %199 : vector<1x1x32x16xbf16> to vector<32x16xbf16>
    %cst_133 = arith.constant dense<0.000000e+00> : vector<64x16xf32>
    %201 = tpu.matmul %161, %200, %cst_133 {dimension_numbers = #tpu.dot_dimension_numbers<[1], [0], [0], [1], [0, 0, 1, 1], [], []>} : vector<64x32xbf16>, vector<32x16xbf16>, vector<64x16xf32> -> vector<64x16xf32>
    %202 = vector.shape_cast %195 : vector<64x16xf32> to vector<8x8x16xf32>
    %203 = vector.shape_cast %198 : vector<64x16xf32> to vector<8x8x16xf32>
    %204 = vector.shape_cast %201 : vector<64x16xf32> to vector<8x8x16xf32>
    "tpu.trace_start"() <{level = 10 : i32, message = "bqd,bkd->bqk"}> : () -> ()
    %cst_134 = arith.constant dense<0.000000e+00> : vector<8x8x8xf32>
    %205 = tpu.matmul %202, %203, %cst_134 {dimension_numbers = #tpu.dot_dimension_numbers<[2], [2], [1], [1], [0, 0, 0, 1, 1, 1], [0], [0]>} : vector<8x8x16xf32>, vector<8x8x16xf32>, vector<8x8x8xf32> -> vector<8x8x8xf32>
    "tpu.trace_stop"() : () -> ()
    %cst_135 = arith.constant 2.500000e-01 : f32
    %206 = vector.broadcast %cst_135 : f32 to vector<8x8x8xf32>
    %207 = arith.mulf %205, %206 : vector<8x8x8xf32>
    %cst_136 = arith.constant dense<0xFF800000> : vector<8x8xf32>
    %208 = vector.multi_reduction <maximumf>, %207, %cst_136 [2] : vector<8x8x8xf32> to vector<8x8xf32>
    %209 = vector.shape_cast %208 : vector<8x8xf32> to vector<8x8x1xf32>
    %210 = vector.broadcast %209 : vector<8x8x1xf32> to vector<8x8x8xf32>
    %211 = arith.subf %207, %210 : vector<8x8x8xf32>
    %212 = math.exp %211 : vector<8x8x8xf32>
    %cst_137 = arith.constant dense<0.000000e+00> : vector<8x8xf32>
    %213 = vector.multi_reduction <add>, %212, %cst_137 [2] : vector<8x8x8xf32> to vector<8x8xf32>
    %214 = vector.shape_cast %213 : vector<8x8xf32> to vector<8x8x1xf32>
    %215 = tpu.reciprocal %214 {approx = true} : vector<8x8x1xf32> -> vector<8x8x1xf32>
    %216 = vector.broadcast %215 : vector<8x8x1xf32> to vector<8x8x8xf32>
    %217 = arith.mulf %212, %216 : vector<8x8x8xf32>
    "tpu.trace_start"() <{level = 10 : i32, message = "bqk,bkd->bqd"}> : () -> ()
    %cst_138 = arith.constant dense<0.000000e+00> : vector<8x8x16xf32>
    %218 = tpu.matmul %217, %204, %cst_138 {dimension_numbers = #tpu.dot_dimension_numbers<[2], [1], [1], [2], [0, 0, 0, 1, 1, 2], [0], [0]>} : vector<8x8x8xf32>, vector<8x8x16xf32>, vector<8x8x16xf32> -> vector<8x8x16xf32>
    "tpu.trace_stop"() : () -> ()
    %219 = vector.shape_cast %218 : vector<8x8x16xf32> to vector<64x16xf32>
    %220 = arith.truncf %219 : vector<64x16xf32> to vector<64x16xbf16>
    %c1_139 = arith.constant 1 : index
    %c1_140 = arith.constant 1 : index
    %c0_141 = arith.constant 0 : index
    %c0_142 = arith.constant 0 : index
    %221 = vector.load %arg8[%c1_139, %c1_140, %c0_141, %c0_142] : memref<2x2x16x32xbf16, #tpu.memory_space<vmem>>, vector<1x1x16x32xbf16>
    %222 = vector.shape_cast %221 : vector<1x1x16x32xbf16> to vector<16x32xbf16>
    %cst_143 = arith.constant dense<0.000000e+00> : vector<64x32xf32>
    %223 = tpu.matmul %220, %222, %cst_143 {dimension_numbers = #tpu.dot_dimension_numbers<[1], [0], [0], [1], [0, 0, 1, 1], [], []>} : vector<64x16xbf16>, vector<16x32xbf16>, vector<64x32xf32> -> vector<64x32xf32>
    %224 = arith.addf %192, %223 : vector<64x32xf32>
    %225 = arith.addf %160, %224 : vector<64x32xf32>
    %c1_144 = arith.constant 1 : index
    %c0_145 = arith.constant 0 : index
    %c0_146 = arith.constant 0 : index
    %226 = vector.load %arg9[%c1_144, %c0_145, %c0_146] : memref<2x1x32xf32, #tpu.memory_space<vmem>>, vector<1x1x32xf32>
    %227 = vector.shape_cast %226 : vector<1x1x32xf32> to vector<1x32xf32>
    %c1_147 = arith.constant 1 : index
    %c0_148 = arith.constant 0 : index
    %c0_149 = arith.constant 0 : index
    %228 = vector.load %arg10[%c1_147, %c0_148, %c0_149] : memref<2x1x32xf32, #tpu.memory_space<vmem>>, vector<1x1x32xf32>
    %229 = vector.shape_cast %228 : vector<1x1x32xf32> to vector<1x32xf32>
    %cst_150 = arith.constant dense<0.000000e+00> : vector<64xf32>
    %230 = vector.multi_reduction <add>, %225, %cst_150 [1] : vector<64x32xf32> to vector<64xf32>
    %231 = vector.shape_cast %230 : vector<64xf32> to vector<64x1xf32>
    %cst_151 = arith.constant 3.200000e+01 : f32
    %232 = vector.broadcast %cst_151 : f32 to vector<64x1xf32>
    %233 = arith.divf %231, %232 : vector<64x1xf32>
    %234 = vector.broadcast %233 : vector<64x1xf32> to vector<64x32xf32>
    %235 = arith.subf %225, %234 : vector<64x32xf32>
    %236 = arith.mulf %235, %235 : vector<64x32xf32>
    %cst_152 = arith.constant dense<0.000000e+00> : vector<64xf32>
    %237 = vector.multi_reduction <add>, %236, %cst_152 [1] : vector<64x32xf32> to vector<64xf32>
    %238 = vector.shape_cast %237 : vector<64xf32> to vector<64x1xf32>
    %cst_153 = arith.constant 3.200000e+01 : f32
    %239 = vector.broadcast %cst_153 : f32 to vector<64x1xf32>
    %240 = arith.divf %238, %239 : vector<64x1xf32>
    %241 = vector.broadcast %233 : vector<64x1xf32> to vector<64x32xf32>
    %242 = arith.subf %225, %241 : vector<64x32xf32>
    %cst_154 = arith.constant 9.99999974E-6 : f32
    %243 = vector.broadcast %cst_154 : f32 to vector<64x1xf32>
    %244 = arith.addf %240, %243 : vector<64x1xf32>
    %245 = math.rsqrt %244 : vector<64x1xf32>
    %246 = vector.broadcast %245 : vector<64x1xf32> to vector<64x32xf32>
    %247 = arith.mulf %242, %246 : vector<64x32xf32>
    %248 = vector.broadcast %227 : vector<1x32xf32> to vector<64x32xf32>
    %249 = arith.mulf %247, %248 : vector<64x32xf32>
    %250 = vector.broadcast %229 : vector<1x32xf32> to vector<64x32xf32>
    %251 = arith.addf %249, %250 : vector<64x32xf32>
    %252 = arith.truncf %251 : vector<64x32xf32> to vector<64x32xbf16>
    %c1_155 = arith.constant 1 : index
    %c0_156 = arith.constant 0 : index
    %c0_157 = arith.constant 0 : index
    %253 = vector.load %arg11[%c1_155, %c0_156, %c0_157] : memref<2x32x64xbf16, #tpu.memory_space<vmem>>, vector<1x32x64xbf16>
    %254 = vector.shape_cast %253 : vector<1x32x64xbf16> to vector<32x64xbf16>
    %cst_158 = arith.constant dense<0.000000e+00> : vector<64x64xf32>
    %255 = tpu.matmul %252, %254, %cst_158 {dimension_numbers = #tpu.dot_dimension_numbers<[1], [0], [0], [1], [0, 0, 1, 1], [], []>} : vector<64x32xbf16>, vector<32x64xbf16>, vector<64x64xf32> -> vector<64x64xf32>
    %c1_159 = arith.constant 1 : index
    %c0_160 = arith.constant 0 : index
    %c0_161 = arith.constant 0 : index
    %256 = vector.load %arg12[%c1_159, %c0_160, %c0_161] : memref<2x1x64xf32, #tpu.memory_space<vmem>>, vector<1x1x64xf32>
    %257 = vector.shape_cast %256 : vector<1x1x64xf32> to vector<1x64xf32>
    %258 = vector.broadcast %257 : vector<1x64xf32> to vector<64x64xf32>
    %259 = arith.addf %255, %258 : vector<64x64xf32>
    %cst_162 = arith.constant 0.000000e+00 : f32
    %260 = vector.broadcast %cst_162 : f32 to vector<64x64xf32>
    %261 = arith.maximumf %259, %260 : vector<64x64xf32>
    %262 = arith.truncf %261 : vector<64x64xf32> to vector<64x64xbf16>
    %c1_163 = arith.constant 1 : index
    %c0_164 = arith.constant 0 : index
    %c0_165 = arith.constant 0 : index
    %263 = vector.load %arg13[%c1_163, %c0_164, %c0_165] : memref<2x64x32xbf16, #tpu.memory_space<vmem>>, vector<1x64x32xbf16>
    %264 = vector.shape_cast %263 : vector<1x64x32xbf16> to vector<64x32xbf16>
    %cst_166 = arith.constant dense<0.000000e+00> : vector<64x32xf32>
    %265 = tpu.matmul %262, %264, %cst_166 {dimension_numbers = #tpu.dot_dimension_numbers<[1], [0], [0], [1], [0, 0, 1, 1], [], []>} : vector<64x64xbf16>, vector<64x32xbf16>, vector<64x32xf32> -> vector<64x32xf32>
    %c1_167 = arith.constant 1 : index
    %c0_168 = arith.constant 0 : index
    %c0_169 = arith.constant 0 : index
    %266 = vector.load %arg14[%c1_167, %c0_168, %c0_169] : memref<2x1x32xf32, #tpu.memory_space<vmem>>, vector<1x1x32xf32>
    %267 = vector.shape_cast %266 : vector<1x1x32xf32> to vector<1x32xf32>
    %268 = vector.broadcast %267 : vector<1x32xf32> to vector<64x32xf32>
    %269 = arith.addf %265, %268 : vector<64x32xf32>
    %270 = arith.addf %251, %269 : vector<64x32xf32>
    %c1_170 = arith.constant 1 : index
    %c0_171 = arith.constant 0 : index
    %c0_172 = arith.constant 0 : index
    %271 = vector.load %arg15[%c1_170, %c0_171, %c0_172] : memref<2x1x32xf32, #tpu.memory_space<vmem>>, vector<1x1x32xf32>
    %272 = vector.shape_cast %271 : vector<1x1x32xf32> to vector<1x32xf32>
    %c1_173 = arith.constant 1 : index
    %c0_174 = arith.constant 0 : index
    %c0_175 = arith.constant 0 : index
    %273 = vector.load %arg16[%c1_173, %c0_174, %c0_175] : memref<2x1x32xf32, #tpu.memory_space<vmem>>, vector<1x1x32xf32>
    %274 = vector.shape_cast %273 : vector<1x1x32xf32> to vector<1x32xf32>
    %cst_176 = arith.constant dense<0.000000e+00> : vector<64xf32>
    %275 = vector.multi_reduction <add>, %270, %cst_176 [1] : vector<64x32xf32> to vector<64xf32>
    %276 = vector.shape_cast %275 : vector<64xf32> to vector<64x1xf32>
    %cst_177 = arith.constant 3.200000e+01 : f32
    %277 = vector.broadcast %cst_177 : f32 to vector<64x1xf32>
    %278 = arith.divf %276, %277 : vector<64x1xf32>
    %279 = vector.broadcast %278 : vector<64x1xf32> to vector<64x32xf32>
    %280 = arith.subf %270, %279 : vector<64x32xf32>
    %281 = arith.mulf %280, %280 : vector<64x32xf32>
    %cst_178 = arith.constant dense<0.000000e+00> : vector<64xf32>
    %282 = vector.multi_reduction <add>, %281, %cst_178 [1] : vector<64x32xf32> to vector<64xf32>
    %283 = vector.shape_cast %282 : vector<64xf32> to vector<64x1xf32>
    %cst_179 = arith.constant 3.200000e+01 : f32
    %284 = vector.broadcast %cst_179 : f32 to vector<64x1xf32>
    %285 = arith.divf %283, %284 : vector<64x1xf32>
    %286 = vector.broadcast %278 : vector<64x1xf32> to vector<64x32xf32>
    %287 = arith.subf %270, %286 : vector<64x32xf32>
    %cst_180 = arith.constant 9.99999974E-6 : f32
    %288 = vector.broadcast %cst_180 : f32 to vector<64x1xf32>
    %289 = arith.addf %285, %288 : vector<64x1xf32>
    %290 = math.rsqrt %289 : vector<64x1xf32>
    %291 = vector.broadcast %290 : vector<64x1xf32> to vector<64x32xf32>
    %292 = arith.mulf %287, %291 : vector<64x32xf32>
    %293 = vector.broadcast %272 : vector<1x32xf32> to vector<64x32xf32>
    %294 = arith.mulf %292, %293 : vector<64x32xf32>
    %295 = vector.broadcast %274 : vector<1x32xf32> to vector<64x32xf32>
    %296 = arith.addf %294, %295 : vector<64x32xf32>
    %297 = vector.shape_cast %296 : vector<64x32xf32> to vector<8x8x32xf32>
    %cst_181 = arith.constant dense<0xFF800000> : vector<8x32xf32>
    %298 = vector.multi_reduction <maximumf>, %297, %cst_181 [1] : vector<8x8x32xf32> to vector<8x32xf32>
    %299 = arith.truncf %298 : vector<8x32xf32> to vector<8x32xbf16>
    %c0_182 = arith.constant 0 : index
    %c0_183 = arith.constant 0 : index
    %300 = vector.load %arg17[%c0_182, %c0_183] : memref<32x32xbf16, #tpu.memory_space<vmem>>, vector<32x32xbf16>
    %cst_184 = arith.constant dense<0.000000e+00> : vector<8x32xf32>
    %301 = tpu.matmul %299, %300, %cst_184 {dimension_numbers = #tpu.dot_dimension_numbers<[1], [0], [0], [1], [0, 0, 1, 1], [], []>} : vector<8x32xbf16>, vector<32x32xbf16>, vector<8x32xf32> -> vector<8x32xf32>
    %302 = arith.truncf %296 : vector<64x32xf32> to vector<64x32xbf16>
    %c0_185 = arith.constant 0 : index
    %c0_186 = arith.constant 0 : index
    %303 = vector.load %arg18[%c0_185, %c0_186] : memref<32x32xbf16, #tpu.memory_space<vmem>>, vector<32x32xbf16>
    %cst_187 = arith.constant dense<0.000000e+00> : vector<64x32xf32>
    %304 = tpu.matmul %302, %303, %cst_187 {dimension_numbers = #tpu.dot_dimension_numbers<[1], [0], [0], [1], [0, 0, 1, 1], [], []>} : vector<64x32xbf16>, vector<32x32xbf16>, vector<64x32xf32> -> vector<64x32xf32>
    %305 = vector.shape_cast %304 : vector<64x32xf32> to vector<8x8x32xf32>
    %306 = vector.shape_cast %301 : vector<8x32xf32> to vector<8x1x32xf32>
    %307 = vector.broadcast %306 : vector<8x1x32xf32> to vector<8x8x32xf32>
    %308 = arith.addf %305, %307 : vector<8x8x32xf32>
    %cst_188 = arith.constant dense<0.000000e+00> : vector<8x32xf32>
    %309 = vector.multi_reduction <add>, %308, %cst_188 [1] : vector<8x8x32xf32> to vector<8x32xf32>
    %cst_189 = arith.constant 8.000000e+00 : f32
    %310 = vector.broadcast %cst_189 : f32 to vector<8x32xf32>
    %311 = arith.divf %309, %310 : vector<8x32xf32>
    %312 = arith.truncf %311 : vector<8x32xf32> to vector<8x32xbf16>
    %c0_190 = arith.constant 0 : index
    %c0_191 = arith.constant 0 : index
    %313 = vector.load %arg19[%c0_190, %c0_191] : memref<32x64xbf16, #tpu.memory_space<vmem>>, vector<32x64xbf16>
    %cst_192 = arith.constant dense<0.000000e+00> : vector<8x64xf32>
    %314 = tpu.matmul %312, %313, %cst_192 {dimension_numbers = #tpu.dot_dimension_numbers<[1], [0], [0], [1], [0, 0, 1, 1], [], []>} : vector<8x32xbf16>, vector<32x64xbf16>, vector<8x64xf32> -> vector<8x64xf32>
    %cst_193 = arith.constant 0.000000e+00 : f32
    %315 = vector.broadcast %cst_193 : f32 to vector<8x64xf32>
    %316 = arith.maximumf %314, %315 : vector<8x64xf32>
    %c0_194 = arith.constant 0 : index
    %c0_195 = arith.constant 0 : index
    %317 = vector.load %arg20[%c0_194, %c0_195] : memref<1x64xf32, #tpu.memory_space<vmem>>, vector<1x64xf32>
    %318 = vector.broadcast %317 : vector<1x64xf32> to vector<8x64xf32>
    %319 = arith.mulf %316, %318 : vector<8x64xf32>
    %cst_196 = arith.constant dense<0.000000e+00> : vector<8xf32>
    %320 = vector.multi_reduction <add>, %319, %cst_196 [1] : vector<8x64xf32> to vector<8xf32>
    %321 = vector.shape_cast %320 : vector<8xf32> to vector<8x1xf32>
    %c0_197 = arith.constant 0 : index
    %c0_198 = arith.constant 0 : index
    %322 = vector.load %arg21[%c0_197, %c0_198] : memref<8x1xf32, #tpu.memory_space<vmem>>, vector<8x1xf32>
    tpu.vector_store %arg21[%c0_197, %c0_198], %321 {strides = array<i32>} : memref<8x1xf32, #tpu.memory_space<vmem>>, vector<8x1xf32>,
    return
  }
  func.func @transform_0(%arg0: i32) -> (i32, i32, i32) {
    %c0_i32 = arith.constant 0 : i32
    %c0_i32_0 = arith.constant 0 : i32
    %c0_i32_1 = arith.constant 0 : i32
    return %arg0, %c0_i32, %c0_i32_0 : i32, i32, i32
  }
  func.func @transform_1(%arg0: i32) -> (i32, i32) {
    %c0_i32 = arith.constant 0 : i32
    %c0_i32_0 = arith.constant 0 : i32
    return %arg0, %c0_i32 : i32, i32
  }
  func.func @transform_2(%arg0: i32) -> (i32, i32) {
    %c0_i32 = arith.constant 0 : i32
    %c0_i32_0 = arith.constant 0 : i32
    %c0_i32_1 = arith.constant 0 : i32
    return %c0_i32, %c0_i32_0 : i32, i32
  }
  func.func @transform_3(%arg0: i32) -> (i32, i32) {
    %c0_i32 = arith.constant 0 : i32
    %c0_i32_0 = arith.constant 0 : i32
    %c0_i32_1 = arith.constant 0 : i32
    return %c0_i32, %c0_i32_0 : i32, i32
  }
  func.func @transform_4(%arg0: i32) -> (i32, i32, i32, i32) {
    %c0_i32 = arith.constant 0 : i32
    %c0_i32_0 = arith.constant 0 : i32
    %c0_i32_1 = arith.constant 0 : i32
    %c0_i32_2 = arith.constant 0 : i32
    %c0_i32_3 = arith.constant 0 : i32
    return %c0_i32, %c0_i32_0, %c0_i32_1, %c0_i32_2 : i32, i32, i32, i32
  }
  func.func @transform_5(%arg0: i32) -> (i32, i32, i32, i32) {
    %c0_i32 = arith.constant 0 : i32
    %c0_i32_0 = arith.constant 0 : i32
    %c0_i32_1 = arith.constant 0 : i32
    %c0_i32_2 = arith.constant 0 : i32
    %c0_i32_3 = arith.constant 0 : i32
    return %c0_i32, %c0_i32_0, %c0_i32_1, %c0_i32_2 : i32, i32, i32, i32
  }
  func.func @transform_6(%arg0: i32) -> (i32, i32, i32, i32) {
    %c0_i32 = arith.constant 0 : i32
    %c0_i32_0 = arith.constant 0 : i32
    %c0_i32_1 = arith.constant 0 : i32
    %c0_i32_2 = arith.constant 0 : i32
    %c0_i32_3 = arith.constant 0 : i32
    return %c0_i32, %c0_i32_0, %c0_i32_1, %c0_i32_2 : i32, i32, i32, i32
  }
  func.func @transform_7(%arg0: i32) -> (i32, i32, i32, i32) {
    %c0_i32 = arith.constant 0 : i32
    %c0_i32_0 = arith.constant 0 : i32
    %c0_i32_1 = arith.constant 0 : i32
    %c0_i32_2 = arith.constant 0 : i32
    %c0_i32_3 = arith.constant 0 : i32
    return %c0_i32, %c0_i32_0, %c0_i32_1, %c0_i32_2 : i32, i32, i32, i32
  }
  func.func @transform_8(%arg0: i32) -> (i32, i32, i32) {
    %c0_i32 = arith.constant 0 : i32
    %c0_i32_0 = arith.constant 0 : i32
    %c0_i32_1 = arith.constant 0 : i32
    %c0_i32_2 = arith.constant 0 : i32
    return %c0_i32, %c0_i32_0, %c0_i32_1 : i32, i32, i32
  }
  func.func @transform_9(%arg0: i32) -> (i32, i32, i32) {
    %c0_i32 = arith.constant 0 : i32
    %c0_i32_0 = arith.constant 0 : i32
    %c0_i32_1 = arith.constant 0 : i32
    %c0_i32_2 = arith.constant 0 : i32
    return %c0_i32, %c0_i32_0, %c0_i32_1 : i32, i32, i32
  }
  func.func @transform_10(%arg0: i32) -> (i32, i32, i32) {
    %c0_i32 = arith.constant 0 : i32
    %c0_i32_0 = arith.constant 0 : i32
    %c0_i32_1 = arith.constant 0 : i32
    %c0_i32_2 = arith.constant 0 : i32
    return %c0_i32, %c0_i32_0, %c0_i32_1 : i32, i32, i32
  }
  func.func @transform_11(%arg0: i32) -> (i32, i32, i32) {
    %c0_i32 = arith.constant 0 : i32
    %c0_i32_0 = arith.constant 0 : i32
    %c0_i32_1 = arith.constant 0 : i32
    %c0_i32_2 = arith.constant 0 : i32
    return %c0_i32, %c0_i32_0, %c0_i32_1 : i32, i32, i32
  }
  func.func @transform_12(%arg0: i32) -> (i32, i32, i32) {
    %c0_i32 = arith.constant 0 : i32
    %c0_i32_0 = arith.constant 0 : i32
    %c0_i32_1 = arith.constant 0 : i32
    %c0_i32_2 = arith.constant 0 : i32
    return %c0_i32, %c0_i32_0, %c0_i32_1 : i32, i32, i32
  }
  func.func @transform_13(%arg0: i32) -> (i32, i32, i32) {
    %c0_i32 = arith.constant 0 : i32
    %c0_i32_0 = arith.constant 0 : i32
    %c0_i32_1 = arith.constant 0 : i32
    %c0_i32_2 = arith.constant 0 : i32
    return %c0_i32, %c0_i32_0, %c0_i32_1 : i32, i32, i32
  }
  func.func @transform_14(%arg0: i32) -> (i32, i32, i32) {
    %c0_i32 = arith.constant 0 : i32
    %c0_i32_0 = arith.constant 0 : i32
    %c0_i32_1 = arith.constant 0 : i32
    %c0_i32_2 = arith.constant 0 : i32
    return %c0_i32, %c0_i32_0, %c0_i32_1 : i32, i32, i32
  }
  func.func @transform_15(%arg0: i32) -> (i32, i32, i32) {
    %c0_i32 = arith.constant 0 : i32
    %c0_i32_0 = arith.constant 0 : i32
    %c0_i32_1 = arith.constant 0 : i32
    %c0_i32_2 = arith.constant 0 : i32
    return %c0_i32, %c0_i32_0, %c0_i32_1 : i32, i32, i32
  }
  func.func @transform_16(%arg0: i32) -> (i32, i32) {
    %c0_i32 = arith.constant 0 : i32
    %c0_i32_0 = arith.constant 0 : i32
    %c0_i32_1 = arith.constant 0 : i32
    return %c0_i32, %c0_i32_0 : i32, i32
  }
  func.func @transform_17(%arg0: i32) -> (i32, i32) {
    %c0_i32 = arith.constant 0 : i32
    %c0_i32_0 = arith.constant 0 : i32
    %c0_i32_1 = arith.constant 0 : i32
    return %c0_i32, %c0_i32_0 : i32, i32
  }
  func.func @transform_18(%arg0: i32) -> (i32, i32) {
    %c0_i32 = arith.constant 0 : i32
    %c0_i32_0 = arith.constant 0 : i32
    %c0_i32_1 = arith.constant 0 : i32
    return %c0_i32, %c0_i32_0 : i32, i32
  }
  func.func @transform_19(%arg0: i32) -> (i32, i32) {
    %c0_i32 = arith.constant 0 : i32
    %c0_i32_0 = arith.constant 0 : i32
    %c0_i32_1 = arith.constant 0 : i32
    return %c0_i32, %c0_i32_0 : i32, i32
  }
  func.func @transform_20(%arg0: i32) -> (i32, i32) {
    %c0_i32 = arith.constant 0 : i32
    %c0_i32_0 = arith.constant 0 : i32
    return %arg0, %c0_i32 : i32, i32
  }
}

</mosaic_0001>

<llo_original>
// kernel: tpu_custom_call.1
$region0: #{tpu_custom_call.1}
  #allocation0 [shape = 'u32[]', space=smem, size = 0x4, offset = 0x4, fixed_abs, tag = 'smem constant byte address 0x4 - core index']
  #allocation1 [shape = 'u32[144,128]{1,0:T(1,128)}', space=vmem, size = 0x12000, scoped, tag = 'internal scratch']
  %s0 = inlined_call_operand.vmem [shape: f32[8,8,2], index: 0, kind: input, shape index: {}]
  %s1 = inlined_call_operand.vmem [shape: s32[8,8], index: 1, kind: input, shape index: {}]
  %s2 = inlined_call_operand.vmem [shape: f32[8,32], index: 2, kind: input, shape index: {}]
  %s3 = inlined_call_operand.vmem [shape: f32[2,32], index: 3, kind: input, shape index: {}]
  %s4 = inlined_call_operand.vmem [shape: bf16[2,2,32,16], index: 4, kind: input, shape index: {}]
  %s5 = inlined_call_operand.vmem [shape: bf16[2,2,32,16], index: 5, kind: input, shape index: {}]
  %s6 = inlined_call_operand.vmem [shape: bf16[2,2,32,16], index: 6, kind: input, shape index: {}]
  %s7 = inlined_call_operand.vmem [shape: bf16[2,2,16,32], index: 7, kind: input, shape index: {}]
  %s8 = inlined_call_operand.vmem [shape: f32[2,1,32], index: 8, kind: input, shape index: {}]
  %s9 = inlined_call_operand.vmem [shape: f32[2,1,32], index: 9, kind: input, shape index: {}]
  %s10 = inlined_call_operand.vmem [shape: bf16[2,32,64], index: 10, kind: input, shape index: {}]
  %s11 = inlined_call_operand.vmem [shape: f32[2,1,64], index: 11, kind: input, shape index: {}]
  %s12 = inlined_call_operand.vmem [shape: bf16[2,64,32], index: 12, kind: input, shape index: {}]
  %s13 = inlined_call_operand.vmem [shape: f32[2,1,32], index: 13, kind: input, shape index: {}]
  %s14 = inlined_call_operand.vmem [shape: f32[2,1,32], index: 14, kind: input, shape index: {}]
  %s15 = inlined_call_operand.vmem [shape: f32[2,1,32], index: 15, kind: input, shape index: {}]
  %s16 = inlined_call_operand.vmem [shape: bf16[32,32], index: 16, kind: input, shape index: {}]
  %s17 = inlined_call_operand.vmem [shape: bf16[32,32], index: 17, kind: input, shape index: {}]
  %s18 = inlined_call_operand.vmem [shape: bf16[32,64], index: 18, kind: input, shape index: {}]
  %s19 = inlined_call_operand.vmem [shape: f32[1,64], index: 19, kind: input, shape index: {}]
  %s20 = inlined_call_operand.vmem [shape: f32[8,1], index: 20, kind: output, shape index: {}]
  %s21 = sld [smem:[#allocation0]]
  $region90: #{tpu_custom_call.1} parent=0
    _
  %s23 = ssub.s32 1, %s21
  %s24 = scalar_select 0, %s23, %s21
  // Predicated region
  $region2: #{tpu_custom_call.1} parent=0 // pred_check
    _
  $region3: #{tpu_custom_call.1} parent=0 // pred_check_branch
    %26 = sbr.rel (0) target = $region5
  $region4: #{tpu_custom_call.1} parent=0 // pred_region
    _
  $region5: #{tpu_custom_call.1} parent=0 // pred_fallthru
    _
  // Predicated region
  $region6: #{tpu_custom_call.1} parent=0 // pred_check
    _
  $region7: #{tpu_custom_call.1} parent=0 // pred_check_branch
    %28 = sbr.rel (0) target = $region9
  $region8: #{tpu_custom_call.1} parent=0 // pred_region
    _
  $region9: #{tpu_custom_call.1} parent=0 // pred_fallthru
    _
  // Predicated region
  $region10: #{tpu_custom_call.1} parent=0 // pred_check
    _
  $region11: #{tpu_custom_call.1} parent=0 // pred_check_branch
    %30 = sbr.rel (0) target = $region13
  $region12: #{tpu_custom_call.1} parent=0 // pred_region
    _
  $region13: #{tpu_custom_call.1} parent=0 // pred_fallthru
    _
  // Predicated region
  $region14: #{tpu_custom_call.1} parent=0 // pred_check
    _
  $region15: #{tpu_custom_call.1} parent=0 // pred_check_branch
    %32 = sbr.rel (0) target = $region17
  $region16: #{tpu_custom_call.1} parent=0 // pred_region
    _
  $region17: #{tpu_custom_call.1} parent=0 // pred_fallthru
    _
  // Predicated region
  $region18: #{tpu_custom_call.1} parent=0 // pred_check
    _
  $region19: #{tpu_custom_call.1} parent=0 // pred_check_branch
    %34 = sbr.rel (0) target = $region21
  $region20: #{tpu_custom_call.1} parent=0 // pred_region
    _
  $region21: #{tpu_custom_call.1} parent=0 // pred_fallthru
    _
  // Predicated region
  $region22: #{tpu_custom_call.1} parent=0 // pred_check
    _
  $region23: #{tpu_custom_call.1} parent=0 // pred_check_branch
    %36 = sbr.rel (0) target = $region25
  $region24: #{tpu_custom_call.1} parent=0 // pred_region
    _
  $region25: #{tpu_custom_call.1} parent=0 // pred_fallthru
    _
  // Predicated region
  $region26: #{tpu_custom_call.1} parent=0 // pred_check
    _
  $region27: #{tpu_custom_call.1} parent=0 // pred_check_branch
    %38 = sbr.rel (0) target = $region29
  $region28: #{tpu_custom_call.1} parent=0 // pred_region
    _
  $region29: #{tpu_custom_call.1} parent=0 // pred_fallthru
    _
  // Predicated region
  $region30: #{tpu_custom_call.1} parent=0 // pred_check
    _
  $region31: #{tpu_custom_call.1} parent=0 // pred_check_branch
    %40 = sbr.rel (0) target = $region33
  $region32: #{tpu_custom_call.1} parent=0 // pred_region
    _
  $region33: #{tpu_custom_call.1} parent=0 // pred_fallthru
    _
  // Predicated region
  $region34: #{tpu_custom_call.1} parent=0 // pred_check
    _
  $region35: #{tpu_custom_call.1} parent=0 // pred_check_branch
    %42 = sbr.rel (0) target = $region37
  $region36: #{tpu_custom_call.1} parent=0 // pred_region
    _
  $region37: #{tpu_custom_call.1} parent=0 // pred_fallthru
    _
  // Predicated region
  $region38: #{tpu_custom_call.1} parent=0 // pred_check
    _
  $region39: #{tpu_custom_call.1} parent=0 // pred_check_branch
    %44 = sbr.rel (0) target = $region41
  $region40: #{tpu_custom_call.1} parent=0 // pred_region
    _
  $region41: #{tpu_custom_call.1} parent=0 // pred_fallthru
    _
  // Predicated region
  $region42: #{tpu_custom_call.1} parent=0 // pred_check
    _
  $region43: #{tpu_custom_call.1} parent=0 // pred_check_branch
    %46 = sbr.rel (0) target = $region45
  $region44: #{tpu_custom_call.1} parent=0 // pred_region
    _
  $region45: #{tpu_custom_call.1} parent=0 // pred_fallthru
    _
  // Predicated region
  $region46: #{tpu_custom_call.1} parent=0 // pred_check
    _
  $region47: #{tpu_custom_call.1} parent=0 // pred_check_branch
    %48 = sbr.rel (0) target = $region49
  $region48: #{tpu_custom_call.1} parent=0 // pred_region
    _
  $region49: #{tpu_custom_call.1} parent=0 // pred_fallthru
    _
  // Predicated region
  $region50: #{tpu_custom_call.1} parent=0 // pred_check
    _
  $region51: #{tpu_custom_call.1} parent=0 // pred_check_branch
    %50 = sbr.rel (0) target = $region53
  $region52: #{tpu_custom_call.1} parent=0 // pred_region
    _
  $region53: #{tpu_custom_call.1} parent=0 // pred_fallthru
    _
  // Predicated region
  $region54: #{tpu_custom_call.1} parent=0 // pred_check
    _
  $region55: #{tpu_custom_call.1} parent=0 // pred_check_branch
    %52 = sbr.rel (0) target = $region57
  $region56: #{tpu_custom_call.1} parent=0 // pred_region
    _
  $region57: #{tpu_custom_call.1} parent=0 // pred_fallthru
    _
  // Predicated region
  $region58: #{tpu_custom_call.1} parent=0 // pred_check
    _
  $region59: #{tpu_custom_call.1} parent=0 // pred_check_branch
    %54 = sbr.rel (0) target = $region61
  $region60: #{tpu_custom_call.1} parent=0 // pred_region
    _
  $region61: #{tpu_custom_call.1} parent=0 // pred_fallthru
    _
  // Predicated region
  $region62: #{tpu_custom_call.1} parent=0 // pred_check
    _
  $region63: #{tpu_custom_call.1} parent=0 // pred_check_branch
    %56 = sbr.rel (0) target = $region65
  $region64: #{tpu_custom_call.1} parent=0 // pred_region
    _
  $region65: #{tpu_custom_call.1} parent=0 // pred_fallthru
    _
  // Predicated region
  $region66: #{tpu_custom_call.1} parent=0 // pred_check
    _
  $region67: #{tpu_custom_call.1} parent=0 // pred_check_branch
    %58 = sbr.rel (0) target = $region69
  $region68: #{tpu_custom_call.1} parent=0 // pred_region
    _
  $region69: #{tpu_custom_call.1} parent=0 // pred_fallthru
    _
  // Predicated region
  $region70: #{tpu_custom_call.1} parent=0 // pred_check
    _
  $region71: #{tpu_custom_call.1} parent=0 // pred_check_branch
    %60 = sbr.rel (0) target = $region73
  $region72: #{tpu_custom_call.1} parent=0 // pred_region
    _
  $region73: #{tpu_custom_call.1} parent=0 // pred_fallthru
    _
  // Predicated region
  $region74: #{tpu_custom_call.1} parent=0 // pred_check
    _
  $region75: #{tpu_custom_call.1} parent=0 // pred_check_branch
    %62 = sbr.rel (0) target = $region77
  $region76: #{tpu_custom_call.1} parent=0 // pred_region
    _
  $region77: #{tpu_custom_call.1} parent=0 // pred_fallthru
    _
  // Predicated region
  $region78: #{tpu_custom_call.1} parent=0 // pred_check
    _
  $region79: #{tpu_custom_call.1} parent=0 // pred_check_branch
    %64 = sbr.rel (0) target = $region81
  $region80: #{tpu_custom_call.1} parent=0 // pred_region
    _
  $region81: #{tpu_custom_call.1} parent=0 // pred_fallthru
    _
  %v66 = vld [vmem:[%s0] sm:$0xff]
  %v67 = vld [vmem:[%s0 + $0x8] sm:$0xff]
  %v68 = vld [vmem:[%s0 + $0x10] sm:$0xff]
  %v69 = vld [vmem:[%s0 + $0x18] sm:$0xff]
  %v70 = vld [vmem:[%s0 + $0x20] sm:$0xff]
  %v71 = vld [vmem:[%s0 + $0x28] sm:$0xff]
  %v72 = vld [vmem:[%s0 + $0x30] sm:$0xff]
  %v73 = vld [vmem:[%s0 + $0x38] sm:$0xff]
  %v74 = vld [vmem:[%s3] sm:$0x3]
  %76 = vset.pattern.permute.xlu0 0
  %77 = vperm.xlu0 %76, %v66
  %v78 = vpop.permute.xlu0 %77
  %81 = vset.pattern.permute.xlu0 0
  %82 = vperm.xlu0 %81, %v67
  %v83 = vpop.permute.xlu0 %82
  %86 = vset.pattern.permute.xlu0 0
  %87 = vperm.xlu0 %86, %v68
  %v88 = vpop.permute.xlu0 %87
  %91 = vset.pattern.permute.xlu0 0
  %92 = vperm.xlu0 %91, %v69
  %v93 = vpop.permute.xlu0 %92
  %96 = vset.pattern.permute.xlu0 0
  %97 = vperm.xlu0 %96, %v70
  %v98 = vpop.permute.xlu0 %97
  %101 = vset.pattern.permute.xlu0 0
  %102 = vperm.xlu0 %101, %v71
  %v103 = vpop.permute.xlu0 %102
  %106 = vset.pattern.permute.xlu0 0
  %107 = vperm.xlu0 %106, %v72
  %v108 = vpop.permute.xlu0 %107
  %111 = vset.pattern.permute.xlu0 0
  %112 = vperm.xlu0 %111, %v73
  %v113 = vpop.permute.xlu0 %112
  %v115 = vlaneseq
  %v116 = vshrl.u32 %v115, 7
  %v117 = vsub.s32 0, %v116
  %v118 = vrot.slane %v74, %v117
  %v119 = vmul.f32 %v78, %v118
  %v120 = vmul.f32 %v83, %v118
  %v121 = vmul.f32 %v88, %v118
  %v122 = vmul.f32 %v93, %v118
  %v123 = vmul.f32 %v98, %v118
  %v124 = vmul.f32 %v103, %v118
  %v125 = vmul.f32 %v108, %v118
  %v126 = vmul.f32 %v113, %v118
  %127 = vset.pattern.permute.xlu0 1
  %128 = vperm.xlu0 %127, %v66
  %v129 = vpop.permute.xlu0 %128
  %131 = vset.pattern.permute.xlu0 1
  %132 = vperm.xlu0 %131, %v67
  %v133 = vpop.permute.xlu0 %132
  %135 = vset.pattern.permute.xlu0 1
  %136 = vperm.xlu0 %135, %v68
  %v137 = vpop.permute.xlu0 %136
  %139 = vset.pattern.permute.xlu0 1
  %140 = vperm.xlu0 %139, %v69
  %v141 = vpop.permute.xlu0 %140
  %143 = vset.pattern.permute.xlu0 1
  %144 = vperm.xlu0 %143, %v70
  %v145 = vpop.permute.xlu0 %144
  %147 = vset.pattern.permute.xlu0 1
  %148 = vperm.xlu0 %147, %v71
  %v149 = vpop.permute.xlu0 %148
  %151 = vset.pattern.permute.xlu0 1
  %152 = vperm.xlu0 %151, %v72
  %v153 = vpop.permute.xlu0 %152
  %155 = vset.pattern.permute.xlu0 1
  %156 = vperm.xlu0 %155, %v73
  %v157 = vpop.permute.xlu0 %156
  %v159 = vlaneseq
  %v160 = vshrl.u32 %v159, 7
  %v161 = vsub.s32 1, %v160
  %v162 = vrot.slane %v74, %v161
  %v163 = vmul.f32 %v129, %v162
  %v164 = vmul.f32 %v133, %v162
  %v165 = vmul.f32 %v137, %v162
  %v166 = vmul.f32 %v141, %v162
  %v167 = vmul.f32 %v145, %v162
  %v168 = vmul.f32 %v149, %v162
  %v169 = vmul.f32 %v153, %v162
  %v170 = vmul.f32 %v157, %v162
  %v171 = vadd.f32 %v119, %v163
  %v172 = vadd.f32 %v120, %v164
  %v173 = vadd.f32 %v121, %v165
  %v174 = vadd.f32 %v122, %v166
  %v175 = vadd.f32 %v123, %v167
  %v176 = vadd.f32 %v124, %v168
  %v177 = vadd.f32 %v125, %v169
  %v178 = vadd.f32 %v126, %v170
  %v179 = vld [vmem:[%s1] sm:$0xff]
  %v180 = vlaneseq
  %v181 = vshrl.u32 %v180, 7
  %v182 = vcombine.high %v179, %v179
  %v184 = vunpack.c.l.s4 1966171168
  %v185 = vunpack.c.0.s8 %v184
  %v186 = vlaneseq
  %v187 = vshrl.u32 %v186, 7
  %v188 = vsub.s32 %v185, %v187
  %v189 = vrot.slane %v179, %v188
  %v191 = vunpack.c.l.s4 1966171168
  %v192 = vunpack.c.0.s8 %v191
  %v193 = vlaneseq
  %v194 = vshrl.u32 %v193, 7
  %v195 = vsub.s32 %v192, %v194
  %v196 = vrot.slane %v182, %v195
  %v197 = vcombine.high %v189, %v189
  %v198 = vcombine.high %v196, %v196
  %v200 = vunpack.c.l.s4 1966171168
  %v201 = vunpack.c.0.s8 %v200
  %v202 = vlaneseq
  %v203 = vshrl.u32 %v202, 7
  %v204 = vsub.s32 %v201, %v203
  %v205 = vrot.slane %v189, %v204
  %v207 = vunpack.c.l.s4 1966171168
  %v208 = vunpack.c.0.s8 %v207
  %v209 = vlaneseq
  %v210 = vshrl.u32 %v209, 7
  %v211 = vsub.s32 %v208, %v210
  %v212 = vrot.slane %v196, %v211
  %v214 = vunpack.c.l.s4 1966171168
  %v215 = vunpack.c.0.s8 %v214
  %v216 = vlaneseq
  %v217 = vshrl.u32 %v216, 7
  %v218 = vsub.s32 %v215, %v217
  %v219 = vrot.slane %v197, %v218
  %v221 = vunpack.c.l.s4 1966171168
  %v222 = vunpack.c.0.s8 %v221
  %v223 = vlaneseq
  %v224 = vshrl.u32 %v223, 7
  %v225 = vsub.s32 %v222, %v224
  %v226 = vrot.slane %v198, %v225
  %v227 = vcombine.high %v205, %v205
  %v228 = vcombine.high %v212, %v212
  %v229 = vcombine.high %v219, %v219
  %v230 = vcombine.high %v226, %v226
  %v231 = vlaneseq
  %v232 = vshrl.u32 %v231, 7
  %v233 = vsub.s32 0, %v232
  %v234 = vrot.slane %v205, %v233
  %v235 = vlaneseq
  %v236 = vshrl.u32 %v235, 7
  %v237 = vsub.s32 0, %v236
  %v238 = vrot.slane %v219, %v237
  %v239 = vlaneseq
  %v240 = vshrl.u32 %v239, 7
  %v241 = vsub.s32 0, %v240
  %v242 = vrot.slane %v227, %v241
  %v243 = vlaneseq
  %v244 = vshrl.u32 %v243, 7
  %v245 = vsub.s32 0, %v244
  %v246 = vrot.slane %v229, %v245
  %v247 = vlaneseq
  %v248 = vshrl.u32 %v247, 7
  %v249 = vsub.s32 0, %v248
  %v250 = vrot.slane %v212, %v249
  %v251 = vlaneseq
  %v252 = vshrl.u32 %v251, 7
  %v253 = vsub.s32 0, %v252
  %v254 = vrot.slane %v226, %v253
  %v255 = vlaneseq
  %v256 = vshrl.u32 %v255, 7
  %v257 = vsub.s32 0, %v256
  %v258 = vrot.slane %v228, %v257
  %v259 = vlaneseq
  %v260 = vshrl.u32 %v259, 7
  %v261 = vsub.s32 0, %v260
  %v262 = vrot.slane %v230, %v261
  %vm263 = vcmp.eq.s32.totalorder %v181, %v234
  %vm264 = vcmp.eq.s32.totalorder %v181, %v238
  %vm265 = vcmp.eq.s32.totalorder %v181, %v242
  %vm266 = vcmp.eq.s32.totalorder %v181, %v246
  %vm267 = vcmp.eq.s32.totalorder %v181, %v250
  %vm268 = vcmp.eq.s32.totalorder %v181, %v254
  %vm269 = vcmp.eq.s32.totalorder %v181, %v258
  %vm270 = vcmp.eq.s32.totalorder %v181, %v262
  %v271 = vsel %vm263, 1, 0
  %v272 = vsel %vm264, 1, 0
  %v273 = vsel %vm265, 1, 0
  %v274 = vsel %vm266, 1, 0
  %v275 = vsel %vm267, 1, 0
  %v276 = vsel %vm268, 1, 0
  %v277 = vsel %vm269, 1, 0
  %v278 = vsel %vm270, 1, 0
  %v279 = vcvt.s32.f32 %v271
  %v280 = vcvt.s32.f32 %v272
  %v281 = vcvt.s32.f32 %v273
  %v282 = vcvt.s32.f32 %v274
  %v283 = vcvt.s32.f32 %v275
  %v284 = vcvt.s32.f32 %v276
  %v285 = vcvt.s32.f32 %v277
  %v286 = vcvt.s32.f32 %v278
  %v287 = vld [vmem:[%s2] sm:$0xff]
  %vm288 = vcmask 64512
  %v290 = vsel %vm288, %v279, 0
  %v293 = vsel %vm288, %v280, 0
  %v296 = vsel %vm288, %v281, 0
  %v299 = vsel %vm288, %v282, 0
  %v302 = vsel %vm288, %v283, 0
  %v305 = vsel %vm288, %v284, 0
  %v308 = vsel %vm288, %v285, 0
  %v311 = vsel %vm288, %v286, 0
  %313 = vmatprep.subr.mxu0 0.0
  %314 = vmatpush1.msra.mxu0 0.0
  %315 = vmatprep.subr.mxu0 0.0
  %316 = vmatpush1.msra.mxu0 0.0
  %317 = vmatprep.subr.mxu0 0.0
  %318 = vmatpush1.msra.mxu0 0.0
  %319 = vmatprep.subr.mxu0 0.0
  %320 = vmatpush1.msra.mxu0 0.0
  %321 = vmatprep.subr.mxu0 0.0
  %322 = vmatpush1.msra.mxu0 0.0
  %323 = vmatprep.subr.mxu0 0.0
  %324 = vmatpush1.msra.mxu0 0.0
  %325 = vmatprep.subr.mxu0 0.0
  %326 = vmatpush1.msra.mxu0 0.0
  %327 = vmatprep.subr.mxu0 0.0
  %328 = vmatpush1.msra.mxu0 0.0
  %329 = vmatprep.subr.mxu0 0.0
  %330 = vmatpush1.msra.mxu0 0.0
  %331 = vmatprep.subr.mxu0 0.0
  %332 = vmatpush1.msra.mxu0 0.0
  %333 = vmatprep.subr.mxu0 0.0
  %334 = vmatpush1.msra.mxu0 0.0
  %335 = vmatprep.subr.mxu0 0.0
  %336 = vmatpush1.msra.mxu0 0.0
  %337 = vmatprep.subr.mxu0 0.0
  %338 = vmatpush1.msra.mxu0 0.0
  %339 = vmatprep.subr.mxu0 0.0
  %340 = vmatpush1.msra.mxu0 0.0
  %341 = vmatprep.subr.mxu0 0.0
  %342 = vmatpush1.msra.mxu0 0.0
  %343 = vmatprep.subr.mxu0 0.0
  %344 = vmatpush1.msra.mxu0 %v287
  %345 = vmatprep.subr.mxu0 0.0
  %346 = vmatpush2.msra.mxu0 0.0
  %347 = vmatprep.subr.mxu0 0.0
  %348 = vmatpush2.msra.mxu0 0.0
  %349 = vmatprep.subr.mxu0 0.0
  %350 = vmatpush2.msra.mxu0 0.0
  %351 = vmatprep.subr.mxu0 0.0
  %352 = vmatpush2.msra.mxu0 0.0
  %353 = vmatprep.subr.mxu0 0.0
  %354 = vmatpush2.msra.mxu0 0.0
  %355 = vmatprep.subr.mxu0 0.0
  %356 = vmatpush2.msra.mxu0 0.0
  %357 = vmatprep.subr.mxu0 0.0
  %358 = vmatpush2.msra.mxu0 0.0
  %359 = vmatprep.subr.mxu0 0.0
  %360 = vmatpush2.msra.mxu0 0.0
  %361 = vmatprep.subr.mxu0 0.0
  %362 = vmatpush2.msra.mxu0 0.0
  %363 = vmatprep.subr.mxu0 0.0
  %364 = vmatpush2.msra.mxu0 0.0
  %365 = vmatprep.subr.mxu0 0.0
  %366 = vmatpush2.msra.mxu0 0.0
  %367 = vmatprep.subr.mxu0 0.0
  %368 = vmatpush2.msra.mxu0 0.0
  %369 = vmatprep.subr.mxu0 0.0
  %370 = vmatpush2.msra.mxu0 0.0
  %371 = vmatprep.subr.mxu0 0.0
  %372 = vmatpush2.msra.mxu0 0.0
  %373 = vmatprep.subr.mxu0 0.0
  %374 = vmatpush2.msra.mxu0 0.0
  %375 = vmatprep.subr.mxu0 0.0
  %376 = vmatpush2.msra.mxu0 0.0
  %377 = vmatprep.mubr.f32.mxu0 0.0
  %378 = vmatmul.mubr.f32.gmra.mxu0 %v290
  %v379 = vpop.f32.mrf.mxu0
  %v380 = vadd.f32 0.0, %v379
  %v381 = vpop.f32.mrf.mxu0
  %382 = vmatprep.mubr.f32.mxu0 0.0
  %383 = vmatmul.mubr.f32.gmra.mxu0 %v293
  %v384 = vpop.f32.mrf.mxu0
  %v385 = vadd.f32 0.0, %v384
  %v386 = vpop.f32.mrf.mxu0
  %387 = vmatprep.mubr.f32.mxu0 0.0
  %388 = vmatmul.mubr.f32.gmra.mxu0 %v296
  %v389 = vpop.f32.mrf.mxu0
  %v390 = vadd.f32 0.0, %v389
  %v391 = vpop.f32.mrf.mxu0
  %392 = vmatprep.mubr.f32.mxu0 0.0
  %393 = vmatmul.mubr.f32.gmra.mxu0 %v299
  %v394 = vpop.f32.mrf.mxu0
  %v395 = vadd.f32 0.0, %v394
  %v396 = vpop.f32.mrf.mxu0
  %397 = vmatprep.mubr.f32.mxu0 0.0
  %398 = vmatmul.mubr.f32.gmra.mxu0 %v302
  %v399 = vpop.f32.mrf.mxu0
  %v400 = vadd.f32 0.0, %v399
  %v401 = vpop.f32.mrf.mxu0
  %402 = vmatprep.mubr.f32.mxu0 0.0
  %403 = vmatmul.mubr.f32.gmra.mxu0 %v305
  %v404 = vpop.f32.mrf.mxu0
  %v405 = vadd.f32 0.0, %v404
  %v406 = vpop.f32.mrf.mxu0
  %407 = vmatprep.mubr.f32.mxu0 0.0
  %408 = vmatmul.mubr.f32.gmra.mxu0 %v308
  %v409 = vpop.f32.mrf.mxu0
  %v410 = vadd.f32 0.0, %v409
  %v411 = vpop.f32.mrf.mxu0
  %412 = vmatprep.mubr.f32.mxu0 0.0
  %413 = vmatmul.mubr.f32.gmra.mxu0 %v311
  %v414 = vpop.f32.mrf.mxu0
  %v415 = vadd.f32 0.0, %v414
  %v416 = vpop.f32.mrf.mxu0
  %417 = vdwg.mxu0
  %v418 = vadd.f32 %v171, %v380
  %v419 = vadd.f32 %v172, %v385
  %v420 = vadd.f32 %v173, %v390
  %v421 = vadd.f32 %v174, %v395
  %v422 = vadd.f32 %v175, %v400
  %v423 = vadd.f32 %v176, %v405
  %v424 = vadd.f32 %v177, %v410
  %v425 = vadd.f32 %v178, %v415
  %v426 = vpack.c.bf16 %v419, %v418
  %v427 = vpack.c.bf16 %v421, %v420
  %v428 = vpack.c.bf16 %v423, %v422
  %v429 = vpack.c.bf16 %v425, %v424
  %v430 = vld [vmem:[%s4] sm:$0xf]
  %v431 = vld [vmem:[%s4 + $0x4] sm:$0xf]
  %v432 = vld [vmem:[%s4 + $0x8] sm:$0xf]
  %v433 = vld [vmem:[%s4 + $0xc] sm:$0xf]
  %v438 = vunpack.c.l.b16 %v430
  %v439 = vunpack.c.l.b16 %v431
  %v440 = vunpack.c.l.b16 %v432
  %v441 = vunpack.c.l.b16 %v433
  %v442 = vpack.c.b16 %v439, %v438
  %v443 = vpack.c.b16 %v441, %v440
  %vm446 = vcmask 261120
  %v448 = vsel %vm446, %v426, 0
  %v451 = vsel %vm446, %v427, 0
  %v454 = vsel %vm446, %v428, 0
  %v457 = vsel %vm446, %v429, 0
  %459 = vmatprep.subr.bf16.mxu0 0
  %460 = vmatpush1.bf16.msra.mxu0 0
  %461 = vmatprep.subr.bf16.mxu0 0
  %462 = vmatpush1.bf16.msra.mxu0 0
  %463 = vmatprep.subr.bf16.mxu0 0
  %464 = vmatpush1.bf16.msra.mxu0 0
  %465 = vmatprep.subr.bf16.mxu0 0
  %466 = vmatpush1.bf16.msra.mxu0 0
  %467 = vmatprep.subr.bf16.mxu0 0
  %468 = vmatpush1.bf16.msra.mxu0 0
  %469 = vmatprep.subr.bf16.mxu0 0
  %470 = vmatpush1.bf16.msra.mxu0 0
  %471 = vmatprep.subr.bf16.mxu0 0
  %472 = vmatpush1.bf16.msra.mxu0 %v443
  %473 = vmatprep.subr.bf16.mxu0 0
  %474 = vmatpush1.bf16.msra.mxu0 %v442
  %475 = vmatprep.subr.bf16.mxu0 0
  %476 = vmatpush2.bf16.msra.mxu0 0
  %477 = vmatprep.subr.bf16.mxu0 0
  %478 = vmatpush2.bf16.msra.mxu0 0
  %479 = vmatprep.subr.bf16.mxu0 0
  %480 = vmatpush2.bf16.msra.mxu0 0
  %481 = vmatprep.subr.bf16.mxu0 0
  %482 = vmatpush2.bf16.msra.mxu0 0
  %483 = vmatprep.subr.bf16.mxu0 0
  %484 = vmatpush2.bf16.msra.mxu0 0
  %485 = vmatprep.subr.bf16.mxu0 0
  %486 = vmatpush2.bf16.msra.mxu0 0
  %487 = vmatprep.subr.bf16.mxu0 0
  %488 = vmatpush2.bf16.msra.mxu0 0
  %489 = vmatprep.subr.bf16.mxu0 0
  %490 = vmatpush2.bf16.msra.mxu0 0
  %491 = vmatprep.mubr.bf16.mxu0 0
  %492 = vmatmul.mubr.bf16.gmra.mxu0 %v448
  %v493 = vpop.f32.mrf.mxu0
  %v494 = vadd.f32 0.0, %v493
  %v495 = vpop.f32.mrf.mxu0
  %v496 = vpop.f32.mrf.mxu0
  %v497 = vadd.f32 0.0, %v496
  %v498 = vpop.f32.mrf.mxu0
  %499 = vmatprep.mubr.bf16.mxu0 0
  %500 = vmatmul.mubr.bf16.gmra.mxu0 %v451
  %v501 = vpop.f32.mrf.mxu0
  %v502 = vadd.f32 0.0, %v501
  %v503 = vpop.f32.mrf.mxu0
  %v504 = vpop.f32.mrf.mxu0
  %v505 = vadd.f32 0.0, %v504
  %v506 = vpop.f32.mrf.mxu0
  %507 = vmatprep.mubr.bf16.mxu0 0
  %508 = vmatmul.mubr.bf16.gmra.mxu0 %v454
  %v509 = vpop.f32.mrf.mxu0
  %v510 = vadd.f32 0.0, %v509
  %v511 = vpop.f32.mrf.mxu0
  %v512 = vpop.f32.mrf.mxu0
  %v513 = vadd.f32 0.0, %v512
  %v514 = vpop.f32.mrf.mxu0
  %515 = vmatprep.mubr.bf16.mxu0 0
  %516 = vmatmul.mubr.bf16.gmra.mxu0 %v457
  %v517 = vpop.f32.mrf.mxu0
  %v518 = vadd.f32 0.0, %v517
  %v519 = vpop.f32.mrf.mxu0
  %v520 = vpop.f32.mrf.mxu0
  %v521 = vadd.f32 0.0, %v520
  %v522 = vpop.f32.mrf.mxu0
  %523 = vdwg.mxu0
  %v524 = vld [vmem:[%s5] sm:$0xf]
  %v525 = vld [vmem:[%s5 + $0x4] sm:$0xf]
  %v526 = vld [vmem:[%s5 + $0x8] sm:$0xf]
  %v527 = vld [vmem:[%s5 + $0xc] sm:$0xf]
  %v532 = vunpack.c.l.b16 %v524
  %v533 = vunpack.c.l.b16 %v525
  %v534 = vunpack.c.l.b16 %v526
  %v535 = vunpack.c.l.b16 %v527
  %v536 = vpack.c.b16 %v533, %v532
  %v537 = vpack.c.b16 %v535, %v534
  %540 = vmatprep.subr.bf16.mxu0 0
  %541 = vmatpush1.bf16.msra.mxu0 0
  %542 = vmatprep.subr.bf16.mxu0 0
  %543 = vmatpush1.bf16.msra.mxu0 0
  %544 = vmatprep.subr.bf16.mxu0 0
  %545 = vmatpush1.bf16.msra.mxu0 0
  %546 = vmatprep.subr.bf16.mxu0 0
  %547 = vmatpush1.bf16.msra.mxu0 0
  %548 = vmatprep.subr.bf16.mxu0 0
  %549 = vmatpush1.bf16.msra.mxu0 0
  %550 = vmatprep.subr.bf16.mxu0 0
  %551 = vmatpush1.bf16.msra.mxu0 0
  %552 = vmatprep.subr.bf16.mxu0 0
  %553 = vmatpush1.bf16.msra.mxu0 %v537
  %554 = vmatprep.subr.bf16.mxu0 0
  %555 = vmatpush1.bf16.msra.mxu0 %v536
  %556 = vmatprep.subr.bf16.mxu0 0
  %557 = vmatpush2.bf16.msra.mxu0 0
  %558 = vmatprep.subr.bf16.mxu0 0
  %559 = vmatpush2.bf16.msra.mxu0 0
  %560 = vmatprep.subr.bf16.mxu0 0
  %561 = vmatpush2.bf16.msra.mxu0 0
  %562 = vmatprep.subr.bf16.mxu0 0
  %563 = vmatpush2.bf16.msra.mxu0 0
  %564 = vmatprep.subr.bf16.mxu0 0
  %565 = vmatpush2.bf16.msra.mxu0 0
  %566 = vmatprep.subr.bf16.mxu0 0
  %567 = vmatpush2.bf16.msra.mxu0 0
  %568 = vmatprep.subr.bf16.mxu0 0
  %569 = vmatpush2.bf16.msra.mxu0 0
  %570 = vmatprep.subr.bf16.mxu0 0
  %571 = vmatpush2.bf16.msra.mxu0 0
  %572 = vmatprep.mubr.bf16.mxu0 0
  %573 = vmatmul.mubr.bf16.gmra.mxu0 %v448
  %v574 = vpop.f32.mrf.mxu0
  %v575 = vadd.f32 0.0, %v574
  %v576 = vpop.f32.mrf.mxu0
  %v577 = vpop.f32.mrf.mxu0
  %v578 = vadd.f32 0.0, %v577
  %v579 = vpop.f32.mrf.mxu0
  %580 = vmatprep.mubr.bf16.mxu0 0
  %581 = vmatmul.mubr.bf16.gmra.mxu0 %v451
  %v582 = vpop.f32.mrf.mxu0
  %v583 = vadd.f32 0.0, %v582
  %v584 = vpop.f32.mrf.mxu0
  %v585 = vpop.f32.mrf.mxu0
  %v586 = vadd.f32 0.0, %v585
  %v587 = vpop.f32.mrf.mxu0
  %588 = vmatprep.mubr.bf16.mxu0 0
  %589 = vmatmul.mubr.bf16.gmra.mxu0 %v454
  %v590 = vpop.f32.mrf.mxu0
  %v591 = vadd.f32 0.0, %v590
  %v592 = vpop.f32.mrf.mxu0
  %v593 = vpop.f32.mrf.mxu0
  %v594 = vadd.f32 0.0, %v593
  %v595 = vpop.f32.mrf.mxu0
  %596 = vmatprep.mubr.bf16.mxu0 0
  %597 = vmatmul.mubr.bf16.gmra.mxu0 %v457
  %v598 = vpop.f32.mrf.mxu0
  %v599 = vadd.f32 0.0, %v598
  %v600 = vpop.f32.mrf.mxu0
  %v601 = vpop.f32.mrf.mxu0
  %v602 = vadd.f32 0.0, %v601
  %v603 = vpop.f32.mrf.mxu0
  %604 = vdwg.mxu0
  %v605 = vld [vmem:[%s6] sm:$0xf]
  %v606 = vld [vmem:[%s6 + $0x4] sm:$0xf]
  %v607 = vld [vmem:[%s6 + $0x8] sm:$0xf]
  %v608 = vld [vmem:[%s6 + $0xc] sm:$0xf]
  %v613 = vunpack.c.l.b16 %v605
  %v614 = vunpack.c.l.b16 %v606
  %v615 = vunpack.c.l.b16 %v607
  %v616 = vunpack.c.l.b16 %v608
  %v617 = vpack.c.b16 %v614, %v613
  %v618 = vpack.c.b16 %v616, %v615
  %621 = vmatprep.subr.bf16.mxu0 0
  %622 = vmatpush1.bf16.msra.mxu0 0
  %623 = vmatprep.subr.bf16.mxu0 0
  %624 = vmatpush1.bf16.msra.mxu0 0
  %625 = vmatprep.subr.bf16.mxu0 0
  %626 = vmatpush1.bf16.msra.mxu0 0
  %627 = vmatprep.subr.bf16.mxu0 0
  %628 = vmatpush1.bf16.msra.mxu0 0
  %629 = vmatprep.subr.bf16.mxu0 0
  %630 = vmatpush1.bf16.msra.mxu0 0
  %631 = vmatprep.subr.bf16.mxu0 0
  %632 = vmatpush1.bf16.msra.mxu0 0
  %633 = vmatprep.subr.bf16.mxu0 0
  %634 = vmatpush1.bf16.msra.mxu0 %v618
  %635 = vmatprep.subr.bf16.mxu0 0
  %636 = vmatpush1.bf16.msra.mxu0 %v617
  %637 = vmatprep.subr.bf16.mxu0 0
  %638 = vmatpush2.bf16.msra.mxu0 0
  %639 = vmatprep.subr.bf16.mxu0 0
  %640 = vmatpush2.bf16.msra.mxu0 0
  %641 = vmatprep.subr.bf16.mxu0 0
  %642 = vmatpush2.bf16.msra.mxu0 0
  %643 = vmatprep.subr.bf16.mxu0 0
  %644 = vmatpush2.bf16.msra.mxu0 0
  %645 = vmatprep.subr.bf16.mxu0 0
  %646 = vmatpush2.bf16.msra.mxu0 0
  %647 = vmatprep.subr.bf16.mxu0 0
  %648 = vmatpush2.bf16.msra.mxu0 0
  %649 = vmatprep.subr.bf16.mxu0 0
  %650 = vmatpush2.bf16.msra.mxu0 0
  %651 = vmatprep.subr.bf16.mxu0 0
  %652 = vmatpush2.bf16.msra.mxu0 0
  %653 = vmatprep.mubr.bf16.mxu0 0
  %654 = vmatmul.mubr.bf16.gmra.mxu0 %v448
  %v655 = vpop.f32.mrf.mxu0
  %v656 = vadd.f32 0.0, %v655
  %v657 = vpop.f32.mrf.mxu0
  %v658 = vpop.f32.mrf.mxu0
  %v659 = vadd.f32 0.0, %v658
  %v660 = vpop.f32.mrf.mxu0
  %661 = vmatprep.mubr.bf16.mxu0 0
  %662 = vmatmul.mubr.bf16.gmra.mxu0 %v451
  %v663 = vpop.f32.mrf.mxu0
  %v664 = vadd.f32 0.0, %v663
  %v665 = vpop.f32.mrf.mxu0
  %v666 = vpop.f32.mrf.mxu0
  %v667 = vadd.f32 0.0, %v666
  %v668 = vpop.f32.mrf.mxu0
  %669 = vmatprep.mubr.bf16.mxu0 0
  %670 = vmatmul.mubr.bf16.gmra.mxu0 %v454
  %v671 = vpop.f32.mrf.mxu0
  %v672 = vadd.f32 0.0, %v671
  %v673 = vpop.f32.mrf.mxu0
  %v674 = vpop.f32.mrf.mxu0
  %v675 = vadd.f32 0.0, %v674
  %v676 = vpop.f32.mrf.mxu0
  %677 = vmatprep.mubr.bf16.mxu0 0
  %678 = vmatmul.mubr.bf16.gmra.mxu0 %v457
  %v679 = vpop.f32.mrf.mxu0
  %v680 = vadd.f32 0.0, %v679
  %v681 = vpop.f32.mrf.mxu0
  %v682 = vpop.f32.mrf.mxu0
  %v683 = vadd.f32 0.0, %v682
  %v684 = vpop.f32.mrf.mxu0
  %685 = vdwg.mxu0
  %vm686 = vcmask 130048
  %v688 = vsel %vm686, %v494, 0
  %v691 = vsel %vm686, %v575, 0
  %693 = vmatprep.subr.mxu0 0.0
  %694 = vmatpush1.xpose.msra.mxu0 0.0
  %695 = vmatprep.subr.mxu0 0.0
  %696 = vmatpush1.xpose.msra.mxu0 0.0
  %697 = vmatprep.subr.mxu0 0.0
  %698 = vmatpush1.xpose.msra.mxu0 0.0
  %699 = vmatprep.subr.mxu0 0.0
  %700 = vmatpush1.xpose.msra.mxu0 0.0
  %701 = vmatprep.subr.mxu0 0.0
  %702 = vmatpush1.xpose.msra.mxu0 0.0
  %703 = vmatprep.subr.mxu0 0.0
  %704 = vmatpush1.xpose.msra.mxu0 0.0
  %705 = vmatprep.subr.mxu0 0.0
  %706 = vmatpush1.xpose.msra.mxu0 0.0
  %707 = vmatprep.subr.mxu0 0.0
  %708 = vmatpush1.xpose.msra.mxu0 0.0
  %709 = vmatprep.subr.mxu0 0.0
  %710 = vmatpush1.xpose.msra.mxu0 0.0
  %711 = vmatprep.subr.mxu0 0.0
  %712 = vmatpush1.xpose.msra.mxu0 0.0
  %713 = vmatprep.subr.mxu0 0.0
  %714 = vmatpush1.xpose.msra.mxu0 0.0
  %715 = vmatprep.subr.mxu0 0.0
  %716 = vmatpush1.xpose.msra.mxu0 0.0
  %717 = vmatprep.subr.mxu0 0.0
  %718 = vmatpush1.xpose.msra.mxu0 0.0
  %719 = vmatprep.subr.mxu0 0.0
  %720 = vmatpush1.xpose.msra.mxu0 0.0
  %721 = vmatprep.subr.mxu0 0.0
  %722 = vmatpush1.xpose.msra.mxu0 0.0
  %723 = vmatprep.subr.mxu0 0.0
  %724 = vmatpush1.xpose.msra.mxu0 %v691
  %725 = vmatprep.subr.mxu0 0.0
  %726 = vmatpush2.xpose.msra.mxu0 0.0
  %727 = vmatprep.subr.mxu0 0.0
  %728 = vmatpush2.xpose.msra.mxu0 0.0
  %729 = vmatprep.subr.mxu0 0.0
  %730 = vmatpush2.xpose.msra.mxu0 0.0
  %731 = vmatprep.subr.mxu0 0.0
  %732 = vmatpush2.xpose.msra.mxu0 0.0
  %733 = vmatprep.subr.mxu0 0.0
  %734 = vmatpush2.xpose.msra.mxu0 0.0
  %735 = vmatprep.subr.mxu0 0.0
  %736 = vmatpush2.xpose.msra.mxu0 0.0
  %737 = vmatprep.subr.mxu0 0.0
  %738 = vmatpush2.xpose.msra.mxu0 0.0
  %739 = vmatprep.subr.mxu0 0.0
  %740 = vmatpush2.xpose.msra.mxu0 0.0
  %741 = vmatprep.subr.mxu0 0.0
  %742 = vmatpush2.xpose.msra.mxu0 0.0
  %743 = vmatprep.subr.mxu0 0.0
  %744 = vmatpush2.xpose.msra.mxu0 0.0
  %745 = vmatprep.subr.mxu0 0.0
  %746 = vmatpush2.xpose.msra.mxu0 0.0
  %747 = vmatprep.subr.mxu0 0.0
  %748 = vmatpush2.xpose.msra.mxu0 0.0
  %749 = vmatprep.subr.mxu0 0.0
  %750 = vmatpush2.xpose.msra.mxu0 0.0
  %751 = vmatprep.subr.mxu0 0.0
  %752 = vmatpush2.xpose.msra.mxu0 0.0
  %753 = vmatprep.subr.mxu0 0.0
  %754 = vmatpush2.xpose.msra.mxu0 0.0
  %755 = vmatprep.subr.mxu0 0.0
  %756 = vmatpush2.xpose.msra.mxu0 0.0
  %757 = vmatprep.mubr.f32.mxu0 0.0
  %758 = vmatmul.mubr.f32.gmra.mxu0 %v688
  %v759 = vpop.f32.mrf.mxu0
  %v760 = vadd.f32 0.0, %v759
  %v761 = vpop.f32.mrf.mxu0
  %762 = vdwg.mxu0
  %v764 = vsel %vm686, %v497, 0
  %v767 = vsel %vm686, %v578, 0
  %769 = vmatprep.subr.mxu0 0.0
  %770 = vmatpush1.xpose.msra.mxu0 0.0
  %771 = vmatprep.subr.mxu0 0.0
  %772 = vmatpush1.xpose.msra.mxu0 0.0
  %773 = vmatprep.subr.mxu0 0.0
  %774 = vmatpush1.xpose.msra.mxu0 0.0
  %775 = vmatprep.subr.mxu0 0.0
  %776 = vmatpush1.xpose.msra.mxu0 0.0
  %777 = vmatprep.subr.mxu0 0.0
  %778 = vmatpush1.xpose.msra.mxu0 0.0
  %779 = vmatprep.subr.mxu0 0.0
  %780 = vmatpush1.xpose.msra.mxu0 0.0
  %781 = vmatprep.subr.mxu0 0.0
  %782 = vmatpush1.xpose.msra.mxu0 0.0
  %783 = vmatprep.subr.mxu0 0.0
  %784 = vmatpush1.xpose.msra.mxu0 0.0
  %785 = vmatprep.subr.mxu0 0.0
  %786 = vmatpush1.xpose.msra.mxu0 0.0
  %787 = vmatprep.subr.mxu0 0.0
  %788 = vmatpush1.xpose.msra.mxu0 0.0
  %789 = vmatprep.subr.mxu0 0.0
  %790 = vmatpush1.xpose.msra.mxu0 0.0
  %791 = vmatprep.subr.mxu0 0.0
  %792 = vmatpush1.xpose.msra.mxu0 0.0
  %793 = vmatprep.subr.mxu0 0.0
  %794 = vmatpush1.xpose.msra.mxu0 0.0
  %795 = vmatprep.subr.mxu0 0.0
  %796 = vmatpush1.xpose.msra.mxu0 0.0
  %797 = vmatprep.subr.mxu0 0.0
  %798 = vmatpush1.xpose.msra.mxu0 0.0
  %799 = vmatprep.subr.mxu0 0.0
  %800 = vmatpush1.xpose.msra.mxu0 %v767
  %801 = vmatprep.subr.mxu0 0.0
  %802 = vmatpush2.xpose.msra.mxu0 0.0
  %803 = vmatprep.subr.mxu0 0.0
  %804 = vmatpush2.xpose.msra.mxu0 0.0
  %805 = vmatprep.subr.mxu0 0.0
  %806 = vmatpush2.xpose.msra.mxu0 0.0
  %807 = vmatprep.subr.mxu0 0.0
  %808 = vmatpush2.xpose.msra.mxu0 0.0
  %809 = vmatprep.subr.mxu0 0.0
  %810 = vmatpush2.xpose.msra.mxu0 0.0
  %811 = vmatprep.subr.mxu0 0.0
  %812 = vmatpush2.xpose.msra.mxu0 0.0
  %813 = vmatprep.subr.mxu0 0.0
  %814 = vmatpush2.xpose.msra.mxu0 0.0
  %815 = vmatprep.subr.mxu0 0.0
  %816 = vmatpush2.xpose.msra.mxu0 0.0
  %817 = vmatprep.subr.mxu0 0.0
  %818 = vmatpush2.xpose.msra.mxu0 0.0
  %819 = vmatprep.subr.mxu0 0.0
  %820 = vmatpush2.xpose.msra.mxu0 0.0
  %821 = vmatprep.subr.mxu0 0.0
  %822 = vmatpush2.xpose.msra.mxu0 0.0
  %823 = vmatprep.subr.mxu0 0.0
  %824 = vmatpush2.xpose.msra.mxu0 0.0
  %825 = vmatprep.subr.mxu0 0.0
  %826 = vmatpush2.xpose.msra.mxu0 0.0
  %827 = vmatprep.subr.mxu0 0.0
  %828 = vmatpush2.xpose.msra.mxu0 0.0
  %829 = vmatprep.subr.mxu0 0.0
  %830 = vmatpush2.xpose.msra.mxu0 0.0
  %831 = vmatprep.subr.mxu0 0.0
  %832 = vmatpush2.xpose.msra.mxu0 0.0
  %833 = vmatprep.mubr.f32.mxu0 0.0
  %834 = vmatmul.mubr.f32.gmra.mxu0 %v764
  %v835 = vpop.f32.mrf.mxu0
  %v836 = vadd.f32 0.0, %v835
  %v837 = vpop.f32.mrf.mxu0
  %838 = vdwg.mxu0
  %v840 = vsel %vm686, %v502, 0
  %v843 = vsel %vm686, %v583, 0
  %845 = vmatprep.subr.mxu0 0.0
  %846 = vmatpush1.xpose.msra.mxu0 0.0
  %847 = vmatprep.subr.mxu0 0.0
  %848 = vmatpush1.xpose.msra.mxu0 0.0
  %849 = vmatprep.subr.mxu0 0.0
  %850 = vmatpush1.xpose.msra.mxu0 0.0
  %851 = vmatprep.subr.mxu0 0.0
  %852 = vmatpush1.xpose.msra.mxu0 0.0
  %853 = vmatprep.subr.mxu0 0.0
  %854 = vmatpush1.xpose.msra.mxu0 0.0
  %855 = vmatprep.subr.mxu0 0.0
  %856 = vmatpush1.xpose.msra.mxu0 0.0
  %857 = vmatprep.subr.mxu0 0.0
  %858 = vmatpush1.xpose.msra.mxu0 0.0
  %859 = vmatprep.subr.mxu0 0.0
  %860 = vmatpush1.xpose.msra.mxu0 0.0
  %861 = vmatprep.subr.mxu0 0.0
  %862 = vmatpush1.xpose.msra.mxu0 0.0
  %863 = vmatprep.subr.mxu0 0.0
  %864 = vmatpush1.xpose.msra.mxu0 0.0
  %865 = vmatprep.subr.mxu0 0.0
  %866 = vmatpush1.xpose.msra.mxu0 0.0
  %867 = vmatprep.subr.mxu0 0.0
  %868 = vmatpush1.xpose.msra.mxu0 0.0
  %869 = vmatprep.subr.mxu0 0.0
  %870 = vmatpush1.xpose.msra.mxu0 0.0
  %871 = vmatprep.subr.mxu0 0.0
  %872 = vmatpush1.xpose.msra.mxu0 0.0
  %873 = vmatprep.subr.mxu0 0.0
  %874 = vmatpush1.xpose.msra.mxu0 0.0
  %875 = vmatprep.subr.mxu0 0.0
  %876 = vmatpush1.xpose.msra.mxu0 %v843
  %877 = vmatprep.subr.mxu0 0.0
  %878 = vmatpush2.xpose.msra.mxu0 0.0
  %879 = vmatprep.subr.mxu0 0.0
  %880 = vmatpush2.xpose.msra.mxu0 0.0
  %881 = vmatprep.subr.mxu0 0.0
  %882 = vmatpush2.xpose.msra.mxu0 0.0
  %883 = vmatprep.subr.mxu0 0.0
  %884 = vmatpush2.xpose.msra.mxu0 0.0
  %885 = vmatprep.subr.mxu0 0.0
  %886 = vmatpush2.xpose.msra.mxu0 0.0
  %887 = vmatprep.subr.mxu0 0.0
  %888 = vmatpush2.xpose.msra.mxu0 0.0
  %889 = vmatprep.subr.mxu0 0.0
  %890 = vmatpush2.xpose.msra.mxu0 0.0
  %891 = vmatprep.subr.mxu0 0.0
  %892 = vmatpush2.xpose.msra.mxu0 0.0
  %893 = vmatprep.subr.mxu0 0.0
  %894 = vmatpush2.xpose.msra.mxu0 0.0
  %895 = vmatprep.subr.mxu0 0.0
  %896 = vmatpush2.xpose.msra.mxu0 0.0
  %897 = vmatprep.subr.mxu0 0.0
  %898 = vmatpush2.xpose.msra.mxu0 0.0
  %899 = vmatprep.subr.mxu0 0.0
  %900 = vmatpush2.xpose.msra.mxu0 0.0
  %901 = vmatprep.subr.mxu0 0.0
  %902 = vmatpush2.xpose.msra.mxu0 0.0
  %903 = vmatprep.subr.mxu0 0.0
  %904 = vmatpush2.xpose.msra.mxu0 0.0
  %905 = vmatprep.subr.mxu0 0.0
  %906 = vmatpush2.xpose.msra.mxu0 0.0
  %907 = vmatprep.subr.mxu0 0.0
  %908 = vmatpush2.xpose.msra.mxu0 0.0
  %909 = vmatprep.mubr.f32.mxu0 0.0
  %910 = vmatmul.mubr.f32.gmra.mxu0 %v840
  %v911 = vpop.f32.mrf.mxu0
  %v912 = vadd.f32 0.0, %v911
  %v913 = vpop.f32.mrf.mxu0
  %914 = vdwg.mxu0
  %v916 = vsel %vm686, %v505, 0
  %v919 = vsel %vm686, %v586, 0
  %921 = vmatprep.subr.mxu0 0.0
  %922 = vmatpush1.xpose.msra.mxu0 0.0
  %923 = vmatprep.subr.mxu0 0.0
  %924 = vmatpush1.xpose.msra.mxu0 0.0
  %925 = vmatprep.subr.mxu0 0.0
  %926 = vmatpush1.xpose.msra.mxu0 0.0
  %927 = vmatprep.subr.mxu0 0.0
  %928 = vmatpush1.xpose.msra.mxu0 0.0
  %929 = vmatprep.subr.mxu0 0.0
  %930 = vmatpush1.xpose.msra.mxu0 0.0
  %931 = vmatprep.subr.mxu0 0.0
  %932 = vmatpush1.xpose.msra.mxu0 0.0
  %933 = vmatprep.subr.mxu0 0.0
  %934 = vmatpush1.xpose.msra.mxu0 0.0
  %935 = vmatprep.subr.mxu0 0.0
  %936 = vmatpush1.xpose.msra.mxu0 0.0
  %937 = vmatprep.subr.mxu0 0.0
  %938 = vmatpush1.xpose.msra.mxu0 0.0
  %939 = vmatprep.subr.mxu0 0.0
  %940 = vmatpush1.xpose.msra.mxu0 0.0
  %941 = vmatprep.subr.mxu0 0.0
  %942 = vmatpush1.xpose.msra.mxu0 0.0
  %943 = vmatprep.subr.mxu0 0.0
  %944 = vmatpush1.xpose.msra.mxu0 0.0
  %945 = vmatprep.subr.mxu0 0.0
  %946 = vmatpush1.xpose.msra.mxu0 0.0
  %947 = vmatprep.subr.mxu0 0.0
  %948 = vmatpush1.xpose.msra.mxu0 0.0
  %949 = vmatprep.subr.mxu0 0.0
  %950 = vmatpush1.xpose.msra.mxu0 0.0
  %951 = vmatprep.subr.mxu0 0.0
  %952 = vmatpush1.xpose.msra.mxu0 %v919
  %953 = vmatprep.subr.mxu0 0.0
  %954 = vmatpush2.xpose.msra.mxu0 0.0
  %955 = vmatprep.subr.mxu0 0.0
  %956 = vmatpush2.xpose.msra.mxu0 0.0
  %957 = vmatprep.subr.mxu0 0.0
  %958 = vmatpush2.xpose.msra.mxu0 0.0
  %959 = vmatprep.subr.mxu0 0.0
  %960 = vmatpush2.xpose.msra.mxu0 0.0
  %961 = vmatprep.subr.mxu0 0.0
  %962 = vmatpush2.xpose.msra.mxu0 0.0
  %963 = vmatprep.subr.mxu0 0.0
  %964 = vmatpush2.xpose.msra.mxu0 0.0
  %965 = vmatprep.subr.mxu0 0.0
  %966 = vmatpush2.xpose.msra.mxu0 0.0
  %967 = vmatprep.subr.mxu0 0.0
  %968 = vmatpush2.xpose.msra.mxu0 0.0
  %969 = vmatprep.subr.mxu0 0.0
  %970 = vmatpush2.xpose.msra.mxu0 0.0
  %971 = vmatprep.subr.mxu0 0.0
  %972 = vmatpush2.xpose.msra.mxu0 0.0
  %973 = vmatprep.subr.mxu0 0.0
  %974 = vmatpush2.xpose.msra.mxu0 0.0
  %975 = vmatprep.subr.mxu0 0.0
  %976 = vmatpush2.xpose.msra.mxu0 0.0
  %977 = vmatprep.subr.mxu0 0.0
  %978 = vmatpush2.xpose.msra.mxu0 0.0
  %979 = vmatprep.subr.mxu0 0.0
  %980 = vmatpush2.xpose.msra.mxu0 0.0
  %981 = vmatprep.subr.mxu0 0.0
  %982 = vmatpush2.xpose.msra.mxu0 0.0
  %983 = vmatprep.subr.mxu0 0.0
  %984 = vmatpush2.xpose.msra.mxu0 0.0
  %985 = vmatprep.mubr.f32.mxu0 0.0
  %986 = vmatmul.mubr.f32.gmra.mxu0 %v916
  %v987 = vpop.f32.mrf.mxu0
  %v988 = vadd.f32 0.0, %v987
  %v989 = vpop.f32.mrf.mxu0
  %990 = vdwg.mxu0
  %v992 = vsel %vm686, %v510, 0
  %v995 = vsel %vm686, %v591, 0
  %997 = vmatprep.subr.mxu0 0.0
  %998 = vmatpush1.xpose.msra.mxu0 0.0
  %999 = vmatprep.subr.mxu0 0.0
  %1000 = vmatpush1.xpose.msra.mxu0 0.0
  %1001 = vmatprep.subr.mxu0 0.0
  %1002 = vmatpush1.xpose.msra.mxu0 0.0
  %1003 = vmatprep.subr.mxu0 0.0
  %1004 = vmatpush1.xpose.msra.mxu0 0.0
  %1005 = vmatprep.subr.mxu0 0.0
  %1006 = vmatpush1.xpose.msra.mxu0 0.0
  %1007 = vmatprep.subr.mxu0 0.0
  %1008 = vmatpush1.xpose.msra.mxu0 0.0
  %1009 = vmatprep.subr.mxu0 0.0
  %1010 = vmatpush1.xpose.msra.mxu0 0.0
  %1011 = vmatprep.subr.mxu0 0.0
  %1012 = vmatpush1.xpose.msra.mxu0 0.0
  %1013 = vmatprep.subr.mxu0 0.0
  %1014 = vmatpush1.xpose.msra.mxu0 0.0
  %1015 = vmatprep.subr.mxu0 0.0
  %1016 = vmatpush1.xpose.msra.mxu0 0.0
  %1017 = vmatprep.subr.mxu0 0.0
  %1018 = vmatpush1.xpose.msra.mxu0 0.0
  %1019 = vmatprep.subr.mxu0 0.0
  %1020 = vmatpush1.xpose.msra.mxu0 0.0
  %1021 = vmatprep.subr.mxu0 0.0
  %1022 = vmatpush1.xpose.msra.mxu0 0.0
  %1023 = vmatprep.subr.mxu0 0.0
  %1024 = vmatpush1.xpose.msra.mxu0 0.0
  %1025 = vmatprep.subr.mxu0 0.0
  %1026 = vmatpush1.xpose.msra.mxu0 0.0
  %1027 = vmatprep.subr.mxu0 0.0
  %1028 = vmatpush1.xpose.msra.mxu0 %v995
  %1029 = vmatprep.subr.mxu0 0.0
  %1030 = vmatpush2.xpose.msra.mxu0 0.0
  %1031 = vmatprep.subr.mxu0 0.0
  %1032 = vmatpush2.xpose.msra.mxu0 0.0
  %1033 = vmatprep.subr.mxu0 0.0
  %1034 = vmatpush2.xpose.msra.mxu0 0.0
  %1035 = vmatprep.subr.mxu0 0.0
  %1036 = vmatpush2.xpose.msra.mxu0 0.0
  %1037 = vmatprep.subr.mxu0 0.0
  %1038 = vmatpush2.xpose.msra.mxu0 0.0
  %1039 = vmatprep.subr.mxu0 0.0
  %1040 = vmatpush2.xpose.msra.mxu0 0.0
  %1041 = vmatprep.subr.mxu0 0.0
  %1042 = vmatpush2.xpose.msra.mxu0 0.0
  %1043 = vmatprep.subr.mxu0 0.0
  %1044 = vmatpush2.xpose.msra.mxu0 0.0
  %1045 = vmatprep.subr.mxu0 0.0
  %1046 = vmatpush2.xpose.msra.mxu0 0.0
  %1047 = vmatprep.subr.mxu0 0.0
  %1048 = vmatpush2.xpose.msra.mxu0 0.0
  %1049 = vmatprep.subr.mxu0 0.0
  %1050 = vmatpush2.xpose.msra.mxu0 0.0
  %1051 = vmatprep.subr.mxu0 0.0
  %1052 = vmatpush2.xpose.msra.mxu0 0.0
  %1053 = vmatprep.subr.mxu0 0.0
  %1054 = vmatpush2.xpose.msra.mxu0 0.0
  %1055 = vmatprep.subr.mxu0 0.0
  %1056 = vmatpush2.xpose.msra.mxu0 0.0
  %1057 = vmatprep.subr.mxu0 0.0
  %1058 = vmatpush2.xpose.msra.mxu0 0.0
  %1059 = vmatprep.subr.mxu0 0.0
  %1060 = vmatpush2.xpose.msra.mxu0 0.0
  %1061 = vmatprep.mubr.f32.mxu0 0.0
  %1062 = vmatmul.mubr.f32.gmra.mxu0 %v992
  %v1063 = vpop.f32.mrf.mxu0
  %v1064 = vadd.f32 0.0, %v1063
  %v1065 = vpop.f32.mrf.mxu0
  %1066 = vdwg.mxu0
  %v1068 = vsel %vm686, %v513, 0
  %v1071 = vsel %vm686, %v594, 0
  %1073 = vmatprep.subr.mxu0 0.0
  %1074 = vmatpush1.xpose.msra.mxu0 0.0
  %1075 = vmatprep.subr.mxu0 0.0
  %1076 = vmatpush1.xpose.msra.mxu0 0.0
  %1077 = vmatprep.subr.mxu0 0.0
  %1078 = vmatpush1.xpose.msra.mxu0 0.0
  %1079 = vmatprep.subr.mxu0 0.0
  %1080 = vmatpush1.xpose.msra.mxu0 0.0
  %1081 = vmatprep.subr.mxu0 0.0
  %1082 = vmatpush1.xpose.msra.mxu0 0.0
  %1083 = vmatprep.subr.mxu0 0.0
  %1084 = vmatpush1.xpose.msra.mxu0 0.0
  %1085 = vmatprep.subr.mxu0 0.0
  %1086 = vmatpush1.xpose.msra.mxu0 0.0
  %1087 = vmatprep.subr.mxu0 0.0
  %1088 = vmatpush1.xpose.msra.mxu0 0.0
  %1089 = vmatprep.subr.mxu0 0.0
  %1090 = vmatpush1.xpose.msra.mxu0 0.0
  %1091 = vmatprep.subr.mxu0 0.0
  %1092 = vmatpush1.xpose.msra.mxu0 0.0
  %1093 = vmatprep.subr.mxu0 0.0
  %1094 = vmatpush1.xpose.msra.mxu0 0.0
  %1095 = vmatprep.subr.mxu0 0.0
  %1096 = vmatpush1.xpose.msra.mxu0 0.0
  %1097 = vmatprep.subr.mxu0 0.0
  %1098 = vmatpush1.xpose.msra.mxu0 0.0
  %1099 = vmatprep.subr.mxu0 0.0
  %1100 = vmatpush1.xpose.msra.mxu0 0.0
  %1101 = vmatprep.subr.mxu0 0.0
  %1102 = vmatpush1.xpose.msra.mxu0 0.0
  %1103 = vmatprep.subr.mxu0 0.0
  %1104 = vmatpush1.xpose.msra.mxu0 %v1071
  %1105 = vmatprep.subr.mxu0 0.0
  %1106 = vmatpush2.xpose.msra.mxu0 0.0
  %1107 = vmatprep.subr.mxu0 0.0
  %1108 = vmatpush2.xpose.msra.mxu0 0.0
  %1109 = vmatprep.subr.mxu0 0.0
  %1110 = vmatpush2.xpose.msra.mxu0 0.0
  %1111 = vmatprep.subr.mxu0 0.0
  %1112 = vmatpush2.xpose.msra.mxu0 0.0
  %1113 = vmatprep.subr.mxu0 0.0
  %1114 = vmatpush2.xpose.msra.mxu0 0.0
  %1115 = vmatprep.subr.mxu0 0.0
  %1116 = vmatpush2.xpose.msra.mxu0 0.0
  %1117 = vmatprep.subr.mxu0 0.0
  %1118 = vmatpush2.xpose.msra.mxu0 0.0
  %1119 = vmatprep.subr.mxu0 0.0
  %1120 = vmatpush2.xpose.msra.mxu0 0.0
  %1121 = vmatprep.subr.mxu0 0.0
  %1122 = vmatpush2.xpose.msra.mxu0 0.0
  %1123 = vmatprep.subr.mxu0 0.0
  %1124 = vmatpush2.xpose.msra.mxu0 0.0
  %1125 = vmatprep.subr.mxu0 0.0
  %1126 = vmatpush2.xpose.msra.mxu0 0.0
  %1127 = vmatprep.subr.mxu0 0.0
  %1128 = vmatpush2.xpose.msra.mxu0 0.0
  %1129 = vmatprep.subr.mxu0 0.0
  %1130 = vmatpush2.xpose.msra.mxu0 0.0
  %1131 = vmatprep.subr.mxu0 0.0
  %1132 = vmatpush2.xpose.msra.mxu0 0.0
  %1133 = vmatprep.subr.mxu0 0.0
  %1134 = vmatpush2.xpose.msra.mxu0 0.0
  %1135 = vmatprep.subr.mxu0 0.0
  %1136 = vmatpush2.xpose.msra.mxu0 0.0
  %1137 = vmatprep.mubr.f32.mxu0 0.0
  %1138 = vmatmul.mubr.f32.gmra.mxu0 %v1068
  %v1139 = vpop.f32.mrf.mxu0
  %v1140 = vadd.f32 0.0, %v1139
  %v1141 = vpop.f32.mrf.mxu0
  %1142 = vdwg.mxu0
  %v1144 = vsel %vm686, %v518, 0
  %v1147 = vsel %vm686, %v599, 0
  %1149 = vmatprep.subr.mxu0 0.0
  %1150 = vmatpush1.xpose.msra.mxu0 0.0
  %1151 = vmatprep.subr.mxu0 0.0
  %1152 = vmatpush1.xpose.msra.mxu0 0.0
  %1153 = vmatprep.subr.mxu0 0.0
  %1154 = vmatpush1.xpose.msra.mxu0 0.0
  %1155 = vmatprep.subr.mxu0 0.0
  %1156 = vmatpush1.xpose.msra.mxu0 0.0
  %1157 = vmatprep.subr.mxu0 0.0
  %1158 = vmatpush1.xpose.msra.mxu0 0.0
  %1159 = vmatprep.subr.mxu0 0.0
  %1160 = vmatpush1.xpose.msra.mxu0 0.0
  %1161 = vmatprep.subr.mxu0 0.0
  %1162 = vmatpush1.xpose.msra.mxu0 0.0
  %1163 = vmatprep.subr.mxu0 0.0
  %1164 = vmatpush1.xpose.msra.mxu0 0.0
  %1165 = vmatprep.subr.mxu0 0.0
  %1166 = vmatpush1.xpose.msra.mxu0 0.0
  %1167 = vmatprep.subr.mxu0 0.0
  %1168 = vmatpush1.xpose.msra.mxu0 0.0
  %1169 = vmatprep.subr.mxu0 0.0
  %1170 = vmatpush1.xpose.msra.mxu0 0.0
  %1171 = vmatprep.subr.mxu0 0.0
  %1172 = vmatpush1.xpose.msra.mxu0 0.0
  %1173 = vmatprep.subr.mxu0 0.0
  %1174 = vmatpush1.xpose.msra.mxu0 0.0
  %1175 = vmatprep.subr.mxu0 0.0
  %1176 = vmatpush1.xpose.msra.mxu0 0.0
  %1177 = vmatprep.subr.mxu0 0.0
  %1178 = vmatpush1.xpose.msra.mxu0 0.0
  %1179 = vmatprep.subr.mxu0 0.0
  %1180 = vmatpush1.xpose.msra.mxu0 %v1147
  %1181 = vmatprep.subr.mxu0 0.0
  %1182 = vmatpush2.xpose.msra.mxu0 0.0
  %1183 = vmatprep.subr.mxu0 0.0
  %1184 = vmatpush2.xpose.msra.mxu0 0.0
  %1185 = vmatprep.subr.mxu0 0.0
  %1186 = vmatpush2.xpose.msra.mxu0 0.0
  %1187 = vmatprep.subr.mxu0 0.0
  %1188 = vmatpush2.xpose.msra.mxu0 0.0
  %1189 = vmatprep.subr.mxu0 0.0
  %1190 = vmatpush2.xpose.msra.mxu0 0.0
  %1191 = vmatprep.subr.mxu0 0.0
  %1192 = vmatpush2.xpose.msra.mxu0 0.0
  %1193 = vmatprep.subr.mxu0 0.0
  %1194 = vmatpush2.xpose.msra.mxu0 0.0
  %1195 = vmatprep.subr.mxu0 0.0
  %1196 = vmatpush2.xpose.msra.mxu0 0.0
  %1197 = vmatprep.subr.mxu0 0.0
  %1198 = vmatpush2.xpose.msra.mxu0 0.0
  %1199 = vmatprep.subr.mxu0 0.0
  %1200 = vmatpush2.xpose.msra.mxu0 0.0
  %1201 = vmatprep.subr.mxu0 0.0
  %1202 = vmatpush2.xpose.msra.mxu0 0.0
  %1203 = vmatprep.subr.mxu0 0.0
  %1204 = vmatpush2.xpose.msra.mxu0 0.0
  %1205 = vmatprep.subr.mxu0 0.0
  %1206 = vmatpush2.xpose.msra.mxu0 0.0
  %1207 = vmatprep.subr.mxu0 0.0
  %1208 = vmatpush2.xpose.msra.mxu0 0.0
  %1209 = vmatprep.subr.mxu0 0.0
  %1210 = vmatpush2.xpose.msra.mxu0 0.0
  %1211 = vmatprep.subr.mxu0 0.0
  %1212 = vmatpush2.xpose.msra.mxu0 0.0
  %1213 = vmatprep.mubr.f32.mxu0 0.0
  %1214 = vmatmul.mubr.f32.gmra.mxu0 %v1144
  %v1215 = vpop.f32.mrf.mxu0
  %v1216 = vadd.f32 0.0, %v1215
  %v1217 = vpop.f32.mrf.mxu0
  %1218 = vdwg.mxu0
  %v1220 = vsel %vm686, %v521, 0
  %v1223 = vsel %vm686, %v602, 0
  %1225 = vmatprep.subr.mxu0 0.0
  %1226 = vmatpush1.xpose.msra.mxu0 0.0
  %1227 = vmatprep.subr.mxu0 0.0
  %1228 = vmatpush1.xpose.msra.mxu0 0.0
  %1229 = vmatprep.subr.mxu0 0.0
  %1230 = vmatpush1.xpose.msra.mxu0 0.0
  %1231 = vmatprep.subr.mxu0 0.0
  %1232 = vmatpush1.xpose.msra.mxu0 0.0
  %1233 = vmatprep.subr.mxu0 0.0
  %1234 = vmatpush1.xpose.msra.mxu0 0.0
  %1235 = vmatprep.subr.mxu0 0.0
  %1236 = vmatpush1.xpose.msra.mxu0 0.0
  %1237 = vmatprep.subr.mxu0 0.0
  %1238 = vmatpush1.xpose.msra.mxu0 0.0
  %1239 = vmatprep.subr.mxu0 0.0
  %1240 = vmatpush1.xpose.msra.mxu0 0.0
  %1241 = vmatprep.subr.mxu0 0.0
  %1242 = vmatpush1.xpose.msra.mxu0 0.0
  %1243 = vmatprep.subr.mxu0 0.0
  %1244 = vmatpush1.xpose.msra.mxu0 0.0
  %1245 = vmatprep.subr.mxu0 0.0
  %1246 = vmatpush1.xpose.msra.mxu0 0.0
  %1247 = vmatprep.subr.mxu0 0.0
  %1248 = vmatpush1.xpose.msra.mxu0 0.0
  %1249 = vmatprep.subr.mxu0 0.0
  %1250 = vmatpush1.xpose.msra.mxu0 0.0
  %1251 = vmatprep.subr.mxu0 0.0
  %1252 = vmatpush1.xpose.msra.mxu0 0.0
  %1253 = vmatprep.subr.mxu0 0.0
  %1254 = vmatpush1.xpose.msra.mxu0 0.0
  %1255 = vmatprep.subr.mxu0 0.0
  %1256 = vmatpush1.xpose.msra.mxu0 %v1223
  %1257 = vmatprep.subr.mxu0 0.0
  %1258 = vmatpush2.xpose.msra.mxu0 0.0
  %1259 = vmatprep.subr.mxu0 0.0
  %1260 = vmatpush2.xpose.msra.mxu0 0.0
  %1261 = vmatprep.subr.mxu0 0.0
  %1262 = vmatpush2.xpose.msra.mxu0 0.0
  %1263 = vmatprep.subr.mxu0 0.0
  %1264 = vmatpush2.xpose.msra.mxu0 0.0
  %1265 = vmatprep.subr.mxu0 0.0
  %1266 = vmatpush2.xpose.msra.mxu0 0.0
  %1267 = vmatprep.subr.mxu0 0.0
  %1268 = vmatpush2.xpose.msra.mxu0 0.0
  %1269 = vmatprep.subr.mxu0 0.0
  %1270 = vmatpush2.xpose.msra.mxu0 0.0
  %1271 = vmatprep.subr.mxu0 0.0
  %1272 = vmatpush2.xpose.msra.mxu0 0.0
  %1273 = vmatprep.subr.mxu0 0.0
  %1274 = vmatpush2.xpose.msra.mxu0 0.0
  %1275 = vmatprep.subr.mxu0 0.0
  %1276 = vmatpush2.xpose.msra.mxu0 0.0
  %1277 = vmatprep.subr.mxu0 0.0
  %1278 = vmatpush2.xpose.msra.mxu0 0.0
  %1279 = vmatprep.subr.mxu0 0.0
  %1280 = vmatpush2.xpose.msra.mxu0 0.0
  %1281 = vmatprep.subr.mxu0 0.0
  %1282 = vmatpush2.xpose.msra.mxu0 0.0
  %1283 = vmatprep.subr.mxu0 0.0
  %1284 = vmatpush2.xpose.msra.mxu0 0.0
  %1285 = vmatprep.subr.mxu0 0.0
  %1286 = vmatpush2.xpose.msra.mxu0 0.0
  %1287 = vmatprep.subr.mxu0 0.0
  %1288 = vmatpush2.xpose.msra.mxu0 0.0
  %1289 = vmatprep.mubr.f32.mxu0 0.0
  %1290 = vmatmul.mubr.f32.gmra.mxu0 %v1220
  %v1291 = vpop.f32.mrf.mxu0
  %v1292 = vadd.f32 0.0, %v1291
  %v1293 = vpop.f32.mrf.mxu0
  %1294 = vdwg.mxu0
  %v1295 = vmul.f32 %v760, 0.25
  %v1296 = vmul.f32 %v836, 0.25
  %v1297 = vmul.f32 %v912, 0.25
  %v1298 = vmul.f32 %v988, 0.25
  %v1299 = vmul.f32 %v1064, 0.25
  %v1300 = vmul.f32 %v1140, 0.25
  %v1301 = vmul.f32 %v1216, 0.25
  %v1302 = vmul.f32 %v1292, 0.25
  %v1303 = vsel %vm288, %v1295, -inf
  %1304 = vmax.xlane.f32.xlu0 %v1303
  %v1305 = vpop.xlane.xlu0 %1304
  %v1306 = vsel %vm288, %v1296, -inf
  %1307 = vmax.xlane.f32.xlu0 %v1306
  %v1308 = vpop.xlane.xlu0 %1307
  %v1309 = vsel %vm288, %v1297, -inf
  %1310 = vmax.xlane.f32.xlu0 %v1309
  %v1311 = vpop.xlane.xlu0 %1310
  %v1312 = vsel %vm288, %v1298, -inf
  %1313 = vmax.xlane.f32.xlu0 %v1312
  %v1314 = vpop.xlane.xlu0 %1313
  %v1315 = vsel %vm288, %v1299, -inf
  %1316 = vmax.xlane.f32.xlu0 %v1315
  %v1317 = vpop.xlane.xlu0 %1316
  %v1318 = vsel %vm288, %v1300, -inf
  %1319 = vmax.xlane.f32.xlu0 %v1318
  %v1320 = vpop.xlane.xlu0 %1319
  %v1321 = vsel %vm288, %v1301, -inf
  %1322 = vmax.xlane.f32.xlu0 %v1321
  %v1323 = vpop.xlane.xlu0 %1322
  %v1324 = vsel %vm288, %v1302, -inf
  %1325 = vmax.xlane.f32.xlu0 %v1324
  %v1326 = vpop.xlane.xlu0 %1325
  %v1327 = vsub.f32 %v1295, %v1305
  %v1328 = vsub.f32 %v1296, %v1308
  %v1329 = vsub.f32 %v1297, %v1311
  %v1330 = vsub.f32 %v1298, %v1314
  %v1331 = vsub.f32 %v1299, %v1317
  %v1332 = vsub.f32 %v1300, %v1320
  %v1333 = vsub.f32 %v1301, %v1323
  %v1334 = vsub.f32 %v1302, %v1326
  %v1335 = vmul.f32 %v1327, 1.442695
  %v1336 = vpow.pop %v1335
  %v1337 = vmul.f32 %v1328, 1.442695
  %v1338 = vpow.pop %v1337
  %v1339 = vmul.f32 %v1329, 1.442695
  %v1340 = vpow.pop %v1339
  %v1341 = vmul.f32 %v1330, 1.442695
  %v1342 = vpow.pop %v1341
  %v1343 = vmul.f32 %v1331, 1.442695
  %v1344 = vpow.pop %v1343
  %v1345 = vmul.f32 %v1332, 1.442695
  %v1346 = vpow.pop %v1345
  %v1347 = vmul.f32 %v1333, 1.442695
  %v1348 = vpow.pop %v1347
  %v1349 = vmul.f32 %v1334, 1.442695
  %v1350 = vpow.pop %v1349
  %v1351 = vsel %vm288, %v1336, 0.0
  %1352 = vadd.xlane.f32.xlu0 %v1351
  %v1353 = vpop.xlane.xlu0 %1352
  %v1354 = vsel %vm288, %v1338, 0.0
  %1355 = vadd.xlane.f32.xlu0 %v1354
  %v1356 = vpop.xlane.xlu0 %1355
  %v1357 = vsel %vm288, %v1340, 0.0
  %1358 = vadd.xlane.f32.xlu0 %v1357
  %v1359 = vpop.xlane.xlu0 %1358
  %v1360 = vsel %vm288, %v1342, 0.0
  %1361 = vadd.xlane.f32.xlu0 %v1360
  %v1362 = vpop.xlane.xlu0 %1361
  %v1363 = vsel %vm288, %v1344, 0.0
  %1364 = vadd.xlane.f32.xlu0 %v1363
  %v1365 = vpop.xlane.xlu0 %1364
  %v1366 = vsel %vm288, %v1346, 0.0
  %1367 = vadd.xlane.f32.xlu0 %v1366
  %v1368 = vpop.xlane.xlu0 %1367
  %v1369 = vsel %vm288, %v1348, 0.0
  %1370 = vadd.xlane.f32.xlu0 %v1369
  %v1371 = vpop.xlane.xlu0 %1370
  %v1372 = vsel %vm288, %v1350, 0.0
  %1373 = vadd.xlane.f32.xlu0 %v1372
  %v1374 = vpop.xlane.xlu0 %1373
  %v1375 = vrcp.pop %v1353
  %v1376 = vrcp.pop %v1356
  %v1377 = vrcp.pop %v1359
  %v1378 = vrcp.pop %v1362
  %v1379 = vrcp.pop %v1365
  %v1380 = vrcp.pop %v1368
  %v1381 = vrcp.pop %v1371
  %v1382 = vrcp.pop %v1374
  %v1383 = vmul.f32 %v1336, %v1375
  %v1384 = vmul.f32 %v1338, %v1376
  %v1385 = vmul.f32 %v1340, %v1377
  %v1386 = vmul.f32 %v1342, %v1378
  %v1387 = vmul.f32 %v1344, %v1379
  %v1388 = vmul.f32 %v1346, %v1380
  %v1389 = vmul.f32 %v1348, %v1381
  %v1390 = vmul.f32 %v1350, %v1382
  %v1392 = vsel %vm288, %v1383, 0
  %1394 = vmatprep.subr.mxu0 0.0
  %1395 = vmatpush1.msra.mxu0 0.0
  %1396 = vmatprep.subr.mxu0 0.0
  %1397 = vmatpush1.msra.mxu0 0.0
  %1398 = vmatprep.subr.mxu0 0.0
  %1399 = vmatpush1.msra.mxu0 0.0
  %1400 = vmatprep.subr.mxu0 0.0
  %1401 = vmatpush1.msra.mxu0 0.0
  %1402 = vmatprep.subr.mxu0 0.0
  %1403 = vmatpush1.msra.mxu0 0.0
  %1404 = vmatprep.subr.mxu0 0.0
  %1405 = vmatpush1.msra.mxu0 0.0
  %1406 = vmatprep.subr.mxu0 0.0
  %1407 = vmatpush1.msra.mxu0 0.0
  %1408 = vmatprep.subr.mxu0 0.0
  %1409 = vmatpush1.msra.mxu0 0.0
  %1410 = vmatprep.subr.mxu0 0.0
  %1411 = vmatpush1.msra.mxu0 0.0
  %1412 = vmatprep.subr.mxu0 0.0
  %1413 = vmatpush1.msra.mxu0 0.0
  %1414 = vmatprep.subr.mxu0 0.0
  %1415 = vmatpush1.msra.mxu0 0.0
  %1416 = vmatprep.subr.mxu0 0.0
  %1417 = vmatpush1.msra.mxu0 0.0
  %1418 = vmatprep.subr.mxu0 0.0
  %1419 = vmatpush1.msra.mxu0 0.0
  %1420 = vmatprep.subr.mxu0 0.0
  %1421 = vmatpush1.msra.mxu0 0.0
  %1422 = vmatprep.subr.mxu0 0.0
  %1423 = vmatpush1.msra.mxu0 0.0
  %1424 = vmatprep.subr.mxu0 0.0
  %1425 = vmatpush1.msra.mxu0 %v656
  %1426 = vmatprep.subr.mxu0 0.0
  %1427 = vmatpush2.msra.mxu0 0.0
  %1428 = vmatprep.subr.mxu0 0.0
  %1429 = vmatpush2.msra.mxu0 0.0
  %1430 = vmatprep.subr.mxu0 0.0
  %1431 = vmatpush2.msra.mxu0 0.0
  %1432 = vmatprep.subr.mxu0 0.0
  %1433 = vmatpush2.msra.mxu0 0.0
  %1434 = vmatprep.subr.mxu0 0.0
  %1435 = vmatpush2.msra.mxu0 0.0
  %1436 = vmatprep.subr.mxu0 0.0
  %1437 = vmatpush2.msra.mxu0 0.0
  %1438 = vmatprep.subr.mxu0 0.0
  %1439 = vmatpush2.msra.mxu0 0.0
  %1440 = vmatprep.subr.mxu0 0.0
  %1441 = vmatpush2.msra.mxu0 0.0
  %1442 = vmatprep.subr.mxu0 0.0
  %1443 = vmatpush2.msra.mxu0 0.0
  %1444 = vmatprep.subr.mxu0 0.0
  %1445 = vmatpush2.msra.mxu0 0.0
  %1446 = vmatprep.subr.mxu0 0.0
  %1447 = vmatpush2.msra.mxu0 0.0
  %1448 = vmatprep.subr.mxu0 0.0
  %1449 = vmatpush2.msra.mxu0 0.0
  %1450 = vmatprep.subr.mxu0 0.0
  %1451 = vmatpush2.msra.mxu0 0.0
  %1452 = vmatprep.subr.mxu0 0.0
  %1453 = vmatpush2.msra.mxu0 0.0
  %1454 = vmatprep.subr.mxu0 0.0
  %1455 = vmatpush2.msra.mxu0 0.0
  %1456 = vmatprep.subr.mxu0 0.0
  %1457 = vmatpush2.msra.mxu0 0.0
  %1458 = vmatprep.mubr.f32.mxu0 0.0
  %1459 = vmatmul.mubr.f32.gmra.mxu0 %v1392
  %v1460 = vpop.f32.mrf.mxu0
  %v1461 = vadd.f32 0.0, %v1460
  %v1462 = vpop.f32.mrf.mxu0
  %1463 = vdwg.mxu0
  %v1465 = vsel %vm288, %v1384, 0
  %1467 = vmatprep.subr.mxu0 0.0
  %1468 = vmatpush1.msra.mxu0 0.0
  %1469 = vmatprep.subr.mxu0 0.0
  %1470 = vmatpush1.msra.mxu0 0.0
  %1471 = vmatprep.subr.mxu0 0.0
  %1472 = vmatpush1.msra.mxu0 0.0
  %1473 = vmatprep.subr.mxu0 0.0
  %1474 = vmatpush1.msra.mxu0 0.0
  %1475 = vmatprep.subr.mxu0 0.0
  %1476 = vmatpush1.msra.mxu0 0.0
  %1477 = vmatprep.subr.mxu0 0.0
  %1478 = vmatpush1.msra.mxu0 0.0
  %1479 = vmatprep.subr.mxu0 0.0
  %1480 = vmatpush1.msra.mxu0 0.0
  %1481 = vmatprep.subr.mxu0 0.0
  %1482 = vmatpush1.msra.mxu0 0.0
  %1483 = vmatprep.subr.mxu0 0.0
  %1484 = vmatpush1.msra.mxu0 0.0
  %1485 = vmatprep.subr.mxu0 0.0
  %1486 = vmatpush1.msra.mxu0 0.0
  %1487 = vmatprep.subr.mxu0 0.0
  %1488 = vmatpush1.msra.mxu0 0.0
  %1489 = vmatprep.subr.mxu0 0.0
  %1490 = vmatpush1.msra.mxu0 0.0
  %1491 = vmatprep.subr.mxu0 0.0
  %1492 = vmatpush1.msra.mxu0 0.0
  %1493 = vmatprep.subr.mxu0 0.0
  %1494 = vmatpush1.msra.mxu0 0.0
  %1495 = vmatprep.subr.mxu0 0.0
  %1496 = vmatpush1.msra.mxu0 0.0
  %1497 = vmatprep.subr.mxu0 0.0
  %1498 = vmatpush1.msra.mxu0 %v659
  %1499 = vmatprep.subr.mxu0 0.0
  %1500 = vmatpush2.msra.mxu0 0.0
  %1501 = vmatprep.subr.mxu0 0.0
  %1502 = vmatpush2.msra.mxu0 0.0
  %1503 = vmatprep.subr.mxu0 0.0
  %1504 = vmatpush2.msra.mxu0 0.0
  %1505 = vmatprep.subr.mxu0 0.0
  %1506 = vmatpush2.msra.mxu0 0.0
  %1507 = vmatprep.subr.mxu0 0.0
  %1508 = vmatpush2.msra.mxu0 0.0
  %1509 = vmatprep.subr.mxu0 0.0
  %1510 = vmatpush2.msra.mxu0 0.0
  %1511 = vmatprep.subr.mxu0 0.0
  %1512 = vmatpush2.msra.mxu0 0.0
  %1513 = vmatprep.subr.mxu0 0.0
  %1514 = vmatpush2.msra.mxu0 0.0
  %1515 = vmatprep.subr.mxu0 0.0
  %1516 = vmatpush2.msra.mxu0 0.0
  %1517 = vmatprep.subr.mxu0 0.0
  %1518 = vmatpush2.msra.mxu0 0.0
  %1519 = vmatprep.subr.mxu0 0.0
  %1520 = vmatpush2.msra.mxu0 0.0
  %1521 = vmatprep.subr.mxu0 0.0
  %1522 = vmatpush2.msra.mxu0 0.0
  %1523 = vmatprep.subr.mxu0 0.0
  %1524 = vmatpush2.msra.mxu0 0.0
  %1525 = vmatprep.subr.mxu0 0.0
  %1526 = vmatpush2.msra.mxu0 0.0
  %1527 = vmatprep.subr.mxu0 0.0
  %1528 = vmatpush2.msra.mxu0 0.0
  %1529 = vmatprep.subr.mxu0 0.0
  %1530 = vmatpush2.msra.mxu0 0.0
  %1531 = vmatprep.mubr.f32.mxu0 0.0
  %1532 = vmatmul.mubr.f32.gmra.mxu0 %v1465
  %v1533 = vpop.f32.mrf.mxu0
  %v1534 = vadd.f32 0.0, %v1533
  %v1535 = vpop.f32.mrf.mxu0
  %1536 = vdwg.mxu0
  %v1538 = vsel %vm288, %v1385, 0
  %1540 = vmatprep.subr.mxu0 0.0
  %1541 = vmatpush1.msra.mxu0 0.0
  %1542 = vmatprep.subr.mxu0 0.0
  %1543 = vmatpush1.msra.mxu0 0.0
  %1544 = vmatprep.subr.mxu0 0.0
  %1545 = vmatpush1.msra.mxu0 0.0
  %1546 = vmatprep.subr.mxu0 0.0
  %1547 = vmatpush1.msra.mxu0 0.0
  %1548 = vmatprep.subr.mxu0 0.0
  %1549 = vmatpush1.msra.mxu0 0.0
  %1550 = vmatprep.subr.mxu0 0.0
  %1551 = vmatpush1.msra.mxu0 0.0
  %1552 = vmatprep.subr.mxu0 0.0
  %1553 = vmatpush1.msra.mxu0 0.0
  %1554 = vmatprep.subr.mxu0 0.0
  %1555 = vmatpush1.msra.mxu0 0.0
  %1556 = vmatprep.subr.mxu0 0.0
  %1557 = vmatpush1.msra.mxu0 0.0
  %1558 = vmatprep.subr.mxu0 0.0
  %1559 = vmatpush1.msra.mxu0 0.0
  %1560 = vmatprep.subr.mxu0 0.0
  %1561 = vmatpush1.msra.mxu0 0.0
  %1562 = vmatprep.subr.mxu0 0.0
  %1563 = vmatpush1.msra.mxu0 0.0
  %1564 = vmatprep.subr.mxu0 0.0
  %1565 = vmatpush1.msra.mxu0 0.0
  %1566 = vmatprep.subr.mxu0 0.0
  %1567 = vmatpush1.msra.mxu0 0.0
  %1568 = vmatprep.subr.mxu0 0.0
  %1569 = vmatpush1.msra.mxu0 0.0
  %1570 = vmatprep.subr.mxu0 0.0
  %1571 = vmatpush1.msra.mxu0 %v664
  %1572 = vmatprep.subr.mxu0 0.0
  %1573 = vmatpush2.msra.mxu0 0.0
  %1574 = vmatprep.subr.mxu0 0.0
  %1575 = vmatpush2.msra.mxu0 0.0
  %1576 = vmatprep.subr.mxu0 0.0
  %1577 = vmatpush2.msra.mxu0 0.0
  %1578 = vmatprep.subr.mxu0 0.0
  %1579 = vmatpush2.msra.mxu0 0.0
  %1580 = vmatprep.subr.mxu0 0.0
  %1581 = vmatpush2.msra.mxu0 0.0
  %1582 = vmatprep.subr.mxu0 0.0
  %1583 = vmatpush2.msra.mxu0 0.0
  %1584 = vmatprep.subr.mxu0 0.0
  %1585 = vmatpush2.msra.mxu0 0.0
  %1586 = vmatprep.subr.mxu0 0.0
  %1587 = vmatpush2.msra.mxu0 0.0
  %1588 = vmatprep.subr.mxu0 0.0
  %1589 = vmatpush2.msra.mxu0 0.0
  %1590 = vmatprep.subr.mxu0 0.0
  %1591 = vmatpush2.msra.mxu0 0.0
  %1592 = vmatprep.subr.mxu0 0.0
  %1593 = vmatpush2.msra.mxu0 0.0
  %1594 = vmatprep.subr.mxu0 0.0
  %1595 = vmatpush2.msra.mxu0 0.0
  %1596 = vmatprep.subr.mxu0 0.0
  %1597 = vmatpush2.msra.mxu0 0.0
  %1598 = vmatprep.subr.mxu0 0.0
  %1599 = vmatpush2.msra.mxu0 0.0
  %1600 = vmatprep.subr.mxu0 0.0
  %1601 = vmatpush2.msra.mxu0 0.0
  %1602 = vmatprep.subr.mxu0 0.0
  %1603 = vmatpush2.msra.mxu0 0.0
  %1604 = vmatprep.mubr.f32.mxu0 0.0
  %1605 = vmatmul.mubr.f32.gmra.mxu0 %v1538
  %v1606 = vpop.f32.mrf.mxu0
  %v1607 = vadd.f32 0.0, %v1606
  %v1608 = vpop.f32.mrf.mxu0
  %1609 = vdwg.mxu0
  %v1611 = vsel %vm288, %v1386, 0
  %1613 = vmatprep.subr.mxu0 0.0
  %1614 = vmatpush1.msra.mxu0 0.0
  %1615 = vmatprep.subr.mxu0 0.0
  %1616 = vmatpush1.msra.mxu0 0.0
  %1617 = vmatprep.subr.mxu0 0.0
  %1618 = vmatpush1.msra.mxu0 0.0
  %1619 = vmatprep.subr.mxu0 0.0
  %1620 = vmatpush1.msra.mxu0 0.0
  %1621 = vmatprep.subr.mxu0 0.0
  %1622 = vmatpush1.msra.mxu0 0.0
  %1623 = vmatprep.subr.mxu0 0.0
  %1624 = vmatpush1.msra.mxu0 0.0
  %1625 = vmatprep.subr.mxu0 0.0
  %1626 = vmatpush1.msra.mxu0 0.0
  %1627 = vmatprep.subr.mxu0 0.0
  %1628 = vmatpush1.msra.mxu0 0.0
  %1629 = vmatprep.subr.mxu0 0.0
  %1630 = vmatpush1.msra.mxu0 0.0
  %1631 = vmatprep.subr.mxu0 0.0
  %1632 = vmatpush1.msra.mxu0 0.0
  %1633 = vmatprep.subr.mxu0 0.0
  %1634 = vmatpush1.msra.mxu0 0.0
  %1635 = vmatprep.subr.mxu0 0.0
  %1636 = vmatpush1.msra.mxu0 0.0
  %1637 = vmatprep.subr.mxu0 0.0
  %1638 = vmatpush1.msra.mxu0 0.0
  %1639 = vmatprep.subr.mxu0 0.0
  %1640 = vmatpush1.msra.mxu0 0.0
  %1641 = vmatprep.subr.mxu0 0.0
  %1642 = vmatpush1.msra.mxu0 0.0
  %1643 = vmatprep.subr.mxu0 0.0
  %1644 = vmatpush1.msra.mxu0 %v667
  %1645 = vmatprep.subr.mxu0 0.0
  %1646 = vmatpush2.msra.mxu0 0.0
  %1647 = vmatprep.subr.mxu0 0.0
  %1648 = vmatpush2.msra.mxu0 0.0
  %1649 = vmatprep.subr.mxu0 0.0
  %1650 = vmatpush2.msra.mxu0 0.0
  %1651 = vmatprep.subr.mxu0 0.0
  %1652 = vmatpush2.msra.mxu0 0.0
  %1653 = vmatprep.subr.mxu0 0.0
  %1654 = vmatpush2.msra.mxu0 0.0
  %1655 = vmatprep.subr.mxu0 0.0
  %1656 = vmatpush2.msra.mxu0 0.0
  %1657 = vmatprep.subr.mxu0 0.0
  %1658 = vmatpush2.msra.mxu0 0.0
  %1659 = vmatprep.subr.mxu0 0.0
  %1660 = vmatpush2.msra.mxu0 0.0
  %1661 = vmatprep.subr.mxu0 0.0
  %1662 = vmatpush2.msra.mxu0 0.0
  %1663 = vmatprep.subr.mxu0 0.0
  %1664 = vmatpush2.msra.mxu0 0.0
  %1665 = vmatprep.subr.mxu0 0.0
  %1666 = vmatpush2.msra.mxu0 0.0
  %1667 = vmatprep.subr.mxu0 0.0
  %1668 = vmatpush2.msra.mxu0 0.0
  %1669 = vmatprep.subr.mxu0 0.0
  %1670 = vmatpush2.msra.mxu0 0.0
  %1671 = vmatprep.subr.mxu0 0.0
  %1672 = vmatpush2.msra.mxu0 0.0
  %1673 = vmatprep.subr.mxu0 0.0
  %1674 = vmatpush2.msra.mxu0 0.0
  %1675 = vmatprep.subr.mxu0 0.0
  %1676 = vmatpush2.msra.mxu0 0.0
  %1677 = vmatprep.mubr.f32.mxu0 0.0
  %1678 = vmatmul.mubr.f32.gmra.mxu0 %v1611
  %v1679 = vpop.f32.mrf.mxu0
  %v1680 = vadd.f32 0.0, %v1679
  %v1681 = vpop.f32.mrf.mxu0
  %1682 = vdwg.mxu0
  %v1684 = vsel %vm288, %v1387, 0
  %1686 = vmatprep.subr.mxu0 0.0
  %1687 = vmatpush1.msra.mxu0 0.0
  %1688 = vmatprep.subr.mxu0 0.0
  %1689 = vmatpush1.msra.mxu0 0.0
  %1690 = vmatprep.subr.mxu0 0.0
  %1691 = vmatpush1.msra.mxu0 0.0
  %1692 = vmatprep.subr.mxu0 0.0
  %1693 = vmatpush1.msra.mxu0 0.0
  %1694 = vmatprep.subr.mxu0 0.0
  %1695 = vmatpush1.msra.mxu0 0.0
  %1696 = vmatprep.subr.mxu0 0.0
  %1697 = vmatpush1.msra.mxu0 0.0
  %1698 = vmatprep.subr.mxu0 0.0
  %1699 = vmatpush1.msra.mxu0 0.0
  %1700 = vmatprep.subr.mxu0 0.0
  %1701 = vmatpush1.msra.mxu0 0.0
  %1702 = vmatprep.subr.mxu0 0.0
  %1703 = vmatpush1.msra.mxu0 0.0
  %1704 = vmatprep.subr.mxu0 0.0
  %1705 = vmatpush1.msra.mxu0 0.0
  %1706 = vmatprep.subr.mxu0 0.0
  %1707 = vmatpush1.msra.mxu0 0.0
  %1708 = vmatprep.subr.mxu0 0.0
  %1709 = vmatpush1.msra.mxu0 0.0
  %1710 = vmatprep.subr.mxu0 0.0
  %1711 = vmatpush1.msra.mxu0 0.0
  %1712 = vmatprep.subr.mxu0 0.0
  %1713 = vmatpush1.msra.mxu0 0.0
  %1714 = vmatprep.subr.mxu0 0.0
  %1715 = vmatpush1.msra.mxu0 0.0
  %1716 = vmatprep.subr.mxu0 0.0
  %1717 = vmatpush1.msra.mxu0 %v672
  %1718 = vmatprep.subr.mxu0 0.0
  %1719 = vmatpush2.msra.mxu0 0.0
  %1720 = vmatprep.subr.mxu0 0.0
  %1721 = vmatpush2.msra.mxu0 0.0
  %1722 = vmatprep.subr.mxu0 0.0
  %1723 = vmatpush2.msra.mxu0 0.0
  %1724 = vmatprep.subr.mxu0 0.0
  %1725 = vmatpush2.msra.mxu0 0.0
  %1726 = vmatprep.subr.mxu0 0.0
  %1727 = vmatpush2.msra.mxu0 0.0
  %1728 = vmatprep.subr.mxu0 0.0
  %1729 = vmatpush2.msra.mxu0 0.0
  %1730 = vmatprep.subr.mxu0 0.0
  %1731 = vmatpush2.msra.mxu0 0.0
  %1732 = vmatprep.subr.mxu0 0.0
  %1733 = vmatpush2.msra.mxu0 0.0
  %1734 = vmatprep.subr.mxu0 0.0
  %1735 = vmatpush2.msra.mxu0 0.0
  %1736 = vmatprep.subr.mxu0 0.0
  %1737 = vmatpush2.msra.mxu0 0.0
  %1738 = vmatprep.subr.mxu0 0.0
  %1739 = vmatpush2.msra.mxu0 0.0
  %1740 = vmatprep.subr.mxu0 0.0
  %1741 = vmatpush2.msra.mxu0 0.0
  %1742 = vmatprep.subr.mxu0 0.0
  %1743 = vmatpush2.msra.mxu0 0.0
  %1744 = vmatprep.subr.mxu0 0.0
  %1745 = vmatpush2.msra.mxu0 0.0
  %1746 = vmatprep.subr.mxu0 0.0
  %1747 = vmatpush2.msra.mxu0 0.0
  %1748 = vmatprep.subr.mxu0 0.0
  %1749 = vmatpush2.msra.mxu0 0.0
  %1750 = vmatprep.mubr.f32.mxu0 0.0
  %1751 = vmatmul.mubr.f32.gmra.mxu0 %v1684
  %v1752 = vpop.f32.mrf.mxu0
  %v1753 = vadd.f32 0.0, %v1752
  %v1754 = vpop.f32.mrf.mxu0
  %1755 = vdwg.mxu0
  %v1757 = vsel %vm288, %v1388, 0
  %1759 = vmatprep.subr.mxu0 0.0
  %1760 = vmatpush1.msra.mxu0 0.0
  %1761 = vmatprep.subr.mxu0 0.0
  %1762 = vmatpush1.msra.mxu0 0.0
  %1763 = vmatprep.subr.mxu0 0.0
  %1764 = vmatpush1.msra.mxu0 0.0
  %1765 = vmatprep.subr.mxu0 0.0
  %1766 = vmatpush1.msra.mxu0 0.0
  %1767 = vmatprep.subr.mxu0 0.0
  %1768 = vmatpush1.msra.mxu0 0.0
  %1769 = vmatprep.subr.mxu0 0.0
  %1770 = vmatpush1.msra.mxu0 0.0
  %1771 = vmatprep.subr.mxu0 0.0
  %1772 = vmatpush1.msra.mxu0 0.0
  %1773 = vmatprep.subr.mxu0 0.0
  %1774 = vmatpush1.msra.mxu0 0.0
  %1775 = vmatprep.subr.mxu0 0.0
  %1776 = vmatpush1.msra.mxu0 0.0
  %1777 = vmatprep.subr.mxu0 0.0
  %1778 = vmatpush1.msra.mxu0 0.0
  %1779 = vmatprep.subr.mxu0 0.0
  %1780 = vmatpush1.msra.mxu0 0.0
  %1781 = vmatprep.subr.mxu0 0.0
  %1782 = vmatpush1.msra.mxu0 0.0
  %1783 = vmatprep.subr.mxu0 0.0
  %1784 = vmatpush1.msra.mxu0 0.0
  %1785 = vmatprep.subr.mxu0 0.0
  %1786 = vmatpush1.msra.mxu0 0.0
  %1787 = vmatprep.subr.mxu0 0.0
  %1788 = vmatpush1.msra.mxu0 0.0
  %1789 = vmatprep.subr.mxu0 0.0
  %1790 = vmatpush1.msra.mxu0 %v675
  %1791 = vmatprep.subr.mxu0 0.0
  %1792 = vmatpush2.msra.mxu0 0.0
  %1793 = vmatprep.subr.mxu0 0.0
  %1794 = vmatpush2.msra.mxu0 0.0
  %1795 = vmatprep.subr.mxu0 0.0
  %1796 = vmatpush2.msra.mxu0 0.0
  %1797 = vmatprep.subr.mxu0 0.0
  %1798 = vmatpush2.msra.mxu0 0.0
  %1799 = vmatprep.subr.mxu0 0.0
  %1800 = vmatpush2.msra.mxu0 0.0
  %1801 = vmatprep.subr.mxu0 0.0
  %1802 = vmatpush2.msra.mxu0 0.0
  %1803 = vmatprep.subr.mxu0 0.0
  %1804 = vmatpush2.msra.mxu0 0.0
  %1805 = vmatprep.subr.mxu0 0.0
  %1806 = vmatpush2.msra.mxu0 0.0
  %1807 = vmatprep.subr.mxu0 0.0
  %1808 = vmatpush2.msra.mxu0 0.0
  %1809 = vmatprep.subr.mxu0 0.0
  %1810 = vmatpush2.msra.mxu0 0.0
  %1811 = vmatprep.subr.mxu0 0.0
  %1812 = vmatpush2.msra.mxu0 0.0
  %1813 = vmatprep.subr.mxu0 0.0
  %1814 = vmatpush2.msra.mxu0 0.0
  %1815 = vmatprep.subr.mxu0 0.0
  %1816 = vmatpush2.msra.mxu0 0.0
  %1817 = vmatprep.subr.mxu0 0.0
  %1818 = vmatpush2.msra.mxu0 0.0
  %1819 = vmatprep.subr.mxu0 0.0
  %1820 = vmatpush2.msra.mxu0 0.0
  %1821 = vmatprep.subr.mxu0 0.0
  %1822 = vmatpush2.msra.mxu0 0.0
  %1823 = vmatprep.mubr.f32.mxu0 0.0
  %1824 = vmatmul.mubr.f32.gmra.mxu0 %v1757
  %v1825 = vpop.f32.mrf.mxu0
  %v1826 = vadd.f32 0.0, %v1825
  %v1827 = vpop.f32.mrf.mxu0
  %1828 = vdwg.mxu0
  %v1830 = vsel %vm288, %v1389, 0
  %1832 = vmatprep.subr.mxu0 0.0
  %1833 = vmatpush1.msra.mxu0 0.0
  %1834 = vmatprep.subr.mxu0 0.0
  %1835 = vmatpush1.msra.mxu0 0.0
  %1836 = vmatprep.subr.mxu0 0.0
  %1837 = vmatpush1.msra.mxu0 0.0
  %1838 = vmatprep.subr.mxu0 0.0
  %1839 = vmatpush1.msra.mxu0 0.0
  %1840 = vmatprep.subr.mxu0 0.0
  %1841 = vmatpush1.msra.mxu0 0.0
  %1842 = vmatprep.subr.mxu0 0.0
  %1843 = vmatpush1.msra.mxu0 0.0
  %1844 = vmatprep.subr.mxu0 0.0
  %1845 = vmatpush1.msra.mxu0 0.0
  %1846 = vmatprep.subr.mxu0 0.0
  %1847 = vmatpush1.msra.mxu0 0.0
  %1848 = vmatprep.subr.mxu0 0.0
  %1849 = vmatpush1.msra.mxu0 0.0
  %1850 = vmatprep.subr.mxu0 0.0
  %1851 = vmatpush1.msra.mxu0 0.0
  %1852 = vmatprep.subr.mxu0 0.0
  %1853 = vmatpush1.msra.mxu0 0.0
  %1854 = vmatprep.subr.mxu0 0.0
  %1855 = vmatpush1.msra.mxu0 0.0
  %1856 = vmatprep.subr.mxu0 0.0
  %1857 = vmatpush1.msra.mxu0 0.0
  %1858 = vmatprep.subr.mxu0 0.0
  %1859 = vmatpush1.msra.mxu0 0.0
  %1860 = vmatprep.subr.mxu0 0.0
  %1861 = vmatpush1.msra.mxu0 0.0
  %1862 = vmatprep.subr.mxu0 0.0
  %1863 = vmatpush1.msra.mxu0 %v680
  %1864 = vmatprep.subr.mxu0 0.0
  %1865 = vmatpush2.msra.mxu0 0.0
  %1866 = vmatprep.subr.mxu0 0.0
  %1867 = vmatpush2.msra.mxu0 0.0
  %1868 = vmatprep.subr.mxu0 0.0
  %1869 = vmatpush2.msra.mxu0 0.0
  %1870 = vmatprep.subr.mxu0 0.0
  %1871 = vmatpush2.msra.mxu0 0.0
  %1872 = vmatprep.subr.mxu0 0.0
  %1873 = vmatpush2.msra.mxu0 0.0
  %1874 = vmatprep.subr.mxu0 0.0
  %1875 = vmatpush2.msra.mxu0 0.0
  %1876 = vmatprep.subr.mxu0 0.0
  %1877 = vmatpush2.msra.mxu0 0.0
  %1878 = vmatprep.subr.mxu0 0.0
  %1879 = vmatpush2.msra.mxu0 0.0
  %1880 = vmatprep.subr.mxu0 0.0
  %1881 = vmatpush2.msra.mxu0 0.0
  %1882 = vmatprep.subr.mxu0 0.0
  %1883 = vmatpush2.msra.mxu0 0.0
  %1884 = vmatprep.subr.mxu0 0.0
  %1885 = vmatpush2.msra.mxu0 0.0
  %1886 = vmatprep.subr.mxu0 0.0
  %1887 = vmatpush2.msra.mxu0 0.0
  %1888 = vmatprep.subr.mxu0 0.0
  %1889 = vmatpush2.msra.mxu0 0.0
  %1890 = vmatprep.subr.mxu0 0.0
  %1891 = vmatpush2.msra.mxu0 0.0
  %1892 = vmatprep.subr.mxu0 0.0
  %1893 = vmatpush2.msra.mxu0 0.0
  %1894 = vmatprep.subr.mxu0 0.0
  %1895 = vmatpush2.msra.mxu0 0.0
  %1896 = vmatprep.mubr.f32.mxu0 0.0
  %1897 = vmatmul.mubr.f32.gmra.mxu0 %v1830
  %v1898 = vpop.f32.mrf.mxu0
  %v1899 = vadd.f32 0.0, %v1898
  %v1900 = vpop.f32.mrf.mxu0
  %1901 = vdwg.mxu0
  %v1903 = vsel %vm288, %v1390, 0
  %1905 = vmatprep.subr.mxu0 0.0
  %1906 = vmatpush1.msra.mxu0 0.0
  %1907 = vmatprep.subr.mxu0 0.0
  %1908 = vmatpush1.msra.mxu0 0.0
  %1909 = vmatprep.subr.mxu0 0.0
  %1910 = vmatpush1.msra.mxu0 0.0
  %1911 = vmatprep.subr.mxu0 0.0
  %1912 = vmatpush1.msra.mxu0 0.0
  %1913 = vmatprep.subr.mxu0 0.0
  %1914 = vmatpush1.msra.mxu0 0.0
  %1915 = vmatprep.subr.mxu0 0.0
  %1916 = vmatpush1.msra.mxu0 0.0
  %1917 = vmatprep.subr.mxu0 0.0
  %1918 = vmatpush1.msra.mxu0 0.0
  %1919 = vmatprep.subr.mxu0 0.0
  %1920 = vmatpush1.msra.mxu0 0.0
  %1921 = vmatprep.subr.mxu0 0.0
  %1922 = vmatpush1.msra.mxu0 0.0
  %1923 = vmatprep.subr.mxu0 0.0
  %1924 = vmatpush1.msra.mxu0 0.0
  %1925 = vmatprep.subr.mxu0 0.0
  %1926 = vmatpush1.msra.mxu0 0.0
  %1927 = vmatprep.subr.mxu0 0.0
  %1928 = vmatpush1.msra.mxu0 0.0
  %1929 = vmatprep.subr.mxu0 0.0
  %1930 = vmatpush1.msra.mxu0 0.0
  %1931 = vmatprep.subr.mxu0 0.0
  %1932 = vmatpush1.msra.mxu0 0.0
  %1933 = vmatprep.subr.mxu0 0.0
  %1934 = vmatpush1.msra.mxu0 0.0
  %1935 = vmatprep.subr.mxu0 0.0
  %1936 = vmatpush1.msra.mxu0 %v683
  %1937 = vmatprep.subr.mxu0 0.0
  %1938 = vmatpush2.msra.mxu0 0.0
  %1939 = vmatprep.subr.mxu0 0.0
  %1940 = vmatpush2.msra.mxu0 0.0
  %1941 = vmatprep.subr.mxu0 0.0
  %1942 = vmatpush2.msra.mxu0 0.0
  %1943 = vmatprep.subr.mxu0 0.0
  %1944 = vmatpush2.msra.mxu0 0.0
  %1945 = vmatprep.subr.mxu0 0.0
  %1946 = vmatpush2.msra.mxu0 0.0
  %1947 = vmatprep.subr.mxu0 0.0
  %1948 = vmatpush2.msra.mxu0 0.0
  %1949 = vmatprep.subr.mxu0 0.0
  %1950 = vmatpush2.msra.mxu0 0.0
  %1951 = vmatprep.subr.mxu0 0.0
  %1952 = vmatpush2.msra.mxu0 0.0
  %1953 = vmatprep.subr.mxu0 0.0
  %1954 = vmatpush2.msra.mxu0 0.0
  %1955 = vmatprep.subr.mxu0 0.0
  %1956 = vmatpush2.msra.mxu0 0.0
  %1957 = vmatprep.subr.mxu0 0.0
  %1958 = vmatpush2.msra.mxu0 0.0
  %1959 = vmatprep.subr.mxu0 0.0
  %1960 = vmatpush2.msra.mxu0 0.0
  %1961 = vmatprep.subr.mxu0 0.0
  %1962 = vmatpush2.msra.mxu0 0.0
  %1963 = vmatprep.subr.mxu0 0.0
  %1964 = vmatpush2.msra.mxu0 0.0
  %1965 = vmatprep.subr.mxu0 0.0
  %1966 = vmatpush2.msra.mxu0 0.0
  %1967 = vmatprep.subr.mxu0 0.0
  %1968 = vmatpush2.msra.mxu0 0.0
  %1969 = vmatprep.mubr.f32.mxu0 0.0
  %1970 = vmatmul.mubr.f32.gmra.mxu0 %v1903
  %v1971 = vpop.f32.mrf.mxu0
  %v1972 = vadd.f32 0.0, %v1971
  %v1973 = vpop.f32.mrf.mxu0
  %1974 = vdwg.mxu0
  %v1975 = vpack.c.bf16 %v1534, %v1461
  %v1976 = vpack.c.bf16 %v1680, %v1607
  %v1977 = vpack.c.bf16 %v1826, %v1753
  %v1978 = vpack.c.bf16 %v1972, %v1899
  %v1979 = vld [vmem:[%s7] sm:$0xf]
  %v1980 = vld [vmem:[%s7 + $0x4] sm:$0xf]
  %s1981 = scalar_lea.vmem %s4, 16
  %v1982 = vld [vmem:[%s1981] sm:$0xf]
  %v1983 = vld [vmem:[%s1981 + $0x4] sm:$0xf]
  %v1984 = vld [vmem:[%s1981 + $0x8] sm:$0xf]
  %v1985 = vld [vmem:[%s1981 + $0xc] sm:$0xf]
  %v1990 = vunpack.c.l.b16 %v1982
  %v1991 = vunpack.c.l.b16 %v1983
  %v1992 = vunpack.c.l.b16 %v1984
  %v1993 = vunpack.c.l.b16 %v1985
  %v1994 = vpack.c.b16 %v1991, %v1990
  %v1995 = vpack.c.b16 %v1993, %v1992
  %1998 = vmatprep.subr.bf16.mxu0 0
  %1999 = vmatpush1.bf16.msra.mxu0 0
  %2000 = vmatprep.subr.bf16.mxu0 0
  %2001 = vmatpush1.bf16.msra.mxu0 0
  %2002 = vmatprep.subr.bf16.mxu0 0
  %2003 = vmatpush1.bf16.msra.mxu0 0
  %2004 = vmatprep.subr.bf16.mxu0 0
  %2005 = vmatpush1.bf16.msra.mxu0 0
  %2006 = vmatprep.subr.bf16.mxu0 0
  %2007 = vmatpush1.bf16.msra.mxu0 0
  %2008 = vmatprep.subr.bf16.mxu0 0
  %2009 = vmatpush1.bf16.msra.mxu0 0
  %2010 = vmatprep.subr.bf16.mxu0 0
  %2011 = vmatpush1.bf16.msra.mxu0 %v1995
  %2012 = vmatprep.subr.bf16.mxu0 0
  %2013 = vmatpush1.bf16.msra.mxu0 %v1994
  %2014 = vmatprep.subr.bf16.mxu0 0
  %2015 = vmatpush2.bf16.msra.mxu0 0
  %2016 = vmatprep.subr.bf16.mxu0 0
  %2017 = vmatpush2.bf16.msra.mxu0 0
  %2018 = vmatprep.subr.bf16.mxu0 0
  %2019 = vmatpush2.bf16.msra.mxu0 0
  %2020 = vmatprep.subr.bf16.mxu0 0
  %2021 = vmatpush2.bf16.msra.mxu0 0
  %2022 = vmatprep.subr.bf16.mxu0 0
  %2023 = vmatpush2.bf16.msra.mxu0 0
  %2024 = vmatprep.subr.bf16.mxu0 0
  %2025 = vmatpush2.bf16.msra.mxu0 0
  %2026 = vmatprep.subr.bf16.mxu0 0
  %2027 = vmatpush2.bf16.msra.mxu0 0
  %2028 = vmatprep.subr.bf16.mxu0 0
  %2029 = vmatpush2.bf16.msra.mxu0 0
  %2030 = vmatprep.mubr.bf16.mxu0 0
  %2031 = vmatmul.mubr.bf16.gmra.mxu0 %v448
  %v2032 = vpop.f32.mrf.mxu0
  %v2033 = vadd.f32 0.0, %v2032
  %v2034 = vpop.f32.mrf.mxu0
  %v2035 = vpop.f32.mrf.mxu0
  %v2036 = vadd.f32 0.0, %v2035
  %v2037 = vpop.f32.mrf.mxu0
  %2038 = vmatprep.mubr.bf16.mxu0 0
  %2039 = vmatmul.mubr.bf16.gmra.mxu0 %v451
  %v2040 = vpop.f32.mrf.mxu0
  %v2041 = vadd.f32 0.0, %v2040
  %v2042 = vpop.f32.mrf.mxu0
  %v2043 = vpop.f32.mrf.mxu0
  %v2044 = vadd.f32 0.0, %v2043
  %v2045 = vpop.f32.mrf.mxu0
  %2046 = vmatprep.mubr.bf16.mxu0 0
  %2047 = vmatmul.mubr.bf16.gmra.mxu0 %v454
  %v2048 = vpop.f32.mrf.mxu0
  %v2049 = vadd.f32 0.0, %v2048
  %v2050 = vpop.f32.mrf.mxu0
  %v2051 = vpop.f32.mrf.mxu0
  %v2052 = vadd.f32 0.0, %v2051
  %v2053 = vpop.f32.mrf.mxu0
  %2054 = vmatprep.mubr.bf16.mxu0 0
  %2055 = vmatmul.mubr.bf16.gmra.mxu0 %v457
  %v2056 = vpop.f32.mrf.mxu0
  %v2057 = vadd.f32 0.0, %v2056
  %v2058 = vpop.f32.mrf.mxu0
  %v2059 = vpop.f32.mrf.mxu0
  %v2060 = vadd.f32 0.0, %v2059
  %v2061 = vpop.f32.mrf.mxu0
  %2062 = vdwg.mxu0
  %s2063 = scalar_lea.vmem %s5, 16
  %v2064 = vld [vmem:[%s2063] sm:$0xf]
  %v2065 = vld [vmem:[%s2063 + $0x4] sm:$0xf]
  %v2066 = vld [vmem:[%s2063 + $0x8] sm:$0xf]
  %v2067 = vld [vmem:[%s2063 + $0xc] sm:$0xf]
  %v2072 = vunpack.c.l.b16 %v2064
  %v2073 = vunpack.c.l.b16 %v2065
  %v2074 = vunpack.c.l.b16 %v2066
  %v2075 = vunpack.c.l.b16 %v2067
  %v2076 = vpack.c.b16 %v2073, %v2072
  %v2077 = vpack.c.b16 %v2075, %v2074
  %2080 = vmatprep.subr.bf16.mxu0 0
  %2081 = vmatpush1.bf16.msra.mxu0 0
  %2082 = vmatprep.subr.bf16.mxu0 0
  %2083 = vmatpush1.bf16.msra.mxu0 0
  %2084 = vmatprep.subr.bf16.mxu0 0
  %2085 = vmatpush1.bf16.msra.mxu0 0
  %2086 = vmatprep.subr.bf16.mxu0 0
  %2087 = vmatpush1.bf16.msra.mxu0 0
  %2088 = vmatprep.subr.bf16.mxu0 0
  %2089 = vmatpush1.bf16.msra.mxu0 0
  %2090 = vmatprep.subr.bf16.mxu0 0
  %2091 = vmatpush1.bf16.msra.mxu0 0
  %2092 = vmatprep.subr.bf16.mxu0 0
  %2093 = vmatpush1.bf16.msra.mxu0 %v2077
  %2094 = vmatprep.subr.bf16.mxu0 0
  %2095 = vmatpush1.bf16.msra.mxu0 %v2076
  %2096 = vmatprep.subr.bf16.mxu0 0
  %2097 = vmatpush2.bf16.msra.mxu0 0
  %2098 = vmatprep.subr.bf16.mxu0 0
  %2099 = vmatpush2.bf16.msra.mxu0 0
  %2100 = vmatprep.subr.bf16.mxu0 0
  %2101 = vmatpush2.bf16.msra.mxu0 0
  %2102 = vmatprep.subr.bf16.mxu0 0
  %2103 = vmatpush2.bf16.msra.mxu0 0
  %2104 = vmatprep.subr.bf16.mxu0 0
  %2105 = vmatpush2.bf16.msra.mxu0 0
  %2106 = vmatprep.subr.bf16.mxu0 0
  %2107 = vmatpush2.bf16.msra.mxu0 0
  %2108 = vmatprep.subr.bf16.mxu0 0
  %2109 = vmatpush2.bf16.msra.mxu0 0
  %2110 = vmatprep.subr.bf16.mxu0 0
  %2111 = vmatpush2.bf16.msra.mxu0 0
  %2112 = vmatprep.mubr.bf16.mxu0 0
  %2113 = vmatmul.mubr.bf16.gmra.mxu0 %v448
  %v2114 = vpop.f32.mrf.mxu0
  %v2115 = vadd.f32 0.0, %v2114
  %v2116 = vpop.f32.mrf.mxu0
  %v2117 = vpop.f32.mrf.mxu0
  %v2118 = vadd.f32 0.0, %v2117
  %v2119 = vpop.f32.mrf.mxu0
  %2120 = vmatprep.mubr.bf16.mxu0 0
  %2121 = vmatmul.mubr.bf16.gmra.mxu0 %v451
  %v2122 = vpop.f32.mrf.mxu0
  %v2123 = vadd.f32 0.0, %v2122
  %v2124 = vpop.f32.mrf.mxu0
  %v2125 = vpop.f32.mrf.mxu0
  %v2126 = vadd.f32 0.0, %v2125
  %v2127 = vpop.f32.mrf.mxu0
  %2128 = vmatprep.mubr.bf16.mxu0 0
  %2129 = vmatmul.mubr.bf16.gmra.mxu0 %v454
  %v2130 = vpop.f32.mrf.mxu0
  %v2131 = vadd.f32 0.0, %v2130
  %v2132 = vpop.f32.mrf.mxu0
  %v2133 = vpop.f32.mrf.mxu0
  %v2134 = vadd.f32 0.0, %v2133
  %v2135 = vpop.f32.mrf.mxu0
  %2136 = vmatprep.mubr.bf16.mxu0 0
  %2137 = vmatmul.mubr.bf16.gmra.mxu0 %v457
  %v2138 = vpop.f32.mrf.mxu0
  %v2139 = vadd.f32 0.0, %v2138
  %v2140 = vpop.f32.mrf.mxu0
  %v2141 = vpop.f32.mrf.mxu0
  %v2142 = vadd.f32 0.0, %v2141
  %v2143 = vpop.f32.mrf.mxu0
  %2144 = vdwg.mxu0
  %s2145 = scalar_lea.vmem %s6, 16
  %v2146 = vld [vmem:[%s2145] sm:$0xf]
  %v2147 = vld [vmem:[%s2145 + $0x4] sm:$0xf]
  %v2148 = vld [vmem:[%s2145 + $0x8] sm:$0xf]
  %v2149 = vld [vmem:[%s2145 + $0xc] sm:$0xf]
  %v2154 = vunpack.c.l.b16 %v2146
  %v2155 = vunpack.c.l.b16 %v2147
  %v2156 = vunpack.c.l.b16 %v2148
  %v2157 = vunpack.c.l.b16 %v2149
  %v2158 = vpack.c.b16 %v2155, %v2154
  %v2159 = vpack.c.b16 %v2157, %v2156
  %2162 = vmatprep.subr.bf16.mxu0 0
  %2163 = vmatpush1.bf16.msra.mxu0 0
  %2164 = vmatprep.subr.bf16.mxu0 0
  %2165 = vmatpush1.bf16.msra.mxu0 0
  %2166 = vmatprep.subr.bf16.mxu0 0
  %2167 = vmatpush1.bf16.msra.mxu0 0
  %2168 = vmatprep.subr.bf16.mxu0 0
  %2169 = vmatpush1.bf16.msra.mxu0 0
  %2170 = vmatprep.subr.bf16.mxu0 0
  %2171 = vmatpush1.bf16.msra.mxu0 0
  %2172 = vmatprep.subr.bf16.mxu0 0
  %2173 = vmatpush1.bf16.msra.mxu0 0
  %2174 = vmatprep.subr.bf16.mxu0 0
  %2175 = vmatpush1.bf16.msra.mxu0 %v2159
  %2176 = vmatprep.subr.bf16.mxu0 0
  %2177 = vmatpush1.bf16.msra.mxu0 %v2158
  %2178 = vmatprep.subr.bf16.mxu0 0
  %2179 = vmatpush2.bf16.msra.mxu0 0
  %2180 = vmatprep.subr.bf16.mxu0 0
  %2181 = vmatpush2.bf16.msra.mxu0 0
  %2182 = vmatprep.subr.bf16.mxu0 0
  %2183 = vmatpush2.bf16.msra.mxu0 0
  %2184 = vmatprep.subr.bf16.mxu0 0
  %2185 = vmatpush2.bf16.msra.mxu0 0
  %2186 = vmatprep.subr.bf16.mxu0 0
  %2187 = vmatpush2.bf16.msra.mxu0 0
  %2188 = vmatprep.subr.bf16.mxu0 0
  %2189 = vmatpush2.bf16.msra.mxu0 0
  %2190 = vmatprep.subr.bf16.mxu0 0
  %2191 = vmatpush2.bf16.msra.mxu0 0
  %2192 = vmatprep.subr.bf16.mxu0 0
  %2193 = vmatpush2.bf16.msra.mxu0 0
  %2194 = vmatprep.mubr.bf16.mxu0 0
  %2195 = vmatmul.mubr.bf16.gmra.mxu0 %v448
  %v2196 = vpop.f32.mrf.mxu0
  %v2197 = vadd.f32 0.0, %v2196
  %v2198 = vpop.f32.mrf.mxu0
  %v2199 = vpop.f32.mrf.mxu0
  %v2200 = vadd.f32 0.0, %v2199
  %v2201 = vpop.f32.mrf.mxu0
  %2202 = vmatprep.mubr.bf16.mxu0 0
  %2203 = vmatmul.mubr.bf16.gmra.mxu0 %v451
  %v2204 = vpop.f32.mrf.mxu0
  %v2205 = vadd.f32 0.0, %v2204
  %v2206 = vpop.f32.mrf.mxu0
  %v2207 = vpop.f32.mrf.mxu0
  %v2208 = vadd.f32 0.0, %v2207
  %v2209 = vpop.f32.mrf.mxu0
  %2210 = vmatprep.mubr.bf16.mxu0 0
  %2211 = vmatmul.mubr.bf16.gmra.mxu0 %v454
  %v2212 = vpop.f32.mrf.mxu0
  %v2213 = vadd.f32 0.0, %v2212
  %v2214 = vpop.f32.mrf.mxu0
  %v2215 = vpop.f32.mrf.mxu0
  %v2216 = vadd.f32 0.0, %v2215
  %v2217 = vpop.f32.mrf.mxu0
  %2218 = vmatprep.mubr.bf16.mxu0 0
  %2219 = vmatmul.mubr.bf16.gmra.mxu0 %v457
  %v2220 = vpop.f32.mrf.mxu0
  %v2221 = vadd.f32 0.0, %v2220
  %v2222 = vpop.f32.mrf.mxu0
  %v2223 = vpop.f32.mrf.mxu0
  %v2224 = vadd.f32 0.0, %v2223
  %v2225 = vpop.f32.mrf.mxu0
  %2226 = vdwg.mxu0
  %v2228 = vsel %vm686, %v2033, 0
  %v2231 = vsel %vm686, %v2115, 0
  %2233 = vmatprep.subr.mxu0 0.0
  %2234 = vmatpush1.xpose.msra.mxu0 0.0
  %2235 = vmatprep.subr.mxu0 0.0
  %2236 = vmatpush1.xpose.msra.mxu0 0.0
  %2237 = vmatprep.subr.mxu0 0.0
  %2238 = vmatpush1.xpose.msra.mxu0 0.0
  %2239 = vmatprep.subr.mxu0 0.0
  %2240 = vmatpush1.xpose.msra.mxu0 0.0
  %2241 = vmatprep.subr.mxu0 0.0
  %2242 = vmatpush1.xpose.msra.mxu0 0.0
  %2243 = vmatprep.subr.mxu0 0.0
  %2244 = vmatpush1.xpose.msra.mxu0 0.0
  %2245 = vmatprep.subr.mxu0 0.0
  %2246 = vmatpush1.xpose.msra.mxu0 0.0
  %2247 = vmatprep.subr.mxu0 0.0
  %2248 = vmatpush1.xpose.msra.mxu0 0.0
  %2249 = vmatprep.subr.mxu0 0.0
  %2250 = vmatpush1.xpose.msra.mxu0 0.0
  %2251 = vmatprep.subr.mxu0 0.0
  %2252 = vmatpush1.xpose.msra.mxu0 0.0
  %2253 = vmatprep.subr.mxu0 0.0
  %2254 = vmatpush1.xpose.msra.mxu0 0.0
  %2255 = vmatprep.subr.mxu0 0.0
  %2256 = vmatpush1.xpose.msra.mxu0 0.0
  %2257 = vmatprep.subr.mxu0 0.0
  %2258 = vmatpush1.xpose.msra.mxu0 0.0
  %2259 = vmatprep.subr.mxu0 0.0
  %2260 = vmatpush1.xpose.msra.mxu0 0.0
  %2261 = vmatprep.subr.mxu0 0.0
  %2262 = vmatpush1.xpose.msra.mxu0 0.0
  %2263 = vmatprep.subr.mxu0 0.0
  %2264 = vmatpush1.xpose.msra.mxu0 %v2231
  %2265 = vmatprep.subr.mxu0 0.0
  %2266 = vmatpush2.xpose.msra.mxu0 0.0
  %2267 = vmatprep.subr.mxu0 0.0
  %2268 = vmatpush2.xpose.msra.mxu0 0.0
  %2269 = vmatprep.subr.mxu0 0.0
  %2270 = vmatpush2.xpose.msra.mxu0 0.0
  %2271 = vmatprep.subr.mxu0 0.0
  %2272 = vmatpush2.xpose.msra.mxu0 0.0
  %2273 = vmatprep.subr.mxu0 0.0
  %2274 = vmatpush2.xpose.msra.mxu0 0.0
  %2275 = vmatprep.subr.mxu0 0.0
  %2276 = vmatpush2.xpose.msra.mxu0 0.0
  %2277 = vmatprep.subr.mxu0 0.0
  %2278 = vmatpush2.xpose.msra.mxu0 0.0
  %2279 = vmatprep.subr.mxu0 0.0
  %2280 = vmatpush2.xpose.msra.mxu0 0.0
  %2281 = vmatprep.subr.mxu0 0.0
  %2282 = vmatpush2.xpose.msra.mxu0 0.0
  %2283 = vmatprep.subr.mxu0 0.0
  %2284 = vmatpush2.xpose.msra.mxu0 0.0
  %2285 = vmatprep.subr.mxu0 0.0
  %2286 = vmatpush2.xpose.msra.mxu0 0.0
  %2287 = vmatprep.subr.mxu0 0.0
  %2288 = vmatpush2.xpose.msra.mxu0 0.0
  %2289 = vmatprep.subr.mxu0 0.0
  %2290 = vmatpush2.xpose.msra.mxu0 0.0
  %2291 = vmatprep.subr.mxu0 0.0
  %2292 = vmatpush2.xpose.msra.mxu0 0.0
  %2293 = vmatprep.subr.mxu0 0.0
  %2294 = vmatpush2.xpose.msra.mxu0 0.0
  %2295 = vmatprep.subr.mxu0 0.0
  %2296 = vmatpush2.xpose.msra.mxu0 0.0
  %2297 = vmatprep.mubr.f32.mxu0 0.0
  %2298 = vmatmul.mubr.f32.gmra.mxu0 %v2228
  %v2299 = vpop.f32.mrf.mxu0
  %v2300 = vadd.f32 0.0, %v2299
  %v2301 = vpop.f32.mrf.mxu0
  %2302 = vdwg.mxu0
  %v2304 = vsel %vm686, %v2036, 0
  %v2307 = vsel %vm686, %v2118, 0
  %2309 = vmatprep.subr.mxu0 0.0
  %2310 = vmatpush1.xpose.msra.mxu0 0.0
  %2311 = vmatprep.subr.mxu0 0.0
  %2312 = vmatpush1.xpose.msra.mxu0 0.0
  %2313 = vmatprep.subr.mxu0 0.0
  %2314 = vmatpush1.xpose.msra.mxu0 0.0
  %2315 = vmatprep.subr.mxu0 0.0
  %2316 = vmatpush1.xpose.msra.mxu0 0.0
  %2317 = vmatprep.subr.mxu0 0.0
  %2318 = vmatpush1.xpose.msra.mxu0 0.0
  %2319 = vmatprep.subr.mxu0 0.0
  %2320 = vmatpush1.xpose.msra.mxu0 0.0
  %2321 = vmatprep.subr.mxu0 0.0
  %2322 = vmatpush1.xpose.msra.mxu0 0.0
  %2323 = vmatprep.subr.mxu0 0.0
  %2324 = vmatpush1.xpose.msra.mxu0 0.0
  %2325 = vmatprep.subr.mxu0 0.0
  %2326 = vmatpush1.xpose.msra.mxu0 0.0
  %2327 = vmatprep.subr.mxu0 0.0
  %2328 = vmatpush1.xpose.msra.mxu0 0.0
  %2329 = vmatprep.subr.mxu0 0.0
  %2330 = vmatpush1.xpose.msra.mxu0 0.0
  %2331 = vmatprep.subr.mxu0 0.0
  %2332 = vmatpush1.xpose.msra.mxu0 0.0
  %2333 = vmatprep.subr.mxu0 0.0
  %2334 = vmatpush1.xpose.msra.mxu0 0.0
  %2335 = vmatprep.subr.mxu0 0.0
  %2336 = vmatpush1.xpose.msra.mxu0 0.0
  %2337 = vmatprep.subr.mxu0 0.0
  %2338 = vmatpush1.xpose.msra.mxu0 0.0
  %2339 = vmatprep.subr.mxu0 0.0
  %2340 = vmatpush1.xpose.msra.mxu0 %v2307
  %2341 = vmatprep.subr.mxu0 0.0
  %2342 = vmatpush2.xpose.msra.mxu0 0.0
  %2343 = vmatprep.subr.mxu0 0.0
  %2344 = vmatpush2.xpose.msra.mxu0 0.0
  %2345 = vmatprep.subr.mxu0 0.0
  %2346 = vmatpush2.xpose.msra.mxu0 0.0
  %2347 = vmatprep.subr.mxu0 0.0
  %2348 = vmatpush2.xpose.msra.mxu0 0.0
  %2349 = vmatprep.subr.mxu0 0.0
  %2350 = vmatpush2.xpose.msra.mxu0 0.0
  %2351 = vmatprep.subr.mxu0 0.0
  %2352 = vmatpush2.xpose.msra.mxu0 0.0
  %2353 = vmatprep.subr.mxu0 0.0
  %2354 = vmatpush2.xpose.msra.mxu0 0.0
  %2355 = vmatprep.subr.mxu0 0.0
  %2356 = vmatpush2.xpose.msra.mxu0 0.0
  %2357 = vmatprep.subr.mxu0 0.0
  %2358 = vmatpush2.xpose.msra.mxu0 0.0
  %2359 = vmatprep.subr.mxu0 0.0
  %2360 = vmatpush2.xpose.msra.mxu0 0.0
  %2361 = vmatprep.subr.mxu0 0.0
  %2362 = vmatpush2.xpose.msra.mxu0 0.0
  %2363 = vmatprep.subr.mxu0 0.0
  %2364 = vmatpush2.xpose.msra.mxu0 0.0
  %2365 = vmatprep.subr.mxu0 0.0
  %2366 = vmatpush2.xpose.msra.mxu0 0.0
  %2367 = vmatprep.subr.mxu0 0.0
  %2368 = vmatpush2.xpose.msra.mxu0 0.0
  %2369 = vmatprep.subr.mxu0 0.0
  %2370 = vmatpush2.xpose.msra.mxu0 0.0
  %2371 = vmatprep.subr.mxu0 0.0
  %2372 = vmatpush2.xpose.msra.mxu0 0.0
  %2373 = vmatprep.mubr.f32.mxu0 0.0
  %2374 = vmatmul.mubr.f32.gmra.mxu0 %v2304
  %v2375 = vpop.f32.mrf.mxu0
  %v2376 = vadd.f32 0.0, %v2375
  %v2377 = vpop.f32.mrf.mxu0
  %2378 = vdwg.mxu0
  %v2380 = vsel %vm686, %v2041, 0
  %v2383 = vsel %vm686, %v2123, 0
  %2385 = vmatprep.subr.mxu0 0.0
  %2386 = vmatpush1.xpose.msra.mxu0 0.0
  %2387 = vmatprep.subr.mxu0 0.0
  %2388 = vmatpush1.xpose.msra.mxu0 0.0
  %2389 = vmatprep.subr.mxu0 0.0
  %2390 = vmatpush1.xpose.msra.mxu0 0.0
  %2391 = vmatprep.subr.mxu0 0.0
  %2392 = vmatpush1.xpose.msra.mxu0 0.0
  %2393 = vmatprep.subr.mxu0 0.0
  %2394 = vmatpush1.xpose.msra.mxu0 0.0
  %2395 = vmatprep.subr.mxu0 0.0
  %2396 = vmatpush1.xpose.msra.mxu0 0.0
  %2397 = vmatprep.subr.mxu0 0.0
  %2398 = vmatpush1.xpose.msra.mxu0 0.0
  %2399 = vmatprep.subr.mxu0 0.0
  %2400 = vmatpush1.xpose.msra.mxu0 0.0
  %2401 = vmatprep.subr.mxu0 0.0
  %2402 = vmatpush1.xpose.msra.mxu0 0.0
  %2403 = vmatprep.subr.mxu0 0.0
  %2404 = vmatpush1.xpose.msra.mxu0 0.0
  %2405 = vmatprep.subr.mxu0 0.0
  %2406 = vmatpush1.xpose.msra.mxu0 0.0
  %2407 = vmatprep.subr.mxu0 0.0
  %2408 = vmatpush1.xpose.msra.mxu0 0.0
  %2409 = vmatprep.subr.mxu0 0.0
  %2410 = vmatpush1.xpose.msra.mxu0 0.0
  %2411 = vmatprep.subr.mxu0 0.0
  %2412 = vmatpush1.xpose.msra.mxu0 0.0
  %2413 = vmatprep.subr.mxu0 0.0
  %2414 = vmatpush1.xpose.msra.mxu0 0.0
  %2415 = vmatprep.subr.mxu0 0.0
  %2416 = vmatpush1.xpose.msra.mxu0 %v2383
  %2417 = vmatprep.subr.mxu0 0.0
  %2418 = vmatpush2.xpose.msra.mxu0 0.0
  %2419 = vmatprep.subr.mxu0 0.0
  %2420 = vmatpush2.xpose.msra.mxu0 0.0
  %2421 = vmatprep.subr.mxu0 0.0
  %2422 = vmatpush2.xpose.msra.mxu0 0.0
  %2423 = vmatprep.subr.mxu0 0.0
  %2424 = vmatpush2.xpose.msra.mxu0 0.0
  %2425 = vmatprep.subr.mxu0 0.0
  %2426 = vmatpush2.xpose.msra.mxu0 0.0
  %2427 = vmatprep.subr.mxu0 0.0
  %2428 = vmatpush2.xpose.msra.mxu0 0.0
  %2429 = vmatprep.subr.mxu0 0.0
  %2430 = vmatpush2.xpose.msra.mxu0 0.0
  %2431 = vmatprep.subr.mxu0 0.0
  %2432 = vmatpush2.xpose.msra.mxu0 0.0
  %2433 = vmatprep.subr.mxu0 0.0
  %2434 = vmatpush2.xpose.msra.mxu0 0.0
  %2435 = vmatprep.subr.mxu0 0.0
  %2436 = vmatpush2.xpose.msra.mxu0 0.0
  %2437 = vmatprep.subr.mxu0 0.0
  %2438 = vmatpush2.xpose.msra.mxu0 0.0
  %2439 = vmatprep.subr.mxu0 0.0
  %2440 = vmatpush2.xpose.msra.mxu0 0.0
  %2441 = vmatprep.subr.mxu0 0.0
  %2442 = vmatpush2.xpose.msra.mxu0 0.0
  %2443 = vmatprep.subr.mxu0 0.0
  %2444 = vmatpush2.xpose.msra.mxu0 0.0
  %2445 = vmatprep.subr.mxu0 0.0
  %2446 = vmatpush2.xpose.msra.mxu0 0.0
  %2447 = vmatprep.subr.mxu0 0.0
  %2448 = vmatpush2.xpose.msra.mxu0 0.0
  %2449 = vmatprep.mubr.f32.mxu0 0.0
  %2450 = vmatmul.mubr.f32.gmra.mxu0 %v2380
  %v2451 = vpop.f32.mrf.mxu0
  %v2452 = vadd.f32 0.0, %v2451
  %v2453 = vpop.f32.mrf.mxu0
  %2454 = vdwg.mxu0
  %v2456 = vsel %vm686, %v2044, 0
  %v2459 = vsel %vm686, %v2126, 0
  %2461 = vmatprep.subr.mxu0 0.0
  %2462 = vmatpush1.xpose.msra.mxu0 0.0
  %2463 = vmatprep.subr.mxu0 0.0
  %2464 = vmatpush1.xpose.msra.mxu0 0.0
  %2465 = vmatprep.subr.mxu0 0.0
  %2466 = vmatpush1.xpose.msra.mxu0 0.0
  %2467 = vmatprep.subr.mxu0 0.0
  %2468 = vmatpush1.xpose.msra.mxu0 0.0
  %2469 = vmatprep.subr.mxu0 0.0
  %2470 = vmatpush1.xpose.msra.mxu0 0.0
  %2471 = vmatprep.subr.mxu0 0.0
  %2472 = vmatpush1.xpose.msra.mxu0 0.0
  %2473 = vmatprep.subr.mxu0 0.0
  %2474 = vmatpush1.xpose.msra.mxu0 0.0
  %2475 = vmatprep.subr.mxu0 0.0
  %2476 = vmatpush1.xpose.msra.mxu0 0.0
  %2477 = vmatprep.subr.mxu0 0.0
  %2478 = vmatpush1.xpose.msra.mxu0 0.0
  %2479 = vmatprep.subr.mxu0 0.0
  %2480 = vmatpush1.xpose.msra.mxu0 0.0
  %2481 = vmatprep.subr.mxu0 0.0
  %2482 = vmatpush1.xpose.msra.mxu0 0.0
  %2483 = vmatprep.subr.mxu0 0.0
  %2484 = vmatpush1.xpose.msra.mxu0 0.0
  %2485 = vmatprep.subr.mxu0 0.0
  %2486 = vmatpush1.xpose.msra.mxu0 0.0
  %2487 = vmatprep.subr.mxu0 0.0
  %2488 = vmatpush1.xpose.msra.mxu0 0.0
  %2489 = vmatprep.subr.mxu0 0.0
  %2490 = vmatpush1.xpose.msra.mxu0 0.0
  %2491 = vmatprep.subr.mxu0 0.0
  %2492 = vmatpush1.xpose.msra.mxu0 %v2459
  %2493 = vmatprep.subr.mxu0 0.0
  %2494 = vmatpush2.xpose.msra.mxu0 0.0
  %2495 = vmatprep.subr.mxu0 0.0
  %2496 = vmatpush2.xpose.msra.mxu0 0.0
  %2497 = vmatprep.subr.mxu0 0.0
  %2498 = vmatpush2.xpose.msra.mxu0 0.0
  %2499 = vmatprep.subr.mxu0 0.0
  %2500 = vmatpush2.xpose.msra.mxu0 0.0
  %2501 = vmatprep.subr.mxu0 0.0
  %2502 = vmatpush2.xpose.msra.mxu0 0.0
  %2503 = vmatprep.subr.mxu0 0.0
  %2504 = vmatpush2.xpose.msra.mxu0 0.0
  %2505 = vmatprep.subr.mxu0 0.0
  %2506 = vmatpush2.xpose.msra.mxu0 0.0
  %2507 = vmatprep.subr.mxu0 0.0
  %2508 = vmatpush2.xpose.msra.mxu0 0.0
  %2509 = vmatprep.subr.mxu0 0.0
  %2510 = vmatpush2.xpose.msra.mxu0 0.0
  %2511 = vmatprep.subr.mxu0 0.0
  %2512 = vmatpush2.xpose.msra.mxu0 0.0
  %2513 = vmatprep.subr.mxu0 0.0
  %2514 = vmatpush2.xpose.msra.mxu0 0.0
  %2515 = vmatprep.subr.mxu0 0.0
  %2516 = vmatpush2.xpose.msra.mxu0 0.0
  %2517 = vmatprep.subr.mxu0 0.0
  %2518 = vmatpush2.xpose.msra.mxu0 0.0
  %2519 = vmatprep.subr.mxu0 0.0
  %2520 = vmatpush2.xpose.msra.mxu0 0.0
  %2521 = vmatprep.subr.mxu0 0.0
  %2522 = vmatpush2.xpose.msra.mxu0 0.0
  %2523 = vmatprep.subr.mxu0 0.0
  %2524 = vmatpush2.xpose.msra.mxu0 0.0
  %2525 = vmatprep.mubr.f32.mxu0 0.0
  %2526 = vmatmul.mubr.f32.gmra.mxu0 %v2456
  %v2527 = vpop.f32.mrf.mxu0
  %v2528 = vadd.f32 0.0, %v2527
  %v2529 = vpop.f32.mrf.mxu0
  %2530 = vdwg.mxu0
  %v2532 = vsel %vm686, %v2049, 0
  %v2535 = vsel %vm686, %v2131, 0
  %2537 = vmatprep.subr.mxu0 0.0
  %2538 = vmatpush1.xpose.msra.mxu0 0.0
  %2539 = vmatprep.subr.mxu0 0.0
  %2540 = vmatpush1.xpose.msra.mxu0 0.0
  %2541 = vmatprep.subr.mxu0 0.0
  %2542 = vmatpush1.xpose.msra.mxu0 0.0
  %2543 = vmatprep.subr.mxu0 0.0
  %2544 = vmatpush1.xpose.msra.mxu0 0.0
  %2545 = vmatprep.subr.mxu0 0.0
  %2546 = vmatpush1.xpose.msra.mxu0 0.0
  %2547 = vmatprep.subr.mxu0 0.0
  %2548 = vmatpush1.xpose.msra.mxu0 0.0
  %2549 = vmatprep.subr.mxu0 0.0
  %2550 = vmatpush1.xpose.msra.mxu0 0.0
  %2551 = vmatprep.subr.mxu0 0.0
  %2552 = vmatpush1.xpose.msra.mxu0 0.0
  %2553 = vmatprep.subr.mxu0 0.0
  %2554 = vmatpush1.xpose.msra.mxu0 0.0
  %2555 = vmatprep.subr.mxu0 0.0
  %2556 = vmatpush1.xpose.msra.mxu0 0.0
  %2557 = vmatprep.subr.mxu0 0.0
  %2558 = vmatpush1.xpose.msra.mxu0 0.0
  %2559 = vmatprep.subr.mxu0 0.0
  %2560 = vmatpush1.xpose.msra.mxu0 0.0
  %2561 = vmatprep.subr.mxu0 0.0
  %2562 = vmatpush1.xpose.msra.mxu0 0.0
  %2563 = vmatprep.subr.mxu0 0.0
  %2564 = vmatpush1.xpose.msra.mxu0 0.0
  %2565 = vmatprep.subr.mxu0 0.0
  %2566 = vmatpush1.xpose.msra.mxu0 0.0
  %2567 = vmatprep.subr.mxu0 0.0
  %2568 = vmatpush1.xpose.msra.mxu0 %v2535
  %2569 = vmatprep.subr.mxu0 0.0
  %2570 = vmatpush2.xpose.msra.mxu0 0.0
  %2571 = vmatprep.subr.mxu0 0.0
  %2572 = vmatpush2.xpose.msra.mxu0 0.0
  %2573 = vmatprep.subr.mxu0 0.0
  %2574 = vmatpush2.xpose.msra.mxu0 0.0
  %2575 = vmatprep.subr.mxu0 0.0
  %2576 = vmatpush2.xpose.msra.mxu0 0.0
  %2577 = vmatprep.subr.mxu0 0.0
  %2578 = vmatpush2.xpose.msra.mxu0 0.0
  %2579 = vmatprep.subr.mxu0 0.0
  %2580 = vmatpush2.xpose.msra.mxu0 0.0
  %2581 = vmatprep.subr.mxu0 0.0
  %2582 = vmatpush2.xpose.msra.mxu0 0.0
  %2583 = vmatprep.subr.mxu0 0.0
  %2584 = vmatpush2.xpose.msra.mxu0 0.0
  %2585 = vmatprep.subr.mxu0 0.0
  %2586 = vmatpush2.xpose.msra.mxu0 0.0
  %2587 = vmatprep.subr.mxu0 0.0
  %2588 = vmatpush2.xpose.msra.mxu0 0.0
  %2589 = vmatprep.subr.mxu0 0.0
  %2590 = vmatpush2.xpose.msra.mxu0 0.0
  %2591 = vmatprep.subr.mxu0 0.0
  %2592 = vmatpush2.xpose.msra.mxu0 0.0
  %2593 = vmatprep.subr.mxu0 0.0
  %2594 = vmatpush2.xpose.msra.mxu0 0.0
  %2595 = vmatprep.subr.mxu0 0.0
  %2596 = vmatpush2.xpose.msra.mxu0 0.0
  %2597 = vmatprep.subr.mxu0 0.0
  %2598 = vmatpush2.xpose.msra.mxu0 0.0
  %2599 = vmatprep.subr.mxu0 0.0
  %2600 = vmatpush2.xpose.msra.mxu0 0.0
  %2601 = vmatprep.mubr.f32.mxu0 0.0
  %2602 = vmatmul.mubr.f32.gmra.mxu0 %v2532
  %v2603 = vpop.f32.mrf.mxu0
  %v2604 = vadd.f32 0.0, %v2603
  %v2605 = vpop.f32.mrf.mxu0
  %2606 = vdwg.mxu0
  %v2608 = vsel %vm686, %v2052, 0
  %v2611 = vsel %vm686, %v2134, 0
  %2613 = vmatprep.subr.mxu0 0.0
  %2614 = vmatpush1.xpose.msra.mxu0 0.0
  %2615 = vmatprep.subr.mxu0 0.0
  %2616 = vmatpush1.xpose.msra.mxu0 0.0
  %2617 = vmatprep.subr.mxu0 0.0
  %2618 = vmatpush1.xpose.msra.mxu0 0.0
  %2619 = vmatprep.subr.mxu0 0.0
  %2620 = vmatpush1.xpose.msra.mxu0 0.0
  %2621 = vmatprep.subr.mxu0 0.0
  %2622 = vmatpush1.xpose.msra.mxu0 0.0
  %2623 = vmatprep.subr.mxu0 0.0
  %2624 = vmatpush1.xpose.msra.mxu0 0.0
  %2625 = vmatprep.subr.mxu0 0.0
  %2626 = vmatpush1.xpose.msra.mxu0 0.0
  %2627 = vmatprep.subr.mxu0 0.0
  %2628 = vmatpush1.xpose.msra.mxu0 0.0
  %2629 = vmatprep.subr.mxu0 0.0
  %2630 = vmatpush1.xpose.msra.mxu0 0.0
  %2631 = vmatprep.subr.mxu0 0.0
  %2632 = vmatpush1.xpose.msra.mxu0 0.0
  %2633 = vmatprep.subr.mxu0 0.0
  %2634 = vmatpush1.xpose.msra.mxu0 0.0
  %2635 = vmatprep.subr.mxu0 0.0
  %2636 = vmatpush1.xpose.msra.mxu0 0.0
  %2637 = vmatprep.subr.mxu0 0.0
  %2638 = vmatpush1.xpose.msra.mxu0 0.0
  %2639 = vmatprep.subr.mxu0 0.0
  %2640 = vmatpush1.xpose.msra.mxu0 0.0
  %2641 = vmatprep.subr.mxu0 0.0
  %2642 = vmatpush1.xpose.msra.mxu0 0.0
  %2643 = vmatprep.subr.mxu0 0.0
  %2644 = vmatpush1.xpose.msra.mxu0 %v2611
  %2645 = vmatprep.subr.mxu0 0.0
  %2646 = vmatpush2.xpose.msra.mxu0 0.0
  %2647 = vmatprep.subr.mxu0 0.0
  %2648 = vmatpush2.xpose.msra.mxu0 0.0
  %2649 = vmatprep.subr.mxu0 0.0
  %2650 = vmatpush2.xpose.msra.mxu0 0.0
  %2651 = vmatprep.subr.mxu0 0.0
  %2652 = vmatpush2.xpose.msra.mxu0 0.0
  %2653 = vmatprep.subr.mxu0 0.0
  %2654 = vmatpush2.xpose.msra.mxu0 0.0
  %2655 = vmatprep.subr.mxu0 0.0
  %2656 = vmatpush2.xpose.msra.mxu0 0.0
  %2657 = vmatprep.subr.mxu0 0.0
  %2658 = vmatpush2.xpose.msra.mxu0 0.0
  %2659 = vmatprep.subr.mxu0 0.0
  %2660 = vmatpush2.xpose.msra.mxu0 0.0
  %2661 = vmatprep.subr.mxu0 0.0
  %2662 = vmatpush2.xpose.msra.mxu0 0.0
  %2663 = vmatprep.subr.mxu0 0.0
  %2664 = vmatpush2.xpose.msra.mxu0 0.0
  %2665 = vmatprep.subr.mxu0 0.0
  %2666 = vmatpush2.xpose.msra.mxu0 0.0
  %2667 = vmatprep.subr.mxu0 0.0
  %2668 = vmatpush2.xpose.msra.mxu0 0.0
  %2669 = vmatprep.subr.mxu0 0.0
  %2670 = vmatpush2.xpose.msra.mxu0 0.0
  %2671 = vmatprep.subr.mxu0 0.0
  %2672 = vmatpush2.xpose.msra.mxu0 0.0
  %2673 = vmatprep.subr.mxu0 0.0
  %2674 = vmatpush2.xpose.msra.mxu0 0.0
  %2675 = vmatprep.subr.mxu0 0.0
  %2676 = vmatpush2.xpose.msra.mxu0 0.0
  %2677 = vmatprep.mubr.f32.mxu0 0.0
  %2678 = vmatmul.mubr.f32.gmra.mxu0 %v2608
  %v2679 = vpop.f32.mrf.mxu0
  %v2680 = vadd.f32 0.0, %v2679
  %v2681 = vpop.f32.mrf.mxu0
  %2682 = vdwg.mxu0
  %v2684 = vsel %vm686, %v2057, 0
  %v2687 = vsel %vm686, %v2139, 0
  %2689 = vmatprep.subr.mxu0 0.0
  %2690 = vmatpush1.xpose.msra.mxu0 0.0
  %2691 = vmatprep.subr.mxu0 0.0
  %2692 = vmatpush1.xpose.msra.mxu0 0.0
  %2693 = vmatprep.subr.mxu0 0.0
  %2694 = vmatpush1.xpose.msra.mxu0 0.0
  %2695 = vmatprep.subr.mxu0 0.0
  %2696 = vmatpush1.xpose.msra.mxu0 0.0
  %2697 = vmatprep.subr.mxu0 0.0
  %2698 = vmatpush1.xpose.msra.mxu0 0.0
  %2699 = vmatprep.subr.mxu0 0.0
  %2700 = vmatpush1.xpose.msra.mxu0 0.0
  %2701 = vmatprep.subr.mxu0 0.0
  %2702 = vmatpush1.xpose.msra.mxu0 0.0
  %2703 = vmatprep.subr.mxu0 0.0
  %2704 = vmatpush1.xpose.msra.mxu0 0.0
  %2705 = vmatprep.subr.mxu0 0.0
  %2706 = vmatpush1.xpose.msra.mxu0 0.0
  %2707 = vmatprep.subr.mxu0 0.0
  %2708 = vmatpush1.xpose.msra.mxu0 0.0
  %2709 = vmatprep.subr.mxu0 0.0
  %2710 = vmatpush1.xpose.msra.mxu0 0.0
  %2711 = vmatprep.subr.mxu0 0.0
  %2712 = vmatpush1.xpose.msra.mxu0 0.0
  %2713 = vmatprep.subr.mxu0 0.0
  %2714 = vmatpush1.xpose.msra.mxu0 0.0
  %2715 = vmatprep.subr.mxu0 0.0
  %2716 = vmatpush1.xpose.msra.mxu0 0.0
  %2717 = vmatprep.subr.mxu0 0.0
  %2718 = vmatpush1.xpose.msra.mxu0 0.0
  %2719 = vmatprep.subr.mxu0 0.0
  %2720 = vmatpush1.xpose.msra.mxu0 %v2687
  %2721 = vmatprep.subr.mxu0 0.0
  %2722 = vmatpush2.xpose.msra.mxu0 0.0
  %2723 = vmatprep.subr.mxu0 0.0
  %2724 = vmatpush2.xpose.msra.mxu0 0.0
  %2725 = vmatprep.subr.mxu0 0.0
  %2726 = vmatpush2.xpose.msra.mxu0 0.0
  %2727 = vmatprep.subr.mxu0 0.0
  %2728 = vmatpush2.xpose.msra.mxu0 0.0
  %2729 = vmatprep.subr.mxu0 0.0
  %2730 = vmatpush2.xpose.msra.mxu0 0.0
  %2731 = vmatprep.subr.mxu0 0.0
  %2732 = vmatpush2.xpose.msra.mxu0 0.0
  %2733 = vmatprep.subr.mxu0 0.0
  %2734 = vmatpush2.xpose.msra.mxu0 0.0
  %2735 = vmatprep.subr.mxu0 0.0
  %2736 = vmatpush2.xpose.msra.mxu0 0.0
  %2737 = vmatprep.subr.mxu0 0.0
  %2738 = vmatpush2.xpose.msra.mxu0 0.0
  %2739 = vmatprep.subr.mxu0 0.0
  %2740 = vmatpush2.xpose.msra.mxu0 0.0
  %2741 = vmatprep.subr.mxu0 0.0
  %2742 = vmatpush2.xpose.msra.mxu0 0.0
  %2743 = vmatprep.subr.mxu0 0.0
  %2744 = vmatpush2.xpose.msra.mxu0 0.0
  %2745 = vmatprep.subr.mxu0 0.0
  %2746 = vmatpush2.xpose.msra.mxu0 0.0
  %2747 = vmatprep.subr.mxu0 0.0
  %2748 = vmatpush2.xpose.msra.mxu0 0.0
  %2749 = vmatprep.subr.mxu0 0.0
  %2750 = vmatpush2.xpose.msra.mxu0 0.0
  %2751 = vmatprep.subr.mxu0 0.0
  %2752 = vmatpush2.xpose.msra.mxu0 0.0
  %2753 = vmatprep.mubr.f32.mxu0 0.0
  %2754 = vmatmul.mubr.f32.gmra.mxu0 %v2684
  %v2755 = vpop.f32.mrf.mxu0
  %v2756 = vadd.f32 0.0, %v2755
  %v2757 = vpop.f32.mrf.mxu0
  %2758 = vdwg.mxu0
  %v2760 = vsel %vm686, %v2060, 0
  %v2763 = vsel %vm686, %v2142, 0
  %2765 = vmatprep.subr.mxu0 0.0
  %2766 = vmatpush1.xpose.msra.mxu0 0.0
  %2767 = vmatprep.subr.mxu0 0.0
  %2768 = vmatpush1.xpose.msra.mxu0 0.0
  %2769 = vmatprep.subr.mxu0 0.0
  %2770 = vmatpush1.xpose.msra.mxu0 0.0
  %2771 = vmatprep.subr.mxu0 0.0
  %2772 = vmatpush1.xpose.msra.mxu0 0.0
  %2773 = vmatprep.subr.mxu0 0.0
  %2774 = vmatpush1.xpose.msra.mxu0 0.0
  %2775 = vmatprep.subr.mxu0 0.0
  %2776 = vmatpush1.xpose.msra.mxu0 0.0
  %2777 = vmatprep.subr.mxu0 0.0
  %2778 = vmatpush1.xpose.msra.mxu0 0.0
  %2779 = vmatprep.subr.mxu0 0.0
  %2780 = vmatpush1.xpose.msra.mxu0 0.0
  %2781 = vmatprep.subr.mxu0 0.0
  %2782 = vmatpush1.xpose.msra.mxu0 0.0
  %2783 = vmatprep.subr.mxu0 0.0
  %2784 = vmatpush1.xpose.msra.mxu0 0.0
  %2785 = vmatprep.subr.mxu0 0.0
  %2786 = vmatpush1.xpose.msra.mxu0 0.0
  %2787 = vmatprep.subr.mxu0 0.0
  %2788 = vmatpush1.xpose.msra.mxu0 0.0
  %2789 = vmatprep.subr.mxu0 0.0
  %2790 = vmatpush1.xpose.msra.mxu0 0.0
  %2791 = vmatprep.subr.mxu0 0.0
  %2792 = vmatpush1.xpose.msra.mxu0 0.0
  %2793 = vmatprep.subr.mxu0 0.0
  %2794 = vmatpush1.xpose.msra.mxu0 0.0
  %2795 = vmatprep.subr.mxu0 0.0
  %2796 = vmatpush1.xpose.msra.mxu0 %v2763
  %2797 = vmatprep.subr.mxu0 0.0
  %2798 = vmatpush2.xpose.msra.mxu0 0.0
  %2799 = vmatprep.subr.mxu0 0.0
  %2800 = vmatpush2.xpose.msra.mxu0 0.0
  %2801 = vmatprep.subr.mxu0 0.0
  %2802 = vmatpush2.xpose.msra.mxu0 0.0
  %2803 = vmatprep.subr.mxu0 0.0
  %2804 = vmatpush2.xpose.msra.mxu0 0.0
  %2805 = vmatprep.subr.mxu0 0.0
  %2806 = vmatpush2.xpose.msra.mxu0 0.0
  %2807 = vmatprep.subr.mxu0 0.0
  %2808 = vmatpush2.xpose.msra.mxu0 0.0
  %2809 = vmatprep.subr.mxu0 0.0
  %2810 = vmatpush2.xpose.msra.mxu0 0.0
  %2811 = vmatprep.subr.mxu0 0.0
  %2812 = vmatpush2.xpose.msra.mxu0 0.0
  %2813 = vmatprep.subr.mxu0 0.0
  %2814 = vmatpush2.xpose.msra.mxu0 0.0
  %2815 = vmatprep.subr.mxu0 0.0
  %2816 = vmatpush2.xpose.msra.mxu0 0.0
  %2817 = vmatprep.subr.mxu0 0.0
  %2818 = vmatpush2.xpose.msra.mxu0 0.0
  %2819 = vmatprep.subr.mxu0 0.0
  %2820 = vmatpush2.xpose.msra.mxu0 0.0
  %2821 = vmatprep.subr.mxu0 0.0
  %2822 = vmatpush2.xpose.msra.mxu0 0.0
  %2823 = vmatprep.subr.mxu0 0.0
  %2824 = vmatpush2.xpose.msra.mxu0 0.0
  %2825 = vmatprep.subr.mxu0 0.0
  %2826 = vmatpush2.xpose.msra.mxu0 0.0
  %2827 = vmatprep.subr.mxu0 0.0
  %2828 = vmatpush2.xpose.msra.mxu0 0.0
  %2829 = vmatprep.mubr.f32.mxu0 0.0
  %2830 = vmatmul.mubr.f32.gmra.mxu0 %v2760
  %v2831 = vpop.f32.mrf.mxu0
  %v2832 = vadd.f32 0.0, %v2831
  %v2833 = vpop.f32.mrf.mxu0
  %2834 = vdwg.mxu0
  %v2835 = vmul.f32 %v2300, 0.25
  %v2836 = vmul.f32 %v2376, 0.25
  %v2837 = vmul.f32 %v2452, 0.25
  %v2838 = vmul.f32 %v2528, 0.25
  %v2839 = vmul.f32 %v2604, 0.25
  %v2840 = vmul.f32 %v2680, 0.25
  %v2841 = vmul.f32 %v2756, 0.25
  %v2842 = vmul.f32 %v2832, 0.25
  %v2843 = vsel %vm288, %v2835, -inf
  %2844 = vmax.xlane.f32.xlu0 %v2843
  %v2845 = vpop.xlane.xlu0 %2844
  %v2846 = vsel %vm288, %v2836, -inf
  %2847 = vmax.xlane.f32.xlu0 %v2846
  %v2848 = vpop.xlane.xlu0 %2847
  %v2849 = vsel %vm288, %v2837, -inf
  %2850 = vmax.xlane.f32.xlu0 %v2849
  %v2851 = vpop.xlane.xlu0 %2850
  %v2852 = vsel %vm288, %v2838, -inf
  %2853 = vmax.xlane.f32.xlu0 %v2852
  %v2854 = vpop.xlane.xlu0 %2853
  %v2855 = vsel %vm288, %v2839, -inf
  %2856 = vmax.xlane.f32.xlu0 %v2855
  %v2857 = vpop.xlane.xlu0 %2856
  %v2858 = vsel %vm288, %v2840, -inf
  %2859 = vmax.xlane.f32.xlu0 %v2858
  %v2860 = vpop.xlane.xlu0 %2859
  %v2861 = vsel %vm288, %v2841, -inf
  %2862 = vmax.xlane.f32.xlu0 %v2861
  %v2863 = vpop.xlane.xlu0 %2862
  %v2864 = vsel %vm288, %v2842, -inf
  %2865 = vmax.xlane.f32.xlu0 %v2864
  %v2866 = vpop.xlane.xlu0 %2865
  %v2867 = vsub.f32 %v2835, %v2845
  %v2868 = vsub.f32 %v2836, %v2848
  %v2869 = vsub.f32 %v2837, %v2851
  %v2870 = vsub.f32 %v2838, %v2854
  %v2871 = vsub.f32 %v2839, %v2857
  %v2872 = vsub.f32 %v2840, %v2860
  %v2873 = vsub.f32 %v2841, %v2863
  %v2874 = vsub.f32 %v2842, %v2866
  %v2875 = vmul.f32 %v2867, 1.442695
  %v2876 = vpow.pop %v2875
  %v2877 = vmul.f32 %v2868, 1.442695
  %v2878 = vpow.pop %v2877
  %v2879 = vmul.f32 %v2869, 1.442695
  %v2880 = vpow.pop %v2879
  %v2881 = vmul.f32 %v2870, 1.442695
  %v2882 = vpow.pop %v2881
  %v2883 = vmul.f32 %v2871, 1.442695
  %v2884 = vpow.pop %v2883
  %v2885 = vmul.f32 %v2872, 1.442695
  %v2886 = vpow.pop %v2885
  %v2887 = vmul.f32 %v2873, 1.442695
  %v2888 = vpow.pop %v2887
  %v2889 = vmul.f32 %v2874, 1.442695
  %v2890 = vpow.pop %v2889
  %v2891 = vsel %vm288, %v2876, 0.0
  %2892 = vadd.xlane.f32.xlu0 %v2891
  %v2893 = vpop.xlane.xlu0 %2892
  %v2894 = vsel %vm288, %v2878, 0.0
  %2895 = vadd.xlane.f32.xlu0 %v2894
  %v2896 = vpop.xlane.xlu0 %2895
  %v2897 = vsel %vm288, %v2880, 0.0
  %2898 = vadd.xlane.f32.xlu0 %v2897
  %v2899 = vpop.xlane.xlu0 %2898
  %v2900 = vsel %vm288, %v2882, 0.0
  %2901 = vadd.xlane.f32.xlu0 %v2900
  %v2902 = vpop.xlane.xlu0 %2901
  %v2903 = vsel %vm288, %v2884, 0.0
  %2904 = vadd.xlane.f32.xlu0 %v2903
  %v2905 = vpop.xlane.xlu0 %2904
  %v2906 = vsel %vm288, %v2886, 0.0
  %2907 = vadd.xlane.f32.xlu0 %v2906
  %v2908 = vpop.xlane.xlu0 %2907
  %v2909 = vsel %vm288, %v2888, 0.0
  %2910 = vadd.xlane.f32.xlu0 %v2909
  %v2911 = vpop.xlane.xlu0 %2910
  %v2912 = vsel %vm288, %v2890, 0.0
  %2913 = vadd.xlane.f32.xlu0 %v2912
  %v2914 = vpop.xlane.xlu0 %2913
  %v2915 = vrcp.pop %v2893
  %v2916 = vrcp.pop %v2896
  %v2917 = vrcp.pop %v2899
  %v2918 = vrcp.pop %v2902
  %v2919 = vrcp.pop %v2905
  %v2920 = vrcp.pop %v2908
  %v2921 = vrcp.pop %v2911
  %v2922 = vrcp.pop %v2914
  %v2923 = vmul.f32 %v2876, %v2915
  %v2924 = vmul.f32 %v2878, %v2916
  %v2925 = vmul.f32 %v2880, %v2917
  %v2926 = vmul.f32 %v2882, %v2918
  %v2927 = vmul.f32 %v2884, %v2919
  %v2928 = vmul.f32 %v2886, %v2920
  %v2929 = vmul.f32 %v2888, %v2921
  %v2930 = vmul.f32 %v2890, %v2922
  %v2932 = vsel %vm288, %v2923, 0
  %2934 = vmatprep.subr.mxu0 0.0
  %2935 = vmatpush1.msra.mxu0 0.0
  %2936 = vmatprep.subr.mxu0 0.0
  %2937 = vmatpush1.msra.mxu0 0.0
  %2938 = vmatprep.subr.mxu0 0.0
  %2939 = vmatpush1.msra.mxu0 0.0
  %2940 = vmatprep.subr.mxu0 0.0
  %2941 = vmatpush1.msra.mxu0 0.0
  %2942 = vmatprep.subr.mxu0 0.0
  %2943 = vmatpush1.msra.mxu0 0.0
  %2944 = vmatprep.subr.mxu0 0.0
  %2945 = vmatpush1.msra.mxu0 0.0
  %2946 = vmatprep.subr.mxu0 0.0
  %2947 = vmatpush1.msra.mxu0 0.0
  %2948 = vmatprep.subr.mxu0 0.0
  %2949 = vmatpush1.msra.mxu0 0.0
  %2950 = vmatprep.subr.mxu0 0.0
  %2951 = vmatpush1.msra.mxu0 0.0
  %2952 = vmatprep.subr.mxu0 0.0
  %2953 = vmatpush1.msra.mxu0 0.0
  %2954 = vmatprep.subr.mxu0 0.0
  %2955 = vmatpush1.msra.mxu0 0.0
  %2956 = vmatprep.subr.mxu0 0.0
  %2957 = vmatpush1.msra.mxu0 0.0
  %2958 = vmatprep.subr.mxu0 0.0
  %2959 = vmatpush1.msra.mxu0 0.0
  %2960 = vmatprep.subr.mxu0 0.0
  %2961 = vmatpush1.msra.mxu0 0.0
  %2962 = vmatprep.subr.mxu0 0.0
  %2963 = vmatpush1.msra.mxu0 0.0
  %2964 = vmatprep.subr.mxu0 0.0
  %2965 = vmatpush1.msra.mxu0 %v2197
  %2966 = vmatprep.subr.mxu0 0.0
  %2967 = vmatpush2.msra.mxu0 0.0
  %2968 = vmatprep.subr.mxu0 0.0
  %2969 = vmatpush2.msra.mxu0 0.0
  %2970 = vmatprep.subr.mxu0 0.0
  %2971 = vmatpush2.msra.mxu0 0.0
  %2972 = vmatprep.subr.mxu0 0.0
  %2973 = vmatpush2.msra.mxu0 0.0
  %2974 = vmatprep.subr.mxu0 0.0
  %2975 = vmatpush2.msra.mxu0 0.0
  %2976 = vmatprep.subr.mxu0 0.0
  %2977 = vmatpush2.msra.mxu0 0.0
  %2978 = vmatprep.subr.mxu0 0.0
  %2979 = vmatpush2.msra.mxu0 0.0
  %2980 = vmatprep.subr.mxu0 0.0
  %2981 = vmatpush2.msra.mxu0 0.0
  %2982 = vmatprep.subr.mxu0 0.0
  %2983 = vmatpush2.msra.mxu0 0.0
  %2984 = vmatprep.subr.mxu0 0.0
  %2985 = vmatpush2.msra.mxu0 0.0
  %2986 = vmatprep.subr.mxu0 0.0
  %2987 = vmatpush2.msra.mxu0 0.0
  %2988 = vmatprep.subr.mxu0 0.0
  %2989 = vmatpush2.msra.mxu0 0.0
  %2990 = vmatprep.subr.mxu0 0.0
  %2991 = vmatpush2.msra.mxu0 0.0
  %2992 = vmatprep.subr.mxu0 0.0
  %2993 = vmatpush2.msra.mxu0 0.0
  %2994 = vmatprep.subr.mxu0 0.0
  %2995 = vmatpush2.msra.mxu0 0.0
  %2996 = vmatprep.subr.mxu0 0.0
  %2997 = vmatpush2.msra.mxu0 0.0
  %2998 = vmatprep.mubr.f32.mxu0 0.0
  %2999 = vmatmul.mubr.f32.gmra.mxu0 %v2932
  %v3000 = vpop.f32.mrf.mxu0
  %v3001 = vadd.f32 0.0, %v3000
  %v3002 = vpop.f32.mrf.mxu0
  %3003 = vdwg.mxu0
  %v3005 = vsel %vm288, %v2924, 0
  %3007 = vmatprep.subr.mxu0 0.0
  %3008 = vmatpush1.msra.mxu0 0.0
  %3009 = vmatprep.subr.mxu0 0.0
  %3010 = vmatpush1.msra.mxu0 0.0
  %3011 = vmatprep.subr.mxu0 0.0
  %3012 = vmatpush1.msra.mxu0 0.0
  %3013 = vmatprep.subr.mxu0 0.0
  %3014 = vmatpush1.msra.mxu0 0.0
  %3015 = vmatprep.subr.mxu0 0.0
  %3016 = vmatpush1.msra.mxu0 0.0
  %3017 = vmatprep.subr.mxu0 0.0
  %3018 = vmatpush1.msra.mxu0 0.0
  %3019 = vmatprep.subr.mxu0 0.0
  %3020 = vmatpush1.msra.mxu0 0.0
  %3021 = vmatprep.subr.mxu0 0.0
  %3022 = vmatpush1.msra.mxu0 0.0
  %3023 = vmatprep.subr.mxu0 0.0
  %3024 = vmatpush1.msra.mxu0 0.0
  %3025 = vmatprep.subr.mxu0 0.0
  %3026 = vmatpush1.msra.mxu0 0.0
  %3027 = vmatprep.subr.mxu0 0.0
  %3028 = vmatpush1.msra.mxu0 0.0
  %3029 = vmatprep.subr.mxu0 0.0
  %3030 = vmatpush1.msra.mxu0 0.0
  %3031 = vmatprep.subr.mxu0 0.0
  %3032 = vmatpush1.msra.mxu0 0.0
  %3033 = vmatprep.subr.mxu0 0.0
  %3034 = vmatpush1.msra.mxu0 0.0
  %3035 = vmatprep.subr.mxu0 0.0
  %3036 = vmatpush1.msra.mxu0 0.0
  %3037 = vmatprep.subr.mxu0 0.0
  %3038 = vmatpush1.msra.mxu0 %v2200
  %3039 = vmatprep.subr.mxu0 0.0
  %3040 = vmatpush2.msra.mxu0 0.0
  %3041 = vmatprep.subr.mxu0 0.0
  %3042 = vmatpush2.msra.mxu0 0.0
  %3043 = vmatprep.subr.mxu0 0.0
  %3044 = vmatpush2.msra.mxu0 0.0
  %3045 = vmatprep.subr.mxu0 0.0
  %3046 = vmatpush2.msra.mxu0 0.0
  %3047 = vmatprep.subr.mxu0 0.0
  %3048 = vmatpush2.msra.mxu0 0.0
  %3049 = vmatprep.subr.mxu0 0.0
  %3050 = vmatpush2.msra.mxu0 0.0
  %3051 = vmatprep.subr.mxu0 0.0
  %3052 = vmatpush2.msra.mxu0 0.0
  %3053 = vmatprep.subr.mxu0 0.0
  %3054 = vmatpush2.msra.mxu0 0.0
  %3055 = vmatprep.subr.mxu0 0.0
  %3056 = vmatpush2.msra.mxu0 0.0
  %3057 = vmatprep.subr.mxu0 0.0
  %3058 = vmatpush2.msra.mxu0 0.0
  %3059 = vmatprep.subr.mxu0 0.0
  %3060 = vmatpush2.msra.mxu0 0.0
  %3061 = vmatprep.subr.mxu0 0.0
  %3062 = vmatpush2.msra.mxu0 0.0
  %3063 = vmatprep.subr.mxu0 0.0
  %3064 = vmatpush2.msra.mxu0 0.0
  %3065 = vmatprep.subr.mxu0 0.0
  %3066 = vmatpush2.msra.mxu0 0.0
  %3067 = vmatprep.subr.mxu0 0.0
  %3068 = vmatpush2.msra.mxu0 0.0
  %3069 = vmatprep.subr.mxu0 0.0
  %3070 = vmatpush2.msra.mxu0 0.0
  %3071 = vmatprep.mubr.f32.mxu0 0.0
  %3072 = vmatmul.mubr.f32.gmra.mxu0 %v3005
  %v3073 = vpop.f32.mrf.mxu0
  %v3074 = vadd.f32 0.0, %v3073
  %v3075 = vpop.f32.mrf.mxu0
  %3076 = vdwg.mxu0
  %v3078 = vsel %vm288, %v2925, 0
  %3080 = vmatprep.subr.mxu0 0.0
  %3081 = vmatpush1.msra.mxu0 0.0
  %3082 = vmatprep.subr.mxu0 0.0
  %3083 = vmatpush1.msra.mxu0 0.0
  %3084 = vmatprep.subr.mxu0 0.0
  %3085 = vmatpush1.msra.mxu0 0.0
  %3086 = vmatprep.subr.mxu0 0.0
  %3087 = vmatpush1.msra.mxu0 0.0
  %3088 = vmatprep.subr.mxu0 0.0
  %3089 = vmatpush1.msra.mxu0 0.0
  %3090 = vmatprep.subr.mxu0 0.0
  %3091 = vmatpush1.msra.mxu0 0.0
  %3092 = vmatprep.subr.mxu0 0.0
  %3093 = vmatpush1.msra.mxu0 0.0
  %3094 = vmatprep.subr.mxu0 0.0
  %3095 = vmatpush1.msra.mxu0 0.0
  %3096 = vmatprep.subr.mxu0 0.0
  %3097 = vmatpush1.msra.mxu0 0.0
  %3098 = vmatprep.subr.mxu0 0.0
  %3099 = vmatpush1.msra.mxu0 0.0
  %3100 = vmatprep.subr.mxu0 0.0
  %3101 = vmatpush1.msra.mxu0 0.0
  %3102 = vmatprep.subr.mxu0 0.0
  %3103 = vmatpush1.msra.mxu0 0.0
  %3104 = vmatprep.subr.mxu0 0.0
  %3105 = vmatpush1.msra.mxu0 0.0
  %3106 = vmatprep.subr.mxu0 0.0
  %3107 = vmatpush1.msra.mxu0 0.0
  %3108 = vmatprep.subr.mxu0 0.0
  %3109 = vmatpush1.msra.mxu0 0.0
  %3110 = vmatprep.subr.mxu0 0.0
  %3111 = vmatpush1.msra.mxu0 %v2205
  %3112 = vmatprep.subr.mxu0 0.0
  %3113 = vmatpush2.msra.mxu0 0.0
  %3114 = vmatprep.subr.mxu0 0.0
  %3115 = vmatpush2.msra.mxu0 0.0
  %3116 = vmatprep.subr.mxu0 0.0
  %3117 = vmatpush2.msra.mxu0 0.0
  %3118 = vmatprep.subr.mxu0 0.0
  %3119 = vmatpush2.msra.mxu0 0.0
  %3120 = vmatprep.subr.mxu0 0.0
  %3121 = vmatpush2.msra.mxu0 0.0
  %3122 = vmatprep.subr.mxu0 0.0
  %3123 = vmatpush2.msra.mxu0 0.0
  %3124 = vmatprep.subr.mxu0 0.0
  %3125 = vmatpush2.msra.mxu0 0.0
  %3126 = vmatprep.subr.mxu0 0.0
  %3127 = vmatpush2.msra.mxu0 0.0
  %3128 = vmatprep.subr.mxu0 0.0
  %3129 = vmatpush2.msra.mxu0 0.0
  %3130 = vmatprep.subr.mxu0 0.0
  %3131 = vmatpush2.msra.mxu0 0.0
  %3132 = vmatprep.subr.mxu0 0.0
  %3133 = vmatpush2.msra.mxu0 0.0
  %3134 = vmatprep.subr.mxu0 0.0
  %3135 = vmatpush2.msra.mxu0 0.0
  %3136 = vmatprep.subr.mxu0 0.0
  %3137 = vmatpush2.msra.mxu0 0.0
  %3138 = vmatprep.subr.mxu0 0.0
  %3139 = vmatpush2.msra.mxu0 0.0
  %3140 = vmatprep.subr.mxu0 0.0
  %3141 = vmatpush2.msra.mxu0 0.0
  %3142 = vmatprep.subr.mxu0 0.0
  %3143 = vmatpush2.msra.mxu0 0.0
  %3144 = vmatprep.mubr.f32.mxu0 0.0
  %3145 = vmatmul.mubr.f32.gmra.mxu0 %v3078
  %v3146 = vpop.f32.mrf.mxu0
  %v3147 = vadd.f32 0.0, %v3146
  %v3148 = vpop.f32.mrf.mxu0
  %3149 = vdwg.mxu0
  %v3151 = vsel %vm288, %v2926, 0
  %3153 = vmatprep.subr.mxu0 0.0
  %3154 = vmatpush1.msra.mxu0 0.0
  %3155 = vmatprep.subr.mxu0 0.0
  %3156 = vmatpush1.msra.mxu0 0.0
  %3157 = vmatprep.subr.mxu0 0.0
  %3158 = vmatpush1.msra.mxu0 0.0
  %3159 = vmatprep.subr.mxu0 0.0
  %3160 = vmatpush1.msra.mxu0 0.0
  %3161 = vmatprep.subr.mxu0 0.0
  %3162 = vmatpush1.msra.mxu0 0.0
  %3163 = vmatprep.subr.mxu0 0.0
  %3164 = vmatpush1.msra.mxu0 0.0
  %3165 = vmatprep.subr.mxu0 0.0
  %3166 = vmatpush1.msra.mxu0 0.0
  %3167 = vmatprep.subr.mxu0 0.0
  %3168 = vmatpush1.msra.mxu0 0.0
  %3169 = vmatprep.subr.mxu0 0.0
  %3170 = vmatpush1.msra.mxu0 0.0
  %3171 = vmatprep.subr.mxu0 0.0
  %3172 = vmatpush1.msra.mxu0 0.0
  %3173 = vmatprep.subr.mxu0 0.0
  %3174 = vmatpush1.msra.mxu0 0.0
  %3175 = vmatprep.subr.mxu0 0.0
  %3176 = vmatpush1.msra.mxu0 0.0
  %3177 = vmatprep.subr.mxu0 0.0
  %3178 = vmatpush1.msra.mxu0 0.0
  %3179 = vmatprep.subr.mxu0 0.0
  %3180 = vmatpush1.msra.mxu0 0.0
  %3181 = vmatprep.subr.mxu0 0.0
  %3182 = vmatpush1.msra.mxu0 0.0
  %3183 = vmatprep.subr.mxu0 0.0
  %3184 = vmatpush1.msra.mxu0 %v2208
  %3185 = vmatprep.subr.mxu0 0.0
  %3186 = vmatpush2.msra.mxu0 0.0
  %3187 = vmatprep.subr.mxu0 0.0
  %3188 = vmatpush2.msra.mxu0 0.0
  %3189 = vmatprep.subr.mxu0 0.0
  %3190 = vmatpush2.msra.mxu0 0.0
  %3191 = vmatprep.subr.mxu0 0.0
  %3192 = vmatpush2.msra.mxu0 0.0
  %3193 = vmatprep.subr.mxu0 0.0
  %3194 = vmatpush2.msra.mxu0 0.0
  %3195 = vmatprep.subr.mxu0 0.0
  %3196 = vmatpush2.msra.mxu0 0.0
  %3197 = vmatprep.subr.mxu0 0.0
  %3198 = vmatpush2.msra.mxu0 0.0
  %3199 = vmatprep.subr.mxu0 0.0
  %3200 = vmatpush2.msra.mxu0 0.0
  %3201 = vmatprep.subr.mxu0 0.0
  %3202 = vmatpush2.msra.mxu0 0.0
  %3203 = vmatprep.subr.mxu0 0.0
  %3204 = vmatpush2.msra.mxu0 0.0
  %3205 = vmatprep.subr.mxu0 0.0
  %3206 = vmatpush2.msra.mxu0 0.0
  %3207 = vmatprep.subr.mxu0 0.0
  %3208 = vmatpush2.msra.mxu0 0.0
  %3209 = vmatprep.subr.mxu0 0.0
  %3210 = vmatpush2.msra.mxu0 0.0
  %3211 = vmatprep.subr.mxu0 0.0
  %3212 = vmatpush2.msra.mxu0 0.0
  %3213 = vmatprep.subr.mxu0 0.0
  %3214 = vmatpush2.msra.mxu0 0.0
  %3215 = vmatprep.subr.mxu0 0.0
  %3216 = vmatpush2.msra.mxu0 0.0
  %3217 = vmatprep.mubr.f32.mxu0 0.0
  %3218 = vmatmul.mubr.f32.gmra.mxu0 %v3151
  %v3219 = vpop.f32.mrf.mxu0
  %v3220 = vadd.f32 0.0, %v3219
  %v3221 = vpop.f32.mrf.mxu0
  %3222 = vdwg.mxu0
  %v3224 = vsel %vm288, %v2927, 0
  %3226 = vmatprep.subr.mxu0 0.0
  %3227 = vmatpush1.msra.mxu0 0.0
  %3228 = vmatprep.subr.mxu0 0.0
  %3229 = vmatpush1.msra.mxu0 0.0
  %3230 = vmatprep.subr.mxu0 0.0
  %3231 = vmatpush1.msra.mxu0 0.0
  %3232 = vmatprep.subr.mxu0 0.0
  %3233 = vmatpush1.msra.mxu0 0.0
  %3234 = vmatprep.subr.mxu0 0.0
  %3235 = vmatpush1.msra.mxu0 0.0
  %3236 = vmatprep.subr.mxu0 0.0
  %3237 = vmatpush1.msra.mxu0 0.0
  %3238 = vmatprep.subr.mxu0 0.0
  %3239 = vmatpush1.msra.mxu0 0.0
  %3240 = vmatprep.subr.mxu0 0.0
  %3241 = vmatpush1.msra.mxu0 0.0
  %3242 = vmatprep.subr.mxu0 0.0
  %3243 = vmatpush1.msra.mxu0 0.0
  %3244 = vmatprep.subr.mxu0 0.0
  %3245 = vmatpush1.msra.mxu0 0.0
  %3246 = vmatprep.subr.mxu0 0.0
  %3247 = vmatpush1.msra.mxu0 0.0
  %3248 = vmatprep.subr.mxu0 0.0
  %3249 = vmatpush1.msra.mxu0 0.0
  %3250 = vmatprep.subr.mxu0 0.0
  %3251 = vmatpush1.msra.mxu0 0.0
  %3252 = vmatprep.subr.mxu0 0.0
  %3253 = vmatpush1.msra.mxu0 0.0
  %3254 = vmatprep.subr.mxu0 0.0
  %3255 = vmatpush1.msra.mxu0 0.0
  %3256 = vmatprep.subr.mxu0 0.0
  %3257 = vmatpush1.msra.mxu0 %v2213
  %3258 = vmatprep.subr.mxu0 0.0
  %3259 = vmatpush2.msra.mxu0 0.0
  %3260 = vmatprep.subr.mxu0 0.0
  %3261 = vmatpush2.msra.mxu0 0.0
  %3262 = vmatprep.subr.mxu0 0.0
  %3263 = vmatpush2.msra.mxu0 0.0
  %3264 = vmatprep.subr.mxu0 0.0
  %3265 = vmatpush2.msra.mxu0 0.0
  %3266 = vmatprep.subr.mxu0 0.0
  %3267 = vmatpush2.msra.mxu0 0.0
  %3268 = vmatprep.subr.mxu0 0.0
  %3269 = vmatpush2.msra.mxu0 0.0
  %3270 = vmatprep.subr.mxu0 0.0
  %3271 = vmatpush2.msra.mxu0 0.0
  %3272 = vmatprep.subr.mxu0 0.0
  %3273 = vmatpush2.msra.mxu0 0.0
  %3274 = vmatprep.subr.mxu0 0.0
  %3275 = vmatpush2.msra.mxu0 0.0
  %3276 = vmatprep.subr.mxu0 0.0
  %3277 = vmatpush2.msra.mxu0 0.0
  %3278 = vmatprep.subr.mxu0 0.0
  %3279 = vmatpush2.msra.mxu0 0.0
  %3280 = vmatprep.subr.mxu0 0.0
  %3281 = vmatpush2.msra.mxu0 0.0
  %3282 = vmatprep.subr.mxu0 0.0
  %3283 = vmatpush2.msra.mxu0 0.0
  %3284 = vmatprep.subr.mxu0 0.0
  %3285 = vmatpush2.msra.mxu0 0.0
  %3286 = vmatprep.subr.mxu0 0.0
  %3287 = vmatpush2.msra.mxu0 0.0
  %3288 = vmatprep.subr.mxu0 0.0
  %3289 = vmatpush2.msra.mxu0 0.0
  %3290 = vmatprep.mubr.f32.mxu0 0.0
  %3291 = vmatmul.mubr.f32.gmra.mxu0 %v3224
  %v3292 = vpop.f32.mrf.mxu0
  %v3293 = vadd.f32 0.0, %v3292
  %v3294 = vpop.f32.mrf.mxu0
  %3295 = vdwg.mxu0
  %v3297 = vsel %vm288, %v2928, 0
  %3299 = vmatprep.subr.mxu0 0.0
  %3300 = vmatpush1.msra.mxu0 0.0
  %3301 = vmatprep.subr.mxu0 0.0
  %3302 = vmatpush1.msra.mxu0 0.0
  %3303 = vmatprep.subr.mxu0 0.0
  %3304 = vmatpush1.msra.mxu0 0.0
  %3305 = vmatprep.subr.mxu0 0.0
  %3306 = vmatpush1.msra.mxu0 0.0
  %3307 = vmatprep.subr.mxu0 0.0
  %3308 = vmatpush1.msra.mxu0 0.0
  %3309 = vmatprep.subr.mxu0 0.0
  %3310 = vmatpush1.msra.mxu0 0.0
  %3311 = vmatprep.subr.mxu0 0.0
  %3312 = vmatpush1.msra.mxu0 0.0
  %3313 = vmatprep.subr.mxu0 0.0
  %3314 = vmatpush1.msra.mxu0 0.0
  %3315 = vmatprep.subr.mxu0 0.0
  %3316 = vmatpush1.msra.mxu0 0.0
  %3317 = vmatprep.subr.mxu0 0.0
  %3318 = vmatpush1.msra.mxu0 0.0
  %3319 = vmatprep.subr.mxu0 0.0
  %3320 = vmatpush1.msra.mxu0 0.0
  %3321 = vmatprep.subr.mxu0 0.0
  %3322 = vmatpush1.msra.mxu0 0.0
  %3323 = vmatprep.subr.mxu0 0.0
  %3324 = vmatpush1.msra.mxu0 0.0
  %3325 = vmatprep.subr.mxu0 0.0
  %3326 = vmatpush1.msra.mxu0 0.0
  %3327 = vmatprep.subr.mxu0 0.0
  %3328 = vmatpush1.msra.mxu0 0.0
  %3329 = vmatprep.subr.mxu0 0.0
  %3330 = vmatpush1.msra.mxu0 %v2216
  %3331 = vmatprep.subr.mxu0 0.0
  %3332 = vmatpush2.msra.mxu0 0.0
  %3333 = vmatprep.subr.mxu0 0.0
  %3334 = vmatpush2.msra.mxu0 0.0
  %3335 = vmatprep.subr.mxu0 0.0
  %3336 = vmatpush2.msra.mxu0 0.0
  %3337 = vmatprep.subr.mxu0 0.0
  %3338 = vmatpush2.msra.mxu0 0.0
  %3339 = vmatprep.subr.mxu0 0.0
  %3340 = vmatpush2.msra.mxu0 0.0
  %3341 = vmatprep.subr.mxu0 0.0
  %3342 = vmatpush2.msra.mxu0 0.0
  %3343 = vmatprep.subr.mxu0 0.0
  %3344 = vmatpush2.msra.mxu0 0.0
  %3345 = vmatprep.subr.mxu0 0.0
  %3346 = vmatpush2.msra.mxu0 0.0
  %3347 = vmatprep.subr.mxu0 0.0
  %3348 = vmatpush2.msra.mxu0 0.0
  %3349 = vmatprep.subr.mxu0 0.0
  %3350 = vmatpush2.msra.mxu0 0.0
  %3351 = vmatprep.subr.mxu0 0.0
  %3352 = vmatpush2.msra.mxu0 0.0
  %3353 = vmatprep.subr.mxu0 0.0
  %3354 = vmatpush2.msra.mxu0 0.0
  %3355 = vmatprep.subr.mxu0 0.0
  %3356 = vmatpush2.msra.mxu0 0.0
  %3357 = vmatprep.subr.mxu0 0.0
  %3358 = vmatpush2.msra.mxu0 0.0
  %3359 = vmatprep.subr.mxu0 0.0
  %3360 = vmatpush2.msra.mxu0 0.0
  %3361 = vmatprep.subr.mxu0 0.0
  %3362 = vmatpush2.msra.mxu0 0.0
  %3363 = vmatprep.mubr.f32.mxu0 0.0
  %3364 = vmatmul.mubr.f32.gmra.mxu0 %v3297
  %v3365 = vpop.f32.mrf.mxu0
  %v3366 = vadd.f32 0.0, %v3365
  %v3367 = vpop.f32.mrf.mxu0
  %3368 = vdwg.mxu0
  %v3370 = vsel %vm288, %v2929, 0
  %3372 = vmatprep.subr.mxu0 0.0
  %3373 = vmatpush1.msra.mxu0 0.0
  %3374 = vmatprep.subr.mxu0 0.0
  %3375 = vmatpush1.msra.mxu0 0.0
  %3376 = vmatprep.subr.mxu0 0.0
  %3377 = vmatpush1.msra.mxu0 0.0
  %3378 = vmatprep.subr.mxu0 0.0
  %3379 = vmatpush1.msra.mxu0 0.0
  %3380 = vmatprep.subr.mxu0 0.0
  %3381 = vmatpush1.msra.mxu0 0.0
  %3382 = vmatprep.subr.mxu0 0.0
  %3383 = vmatpush1.msra.mxu0 0.0
  %3384 = vmatprep.subr.mxu0 0.0
  %3385 = vmatpush1.msra.mxu0 0.0
  %3386 = vmatprep.subr.mxu0 0.0
  %3387 = vmatpush1.msra.mxu0 0.0
  %3388 = vmatprep.subr.mxu0 0.0
  %3389 = vmatpush1.msra.mxu0 0.0
  %3390 = vmatprep.subr.mxu0 0.0
  %3391 = vmatpush1.msra.mxu0 0.0
  %3392 = vmatprep.subr.mxu0 0.0
  %3393 = vmatpush1.msra.mxu0 0.0
  %3394 = vmatprep.subr.mxu0 0.0
  %3395 = vmatpush1.msra.mxu0 0.0
  %3396 = vmatprep.subr.mxu0 0.0
  %3397 = vmatpush1.msra.mxu0 0.0
  %3398 = vmatprep.subr.mxu0 0.0
  %3399 = vmatpush1.msra.mxu0 0.0
  %3400 = vmatprep.subr.mxu0 0.0
  %3401 = vmatpush1.msra.mxu0 0.0
  %3402 = vmatprep.subr.mxu0 0.0
  %3403 = vmatpush1.msra.mxu0 %v2221
  %3404 = vmatprep.subr.mxu0 0.0
  %3405 = vmatpush2.msra.mxu0 0.0
  %3406 = vmatprep.subr.mxu0 0.0
  %3407 = vmatpush2.msra.mxu0 0.0
  %3408 = vmatprep.subr.mxu0 0.0
  %3409 = vmatpush2.msra.mxu0 0.0
  %3410 = vmatprep.subr.mxu0 0.0
  %3411 = vmatpush2.msra.mxu0 0.0
  %3412 = vmatprep.subr.mxu0 0.0
  %3413 = vmatpush2.msra.mxu0 0.0
  %3414 = vmatprep.subr.mxu0 0.0
  %3415 = vmatpush2.msra.mxu0 0.0
  %3416 = vmatprep.subr.mxu0 0.0
  %3417 = vmatpush2.msra.mxu0 0.0
  %3418 = vmatprep.subr.mxu0 0.0
  %3419 = vmatpush2.msra.mxu0 0.0
  %3420 = vmatprep.subr.mxu0 0.0
  %3421 = vmatpush2.msra.mxu0 0.0
  %3422 = vmatprep.subr.mxu0 0.0
  %3423 = vmatpush2.msra.mxu0 0.0
  %3424 = vmatprep.subr.mxu0 0.0
  %3425 = vmatpush2.msra.mxu0 0.0
  %3426 = vmatprep.subr.mxu0 0.0
  %3427 = vmatpush2.msra.mxu0 0.0
  %3428 = vmatprep.subr.mxu0 0.0
  %3429 = vmatpush2.msra.mxu0 0.0
  %3430 = vmatprep.subr.mxu0 0.0
  %3431 = vmatpush2.msra.mxu0 0.0
  %3432 = vmatprep.subr.mxu0 0.0
  %3433 = vmatpush2.msra.mxu0 0.0
  %3434 = vmatprep.subr.mxu0 0.0
  %3435 = vmatpush2.msra.mxu0 0.0
  %3436 = vmatprep.mubr.f32.mxu0 0.0
  %3437 = vmatmul.mubr.f32.gmra.mxu0 %v3370
  %v3438 = vpop.f32.mrf.mxu0
  %v3439 = vadd.f32 0.0, %v3438
  %v3440 = vpop.f32.mrf.mxu0
  %3441 = vdwg.mxu0
  %v3443 = vsel %vm288, %v2930, 0
  %3445 = vmatprep.subr.mxu0 0.0
  %3446 = vmatpush1.msra.mxu0 0.0
  %3447 = vmatprep.subr.mxu0 0.0
  %3448 = vmatpush1.msra.mxu0 0.0
  %3449 = vmatprep.subr.mxu0 0.0
  %3450 = vmatpush1.msra.mxu0 0.0
  %3451 = vmatprep.subr.mxu0 0.0
  %3452 = vmatpush1.msra.mxu0 0.0
  %3453 = vmatprep.subr.mxu0 0.0
  %3454 = vmatpush1.msra.mxu0 0.0
  %3455 = vmatprep.subr.mxu0 0.0
  %3456 = vmatpush1.msra.mxu0 0.0
  %3457 = vmatprep.subr.mxu0 0.0
  %3458 = vmatpush1.msra.mxu0 0.0
  %3459 = vmatprep.subr.mxu0 0.0
  %3460 = vmatpush1.msra.mxu0 0.0
  %3461 = vmatprep.subr.mxu0 0.0
  %3462 = vmatpush1.msra.mxu0 0.0
  %3463 = vmatprep.subr.mxu0 0.0
  %3464 = vmatpush1.msra.mxu0 0.0
  %3465 = vmatprep.subr.mxu0 0.0
  %3466 = vmatpush1.msra.mxu0 0.0
  %3467 = vmatprep.subr.mxu0 0.0
  %3468 = vmatpush1.msra.mxu0 0.0
  %3469 = vmatprep.subr.mxu0 0.0
  %3470 = vmatpush1.msra.mxu0 0.0
  %3471 = vmatprep.subr.mxu0 0.0
  %3472 = vmatpush1.msra.mxu0 0.0
  %3473 = vmatprep.subr.mxu0 0.0
  %3474 = vmatpush1.msra.mxu0 0.0
  %3475 = vmatprep.subr.mxu0 0.0
  %3476 = vmatpush1.msra.mxu0 %v2224
  %3477 = vmatprep.subr.mxu0 0.0
  %3478 = vmatpush2.msra.mxu0 0.0
  %3479 = vmatprep.subr.mxu0 0.0
  %3480 = vmatpush2.msra.mxu0 0.0
  %3481 = vmatprep.subr.mxu0 0.0
  %3482 = vmatpush2.msra.mxu0 0.0
  %3483 = vmatprep.subr.mxu0 0.0
  %3484 = vmatpush2.msra.mxu0 0.0
  %3485 = vmatprep.subr.mxu0 0.0
  %3486 = vmatpush2.msra.mxu0 0.0
  %3487 = vmatprep.subr.mxu0 0.0
  %3488 = vmatpush2.msra.mxu0 0.0
  %3489 = vmatprep.subr.mxu0 0.0
  %3490 = vmatpush2.msra.mxu0 0.0
  %3491 = vmatprep.subr.mxu0 0.0
  %3492 = vmatpush2.msra.mxu0 0.0
  %3493 = vmatprep.subr.mxu0 0.0
  %3494 = vmatpush2.msra.mxu0 0.0
  %3495 = vmatprep.subr.mxu0 0.0
  %3496 = vmatpush2.msra.mxu0 0.0
  %3497 = vmatprep.subr.mxu0 0.0
  %3498 = vmatpush2.msra.mxu0 0.0
  %3499 = vmatprep.subr.mxu0 0.0
  %3500 = vmatpush2.msra.mxu0 0.0
  %3501 = vmatprep.subr.mxu0 0.0
  %3502 = vmatpush2.msra.mxu0 0.0
  %3503 = vmatprep.subr.mxu0 0.0
  %3504 = vmatpush2.msra.mxu0 0.0
  %3505 = vmatprep.subr.mxu0 0.0
  %3506 = vmatpush2.msra.mxu0 0.0
  %3507 = vmatprep.subr.mxu0 0.0
  %3508 = vmatpush2.msra.mxu0 0.0
  %3509 = vmatprep.mubr.f32.mxu0 0.0
  %3510 = vmatmul.mubr.f32.gmra.mxu0 %v3443
  %v3511 = vpop.f32.mrf.mxu0
  %v3512 = vadd.f32 0.0, %v3511
  %v3513 = vpop.f32.mrf.mxu0
  %3514 = vdwg.mxu0
  %v3515 = vpack.c.bf16 %v3074, %v3001
  %v3516 = vpack.c.bf16 %v3220, %v3147
  %v3517 = vpack.c.bf16 %v3366, %v3293
  %v3518 = vpack.c.bf16 %v3512, %v3439
  %s3519 = scalar_lea.vmem %s7, 8
  %v3520 = vld [vmem:[%s3519] sm:$0xf]
  %v3521 = vld [vmem:[%s3519 + $0x4] sm:$0xf]
  %v3524 = vunpack.c.l.b16 %v3520
  %v3525 = vunpack.c.l.b16 %v3521
  %v3526 = vpack.c.b16 %v3525, %v3524
  %v3529 = vsel %vm686, %v3515, 0
  %v3532 = vsel %vm686, %v3516, 0
  %v3535 = vsel %vm686, %v3517, 0
  %v3538 = vsel %vm686, %v3518, 0
  %3540 = vmatprep.subr.bf16.mxu0 0
  %3541 = vmatpush1.bf16.msra.mxu0 0
  %3542 = vmatprep.subr.bf16.mxu0 0
  %3543 = vmatpush1.bf16.msra.mxu0 0
  %3544 = vmatprep.subr.bf16.mxu0 0
  %3545 = vmatpush1.bf16.msra.mxu0 0
  %3546 = vmatprep.subr.bf16.mxu0 0
  %3547 = vmatpush1.bf16.msra.mxu0 0
  %3548 = vmatprep.subr.bf16.mxu0 0
  %3549 = vmatpush1.bf16.msra.mxu0 0
  %3550 = vmatprep.subr.bf16.mxu0 0
  %3551 = vmatpush1.bf16.msra.mxu0 0
  %3552 = vmatprep.subr.bf16.mxu0 0
  %3553 = vmatpush1.bf16.msra.mxu0 0
  %3554 = vmatprep.subr.bf16.mxu0 0
  %3555 = vmatpush1.bf16.msra.mxu0 %v3526
  %3556 = vmatprep.subr.bf16.mxu0 0
  %3557 = vmatpush2.bf16.msra.mxu0 0
  %3558 = vmatprep.subr.bf16.mxu0 0
  %3559 = vmatpush2.bf16.msra.mxu0 0
  %3560 = vmatprep.subr.bf16.mxu0 0
  %3561 = vmatpush2.bf16.msra.mxu0 0
  %3562 = vmatprep.subr.bf16.mxu0 0
  %3563 = vmatpush2.bf16.msra.mxu0 0
  %3564 = vmatprep.subr.bf16.mxu0 0
  %3565 = vmatpush2.bf16.msra.mxu0 0
  %3566 = vmatprep.subr.bf16.mxu0 0
  %3567 = vmatpush2.bf16.msra.mxu0 0
  %3568 = vmatprep.subr.bf16.mxu0 0
  %3569 = vmatpush2.bf16.msra.mxu0 0
  %3570 = vmatprep.subr.bf16.mxu0 0
  %3571 = vmatpush2.bf16.msra.mxu0 0
  %3572 = vmatprep.mubr.bf16.mxu0 0
  %3573 = vmatmul.mubr.bf16.gmra.mxu0 %v3529
  %v3574 = vpop.f32.mrf.mxu0
  %v3575 = vadd.f32 0.0, %v3574
  %v3576 = vpop.f32.mrf.mxu0
  %v3577 = vpop.f32.mrf.mxu0
  %v3578 = vadd.f32 0.0, %v3577
  %v3579 = vpop.f32.mrf.mxu0
  %3580 = vmatprep.mubr.bf16.mxu0 0
  %3581 = vmatmul.mubr.bf16.gmra.mxu0 %v3532
  %v3582 = vpop.f32.mrf.mxu0
  %v3583 = vadd.f32 0.0, %v3582
  %v3584 = vpop.f32.mrf.mxu0
  %v3585 = vpop.f32.mrf.mxu0
  %v3586 = vadd.f32 0.0, %v3585
  %v3587 = vpop.f32.mrf.mxu0
  %3588 = vmatprep.mubr.bf16.mxu0 0
  %3589 = vmatmul.mubr.bf16.gmra.mxu0 %v3535
  %v3590 = vpop.f32.mrf.mxu0
  %v3591 = vadd.f32 0.0, %v3590
  %v3592 = vpop.f32.mrf.mxu0
  %v3593 = vpop.f32.mrf.mxu0
  %v3594 = vadd.f32 0.0, %v3593
  %v3595 = vpop.f32.mrf.mxu0
  %3596 = vmatprep.mubr.bf16.mxu0 0
  %3597 = vmatmul.mubr.bf16.gmra.mxu0 %v3538
  %v3598 = vpop.f32.mrf.mxu0
  %v3599 = vadd.f32 0.0, %v3598
  %v3600 = vpop.f32.mrf.mxu0
  %v3601 = vpop.f32.mrf.mxu0
  %v3602 = vadd.f32 0.0, %v3601
  %v3603 = vpop.f32.mrf.mxu0
  %3604 = vdwg.mxu0
  %v3607 = vunpack.c.l.b16 %v1979
  %v3608 = vunpack.c.l.b16 %v1980
  %v3609 = vpack.c.b16 %v3608, %v3607
  %v3612 = vsel %vm686, %v1975, 0
  %v3615 = vsel %vm686, %v1976, 0
  %v3618 = vsel %vm686, %v1977, 0
  %v3621 = vsel %vm686, %v1978, 0
  %3623 = vmatprep.subr.bf16.mxu0 0
  %3624 = vmatpush1.bf16.msra.mxu0 0
  %3625 = vmatprep.subr.bf16.mxu0 0
  %3626 = vmatpush1.bf16.msra.mxu0 0
  %3627 = vmatprep.subr.bf16.mxu0 0
  %3628 = vmatpush1.bf16.msra.mxu0 0
  %3629 = vmatprep.subr.bf16.mxu0 0
  %3630 = vmatpush1.bf16.msra.mxu0 0
  %3631 = vmatprep.subr.bf16.mxu0 0
  %3632 = vmatpush1.bf16.msra.mxu0 0
  %3633 = vmatprep.subr.bf16.mxu0 0
  %3634 = vmatpush1.bf16.msra.mxu0 0
  %3635 = vmatprep.subr.bf16.mxu0 0
  %3636 = vmatpush1.bf16.msra.mxu0 0
  %3637 = vmatprep.subr.bf16.mxu0 0
  %3638 = vmatpush1.bf16.msra.mxu0 %v3609
  %3639 = vmatprep.subr.bf16.mxu0 0
  %3640 = vmatpush2.bf16.msra.mxu0 0
  %3641 = vmatprep.subr.bf16.mxu0 0
  %3642 = vmatpush2.bf16.msra.mxu0 0
  %3643 = vmatprep.subr.bf16.mxu0 0
  %3644 = vmatpush2.bf16.msra.mxu0 0
  %3645 = vmatprep.subr.bf16.mxu0 0
  %3646 = vmatpush2.bf16.msra.mxu0 0
  %3647 = vmatprep.subr.bf16.mxu0 0
  %3648 = vmatpush2.bf16.msra.mxu0 0
  %3649 = vmatprep.subr.bf16.mxu0 0
  %3650 = vmatpush2.bf16.msra.mxu0 0
  %3651 = vmatprep.subr.bf16.mxu0 0
  %3652 = vmatpush2.bf16.msra.mxu0 0
  %3653 = vmatprep.subr.bf16.mxu0 0
  %3654 = vmatpush2.bf16.msra.mxu0 0
  %3655 = vmatprep.mubr.bf16.mxu0 0
  %3656 = vmatmul.mubr.bf16.gmra.mxu0 %v3612
  %v3657 = vpop.f32.mrf.mxu0
  %v3658 = vadd.f32 %v3575, %v3657
  %v3659 = vpop.f32.mrf.mxu0
  %v3660 = vpop.f32.mrf.mxu0
  %v3661 = vadd.f32 %v3578, %v3660
  %v3662 = vpop.f32.mrf.mxu0
  %3663 = vmatprep.mubr.bf16.mxu0 0
  %3664 = vmatmul.mubr.bf16.gmra.mxu0 %v3615
  %v3665 = vpop.f32.mrf.mxu0
  %v3666 = vadd.f32 %v3583, %v3665
  %v3667 = vpop.f32.mrf.mxu0
  %v3668 = vpop.f32.mrf.mxu0
  %v3669 = vadd.f32 %v3586, %v3668
  %v3670 = vpop.f32.mrf.mxu0
  %3671 = vmatprep.mubr.bf16.mxu0 0
  %3672 = vmatmul.mubr.bf16.gmra.mxu0 %v3618
  %v3673 = vpop.f32.mrf.mxu0
  %v3674 = vadd.f32 %v3591, %v3673
  %v3675 = vpop.f32.mrf.mxu0
  %v3676 = vpop.f32.mrf.mxu0
  %v3677 = vadd.f32 %v3594, %v3676
  %v3678 = vpop.f32.mrf.mxu0
  %3679 = vmatprep.mubr.bf16.mxu0 0
  %3680 = vmatmul.mubr.bf16.gmra.mxu0 %v3621
  %v3681 = vpop.f32.mrf.mxu0
  %v3682 = vadd.f32 %v3599, %v3681
  %v3683 = vpop.f32.mrf.mxu0
  %v3684 = vpop.f32.mrf.mxu0
  %v3685 = vadd.f32 %v3602, %v3684
  %v3686 = vpop.f32.mrf.mxu0
  %3687 = vdwg.mxu0
  %v3688 = vadd.f32 %v418, %v3658
  %v3689 = vadd.f32 %v419, %v3661
  %v3690 = vadd.f32 %v420, %v3666
  %v3691 = vadd.f32 %v421, %v3669
  %v3692 = vadd.f32 %v422, %v3674
  %v3693 = vadd.f32 %v423, %v3677
  %v3694 = vadd.f32 %v424, %v3682
  %v3695 = vadd.f32 %v425, %v3685
  %v3696 = vld [vmem:[%s8] sm:$0x1]
  %v3697 = vld [vmem:[%s9] sm:$0x1]
  %v3698 = vsel %vm446, %v3688, 0.0
  %3699 = vadd.xlane.f32.xlu0 %v3698
  %v3700 = vpop.xlane.xlu0 %3699
  %v3701 = vsel %vm446, %v3689, 0.0
  %3702 = vadd.xlane.f32.xlu0 %v3701
  %v3703 = vpop.xlane.xlu0 %3702
  %v3704 = vsel %vm446, %v3690, 0.0
  %3705 = vadd.xlane.f32.xlu0 %v3704
  %v3706 = vpop.xlane.xlu0 %3705
  %v3707 = vsel %vm446, %v3691, 0.0
  %3708 = vadd.xlane.f32.xlu0 %v3707
  %v3709 = vpop.xlane.xlu0 %3708
  %v3710 = vsel %vm446, %v3692, 0.0
  %3711 = vadd.xlane.f32.xlu0 %v3710
  %v3712 = vpop.xlane.xlu0 %3711
  %v3713 = vsel %vm446, %v3693, 0.0
  %3714 = vadd.xlane.f32.xlu0 %v3713
  %v3715 = vpop.xlane.xlu0 %3714
  %v3716 = vsel %vm446, %v3694, 0.0
  %3717 = vadd.xlane.f32.xlu0 %v3716
  %v3718 = vpop.xlane.xlu0 %3717
  %v3719 = vsel %vm446, %v3695, 0.0
  %3720 = vadd.xlane.f32.xlu0 %v3719
  %v3721 = vpop.xlane.xlu0 %3720
  %v3722 = vrcp.pop 32.0
  %v3723 = vmul.f32 %v3700, %v3722
  %v3724 = vmul.f32 %v3703, %v3722
  %v3725 = vmul.f32 %v3706, %v3722
  %v3726 = vmul.f32 %v3709, %v3722
  %v3727 = vmul.f32 %v3712, %v3722
  %v3728 = vmul.f32 %v3715, %v3722
  %v3729 = vmul.f32 %v3718, %v3722
  %v3730 = vmul.f32 %v3721, %v3722
  %v3731 = vsub.f32 %v3688, %v3723
  %v3732 = vsub.f32 %v3689, %v3724
  %v3733 = vsub.f32 %v3690, %v3725
  %v3734 = vsub.f32 %v3691, %v3726
  %v3735 = vsub.f32 %v3692, %v3727
  %v3736 = vsub.f32 %v3693, %v3728
  %v3737 = vsub.f32 %v3694, %v3729
  %v3738 = vsub.f32 %v3695, %v3730
  %v3739 = vmul.f32 %v3731, %v3731
  %v3740 = vmul.f32 %v3732, %v3732
  %v3741 = vmul.f32 %v3733, %v3733
  %v3742 = vmul.f32 %v3734, %v3734
  %v3743 = vmul.f32 %v3735, %v3735
  %v3744 = vmul.f32 %v3736, %v3736
  %v3745 = vmul.f32 %v3737, %v3737
  %v3746 = vmul.f32 %v3738, %v3738
  %v3747 = vsel %vm446, %v3739, 0.0
  %3748 = vadd.xlane.f32.xlu0 %v3747
  %v3749 = vpop.xlane.xlu0 %3748
  %v3750 = vsel %vm446, %v3740, 0.0
  %3751 = vadd.xlane.f32.xlu0 %v3750
  %v3752 = vpop.xlane.xlu0 %3751
  %v3753 = vsel %vm446, %v3741, 0.0
  %3754 = vadd.xlane.f32.xlu0 %v3753
  %v3755 = vpop.xlane.xlu0 %3754
  %v3756 = vsel %vm446, %v3742, 0.0
  %3757 = vadd.xlane.f32.xlu0 %v3756
  %v3758 = vpop.xlane.xlu0 %3757
  %v3759 = vsel %vm446, %v3743, 0.0
  %3760 = vadd.xlane.f32.xlu0 %v3759
  %v3761 = vpop.xlane.xlu0 %3760
  %v3762 = vsel %vm446, %v3744, 0.0
  %3763 = vadd.xlane.f32.xlu0 %v3762
  %v3764 = vpop.xlane.xlu0 %3763
  %v3765 = vsel %vm446, %v3745, 0.0
  %3766 = vadd.xlane.f32.xlu0 %v3765
  %v3767 = vpop.xlane.xlu0 %3766
  %v3768 = vsel %vm446, %v3746, 0.0
  %3769 = vadd.xlane.f32.xlu0 %v3768
  %v3770 = vpop.xlane.xlu0 %3769
  %v3771 = vmul.f32 %v3749, %v3722
  %v3772 = vmul.f32 %v3752, %v3722
  %v3773 = vmul.f32 %v3755, %v3722
  %v3774 = vmul.f32 %v3758, %v3722
  %v3775 = vmul.f32 %v3761, %v3722
  %v3776 = vmul.f32 %v3764, %v3722
  %v3777 = vmul.f32 %v3767, %v3722
  %v3778 = vmul.f32 %v3770, %v3722
  %v3779 = vadd.f32 %v3771, 1e-05
  %v3780 = vadd.f32 %v3772, 1e-05
  %v3781 = vadd.f32 %v3773, 1e-05
  %v3782 = vadd.f32 %v3774, 1e-05
  %v3783 = vadd.f32 %v3775, 1e-05
  %v3784 = vadd.f32 %v3776, 1e-05
  %v3785 = vadd.f32 %v3777, 1e-05
  %v3786 = vadd.f32 %v3778, 1e-05
  %v3787 = vrsqrt.pop %v3779
  %v3788 = vrsqrt.pop %v3780
  %v3789 = vrsqrt.pop %v3781
  %v3790 = vrsqrt.pop %v3782
  %v3791 = vrsqrt.pop %v3783
  %v3792 = vrsqrt.pop %v3784
  %v3793 = vrsqrt.pop %v3785
  %v3794 = vrsqrt.pop %v3786
  %v3795 = vmul.f32 %v3731, %v3787
  %v3796 = vmul.f32 %v3732, %v3788
  %v3797 = vmul.f32 %v3733, %v3789
  %v3798 = vmul.f32 %v3734, %v3790
  %v3799 = vmul.f32 %v3735, %v3791
  %v3800 = vmul.f32 %v3736, %v3792
  %v3801 = vmul.f32 %v3737, %v3793
  %v3802 = vmul.f32 %v3738, %v3794
  %v3804 = vlaneseq
  %v3805 = vshrl.u32 %v3804, 7
  %v3806 = vsub.s32 0, %v3805
  %v3807 = vrot.slane %v3696, %v3806
  %v3809 = vmul.f32 %v3795, %v3807
  %v3810 = vmul.f32 %v3796, %v3807
  %v3811 = vmul.f32 %v3797, %v3807
  %v3812 = vmul.f32 %v3798, %v3807
  %v3813 = vmul.f32 %v3799, %v3807
  %v3814 = vmul.f32 %v3800, %v3807
  %v3815 = vmul.f32 %v3801, %v3807
  %v3816 = vmul.f32 %v3802, %v3807
  %v3818 = vlaneseq
  %v3819 = vshrl.u32 %v3818, 7
  %v3820 = vsub.s32 0, %v3819
  %v3821 = vrot.slane %v3697, %v3820
  %v3823 = vadd.f32 %v3809, %v3821
  %v3824 = vadd.f32 %v3810, %v3821
  %v3825 = vadd.f32 %v3811, %v3821
  %v3826 = vadd.f32 %v3812, %v3821
  %v3827 = vadd.f32 %v3813, %v3821
  %v3828 = vadd.f32 %v3814, %v3821
  %v3829 = vadd.f32 %v3815, %v3821
  %v3830 = vadd.f32 %v3816, %v3821
  %v3831 = vpack.c.bf16 %v3824, %v3823
  %v3832 = vpack.c.bf16 %v3826, %v3825
  %v3833 = vpack.c.bf16 %v3828, %v3827
  %v3834 = vpack.c.bf16 %v3830, %v3829
  %v3835 = vld [vmem:[%s10] sm:$0xf]
  %v3836 = vld [vmem:[%s10 + $0x4] sm:$0xf]
  %v3837 = vld [vmem:[%s10 + $0x8] sm:$0xf]
  %v3838 = vld [vmem:[%s10 + $0xc] sm:$0xf]
  %v3839 = vld [vmem:[%s11] sm:$0x1]
  %v3841 = vlaneseq
  %v3842 = vshrl.u32 %v3841, 7
  %v3843 = vsub.s32 0, %v3842
  %v3844 = vrot.slane %v3839, %v3843
  %v3850 = vunpack.c.l.b16 %v3835
  %v3851 = vunpack.c.l.b16 %v3836
  %v3852 = vunpack.c.l.b16 %v3837
  %v3853 = vunpack.c.l.b16 %v3838
  %v3854 = vpack.c.b16 %v3851, %v3850
  %v3855 = vpack.c.b16 %v3853, %v3852
  %v3859 = vsel %vm446, %v3831, 0
  %v3862 = vsel %vm446, %v3832, 0
  %v3865 = vsel %vm446, %v3833, 0
  %v3868 = vsel %vm446, %v3834, 0
  %3870 = vmatprep.subr.bf16.mxu0 0
  %3871 = vmatpush1.bf16.msra.mxu0 0
  %3872 = vmatprep.subr.bf16.mxu0 0
  %3873 = vmatpush1.bf16.msra.mxu0 0
  %3874 = vmatprep.subr.bf16.mxu0 0
  %3875 = vmatpush1.bf16.msra.mxu0 0
  %3876 = vmatprep.subr.bf16.mxu0 0
  %3877 = vmatpush1.bf16.msra.mxu0 0
  %3878 = vmatprep.subr.bf16.mxu0 0
  %3879 = vmatpush1.bf16.msra.mxu0 0
  %3880 = vmatprep.subr.bf16.mxu0 0
  %3881 = vmatpush1.bf16.msra.mxu0 0
  %3882 = vmatprep.subr.bf16.mxu0 0
  %3883 = vmatpush1.bf16.msra.mxu0 %v3855
  %3884 = vmatprep.subr.bf16.mxu0 0
  %3885 = vmatpush1.bf16.msra.mxu0 %v3854
  %3886 = vmatprep.subr.bf16.mxu0 0
  %3887 = vmatpush2.bf16.msra.mxu0 0
  %3888 = vmatprep.subr.bf16.mxu0 0
  %3889 = vmatpush2.bf16.msra.mxu0 0
  %3890 = vmatprep.subr.bf16.mxu0 0
  %3891 = vmatpush2.bf16.msra.mxu0 0
  %3892 = vmatprep.subr.bf16.mxu0 0
  %3893 = vmatpush2.bf16.msra.mxu0 0
  %3894 = vmatprep.subr.bf16.mxu0 0
  %3895 = vmatpush2.bf16.msra.mxu0 0
  %3896 = vmatprep.subr.bf16.mxu0 0
  %3897 = vmatpush2.bf16.msra.mxu0 0
  %3898 = vmatprep.subr.bf16.mxu0 0
  %3899 = vmatpush2.bf16.msra.mxu0 0
  %3900 = vmatprep.subr.bf16.mxu0 0
  %3901 = vmatpush2.bf16.msra.mxu0 0
  %3902 = vmatprep.mubr.bf16.mxu0 0
  %3903 = vmatmul.mubr.bf16.gmra.mxu0 %v3859
  %v3904 = vpop.f32.mrf.mxu0
  %v3905 = vadd.f32 %v3844, %v3904
  %v3906 = vpop.f32.mrf.mxu0
  %v3907 = vpop.f32.mrf.mxu0
  %v3908 = vadd.f32 %v3844, %v3907
  %v3909 = vpop.f32.mrf.mxu0
  %3910 = vmatprep.mubr.bf16.mxu0 0
  %3911 = vmatmul.mubr.bf16.gmra.mxu0 %v3862
  %v3912 = vpop.f32.mrf.mxu0
  %v3913 = vadd.f32 %v3844, %v3912
  %v3914 = vpop.f32.mrf.mxu0
  %v3915 = vpop.f32.mrf.mxu0
  %v3916 = vadd.f32 %v3844, %v3915
  %v3917 = vpop.f32.mrf.mxu0
  %3918 = vmatprep.mubr.bf16.mxu0 0
  %3919 = vmatmul.mubr.bf16.gmra.mxu0 %v3865
  %v3920 = vpop.f32.mrf.mxu0
  %v3921 = vadd.f32 %v3844, %v3920
  %v3922 = vpop.f32.mrf.mxu0
  %v3923 = vpop.f32.mrf.mxu0
  %v3924 = vadd.f32 %v3844, %v3923
  %v3925 = vpop.f32.mrf.mxu0
  %3926 = vmatprep.mubr.bf16.mxu0 0
  %3927 = vmatmul.mubr.bf16.gmra.mxu0 %v3868
  %v3928 = vpop.f32.mrf.mxu0
  %v3929 = vadd.f32 %v3844, %v3928
  %v3930 = vpop.f32.mrf.mxu0
  %v3931 = vpop.f32.mrf.mxu0
  %v3932 = vadd.f32 %v3844, %v3931
  %v3933 = vpop.f32.mrf.mxu0
  %3934 = vdwg.mxu0
  %v3935 = vmax.f32 %v3905, 0.0
  %v3936 = vmax.f32 %v3908, 0.0
  %v3937 = vmax.f32 %v3913, 0.0
  %v3938 = vmax.f32 %v3916, 0.0
  %v3939 = vmax.f32 %v3921, 0.0
  %v3940 = vmax.f32 %v3924, 0.0
  %v3941 = vmax.f32 %v3929, 0.0
  %v3942 = vmax.f32 %v3932, 0.0
  %v3943 = vpack.c.bf16 %v3936, %v3935
  %v3944 = vpack.c.bf16 %v3938, %v3937
  %v3945 = vpack.c.bf16 %v3940, %v3939
  %v3946 = vpack.c.bf16 %v3942, %v3941
  %v3947 = vld [vmem:[%s12] sm:$0xf]
  %v3948 = vld [vmem:[%s12 + $0x4] sm:$0xf]
  %v3949 = vld [vmem:[%s12 + $0x8] sm:$0xf]
  %v3950 = vld [vmem:[%s12 + $0xc] sm:$0xf]
  %v3951 = vld [vmem:[%s12 + $0x10] sm:$0xf]
  %v3952 = vld [vmem:[%s12 + $0x14] sm:$0xf]
  %v3953 = vld [vmem:[%s12 + $0x18] sm:$0xf]
  %v3954 = vld [vmem:[%s12 + $0x1c] sm:$0xf]
  %v3955 = vld [vmem:[%s13] sm:$0x1]
  %v3957 = vlaneseq
  %v3958 = vshrl.u32 %v3957, 7
  %v3959 = vsub.s32 0, %v3958
  %v3960 = vrot.slane %v3955, %v3959
  %v3970 = vunpack.c.l.b16 %v3947
  %v3971 = vunpack.c.l.b16 %v3948
  %v3972 = vunpack.c.l.b16 %v3949
  %v3973 = vunpack.c.l.b16 %v3950
  %v3974 = vunpack.c.l.b16 %v3951
  %v3975 = vunpack.c.l.b16 %v3952
  %v3976 = vunpack.c.l.b16 %v3953
  %v3977 = vunpack.c.l.b16 %v3954
  %v3978 = vpack.c.b16 %v3971, %v3970
  %v3979 = vpack.c.b16 %v3973, %v3972
  %v3980 = vpack.c.b16 %v3975, %v3974
  %v3981 = vpack.c.b16 %v3977, %v3976
  %vm3986 = vcmask 523264
  %v3988 = vsel %vm3986, %v3943, 0
  %v3991 = vsel %vm3986, %v3944, 0
  %v3994 = vsel %vm3986, %v3945, 0
  %v3997 = vsel %vm3986, %v3946, 0
  %3999 = vmatprep.subr.bf16.mxu0 0
  %4000 = vmatpush1.bf16.msra.mxu0 0
  %4001 = vmatprep.subr.bf16.mxu0 0
  %4002 = vmatpush1.bf16.msra.mxu0 0
  %4003 = vmatprep.subr.bf16.mxu0 0
  %4004 = vmatpush1.bf16.msra.mxu0 0
  %4005 = vmatprep.subr.bf16.mxu0 0
  %4006 = vmatpush1.bf16.msra.mxu0 0
  %4007 = vmatprep.subr.bf16.mxu0 0
  %4008 = vmatpush1.bf16.msra.mxu0 %v3981
  %4009 = vmatprep.subr.bf16.mxu0 0
  %4010 = vmatpush1.bf16.msra.mxu0 %v3980
  %4011 = vmatprep.subr.bf16.mxu0 0
  %4012 = vmatpush1.bf16.msra.mxu0 %v3979
  %4013 = vmatprep.subr.bf16.mxu0 0
  %4014 = vmatpush1.bf16.msra.mxu0 %v3978
  %4015 = vmatprep.subr.bf16.mxu0 0
  %4016 = vmatpush2.bf16.msra.mxu0 0
  %4017 = vmatprep.subr.bf16.mxu0 0
  %4018 = vmatpush2.bf16.msra.mxu0 0
  %4019 = vmatprep.subr.bf16.mxu0 0
  %4020 = vmatpush2.bf16.msra.mxu0 0
  %4021 = vmatprep.subr.bf16.mxu0 0
  %4022 = vmatpush2.bf16.msra.mxu0 0
  %4023 = vmatprep.subr.bf16.mxu0 0
  %4024 = vmatpush2.bf16.msra.mxu0 0
  %4025 = vmatprep.subr.bf16.mxu0 0
  %4026 = vmatpush2.bf16.msra.mxu0 0
  %4027 = vmatprep.subr.bf16.mxu0 0
  %4028 = vmatpush2.bf16.msra.mxu0 0
  %4029 = vmatprep.subr.bf16.mxu0 0
  %4030 = vmatpush2.bf16.msra.mxu0 0
  %4031 = vmatprep.mubr.bf16.mxu0 0
  %4032 = vmatmul.mubr.bf16.gmra.mxu0 %v3988
  %v4033 = vpop.f32.mrf.mxu0
  %v4034 = vadd.f32 %v3960, %v4033
  %v4035 = vpop.f32.mrf.mxu0
  %v4036 = vpop.f32.mrf.mxu0
  %v4037 = vadd.f32 %v3960, %v4036
  %v4038 = vpop.f32.mrf.mxu0
  %4039 = vmatprep.mubr.bf16.mxu0 0
  %4040 = vmatmul.mubr.bf16.gmra.mxu0 %v3991
  %v4041 = vpop.f32.mrf.mxu0
  %v4042 = vadd.f32 %v3960, %v4041
  %v4043 = vpop.f32.mrf.mxu0
  %v4044 = vpop.f32.mrf.mxu0
  %v4045 = vadd.f32 %v3960, %v4044
  %v4046 = vpop.f32.mrf.mxu0
  %4047 = vmatprep.mubr.bf16.mxu0 0
  %4048 = vmatmul.mubr.bf16.gmra.mxu0 %v3994
  %v4049 = vpop.f32.mrf.mxu0
  %v4050 = vadd.f32 %v3960, %v4049
  %v4051 = vpop.f32.mrf.mxu0
  %v4052 = vpop.f32.mrf.mxu0
  %v4053 = vadd.f32 %v3960, %v4052
  %v4054 = vpop.f32.mrf.mxu0
  %4055 = vmatprep.mubr.bf16.mxu0 0
  %4056 = vmatmul.mubr.bf16.gmra.mxu0 %v3997
  %v4057 = vpop.f32.mrf.mxu0
  %v4058 = vadd.f32 %v3960, %v4057
  %v4059 = vpop.f32.mrf.mxu0
  %v4060 = vpop.f32.mrf.mxu0
  %v4061 = vadd.f32 %v3960, %v4060
  %v4062 = vpop.f32.mrf.mxu0
  %4063 = vdwg.mxu0
  %v4064 = vadd.f32 %v3823, %v4034
  %v4065 = vadd.f32 %v3824, %v4037
  %v4066 = vadd.f32 %v3825, %v4042
  %v4067 = vadd.f32 %v3826, %v4045
  %v4068 = vadd.f32 %v3827, %v4050
  %v4069 = vadd.f32 %v3828, %v4053
  %v4070 = vadd.f32 %v3829, %v4058
  %v4071 = vadd.f32 %v3830, %v4061
  %v4072 = vld [vmem:[%s14] sm:$0x1]
  %v4073 = vld [vmem:[%s15] sm:$0x1]
  %v4074 = vsel %vm446, %v4064, 0.0
  %4075 = vadd.xlane.f32.xlu0 %v4074
  %v4076 = vpop.xlane.xlu0 %4075
  %v4077 = vsel %vm446, %v4065, 0.0
  %4078 = vadd.xlane.f32.xlu0 %v4077
  %v4079 = vpop.xlane.xlu0 %4078
  %v4080 = vsel %vm446, %v4066, 0.0
  %4081 = vadd.xlane.f32.xlu0 %v4080
  %v4082 = vpop.xlane.xlu0 %4081
  %v4083 = vsel %vm446, %v4067, 0.0
  %4084 = vadd.xlane.f32.xlu0 %v4083
  %v4085 = vpop.xlane.xlu0 %4084
  %v4086 = vsel %vm446, %v4068, 0.0
  %4087 = vadd.xlane.f32.xlu0 %v4086
  %v4088 = vpop.xlane.xlu0 %4087
  %v4089 = vsel %vm446, %v4069, 0.0
  %4090 = vadd.xlane.f32.xlu0 %v4089
  %v4091 = vpop.xlane.xlu0 %4090
  %v4092 = vsel %vm446, %v4070, 0.0
  %4093 = vadd.xlane.f32.xlu0 %v4092
  %v4094 = vpop.xlane.xlu0 %4093
  %v4095 = vsel %vm446, %v4071, 0.0
  %4096 = vadd.xlane.f32.xlu0 %v4095
  %v4097 = vpop.xlane.xlu0 %4096
  %v4098 = vmul.f32 %v4076, %v3722
  %v4099 = vmul.f32 %v4079, %v3722
  %v4100 = vmul.f32 %v4082, %v3722
  %v4101 = vmul.f32 %v4085, %v3722
  %v4102 = vmul.f32 %v4088, %v3722
  %v4103 = vmul.f32 %v4091, %v3722
  %v4104 = vmul.f32 %v4094, %v3722
  %v4105 = vmul.f32 %v4097, %v3722
  %v4106 = vsub.f32 %v4064, %v4098
  %v4107 = vsub.f32 %v4065, %v4099
  %v4108 = vsub.f32 %v4066, %v4100
  %v4109 = vsub.f32 %v4067, %v4101
  %v4110 = vsub.f32 %v4068, %v4102
  %v4111 = vsub.f32 %v4069, %v4103
  %v4112 = vsub.f32 %v4070, %v4104
  %v4113 = vsub.f32 %v4071, %v4105
  %v4114 = vmul.f32 %v4106, %v4106
  %v4115 = vmul.f32 %v4107, %v4107
  %v4116 = vmul.f32 %v4108, %v4108
  %v4117 = vmul.f32 %v4109, %v4109
  %v4118 = vmul.f32 %v4110, %v4110
  %v4119 = vmul.f32 %v4111, %v4111
  %v4120 = vmul.f32 %v4112, %v4112
  %v4121 = vmul.f32 %v4113, %v4113
  %v4122 = vsel %vm446, %v4114, 0.0
  %4123 = vadd.xlane.f32.xlu0 %v4122
  %v4124 = vpop.xlane.xlu0 %4123
  %v4125 = vsel %vm446, %v4115, 0.0
  %4126 = vadd.xlane.f32.xlu0 %v4125
  %v4127 = vpop.xlane.xlu0 %4126
  %v4128 = vsel %vm446, %v4116, 0.0
  %4129 = vadd.xlane.f32.xlu0 %v4128
  %v4130 = vpop.xlane.xlu0 %4129
  %v4131 = vsel %vm446, %v4117, 0.0
  %4132 = vadd.xlane.f32.xlu0 %v4131
  %v4133 = vpop.xlane.xlu0 %4132
  %v4134 = vsel %vm446, %v4118, 0.0
  %4135 = vadd.xlane.f32.xlu0 %v4134
  %v4136 = vpop.xlane.xlu0 %4135
  %v4137 = vsel %vm446, %v4119, 0.0
  %4138 = vadd.xlane.f32.xlu0 %v4137
  %v4139 = vpop.xlane.xlu0 %4138
  %v4140 = vsel %vm446, %v4120, 0.0
  %4141 = vadd.xlane.f32.xlu0 %v4140
  %v4142 = vpop.xlane.xlu0 %4141
  %v4143 = vsel %vm446, %v4121, 0.0
  %4144 = vadd.xlane.f32.xlu0 %v4143
  %v4145 = vpop.xlane.xlu0 %4144
  %v4146 = vmul.f32 %v4124, %v3722
  %v4147 = vmul.f32 %v4127, %v3722
  %v4148 = vmul.f32 %v4130, %v3722
  %v4149 = vmul.f32 %v4133, %v3722
  %v4150 = vmul.f32 %v4136, %v3722
  %v4151 = vmul.f32 %v4139, %v3722
  %v4152 = vmul.f32 %v4142, %v3722
  %v4153 = vmul.f32 %v4145, %v3722
  %v4154 = vadd.f32 %v4146, 1e-05
  %v4155 = vadd.f32 %v4147, 1e-05
  %v4156 = vadd.f32 %v4148, 1e-05
  %v4157 = vadd.f32 %v4149, 1e-05
  %v4158 = vadd.f32 %v4150, 1e-05
  %v4159 = vadd.f32 %v4151, 1e-05
  %v4160 = vadd.f32 %v4152, 1e-05
  %v4161 = vadd.f32 %v4153, 1e-05
  %v4162 = vrsqrt.pop %v4154
  %v4163 = vrsqrt.pop %v4155
  %v4164 = vrsqrt.pop %v4156
  %v4165 = vrsqrt.pop %v4157
  %v4166 = vrsqrt.pop %v4158
  %v4167 = vrsqrt.pop %v4159
  %v4168 = vrsqrt.pop %v4160
  %v4169 = vrsqrt.pop %v4161
  %v4170 = vmul.f32 %v4106, %v4162
  %v4171 = vmul.f32 %v4107, %v4163
  %v4172 = vmul.f32 %v4108, %v4164
  %v4173 = vmul.f32 %v4109, %v4165
  %v4174 = vmul.f32 %v4110, %v4166
  %v4175 = vmul.f32 %v4111, %v4167
  %v4176 = vmul.f32 %v4112, %v4168
  %v4177 = vmul.f32 %v4113, %v4169
  %v4179 = vlaneseq
  %v4180 = vshrl.u32 %v4179, 7
  %v4181 = vsub.s32 0, %v4180
  %v4182 = vrot.slane %v4072, %v4181
  %v4184 = vmul.f32 %v4170, %v4182
  %v4185 = vmul.f32 %v4171, %v4182
  %v4186 = vmul.f32 %v4172, %v4182
  %v4187 = vmul.f32 %v4173, %v4182
  %v4188 = vmul.f32 %v4174, %v4182
  %v4189 = vmul.f32 %v4175, %v4182
  %v4190 = vmul.f32 %v4176, %v4182
  %v4191 = vmul.f32 %v4177, %v4182
  %v4193 = vlaneseq
  %v4194 = vshrl.u32 %v4193, 7
  %v4195 = vsub.s32 0, %v4194
  %v4196 = vrot.slane %v4073, %v4195
  %v4198 = vadd.f32 %v4184, %v4196
  %v4199 = vadd.f32 %v4185, %v4196
  %v4200 = vadd.f32 %v4186, %v4196
  %v4201 = vadd.f32 %v4187, %v4196
  %v4202 = vadd.f32 %v4188, %v4196
  %v4203 = vadd.f32 %v4189, %v4196
  %v4204 = vadd.f32 %v4190, %v4196
  %v4205 = vadd.f32 %v4191, %v4196
  %v4206 = vpack.c.bf16 %v4199, %v4198
  %v4207 = vpack.c.bf16 %v4201, %v4200
  %v4208 = vpack.c.bf16 %v4203, %v4202
  %v4209 = vpack.c.bf16 %v4205, %v4204
  %s4210 = scalar_lea.vmem %s4, 32
  %v4211 = vld [vmem:[%s4210] sm:$0xf]
  %v4212 = vld [vmem:[%s4210 + $0x4] sm:$0xf]
  %v4213 = vld [vmem:[%s4210 + $0x8] sm:$0xf]
  %v4214 = vld [vmem:[%s4210 + $0xc] sm:$0xf]
  %v4219 = vunpack.c.l.b16 %v4211
  %v4220 = vunpack.c.l.b16 %v4212
  %v4221 = vunpack.c.l.b16 %v4213
  %v4222 = vunpack.c.l.b16 %v4214
  %v4223 = vpack.c.b16 %v4220, %v4219
  %v4224 = vpack.c.b16 %v4222, %v4221
  %v4228 = vsel %vm446, %v4206, 0
  %v4231 = vsel %vm446, %v4207, 0
  %v4234 = vsel %vm446, %v4208, 0
  %v4237 = vsel %vm446, %v4209, 0
  %4239 = vmatprep.subr.bf16.mxu0 0
  %4240 = vmatpush1.bf16.msra.mxu0 0
  %4241 = vmatprep.subr.bf16.mxu0 0
  %4242 = vmatpush1.bf16.msra.mxu0 0
  %4243 = vmatprep.subr.bf16.mxu0 0
  %4244 = vmatpush1.bf16.msra.mxu0 0
  %4245 = vmatprep.subr.bf16.mxu0 0
  %4246 = vmatpush1.bf16.msra.mxu0 0
  %4247 = vmatprep.subr.bf16.mxu0 0
  %4248 = vmatpush1.bf16.msra.mxu0 0
  %4249 = vmatprep.subr.bf16.mxu0 0
  %4250 = vmatpush1.bf16.msra.mxu0 0
  %4251 = vmatprep.subr.bf16.mxu0 0
  %4252 = vmatpush1.bf16.msra.mxu0 %v4224
  %4253 = vmatprep.subr.bf16.mxu0 0
  %4254 = vmatpush1.bf16.msra.mxu0 %v4223
  %4255 = vmatprep.subr.bf16.mxu0 0
  %4256 = vmatpush2.bf16.msra.mxu0 0
  %4257 = vmatprep.subr.bf16.mxu0 0
  %4258 = vmatpush2.bf16.msra.mxu0 0
  %4259 = vmatprep.subr.bf16.mxu0 0
  %4260 = vmatpush2.bf16.msra.mxu0 0
  %4261 = vmatprep.subr.bf16.mxu0 0
  %4262 = vmatpush2.bf16.msra.mxu0 0
  %4263 = vmatprep.subr.bf16.mxu0 0
  %4264 = vmatpush2.bf16.msra.mxu0 0
  %4265 = vmatprep.subr.bf16.mxu0 0
  %4266 = vmatpush2.bf16.msra.mxu0 0
  %4267 = vmatprep.subr.bf16.mxu0 0
  %4268 = vmatpush2.bf16.msra.mxu0 0
  %4269 = vmatprep.subr.bf16.mxu0 0
  %4270 = vmatpush2.bf16.msra.mxu0 0
  %4271 = vmatprep.mubr.bf16.mxu0 0
  %4272 = vmatmul.mubr.bf16.gmra.mxu0 %v4228
  %v4273 = vpop.f32.mrf.mxu0
  %v4274 = vadd.f32 0.0, %v4273
  %v4275 = vpop.f32.mrf.mxu0
  %v4276 = vpop.f32.mrf.mxu0
  %v4277 = vadd.f32 0.0, %v4276
  %v4278 = vpop.f32.mrf.mxu0
  %4279 = vmatprep.mubr.bf16.mxu0 0
  %4280 = vmatmul.mubr.bf16.gmra.mxu0 %v4231
  %v4281 = vpop.f32.mrf.mxu0
  %v4282 = vadd.f32 0.0, %v4281
  %v4283 = vpop.f32.mrf.mxu0
  %v4284 = vpop.f32.mrf.mxu0
  %v4285 = vadd.f32 0.0, %v4284
  %v4286 = vpop.f32.mrf.mxu0
  %4287 = vmatprep.mubr.bf16.mxu0 0
  %4288 = vmatmul.mubr.bf16.gmra.mxu0 %v4234
  %v4289 = vpop.f32.mrf.mxu0
  %v4290 = vadd.f32 0.0, %v4289
  %v4291 = vpop.f32.mrf.mxu0
  %v4292 = vpop.f32.mrf.mxu0
  %v4293 = vadd.f32 0.0, %v4292
  %v4294 = vpop.f32.mrf.mxu0
  %4295 = vmatprep.mubr.bf16.mxu0 0
  %4296 = vmatmul.mubr.bf16.gmra.mxu0 %v4237
  %v4297 = vpop.f32.mrf.mxu0
  %v4298 = vadd.f32 0.0, %v4297
  %v4299 = vpop.f32.mrf.mxu0
  %v4300 = vpop.f32.mrf.mxu0
  %v4301 = vadd.f32 0.0, %v4300
  %v4302 = vpop.f32.mrf.mxu0
  %4303 = vdwg.mxu0
  %s4304 = scalar_lea.vmem %s5, 32
  %v4305 = vld [vmem:[%s4304] sm:$0xf]
  %v4306 = vld [vmem:[%s4304 + $0x4] sm:$0xf]
  %v4307 = vld [vmem:[%s4304 + $0x8] sm:$0xf]
  %v4308 = vld [vmem:[%s4304 + $0xc] sm:$0xf]
  %v4313 = vunpack.c.l.b16 %v4305
  %v4314 = vunpack.c.l.b16 %v4306
  %v4315 = vunpack.c.l.b16 %v4307
  %v4316 = vunpack.c.l.b16 %v4308
  %v4317 = vpack.c.b16 %v4314, %v4313
  %v4318 = vpack.c.b16 %v4316, %v4315
  %4321 = vmatprep.subr.bf16.mxu0 0
  %4322 = vmatpush1.bf16.msra.mxu0 0
  %4323 = vmatprep.subr.bf16.mxu0 0
  %4324 = vmatpush1.bf16.msra.mxu0 0
  %4325 = vmatprep.subr.bf16.mxu0 0
  %4326 = vmatpush1.bf16.msra.mxu0 0
  %4327 = vmatprep.subr.bf16.mxu0 0
  %4328 = vmatpush1.bf16.msra.mxu0 0
  %4329 = vmatprep.subr.bf16.mxu0 0
  %4330 = vmatpush1.bf16.msra.mxu0 0
  %4331 = vmatprep.subr.bf16.mxu0 0
  %4332 = vmatpush1.bf16.msra.mxu0 0
  %4333 = vmatprep.subr.bf16.mxu0 0
  %4334 = vmatpush1.bf16.msra.mxu0 %v4318
  %4335 = vmatprep.subr.bf16.mxu0 0
  %4336 = vmatpush1.bf16.msra.mxu0 %v4317
  %4337 = vmatprep.subr.bf16.mxu0 0
  %4338 = vmatpush2.bf16.msra.mxu0 0
  %4339 = vmatprep.subr.bf16.mxu0 0
  %4340 = vmatpush2.bf16.msra.mxu0 0
  %4341 = vmatprep.subr.bf16.mxu0 0
  %4342 = vmatpush2.bf16.msra.mxu0 0
  %4343 = vmatprep.subr.bf16.mxu0 0
  %4344 = vmatpush2.bf16.msra.mxu0 0
  %4345 = vmatprep.subr.bf16.mxu0 0
  %4346 = vmatpush2.bf16.msra.mxu0 0
  %4347 = vmatprep.subr.bf16.mxu0 0
  %4348 = vmatpush2.bf16.msra.mxu0 0
  %4349 = vmatprep.subr.bf16.mxu0 0
  %4350 = vmatpush2.bf16.msra.mxu0 0
  %4351 = vmatprep.subr.bf16.mxu0 0
  %4352 = vmatpush2.bf16.msra.mxu0 0
  %4353 = vmatprep.mubr.bf16.mxu0 0
  %4354 = vmatmul.mubr.bf16.gmra.mxu0 %v4228
  %v4355 = vpop.f32.mrf.mxu0
  %v4356 = vadd.f32 0.0, %v4355
  %v4357 = vpop.f32.mrf.mxu0
  %v4358 = vpop.f32.mrf.mxu0
  %v4359 = vadd.f32 0.0, %v4358
  %v4360 = vpop.f32.mrf.mxu0
  %4361 = vmatprep.mubr.bf16.mxu0 0
  %4362 = vmatmul.mubr.bf16.gmra.mxu0 %v4231
  %v4363 = vpop.f32.mrf.mxu0
  %v4364 = vadd.f32 0.0, %v4363
  %v4365 = vpop.f32.mrf.mxu0
  %v4366 = vpop.f32.mrf.mxu0
  %v4367 = vadd.f32 0.0, %v4366
  %v4368 = vpop.f32.mrf.mxu0
  %4369 = vmatprep.mubr.bf16.mxu0 0
  %4370 = vmatmul.mubr.bf16.gmra.mxu0 %v4234
  %v4371 = vpop.f32.mrf.mxu0
  %v4372 = vadd.f32 0.0, %v4371
  %v4373 = vpop.f32.mrf.mxu0
  %v4374 = vpop.f32.mrf.mxu0
  %v4375 = vadd.f32 0.0, %v4374
  %v4376 = vpop.f32.mrf.mxu0
  %4377 = vmatprep.mubr.bf16.mxu0 0
  %4378 = vmatmul.mubr.bf16.gmra.mxu0 %v4237
  %v4379 = vpop.f32.mrf.mxu0
  %v4380 = vadd.f32 0.0, %v4379
  %v4381 = vpop.f32.mrf.mxu0
  %v4382 = vpop.f32.mrf.mxu0
  %v4383 = vadd.f32 0.0, %v4382
  %v4384 = vpop.f32.mrf.mxu0
  %4385 = vdwg.mxu0
  %s4386 = scalar_lea.vmem %s6, 32
  %v4387 = vld [vmem:[%s4386] sm:$0xf]
  %v4388 = vld [vmem:[%s4386 + $0x4] sm:$0xf]
  %v4389 = vld [vmem:[%s4386 + $0x8] sm:$0xf]
  %v4390 = vld [vmem:[%s4386 + $0xc] sm:$0xf]
  %v4395 = vunpack.c.l.b16 %v4387
  %v4396 = vunpack.c.l.b16 %v4388
  %v4397 = vunpack.c.l.b16 %v4389
  %v4398 = vunpack.c.l.b16 %v4390
  %v4399 = vpack.c.b16 %v4396, %v4395
  %v4400 = vpack.c.b16 %v4398, %v4397
  %4403 = vmatprep.subr.bf16.mxu0 0
  %4404 = vmatpush1.bf16.msra.mxu0 0
  %4405 = vmatprep.subr.bf16.mxu0 0
  %4406 = vmatpush1.bf16.msra.mxu0 0
  %4407 = vmatprep.subr.bf16.mxu0 0
  %4408 = vmatpush1.bf16.msra.mxu0 0
  %4409 = vmatprep.subr.bf16.mxu0 0
  %4410 = vmatpush1.bf16.msra.mxu0 0
  %4411 = vmatprep.subr.bf16.mxu0 0
  %4412 = vmatpush1.bf16.msra.mxu0 0
  %4413 = vmatprep.subr.bf16.mxu0 0
  %4414 = vmatpush1.bf16.msra.mxu0 0
  %4415 = vmatprep.subr.bf16.mxu0 0
  %4416 = vmatpush1.bf16.msra.mxu0 %v4400
  %4417 = vmatprep.subr.bf16.mxu0 0
  %4418 = vmatpush1.bf16.msra.mxu0 %v4399
  %4419 = vmatprep.subr.bf16.mxu0 0
  %4420 = vmatpush2.bf16.msra.mxu0 0
  %4421 = vmatprep.subr.bf16.mxu0 0
  %4422 = vmatpush2.bf16.msra.mxu0 0
  %4423 = vmatprep.subr.bf16.mxu0 0
  %4424 = vmatpush2.bf16.msra.mxu0 0
  %4425 = vmatprep.subr.bf16.mxu0 0
  %4426 = vmatpush2.bf16.msra.mxu0 0
  %4427 = vmatprep.subr.bf16.mxu0 0
  %4428 = vmatpush2.bf16.msra.mxu0 0
  %4429 = vmatprep.subr.bf16.mxu0 0
  %4430 = vmatpush2.bf16.msra.mxu0 0
  %4431 = vmatprep.subr.bf16.mxu0 0
  %4432 = vmatpush2.bf16.msra.mxu0 0
  %4433 = vmatprep.subr.bf16.mxu0 0
  %4434 = vmatpush2.bf16.msra.mxu0 0
  %4435 = vmatprep.mubr.bf16.mxu0 0
  %4436 = vmatmul.mubr.bf16.gmra.mxu0 %v4228
  %v4437 = vpop.f32.mrf.mxu0
  %v4438 = vadd.f32 0.0, %v4437
  %v4439 = vpop.f32.mrf.mxu0
  %v4440 = vpop.f32.mrf.mxu0
  %v4441 = vadd.f32 0.0, %v4440
  %v4442 = vpop.f32.mrf.mxu0
  %4443 = vmatprep.mubr.bf16.mxu0 0
  %4444 = vmatmul.mubr.bf16.gmra.mxu0 %v4231
  %v4445 = vpop.f32.mrf.mxu0
  %v4446 = vadd.f32 0.0, %v4445
  %v4447 = vpop.f32.mrf.mxu0
  %v4448 = vpop.f32.mrf.mxu0
  %v4449 = vadd.f32 0.0, %v4448
  %v4450 = vpop.f32.mrf.mxu0
  %4451 = vmatprep.mubr.bf16.mxu0 0
  %4452 = vmatmul.mubr.bf16.gmra.mxu0 %v4234
  %v4453 = vpop.f32.mrf.mxu0
  %v4454 = vadd.f32 0.0, %v4453
  %v4455 = vpop.f32.mrf.mxu0
  %v4456 = vpop.f32.mrf.mxu0
  %v4457 = vadd.f32 0.0, %v4456
  %v4458 = vpop.f32.mrf.mxu0
  %4459 = vmatprep.mubr.bf16.mxu0 0
  %4460 = vmatmul.mubr.bf16.gmra.mxu0 %v4237
  %v4461 = vpop.f32.mrf.mxu0
  %v4462 = vadd.f32 0.0, %v4461
  %v4463 = vpop.f32.mrf.mxu0
  %v4464 = vpop.f32.mrf.mxu0
  %v4465 = vadd.f32 0.0, %v4464
  %v4466 = vpop.f32.mrf.mxu0
  %4467 = vdwg.mxu0
  %v4469 = vsel %vm686, %v4274, 0
  %v4472 = vsel %vm686, %v4356, 0
  %4474 = vmatprep.subr.mxu0 0.0
  %4475 = vmatpush1.xpose.msra.mxu0 0.0
  %4476 = vmatprep.subr.mxu0 0.0
  %4477 = vmatpush1.xpose.msra.mxu0 0.0
  %4478 = vmatprep.subr.mxu0 0.0
  %4479 = vmatpush1.xpose.msra.mxu0 0.0
  %4480 = vmatprep.subr.mxu0 0.0
  %4481 = vmatpush1.xpose.msra.mxu0 0.0
  %4482 = vmatprep.subr.mxu0 0.0
  %4483 = vmatpush1.xpose.msra.mxu0 0.0
  %4484 = vmatprep.subr.mxu0 0.0
  %4485 = vmatpush1.xpose.msra.mxu0 0.0
  %4486 = vmatprep.subr.mxu0 0.0
  %4487 = vmatpush1.xpose.msra.mxu0 0.0
  %4488 = vmatprep.subr.mxu0 0.0
  %4489 = vmatpush1.xpose.msra.mxu0 0.0
  %4490 = vmatprep.subr.mxu0 0.0
  %4491 = vmatpush1.xpose.msra.mxu0 0.0
  %4492 = vmatprep.subr.mxu0 0.0
  %4493 = vmatpush1.xpose.msra.mxu0 0.0
  %4494 = vmatprep.subr.mxu0 0.0
  %4495 = vmatpush1.xpose.msra.mxu0 0.0
  %4496 = vmatprep.subr.mxu0 0.0
  %4497 = vmatpush1.xpose.msra.mxu0 0.0
  %4498 = vmatprep.subr.mxu0 0.0
  %4499 = vmatpush1.xpose.msra.mxu0 0.0
  %4500 = vmatprep.subr.mxu0 0.0
  %4501 = vmatpush1.xpose.msra.mxu0 0.0
  %4502 = vmatprep.subr.mxu0 0.0
  %4503 = vmatpush1.xpose.msra.mxu0 0.0
  %4504 = vmatprep.subr.mxu0 0.0
  %4505 = vmatpush1.xpose.msra.mxu0 %v4472
  %4506 = vmatprep.subr.mxu0 0.0
  %4507 = vmatpush2.xpose.msra.mxu0 0.0
  %4508 = vmatprep.subr.mxu0 0.0
  %4509 = vmatpush2.xpose.msra.mxu0 0.0
  %4510 = vmatprep.subr.mxu0 0.0
  %4511 = vmatpush2.xpose.msra.mxu0 0.0
  %4512 = vmatprep.subr.mxu0 0.0
  %4513 = vmatpush2.xpose.msra.mxu0 0.0
  %4514 = vmatprep.subr.mxu0 0.0
  %4515 = vmatpush2.xpose.msra.mxu0 0.0
  %4516 = vmatprep.subr.mxu0 0.0
  %4517 = vmatpush2.xpose.msra.mxu0 0.0
  %4518 = vmatprep.subr.mxu0 0.0
  %4519 = vmatpush2.xpose.msra.mxu0 0.0
  %4520 = vmatprep.subr.mxu0 0.0
  %4521 = vmatpush2.xpose.msra.mxu0 0.0
  %4522 = vmatprep.subr.mxu0 0.0
  %4523 = vmatpush2.xpose.msra.mxu0 0.0
  %4524 = vmatprep.subr.mxu0 0.0
  %4525 = vmatpush2.xpose.msra.mxu0 0.0
  %4526 = vmatprep.subr.mxu0 0.0
  %4527 = vmatpush2.xpose.msra.mxu0 0.0
  %4528 = vmatprep.subr.mxu0 0.0
  %4529 = vmatpush2.xpose.msra.mxu0 0.0
  %4530 = vmatprep.subr.mxu0 0.0
  %4531 = vmatpush2.xpose.msra.mxu0 0.0
  %4532 = vmatprep.subr.mxu0 0.0
  %4533 = vmatpush2.xpose.msra.mxu0 0.0
  %4534 = vmatprep.subr.mxu0 0.0
  %4535 = vmatpush2.xpose.msra.mxu0 0.0
  %4536 = vmatprep.subr.mxu0 0.0
  %4537 = vmatpush2.xpose.msra.mxu0 0.0
  %4538 = vmatprep.mubr.f32.mxu0 0.0
  %4539 = vmatmul.mubr.f32.gmra.mxu0 %v4469
  %v4540 = vpop.f32.mrf.mxu0
  %v4541 = vadd.f32 0.0, %v4540
  %v4542 = vpop.f32.mrf.mxu0
  %4543 = vdwg.mxu0
  %v4545 = vsel %vm686, %v4277, 0
  %v4548 = vsel %vm686, %v4359, 0
  %4550 = vmatprep.subr.mxu0 0.0
  %4551 = vmatpush1.xpose.msra.mxu0 0.0
  %4552 = vmatprep.subr.mxu0 0.0
  %4553 = vmatpush1.xpose.msra.mxu0 0.0
  %4554 = vmatprep.subr.mxu0 0.0
  %4555 = vmatpush1.xpose.msra.mxu0 0.0
  %4556 = vmatprep.subr.mxu0 0.0
  %4557 = vmatpush1.xpose.msra.mxu0 0.0
  %4558 = vmatprep.subr.mxu0 0.0
  %4559 = vmatpush1.xpose.msra.mxu0 0.0
  %4560 = vmatprep.subr.mxu0 0.0
  %4561 = vmatpush1.xpose.msra.mxu0 0.0
  %4562 = vmatprep.subr.mxu0 0.0
  %4563 = vmatpush1.xpose.msra.mxu0 0.0
  %4564 = vmatprep.subr.mxu0 0.0
  %4565 = vmatpush1.xpose.msra.mxu0 0.0
  %4566 = vmatprep.subr.mxu0 0.0
  %4567 = vmatpush1.xpose.msra.mxu0 0.0
  %4568 = vmatprep.subr.mxu0 0.0
  %4569 = vmatpush1.xpose.msra.mxu0 0.0
  %4570 = vmatprep.subr.mxu0 0.0
  %4571 = vmatpush1.xpose.msra.mxu0 0.0
  %4572 = vmatprep.subr.mxu0 0.0
  %4573 = vmatpush1.xpose.msra.mxu0 0.0
  %4574 = vmatprep.subr.mxu0 0.0
  %4575 = vmatpush1.xpose.msra.mxu0 0.0
  %4576 = vmatprep.subr.mxu0 0.0
  %4577 = vmatpush1.xpose.msra.mxu0 0.0
  %4578 = vmatprep.subr.mxu0 0.0
  %4579 = vmatpush1.xpose.msra.mxu0 0.0
  %4580 = vmatprep.subr.mxu0 0.0
  %4581 = vmatpush1.xpose.msra.mxu0 %v4548
  %4582 = vmatprep.subr.mxu0 0.0
  %4583 = vmatpush2.xpose.msra.mxu0 0.0
  %4584 = vmatprep.subr.mxu0 0.0
  %4585 = vmatpush2.xpose.msra.mxu0 0.0
  %4586 = vmatprep.subr.mxu0 0.0
  %4587 = vmatpush2.xpose.msra.mxu0 0.0
  %4588 = vmatprep.subr.mxu0 0.0
  %4589 = vmatpush2.xpose.msra.mxu0 0.0
  %4590 = vmatprep.subr.mxu0 0.0
  %4591 = vmatpush2.xpose.msra.mxu0 0.0
  %4592 = vmatprep.subr.mxu0 0.0
  %4593 = vmatpush2.xpose.msra.mxu0 0.0
  %4594 = vmatprep.subr.mxu0 0.0
  %4595 = vmatpush2.xpose.msra.mxu0 0.0
  %4596 = vmatprep.subr.mxu0 0.0
  %4597 = vmatpush2.xpose.msra.mxu0 0.0
  %4598 = vmatprep.subr.mxu0 0.0
  %4599 = vmatpush2.xpose.msra.mxu0 0.0
  %4600 = vmatprep.subr.mxu0 0.0
  %4601 = vmatpush2.xpose.msra.mxu0 0.0
  %4602 = vmatprep.subr.mxu0 0.0
  %4603 = vmatpush2.xpose.msra.mxu0 0.0
  %4604 = vmatprep.subr.mxu0 0.0
  %4605 = vmatpush2.xpose.msra.mxu0 0.0
  %4606 = vmatprep.subr.mxu0 0.0
  %4607 = vmatpush2.xpose.msra.mxu0 0.0
  %4608 = vmatprep.subr.mxu0 0.0
  %4609 = vmatpush2.xpose.msra.mxu0 0.0
  %4610 = vmatprep.subr.mxu0 0.0
  %4611 = vmatpush2.xpose.msra.mxu0 0.0
  %4612 = vmatprep.subr.mxu0 0.0
  %4613 = vmatpush2.xpose.msra.mxu0 0.0
  %4614 = vmatprep.mubr.f32.mxu0 0.0
  %4615 = vmatmul.mubr.f32.gmra.mxu0 %v4545
  %v4616 = vpop.f32.mrf.mxu0
  %v4617 = vadd.f32 0.0, %v4616
  %v4618 = vpop.f32.mrf.mxu0
  %4619 = vdwg.mxu0
  %v4621 = vsel %vm686, %v4282, 0
  %v4624 = vsel %vm686, %v4364, 0
  %4626 = vmatprep.subr.mxu0 0.0
  %4627 = vmatpush1.xpose.msra.mxu0 0.0
  %4628 = vmatprep.subr.mxu0 0.0
  %4629 = vmatpush1.xpose.msra.mxu0 0.0
  %4630 = vmatprep.subr.mxu0 0.0
  %4631 = vmatpush1.xpose.msra.mxu0 0.0
  %4632 = vmatprep.subr.mxu0 0.0
  %4633 = vmatpush1.xpose.msra.mxu0 0.0
  %4634 = vmatprep.subr.mxu0 0.0
  %4635 = vmatpush1.xpose.msra.mxu0 0.0
  %4636 = vmatprep.subr.mxu0 0.0
  %4637 = vmatpush1.xpose.msra.mxu0 0.0
  %4638 = vmatprep.subr.mxu0 0.0
  %4639 = vmatpush1.xpose.msra.mxu0 0.0
  %4640 = vmatprep.subr.mxu0 0.0
  %4641 = vmatpush1.xpose.msra.mxu0 0.0
  %4642 = vmatprep.subr.mxu0 0.0
  %4643 = vmatpush1.xpose.msra.mxu0 0.0
  %4644 = vmatprep.subr.mxu0 0.0
  %4645 = vmatpush1.xpose.msra.mxu0 0.0
  %4646 = vmatprep.subr.mxu0 0.0
  %4647 = vmatpush1.xpose.msra.mxu0 0.0
  %4648 = vmatprep.subr.mxu0 0.0
  %4649 = vmatpush1.xpose.msra.mxu0 0.0
  %4650 = vmatprep.subr.mxu0 0.0
  %4651 = vmatpush1.xpose.msra.mxu0 0.0
  %4652 = vmatprep.subr.mxu0 0.0
  %4653 = vmatpush1.xpose.msra.mxu0 0.0
  %4654 = vmatprep.subr.mxu0 0.0
  %4655 = vmatpush1.xpose.msra.mxu0 0.0
  %4656 = vmatprep.subr.mxu0 0.0
  %4657 = vmatpush1.xpose.msra.mxu0 %v4624
  %4658 = vmatprep.subr.mxu0 0.0
  %4659 = vmatpush2.xpose.msra.mxu0 0.0
  %4660 = vmatprep.subr.mxu0 0.0
  %4661 = vmatpush2.xpose.msra.mxu0 0.0
  %4662 = vmatprep.subr.mxu0 0.0
  %4663 = vmatpush2.xpose.msra.mxu0 0.0
  %4664 = vmatprep.subr.mxu0 0.0
  %4665 = vmatpush2.xpose.msra.mxu0 0.0
  %4666 = vmatprep.subr.mxu0 0.0
  %4667 = vmatpush2.xpose.msra.mxu0 0.0
  %4668 = vmatprep.subr.mxu0 0.0
  %4669 = vmatpush2.xpose.msra.mxu0 0.0
  %4670 = vmatprep.subr.mxu0 0.0
  %4671 = vmatpush2.xpose.msra.mxu0 0.0
  %4672 = vmatprep.subr.mxu0 0.0
  %4673 = vmatpush2.xpose.msra.mxu0 0.0
  %4674 = vmatprep.subr.mxu0 0.0
  %4675 = vmatpush2.xpose.msra.mxu0 0.0
  %4676 = vmatprep.subr.mxu0 0.0
  %4677 = vmatpush2.xpose.msra.mxu0 0.0
  %4678 = vmatprep.subr.mxu0 0.0
  %4679 = vmatpush2.xpose.msra.mxu0 0.0
  %4680 = vmatprep.subr.mxu0 0.0
  %4681 = vmatpush2.xpose.msra.mxu0 0.0
  %4682 = vmatprep.subr.mxu0 0.0
  %4683 = vmatpush2.xpose.msra.mxu0 0.0
  %4684 = vmatprep.subr.mxu0 0.0
  %4685 = vmatpush2.xpose.msra.mxu0 0.0
  %4686 = vmatprep.subr.mxu0 0.0
  %4687 = vmatpush2.xpose.msra.mxu0 0.0
  %4688 = vmatprep.subr.mxu0 0.0
  %4689 = vmatpush2.xpose.msra.mxu0 0.0
  %4690 = vmatprep.mubr.f32.mxu0 0.0
  %4691 = vmatmul.mubr.f32.gmra.mxu0 %v4621
  %v4692 = vpop.f32.mrf.mxu0
  %v4693 = vadd.f32 0.0, %v4692
  %v4694 = vpop.f32.mrf.mxu0
  %4695 = vdwg.mxu0
  %v4697 = vsel %vm686, %v4285, 0
  %v4700 = vsel %vm686, %v4367, 0
  %4702 = vmatprep.subr.mxu0 0.0
  %4703 = vmatpush1.xpose.msra.mxu0 0.0
  %4704 = vmatprep.subr.mxu0 0.0
  %4705 = vmatpush1.xpose.msra.mxu0 0.0
  %4706 = vmatprep.subr.mxu0 0.0
  %4707 = vmatpush1.xpose.msra.mxu0 0.0
  %4708 = vmatprep.subr.mxu0 0.0
  %4709 = vmatpush1.xpose.msra.mxu0 0.0
  %4710 = vmatprep.subr.mxu0 0.0
  %4711 = vmatpush1.xpose.msra.mxu0 0.0
  %4712 = vmatprep.subr.mxu0 0.0
  %4713 = vmatpush1.xpose.msra.mxu0 0.0
  %4714 = vmatprep.subr.mxu0 0.0
  %4715 = vmatpush1.xpose.msra.mxu0 0.0
  %4716 = vmatprep.subr.mxu0 0.0
  %4717 = vmatpush1.xpose.msra.mxu0 0.0
  %4718 = vmatprep.subr.mxu0 0.0
  %4719 = vmatpush1.xpose.msra.mxu0 0.0
  %4720 = vmatprep.subr.mxu0 0.0
  %4721 = vmatpush1.xpose.msra.mxu0 0.0
  %4722 = vmatprep.subr.mxu0 0.0
  %4723 = vmatpush1.xpose.msra.mxu0 0.0
  %4724 = vmatprep.subr.mxu0 0.0
  %4725 = vmatpush1.xpose.msra.mxu0 0.0
  %4726 = vmatprep.subr.mxu0 0.0
  %4727 = vmatpush1.xpose.msra.mxu0 0.0
  %4728 = vmatprep.subr.mxu0 0.0
  %4729 = vmatpush1.xpose.msra.mxu0 0.0
  %4730 = vmatprep.subr.mxu0 0.0
  %4731 = vmatpush1.xpose.msra.mxu0 0.0
  %4732 = vmatprep.subr.mxu0 0.0
  %4733 = vmatpush1.xpose.msra.mxu0 %v4700
  %4734 = vmatprep.subr.mxu0 0.0
  %4735 = vmatpush2.xpose.msra.mxu0 0.0
  %4736 = vmatprep.subr.mxu0 0.0
  %4737 = vmatpush2.xpose.msra.mxu0 0.0
  %4738 = vmatprep.subr.mxu0 0.0
  %4739 = vmatpush2.xpose.msra.mxu0 0.0
  %4740 = vmatprep.subr.mxu0 0.0
  %4741 = vmatpush2.xpose.msra.mxu0 0.0
  %4742 = vmatprep.subr.mxu0 0.0
  %4743 = vmatpush2.xpose.msra.mxu0 0.0
  %4744 = vmatprep.subr.mxu0 0.0
  %4745 = vmatpush2.xpose.msra.mxu0 0.0
  %4746 = vmatprep.subr.mxu0 0.0
  %4747 = vmatpush2.xpose.msra.mxu0 0.0
  %4748 = vmatprep.subr.mxu0 0.0
  %4749 = vmatpush2.xpose.msra.mxu0 0.0
  %4750 = vmatprep.subr.mxu0 0.0
  %4751 = vmatpush2.xpose.msra.mxu0 0.0
  %4752 = vmatprep.subr.mxu0 0.0
  %4753 = vmatpush2.xpose.msra.mxu0 0.0
  %4754 = vmatprep.subr.mxu0 0.0
  %4755 = vmatpush2.xpose.msra.mxu0 0.0
  %4756 = vmatprep.subr.mxu0 0.0
  %4757 = vmatpush2.xpose.msra.mxu0 0.0
  %4758 = vmatprep.subr.mxu0 0.0
  %4759 = vmatpush2.xpose.msra.mxu0 0.0
  %4760 = vmatprep.subr.mxu0 0.0
  %4761 = vmatpush2.xpose.msra.mxu0 0.0
  %4762 = vmatprep.subr.mxu0 0.0
  %4763 = vmatpush2.xpose.msra.mxu0 0.0
  %4764 = vmatprep.subr.mxu0 0.0
  %4765 = vmatpush2.xpose.msra.mxu0 0.0
  %4766 = vmatprep.mubr.f32.mxu0 0.0
  %4767 = vmatmul.mubr.f32.gmra.mxu0 %v4697
  %v4768 = vpop.f32.mrf.mxu0
  %v4769 = vadd.f32 0.0, %v4768
  %v4770 = vpop.f32.mrf.mxu0
  %4771 = vdwg.mxu0
  %v4773 = vsel %vm686, %v4290, 0
  %v4776 = vsel %vm686, %v4372, 0
  %4778 = vmatprep.subr.mxu0 0.0
  %4779 = vmatpush1.xpose.msra.mxu0 0.0
  %4780 = vmatprep.subr.mxu0 0.0
  %4781 = vmatpush1.xpose.msra.mxu0 0.0
  %4782 = vmatprep.subr.mxu0 0.0
  %4783 = vmatpush1.xpose.msra.mxu0 0.0
  %4784 = vmatprep.subr.mxu0 0.0
  %4785 = vmatpush1.xpose.msra.mxu0 0.0
  %4786 = vmatprep.subr.mxu0 0.0
  %4787 = vmatpush1.xpose.msra.mxu0 0.0
  %4788 = vmatprep.subr.mxu0 0.0
  %4789 = vmatpush1.xpose.msra.mxu0 0.0
  %4790 = vmatprep.subr.mxu0 0.0
  %4791 = vmatpush1.xpose.msra.mxu0 0.0
  %4792 = vmatprep.subr.mxu0 0.0
  %4793 = vmatpush1.xpose.msra.mxu0 0.0
  %4794 = vmatprep.subr.mxu0 0.0
  %4795 = vmatpush1.xpose.msra.mxu0 0.0
  %4796 = vmatprep.subr.mxu0 0.0
  %4797 = vmatpush1.xpose.msra.mxu0 0.0
  %4798 = vmatprep.subr.mxu0 0.0
  %4799 = vmatpush1.xpose.msra.mxu0 0.0
  %4800 = vmatprep.subr.mxu0 0.0
  %4801 = vmatpush1.xpose.msra.mxu0 0.0
  %4802 = vmatprep.subr.mxu0 0.0
  %4803 = vmatpush1.xpose.msra.mxu0 0.0
  %4804 = vmatprep.subr.mxu0 0.0
  %4805 = vmatpush1.xpose.msra.mxu0 0.0
  %4806 = vmatprep.subr.mxu0 0.0
  %4807 = vmatpush1.xpose.msra.mxu0 0.0
  %4808 = vmatprep.subr.mxu0 0.0
  %4809 = vmatpush1.xpose.msra.mxu0 %v4776
  %4810 = vmatprep.subr.mxu0 0.0
  %4811 = vmatpush2.xpose.msra.mxu0 0.0
  %4812 = vmatprep.subr.mxu0 0.0
  %4813 = vmatpush2.xpose.msra.mxu0 0.0
  %4814 = vmatprep.subr.mxu0 0.0
  %4815 = vmatpush2.xpose.msra.mxu0 0.0
  %4816 = vmatprep.subr.mxu0 0.0
  %4817 = vmatpush2.xpose.msra.mxu0 0.0
  %4818 = vmatprep.subr.mxu0 0.0
  %4819 = vmatpush2.xpose.msra.mxu0 0.0
  %4820 = vmatprep.subr.mxu0 0.0
  %4821 = vmatpush2.xpose.msra.mxu0 0.0
  %4822 = vmatprep.subr.mxu0 0.0
  %4823 = vmatpush2.xpose.msra.mxu0 0.0
  %4824 = vmatprep.subr.mxu0 0.0
  %4825 = vmatpush2.xpose.msra.mxu0 0.0
  %4826 = vmatprep.subr.mxu0 0.0
  %4827 = vmatpush2.xpose.msra.mxu0 0.0
  %4828 = vmatprep.subr.mxu0 0.0
  %4829 = vmatpush2.xpose.msra.mxu0 0.0
  %4830 = vmatprep.subr.mxu0 0.0
  %4831 = vmatpush2.xpose.msra.mxu0 0.0
  %4832 = vmatprep.subr.mxu0 0.0
  %4833 = vmatpush2.xpose.msra.mxu0 0.0
  %4834 = vmatprep.subr.mxu0 0.0
  %4835 = vmatpush2.xpose.msra.mxu0 0.0
  %4836 = vmatprep.subr.mxu0 0.0
  %4837 = vmatpush2.xpose.msra.mxu0 0.0
  %4838 = vmatprep.subr.mxu0 0.0
  %4839 = vmatpush2.xpose.msra.mxu0 0.0
  %4840 = vmatprep.subr.mxu0 0.0
  %4841 = vmatpush2.xpose.msra.mxu0 0.0
  %4842 = vmatprep.mubr.f32.mxu0 0.0
  %4843 = vmatmul.mubr.f32.gmra.mxu0 %v4773
  %v4844 = vpop.f32.mrf.mxu0
  %v4845 = vadd.f32 0.0, %v4844
  %v4846 = vpop.f32.mrf.mxu0
  %4847 = vdwg.mxu0
  %v4849 = vsel %vm686, %v4293, 0
  %v4852 = vsel %vm686, %v4375, 0
  %4854 = vmatprep.subr.mxu0 0.0
  %4855 = vmatpush1.xpose.msra.mxu0 0.0
  %4856 = vmatprep.subr.mxu0 0.0
  %4857 = vmatpush1.xpose.msra.mxu0 0.0
  %4858 = vmatprep.subr.mxu0 0.0
  %4859 = vmatpush1.xpose.msra.mxu0 0.0
  %4860 = vmatprep.subr.mxu0 0.0
  %4861 = vmatpush1.xpose.msra.mxu0 0.0
  %4862 = vmatprep.subr.mxu0 0.0
  %4863 = vmatpush1.xpose.msra.mxu0 0.0
  %4864 = vmatprep.subr.mxu0 0.0
  %4865 = vmatpush1.xpose.msra.mxu0 0.0
  %4866 = vmatprep.subr.mxu0 0.0
  %4867 = vmatpush1.xpose.msra.mxu0 0.0
  %4868 = vmatprep.subr.mxu0 0.0
  %4869 = vmatpush1.xpose.msra.mxu0 0.0
  %4870 = vmatprep.subr.mxu0 0.0
  %4871 = vmatpush1.xpose.msra.mxu0 0.0
  %4872 = vmatprep.subr.mxu0 0.0
  %4873 = vmatpush1.xpose.msra.mxu0 0.0
  %4874 = vmatprep.subr.mxu0 0.0
  %4875 = vmatpush1.xpose.msra.mxu0 0.0
  %4876 = vmatprep.subr.mxu0 0.0
  %4877 = vmatpush1.xpose.msra.mxu0 0.0
  %4878 = vmatprep.subr.mxu0 0.0
  %4879 = vmatpush1.xpose.msra.mxu0 0.0
  %4880 = vmatprep.subr.mxu0 0.0
  %4881 = vmatpush1.xpose.msra.mxu0 0.0
  %4882 = vmatprep.subr.mxu0 0.0
  %4883 = vmatpush1.xpose.msra.mxu0 0.0
  %4884 = vmatprep.subr.mxu0 0.0
  %4885 = vmatpush1.xpose.msra.mxu0 %v4852
  %4886 = vmatprep.subr.mxu0 0.0
  %4887 = vmatpush2.xpose.msra.mxu0 0.0
  %4888 = vmatprep.subr.mxu0 0.0
  %4889 = vmatpush2.xpose.msra.mxu0 0.0
  %4890 = vmatprep.subr.mxu0 0.0
  %4891 = vmatpush2.xpose.msra.mxu0 0.0
  %4892 = vmatprep.subr.mxu0 0.0
  %4893 = vmatpush2.xpose.msra.mxu0 0.0
  %4894 = vmatprep.subr.mxu0 0.0
  %4895 = vmatpush2.xpose.msra.mxu0 0.0
  %4896 = vmatprep.subr.mxu0 0.0
  %4897 = vmatpush2.xpose.msra.mxu0 0.0
  %4898 = vmatprep.subr.mxu0 0.0
  %4899 = vmatpush2.xpose.msra.mxu0 0.0
  %4900 = vmatprep.subr.mxu0 0.0
  %4901 = vmatpush2.xpose.msra.mxu0 0.0
  %4902 = vmatprep.subr.mxu0 0.0
  %4903 = vmatpush2.xpose.msra.mxu0 0.0
  %4904 = vmatprep.subr.mxu0 0.0
  %4905 = vmatpush2.xpose.msra.mxu0 0.0
  %4906 = vmatprep.subr.mxu0 0.0
  %4907 = vmatpush2.xpose.msra.mxu0 0.0
  %4908 = vmatprep.subr.mxu0 0.0
  %4909 = vmatpush2.xpose.msra.mxu0 0.0
  %4910 = vmatprep.subr.mxu0 0.0
  %4911 = vmatpush2.xpose.msra.mxu0 0.0
  %4912 = vmatprep.subr.mxu0 0.0
  %4913 = vmatpush2.xpose.msra.mxu0 0.0
  %4914 = vmatprep.subr.mxu0 0.0
  %4915 = vmatpush2.xpose.msra.mxu0 0.0
  %4916 = vmatprep.subr.mxu0 0.0
  %4917 = vmatpush2.xpose.msra.mxu0 0.0
  %4918 = vmatprep.mubr.f32.mxu0 0.0
  %4919 = vmatmul.mubr.f32.gmra.mxu0 %v4849
  %v4920 = vpop.f32.mrf.mxu0
  %v4921 = vadd.f32 0.0, %v4920
  %v4922 = vpop.f32.mrf.mxu0
  %4923 = vdwg.mxu0
  %v4925 = vsel %vm686, %v4298, 0
  %v4928 = vsel %vm686, %v4380, 0
  %4930 = vmatprep.subr.mxu0 0.0
  %4931 = vmatpush1.xpose.msra.mxu0 0.0
  %4932 = vmatprep.subr.mxu0 0.0
  %4933 = vmatpush1.xpose.msra.mxu0 0.0
  %4934 = vmatprep.subr.mxu0 0.0
  %4935 = vmatpush1.xpose.msra.mxu0 0.0
  %4936 = vmatprep.subr.mxu0 0.0
  %4937 = vmatpush1.xpose.msra.mxu0 0.0
  %4938 = vmatprep.subr.mxu0 0.0
  %4939 = vmatpush1.xpose.msra.mxu0 0.0
  %4940 = vmatprep.subr.mxu0 0.0
  %4941 = vmatpush1.xpose.msra.mxu0 0.0
  %4942 = vmatprep.subr.mxu0 0.0
  %4943 = vmatpush1.xpose.msra.mxu0 0.0
  %4944 = vmatprep.subr.mxu0 0.0
  %4945 = vmatpush1.xpose.msra.mxu0 0.0
  %4946 = vmatprep.subr.mxu0 0.0
  %4947 = vmatpush1.xpose.msra.mxu0 0.0
  %4948 = vmatprep.subr.mxu0 0.0
  %4949 = vmatpush1.xpose.msra.mxu0 0.0
  %4950 = vmatprep.subr.mxu0 0.0
  %4951 = vmatpush1.xpose.msra.mxu0 0.0
  %4952 = vmatprep.subr.mxu0 0.0
  %4953 = vmatpush1.xpose.msra.mxu0 0.0
  %4954 = vmatprep.subr.mxu0 0.0
  %4955 = vmatpush1.xpose.msra.mxu0 0.0
  %4956 = vmatprep.subr.mxu0 0.0
  %4957 = vmatpush1.xpose.msra.mxu0 0.0
  %4958 = vmatprep.subr.mxu0 0.0
  %4959 = vmatpush1.xpose.msra.mxu0 0.0
  %4960 = vmatprep.subr.mxu0 0.0
  %4961 = vmatpush1.xpose.msra.mxu0 %v4928
  %4962 = vmatprep.subr.mxu0 0.0
  %4963 = vmatpush2.xpose.msra.mxu0 0.0
  %4964 = vmatprep.subr.mxu0 0.0
  %4965 = vmatpush2.xpose.msra.mxu0 0.0
  %4966 = vmatprep.subr.mxu0 0.0
  %4967 = vmatpush2.xpose.msra.mxu0 0.0
  %4968 = vmatprep.subr.mxu0 0.0
  %4969 = vmatpush2.xpose.msra.mxu0 0.0
  %4970 = vmatprep.subr.mxu0 0.0
  %4971 = vmatpush2.xpose.msra.mxu0 0.0
  %4972 = vmatprep.subr.mxu0 0.0
  %4973 = vmatpush2.xpose.msra.mxu0 0.0
  %4974 = vmatprep.subr.mxu0 0.0
  %4975 = vmatpush2.xpose.msra.mxu0 0.0
  %4976 = vmatprep.subr.mxu0 0.0
  %4977 = vmatpush2.xpose.msra.mxu0 0.0
  %4978 = vmatprep.subr.mxu0 0.0
  %4979 = vmatpush2.xpose.msra.mxu0 0.0
  %4980 = vmatprep.subr.mxu0 0.0
  %4981 = vmatpush2.xpose.msra.mxu0 0.0
  %4982 = vmatprep.subr.mxu0 0.0
  %4983 = vmatpush2.xpose.msra.mxu0 0.0
  %4984 = vmatprep.subr.mxu0 0.0
  %4985 = vmatpush2.xpose.msra.mxu0 0.0
  %4986 = vmatprep.subr.mxu0 0.0
  %4987 = vmatpush2.xpose.msra.mxu0 0.0
  %4988 = vmatprep.subr.mxu0 0.0
  %4989 = vmatpush2.xpose.msra.mxu0 0.0
  %4990 = vmatprep.subr.mxu0 0.0
  %4991 = vmatpush2.xpose.msra.mxu0 0.0
  %4992 = vmatprep.subr.mxu0 0.0
  %4993 = vmatpush2.xpose.msra.mxu0 0.0
  %4994 = vmatprep.mubr.f32.mxu0 0.0
  %4995 = vmatmul.mubr.f32.gmra.mxu0 %v4925
  %v4996 = vpop.f32.mrf.mxu0
  %v4997 = vadd.f32 0.0, %v4996
  %v4998 = vpop.f32.mrf.mxu0
  %4999 = vdwg.mxu0
  %v5001 = vsel %vm686, %v4301, 0
  %v5004 = vsel %vm686, %v4383, 0
  %5006 = vmatprep.subr.mxu0 0.0
  %5007 = vmatpush1.xpose.msra.mxu0 0.0
  %5008 = vmatprep.subr.mxu0 0.0
  %5009 = vmatpush1.xpose.msra.mxu0 0.0
  %5010 = vmatprep.subr.mxu0 0.0
  %5011 = vmatpush1.xpose.msra.mxu0 0.0
  %5012 = vmatprep.subr.mxu0 0.0
  %5013 = vmatpush1.xpose.msra.mxu0 0.0
  %5014 = vmatprep.subr.mxu0 0.0
  %5015 = vmatpush1.xpose.msra.mxu0 0.0
  %5016 = vmatprep.subr.mxu0 0.0
  %5017 = vmatpush1.xpose.msra.mxu0 0.0
  %5018 = vmatprep.subr.mxu0 0.0
  %5019 = vmatpush1.xpose.msra.mxu0 0.0
  %5020 = vmatprep.subr.mxu0 0.0
  %5021 = vmatpush1.xpose.msra.mxu0 0.0
  %5022 = vmatprep.subr.mxu0 0.0
  %5023 = vmatpush1.xpose.msra.mxu0 0.0
  %5024 = vmatprep.subr.mxu0 0.0
  %5025 = vmatpush1.xpose.msra.mxu0 0.0
  %5026 = vmatprep.subr.mxu0 0.0
  %5027 = vmatpush1.xpose.msra.mxu0 0.0
  %5028 = vmatprep.subr.mxu0 0.0
  %5029 = vmatpush1.xpose.msra.mxu0 0.0
  %5030 = vmatprep.subr.mxu0 0.0
  %5031 = vmatpush1.xpose.msra.mxu0 0.0
  %5032 = vmatprep.subr.mxu0 0.0
  %5033 = vmatpush1.xpose.msra.mxu0 0.0
  %5034 = vmatprep.subr.mxu0 0.0
  %5035 = vmatpush1.xpose.msra.mxu0 0.0
  %5036 = vmatprep.subr.mxu0 0.0
  %5037 = vmatpush1.xpose.msra.mxu0 %v5004
  %5038 = vmatprep.subr.mxu0 0.0
  %5039 = vmatpush2.xpose.msra.mxu0 0.0
  %5040 = vmatprep.subr.mxu0 0.0
  %5041 = vmatpush2.xpose.msra.mxu0 0.0
  %5042 = vmatprep.subr.mxu0 0.0
  %5043 = vmatpush2.xpose.msra.mxu0 0.0
  %5044 = vmatprep.subr.mxu0 0.0
  %5045 = vmatpush2.xpose.msra.mxu0 0.0
  %5046 = vmatprep.subr.mxu0 0.0
  %5047 = vmatpush2.xpose.msra.mxu0 0.0
  %5048 = vmatprep.subr.mxu0 0.0
  %5049 = vmatpush2.xpose.msra.mxu0 0.0
  %5050 = vmatprep.subr.mxu0 0.0
  %5051 = vmatpush2.xpose.msra.mxu0 0.0
  %5052 = vmatprep.subr.mxu0 0.0
  %5053 = vmatpush2.xpose.msra.mxu0 0.0
  %5054 = vmatprep.subr.mxu0 0.0
  %5055 = vmatpush2.xpose.msra.mxu0 0.0
  %5056 = vmatprep.subr.mxu0 0.0
  %5057 = vmatpush2.xpose.msra.mxu0 0.0
  %5058 = vmatprep.subr.mxu0 0.0
  %5059 = vmatpush2.xpose.msra.mxu0 0.0
  %5060 = vmatprep.subr.mxu0 0.0
  %5061 = vmatpush2.xpose.msra.mxu0 0.0
  %5062 = vmatprep.subr.mxu0 0.0
  %5063 = vmatpush2.xpose.msra.mxu0 0.0
  %5064 = vmatprep.subr.mxu0 0.0
  %5065 = vmatpush2.xpose.msra.mxu0 0.0
  %5066 = vmatprep.subr.mxu0 0.0
  %5067 = vmatpush2.xpose.msra.mxu0 0.0
  %5068 = vmatprep.subr.mxu0 0.0
  %5069 = vmatpush2.xpose.msra.mxu0 0.0
  %5070 = vmatprep.mubr.f32.mxu0 0.0
  %5071 = vmatmul.mubr.f32.gmra.mxu0 %v5001
  %v5072 = vpop.f32.mrf.mxu0
  %v5073 = vadd.f32 0.0, %v5072
  %v5074 = vpop.f32.mrf.mxu0
  %5075 = vdwg.mxu0
  %v5076 = vmul.f32 %v4541, 0.25
  %v5077 = vmul.f32 %v4617, 0.25
  %v5078 = vmul.f32 %v4693, 0.25
  %v5079 = vmul.f32 %v4769, 0.25
  %v5080 = vmul.f32 %v4845, 0.25
  %v5081 = vmul.f32 %v4921, 0.25
  %v5082 = vmul.f32 %v4997, 0.25
  %v5083 = vmul.f32 %v5073, 0.25
  %v5084 = vsel %vm288, %v5076, -inf
  %5085 = vmax.xlane.f32.xlu0 %v5084
  %v5086 = vpop.xlane.xlu0 %5085
  %v5087 = vsel %vm288, %v5077, -inf
  %5088 = vmax.xlane.f32.xlu0 %v5087
  %v5089 = vpop.xlane.xlu0 %5088
  %v5090 = vsel %vm288, %v5078, -inf
  %5091 = vmax.xlane.f32.xlu0 %v5090
  %v5092 = vpop.xlane.xlu0 %5091
  %v5093 = vsel %vm288, %v5079, -inf
  %5094 = vmax.xlane.f32.xlu0 %v5093
  %v5095 = vpop.xlane.xlu0 %5094
  %v5096 = vsel %vm288, %v5080, -inf
  %5097 = vmax.xlane.f32.xlu0 %v5096
  %v5098 = vpop.xlane.xlu0 %5097
  %v5099 = vsel %vm288, %v5081, -inf
  %5100 = vmax.xlane.f32.xlu0 %v5099
  %v5101 = vpop.xlane.xlu0 %5100
  %v5102 = vsel %vm288, %v5082, -inf
  %5103 = vmax.xlane.f32.xlu0 %v5102
  %v5104 = vpop.xlane.xlu0 %5103
  %v5105 = vsel %vm288, %v5083, -inf
  %5106 = vmax.xlane.f32.xlu0 %v5105
  %v5107 = vpop.xlane.xlu0 %5106
  %v5108 = vsub.f32 %v5076, %v5086
  %v5109 = vsub.f32 %v5077, %v5089
  %v5110 = vsub.f32 %v5078, %v5092
  %v5111 = vsub.f32 %v5079, %v5095
  %v5112 = vsub.f32 %v5080, %v5098
  %v5113 = vsub.f32 %v5081, %v5101
  %v5114 = vsub.f32 %v5082, %v5104
  %v5115 = vsub.f32 %v5083, %v5107
  %v5116 = vmul.f32 %v5108, 1.442695
  %v5117 = vpow.pop %v5116
  %v5118 = vmul.f32 %v5109, 1.442695
  %v5119 = vpow.pop %v5118
  %v5120 = vmul.f32 %v5110, 1.442695
  %v5121 = vpow.pop %v5120
  %v5122 = vmul.f32 %v5111, 1.442695
  %v5123 = vpow.pop %v5122
  %v5124 = vmul.f32 %v5112, 1.442695
  %v5125 = vpow.pop %v5124
  %v5126 = vmul.f32 %v5113, 1.442695
  %v5127 = vpow.pop %v5126
  %v5128 = vmul.f32 %v5114, 1.442695
  %v5129 = vpow.pop %v5128
  %v5130 = vmul.f32 %v5115, 1.442695
  %v5131 = vpow.pop %v5130
  %v5132 = vsel %vm288, %v5117, 0.0
  %5133 = vadd.xlane.f32.xlu0 %v5132
  %v5134 = vpop.xlane.xlu0 %5133
  %v5135 = vsel %vm288, %v5119, 0.0
  %5136 = vadd.xlane.f32.xlu0 %v5135
  %v5137 = vpop.xlane.xlu0 %5136
  %v5138 = vsel %vm288, %v5121, 0.0
  %5139 = vadd.xlane.f32.xlu0 %v5138
  %v5140 = vpop.xlane.xlu0 %5139
  %v5141 = vsel %vm288, %v5123, 0.0
  %5142 = vadd.xlane.f32.xlu0 %v5141
  %v5143 = vpop.xlane.xlu0 %5142
  %v5144 = vsel %vm288, %v5125, 0.0
  %5145 = vadd.xlane.f32.xlu0 %v5144
  %v5146 = vpop.xlane.xlu0 %5145
  %v5147 = vsel %vm288, %v5127, 0.0
  %5148 = vadd.xlane.f32.xlu0 %v5147
  %v5149 = vpop.xlane.xlu0 %5148
  %v5150 = vsel %vm288, %v5129, 0.0
  %5151 = vadd.xlane.f32.xlu0 %v5150
  %v5152 = vpop.xlane.xlu0 %5151
  %v5153 = vsel %vm288, %v5131, 0.0
  %5154 = vadd.xlane.f32.xlu0 %v5153
  %v5155 = vpop.xlane.xlu0 %5154
  %v5156 = vrcp.pop %v5134
  %v5157 = vrcp.pop %v5137
  %v5158 = vrcp.pop %v5140
  %v5159 = vrcp.pop %v5143
  %v5160 = vrcp.pop %v5146
  %v5161 = vrcp.pop %v5149
  %v5162 = vrcp.pop %v5152
  %v5163 = vrcp.pop %v5155
  %v5164 = vmul.f32 %v5117, %v5156
  %v5165 = vmul.f32 %v5119, %v5157
  %v5166 = vmul.f32 %v5121, %v5158
  %v5167 = vmul.f32 %v5123, %v5159
  %v5168 = vmul.f32 %v5125, %v5160
  %v5169 = vmul.f32 %v5127, %v5161
  %v5170 = vmul.f32 %v5129, %v5162
  %v5171 = vmul.f32 %v5131, %v5163
  %v5173 = vsel %vm288, %v5164, 0
  %5175 = vmatprep.subr.mxu0 0.0
  %5176 = vmatpush1.msra.mxu0 0.0
  %5177 = vmatprep.subr.mxu0 0.0
  %5178 = vmatpush1.msra.mxu0 0.0
  %5179 = vmatprep.subr.mxu0 0.0
  %5180 = vmatpush1.msra.mxu0 0.0
  %5181 = vmatprep.subr.mxu0 0.0
  %5182 = vmatpush1.msra.mxu0 0.0
  %5183 = vmatprep.subr.mxu0 0.0
  %5184 = vmatpush1.msra.mxu0 0.0
  %5185 = vmatprep.subr.mxu0 0.0
  %5186 = vmatpush1.msra.mxu0 0.0
  %5187 = vmatprep.subr.mxu0 0.0
  %5188 = vmatpush1.msra.mxu0 0.0
  %5189 = vmatprep.subr.mxu0 0.0
  %5190 = vmatpush1.msra.mxu0 0.0
  %5191 = vmatprep.subr.mxu0 0.0
  %5192 = vmatpush1.msra.mxu0 0.0
  %5193 = vmatprep.subr.mxu0 0.0
  %5194 = vmatpush1.msra.mxu0 0.0
  %5195 = vmatprep.subr.mxu0 0.0
  %5196 = vmatpush1.msra.mxu0 0.0
  %5197 = vmatprep.subr.mxu0 0.0
  %5198 = vmatpush1.msra.mxu0 0.0
  %5199 = vmatprep.subr.mxu0 0.0
  %5200 = vmatpush1.msra.mxu0 0.0
  %5201 = vmatprep.subr.mxu0 0.0
  %5202 = vmatpush1.msra.mxu0 0.0
  %5203 = vmatprep.subr.mxu0 0.0
  %5204 = vmatpush1.msra.mxu0 0.0
  %5205 = vmatprep.subr.mxu0 0.0
  %5206 = vmatpush1.msra.mxu0 %v4438
  %5207 = vmatprep.subr.mxu0 0.0
  %5208 = vmatpush2.msra.mxu0 0.0
  %5209 = vmatprep.subr.mxu0 0.0
  %5210 = vmatpush2.msra.mxu0 0.0
  %5211 = vmatprep.subr.mxu0 0.0
  %5212 = vmatpush2.msra.mxu0 0.0
  %5213 = vmatprep.subr.mxu0 0.0
  %5214 = vmatpush2.msra.mxu0 0.0
  %5215 = vmatprep.subr.mxu0 0.0
  %5216 = vmatpush2.msra.mxu0 0.0
  %5217 = vmatprep.subr.mxu0 0.0
  %5218 = vmatpush2.msra.mxu0 0.0
  %5219 = vmatprep.subr.mxu0 0.0
  %5220 = vmatpush2.msra.mxu0 0.0
  %5221 = vmatprep.subr.mxu0 0.0
  %5222 = vmatpush2.msra.mxu0 0.0
  %5223 = vmatprep.subr.mxu0 0.0
  %5224 = vmatpush2.msra.mxu0 0.0
  %5225 = vmatprep.subr.mxu0 0.0
  %5226 = vmatpush2.msra.mxu0 0.0
  %5227 = vmatprep.subr.mxu0 0.0
  %5228 = vmatpush2.msra.mxu0 0.0
  %5229 = vmatprep.subr.mxu0 0.0
  %5230 = vmatpush2.msra.mxu0 0.0
  %5231 = vmatprep.subr.mxu0 0.0
  %5232 = vmatpush2.msra.mxu0 0.0
  %5233 = vmatprep.subr.mxu0 0.0
  %5234 = vmatpush2.msra.mxu0 0.0
  %5235 = vmatprep.subr.mxu0 0.0
  %5236 = vmatpush2.msra.mxu0 0.0
  %5237 = vmatprep.subr.mxu0 0.0
  %5238 = vmatpush2.msra.mxu0 0.0
  %5239 = vmatprep.mubr.f32.mxu0 0.0
  %5240 = vmatmul.mubr.f32.gmra.mxu0 %v5173
  %v5241 = vpop.f32.mrf.mxu0
  %v5242 = vadd.f32 0.0, %v5241
  %v5243 = vpop.f32.mrf.mxu0
  %5244 = vdwg.mxu0
  %v5246 = vsel %vm288, %v5165, 0
  %5248 = vmatprep.subr.mxu0 0.0
  %5249 = vmatpush1.msra.mxu0 0.0
  %5250 = vmatprep.subr.mxu0 0.0
  %5251 = vmatpush1.msra.mxu0 0.0
  %5252 = vmatprep.subr.mxu0 0.0
  %5253 = vmatpush1.msra.mxu0 0.0
  %5254 = vmatprep.subr.mxu0 0.0
  %5255 = vmatpush1.msra.mxu0 0.0
  %5256 = vmatprep.subr.mxu0 0.0
  %5257 = vmatpush1.msra.mxu0 0.0
  %5258 = vmatprep.subr.mxu0 0.0
  %5259 = vmatpush1.msra.mxu0 0.0
  %5260 = vmatprep.subr.mxu0 0.0
  %5261 = vmatpush1.msra.mxu0 0.0
  %5262 = vmatprep.subr.mxu0 0.0
  %5263 = vmatpush1.msra.mxu0 0.0
  %5264 = vmatprep.subr.mxu0 0.0
  %5265 = vmatpush1.msra.mxu0 0.0
  %5266 = vmatprep.subr.mxu0 0.0
  %5267 = vmatpush1.msra.mxu0 0.0
  %5268 = vmatprep.subr.mxu0 0.0
  %5269 = vmatpush1.msra.mxu0 0.0
  %5270 = vmatprep.subr.mxu0 0.0
  %5271 = vmatpush1.msra.mxu0 0.0
  %5272 = vmatprep.subr.mxu0 0.0
  %5273 = vmatpush1.msra.mxu0 0.0
  %5274 = vmatprep.subr.mxu0 0.0
  %5275 = vmatpush1.msra.mxu0 0.0
  %5276 = vmatprep.subr.mxu0 0.0
  %5277 = vmatpush1.msra.mxu0 0.0
  %5278 = vmatprep.subr.mxu0 0.0
  %5279 = vmatpush1.msra.mxu0 %v4441
  %5280 = vmatprep.subr.mxu0 0.0
  %5281 = vmatpush2.msra.mxu0 0.0
  %5282 = vmatprep.subr.mxu0 0.0
  %5283 = vmatpush2.msra.mxu0 0.0
  %5284 = vmatprep.subr.mxu0 0.0
  %5285 = vmatpush2.msra.mxu0 0.0
  %5286 = vmatprep.subr.mxu0 0.0
  %5287 = vmatpush2.msra.mxu0 0.0
  %5288 = vmatprep.subr.mxu0 0.0
  %5289 = vmatpush2.msra.mxu0 0.0
  %5290 = vmatprep.subr.mxu0 0.0
  %5291 = vmatpush2.msra.mxu0 0.0
  %5292 = vmatprep.subr.mxu0 0.0
  %5293 = vmatpush2.msra.mxu0 0.0
  %5294 = vmatprep.subr.mxu0 0.0
  %5295 = vmatpush2.msra.mxu0 0.0
  %5296 = vmatprep.subr.mxu0 0.0
  %5297 = vmatpush2.msra.mxu0 0.0
  %5298 = vmatprep.subr.mxu0 0.0
  %5299 = vmatpush2.msra.mxu0 0.0
  %5300 = vmatprep.subr.mxu0 0.0
  %5301 = vmatpush2.msra.mxu0 0.0
  %5302 = vmatprep.subr.mxu0 0.0
  %5303 = vmatpush2.msra.mxu0 0.0
  %5304 = vmatprep.subr.mxu0 0.0
  %5305 = vmatpush2.msra.mxu0 0.0
  %5306 = vmatprep.subr.mxu0 0.0
  %5307 = vmatpush2.msra.mxu0 0.0
  %5308 = vmatprep.subr.mxu0 0.0
  %5309 = vmatpush2.msra.mxu0 0.0
  %5310 = vmatprep.subr.mxu0 0.0
  %5311 = vmatpush2.msra.mxu0 0.0
  %5312 = vmatprep.mubr.f32.mxu0 0.0
  %5313 = vmatmul.mubr.f32.gmra.mxu0 %v5246
  %v5314 = vpop.f32.mrf.mxu0
  %v5315 = vadd.f32 0.0, %v5314
  %v5316 = vpop.f32.mrf.mxu0
  %5317 = vdwg.mxu0
  %v5319 = vsel %vm288, %v5166, 0
  %5321 = vmatprep.subr.mxu0 0.0
  %5322 = vmatpush1.msra.mxu0 0.0
  %5323 = vmatprep.subr.mxu0 0.0
  %5324 = vmatpush1.msra.mxu0 0.0
  %5325 = vmatprep.subr.mxu0 0.0
  %5326 = vmatpush1.msra.mxu0 0.0
  %5327 = vmatprep.subr.mxu0 0.0
  %5328 = vmatpush1.msra.mxu0 0.0
  %5329 = vmatprep.subr.mxu0 0.0
  %5330 = vmatpush1.msra.mxu0 0.0
  %5331 = vmatprep.subr.mxu0 0.0
  %5332 = vmatpush1.msra.mxu0 0.0
  %5333 = vmatprep.subr.mxu0 0.0
  %5334 = vmatpush1.msra.mxu0 0.0
  %5335 = vmatprep.subr.mxu0 0.0
  %5336 = vmatpush1.msra.mxu0 0.0
  %5337 = vmatprep.subr.mxu0 0.0
  %5338 = vmatpush1.msra.mxu0 0.0
  %5339 = vmatprep.subr.mxu0 0.0
  %5340 = vmatpush1.msra.mxu0 0.0
  %5341 = vmatprep.subr.mxu0 0.0
  %5342 = vmatpush1.msra.mxu0 0.0
  %5343 = vmatprep.subr.mxu0 0.0
  %5344 = vmatpush1.msra.mxu0 0.0
  %5345 = vmatprep.subr.mxu0 0.0
  %5346 = vmatpush1.msra.mxu0 0.0
  %5347 = vmatprep.subr.mxu0 0.0
  %5348 = vmatpush1.msra.mxu0 0.0
  %5349 = vmatprep.subr.mxu0 0.0
  %5350 = vmatpush1.msra.mxu0 0.0
  %5351 = vmatprep.subr.mxu0 0.0
  %5352 = vmatpush1.msra.mxu0 %v4446
  %5353 = vmatprep.subr.mxu0 0.0
  %5354 = vmatpush2.msra.mxu0 0.0
  %5355 = vmatprep.subr.mxu0 0.0
  %5356 = vmatpush2.msra.mxu0 0.0
  %5357 = vmatprep.subr.mxu0 0.0
  %5358 = vmatpush2.msra.mxu0 0.0
  %5359 = vmatprep.subr.mxu0 0.0
  %5360 = vmatpush2.msra.mxu0 0.0
  %5361 = vmatprep.subr.mxu0 0.0
  %5362 = vmatpush2.msra.mxu0 0.0
  %5363 = vmatprep.subr.mxu0 0.0
  %5364 = vmatpush2.msra.mxu0 0.0
  %5365 = vmatprep.subr.mxu0 0.0
  %5366 = vmatpush2.msra.mxu0 0.0
  %5367 = vmatprep.subr.mxu0 0.0
  %5368 = vmatpush2.msra.mxu0 0.0
  %5369 = vmatprep.subr.mxu0 0.0
  %5370 = vmatpush2.msra.mxu0 0.0
  %5371 = vmatprep.subr.mxu0 0.0
  %5372 = vmatpush2.msra.mxu0 0.0
  %5373 = vmatprep.subr.mxu0 0.0
  %5374 = vmatpush2.msra.mxu0 0.0
  %5375 = vmatprep.subr.mxu0 0.0
  %5376 = vmatpush2.msra.mxu0 0.0
  %5377 = vmatprep.subr.mxu0 0.0
  %5378 = vmatpush2.msra.mxu0 0.0
  %5379 = vmatprep.subr.mxu0 0.0
  %5380 = vmatpush2.msra.mxu0 0.0
  %5381 = vmatprep.subr.mxu0 0.0
  %5382 = vmatpush2.msra.mxu0 0.0
  %5383 = vmatprep.subr.mxu0 0.0
  %5384 = vmatpush2.msra.mxu0 0.0
  %5385 = vmatprep.mubr.f32.mxu0 0.0
  %5386 = vmatmul.mubr.f32.gmra.mxu0 %v5319
  %v5387 = vpop.f32.mrf.mxu0
  %v5388 = vadd.f32 0.0, %v5387
  %v5389 = vpop.f32.mrf.mxu0
  %5390 = vdwg.mxu0
  %v5392 = vsel %vm288, %v5167, 0
  %5394 = vmatprep.subr.mxu0 0.0
  %5395 = vmatpush1.msra.mxu0 0.0
  %5396 = vmatprep.subr.mxu0 0.0
  %5397 = vmatpush1.msra.mxu0 0.0
  %5398 = vmatprep.subr.mxu0 0.0
  %5399 = vmatpush1.msra.mxu0 0.0
  %5400 = vmatprep.subr.mxu0 0.0
  %5401 = vmatpush1.msra.mxu0 0.0
  %5402 = vmatprep.subr.mxu0 0.0
  %5403 = vmatpush1.msra.mxu0 0.0
  %5404 = vmatprep.subr.mxu0 0.0
  %5405 = vmatpush1.msra.mxu0 0.0
  %5406 = vmatprep.subr.mxu0 0.0
  %5407 = vmatpush1.msra.mxu0 0.0
  %5408 = vmatprep.subr.mxu0 0.0
  %5409 = vmatpush1.msra.mxu0 0.0
  %5410 = vmatprep.subr.mxu0 0.0
  %5411 = vmatpush1.msra.mxu0 0.0
  %5412 = vmatprep.subr.mxu0 0.0
  %5413 = vmatpush1.msra.mxu0 0.0
  %5414 = vmatprep.subr.mxu0 0.0
  %5415 = vmatpush1.msra.mxu0 0.0
  %5416 = vmatprep.subr.mxu0 0.0
  %5417 = vmatpush1.msra.mxu0 0.0
  %5418 = vmatprep.subr.mxu0 0.0
  %5419 = vmatpush1.msra.mxu0 0.0
  %5420 = vmatprep.subr.mxu0 0.0
  %5421 = vmatpush1.msra.mxu0 0.0
  %5422 = vmatprep.subr.mxu0 0.0
  %5423 = vmatpush1.msra.mxu0 0.0
  %5424 = vmatprep.subr.mxu0 0.0
  %5425 = vmatpush1.msra.mxu0 %v4449
  %5426 = vmatprep.subr.mxu0 0.0
  %5427 = vmatpush2.msra.mxu0 0.0
  %5428 = vmatprep.subr.mxu0 0.0
  %5429 = vmatpush2.msra.mxu0 0.0
  %5430 = vmatprep.subr.mxu0 0.0
  %5431 = vmatpush2.msra.mxu0 0.0
  %5432 = vmatprep.subr.mxu0 0.0
  %5433 = vmatpush2.msra.mxu0 0.0
  %5434 = vmatprep.subr.mxu0 0.0
  %5435 = vmatpush2.msra.mxu0 0.0
  %5436 = vmatprep.subr.mxu0 0.0
  %5437 = vmatpush2.msra.mxu0 0.0
  %5438 = vmatprep.subr.mxu0 0.0
  %5439 = vmatpush2.msra.mxu0 0.0
  %5440 = vmatprep.subr.mxu0 0.0
  %5441 = vmatpush2.msra.mxu0 0.0
  %5442 = vmatprep.subr.mxu0 0.0
  %5443 = vmatpush2.msra.mxu0 0.0
  %5444 = vmatprep.subr.mxu0 0.0
  %5445 = vmatpush2.msra.mxu0 0.0
  %5446 = vmatprep.subr.mxu0 0.0
  %5447 = vmatpush2.msra.mxu0 0.0
  %5448 = vmatprep.subr.mxu0 0.0
  %5449 = vmatpush2.msra.mxu0 0.0
  %5450 = vmatprep.subr.mxu0 0.0
  %5451 = vmatpush2.msra.mxu0 0.0
  %5452 = vmatprep.subr.mxu0 0.0
  %5453 = vmatpush2.msra.mxu0 0.0
  %5454 = vmatprep.subr.mxu0 0.0
  %5455 = vmatpush2.msra.mxu0 0.0
  %5456 = vmatprep.subr.mxu0 0.0
  %5457 = vmatpush2.msra.mxu0 0.0
  %5458 = vmatprep.mubr.f32.mxu0 0.0
  %5459 = vmatmul.mubr.f32.gmra.mxu0 %v5392
  %v5460 = vpop.f32.mrf.mxu0
  %v5461 = vadd.f32 0.0, %v5460
  %v5462 = vpop.f32.mrf.mxu0
  %5463 = vdwg.mxu0
  %v5465 = vsel %vm288, %v5168, 0
  %5467 = vmatprep.subr.mxu0 0.0
  %5468 = vmatpush1.msra.mxu0 0.0
  %5469 = vmatprep.subr.mxu0 0.0
  %5470 = vmatpush1.msra.mxu0 0.0
  %5471 = vmatprep.subr.mxu0 0.0
  %5472 = vmatpush1.msra.mxu0 0.0
  %5473 = vmatprep.subr.mxu0 0.0
  %5474 = vmatpush1.msra.mxu0 0.0
  %5475 = vmatprep.subr.mxu0 0.0
  %5476 = vmatpush1.msra.mxu0 0.0
  %5477 = vmatprep.subr.mxu0 0.0
  %5478 = vmatpush1.msra.mxu0 0.0
  %5479 = vmatprep.subr.mxu0 0.0
  %5480 = vmatpush1.msra.mxu0 0.0
  %5481 = vmatprep.subr.mxu0 0.0
  %5482 = vmatpush1.msra.mxu0 0.0
  %5483 = vmatprep.subr.mxu0 0.0
  %5484 = vmatpush1.msra.mxu0 0.0
  %5485 = vmatprep.subr.mxu0 0.0
  %5486 = vmatpush1.msra.mxu0 0.0
  %5487 = vmatprep.subr.mxu0 0.0
  %5488 = vmatpush1.msra.mxu0 0.0
  %5489 = vmatprep.subr.mxu0 0.0
  %5490 = vmatpush1.msra.mxu0 0.0
  %5491 = vmatprep.subr.mxu0 0.0
  %5492 = vmatpush1.msra.mxu0 0.0
  %5493 = vmatprep.subr.mxu0 0.0
  %5494 = vmatpush1.msra.mxu0 0.0
  %5495 = vmatprep.subr.mxu0 0.0
  %5496 = vmatpush1.msra.mxu0 0.0
  %5497 = vmatprep.subr.mxu0 0.0
  %5498 = vmatpush1.msra.mxu0 %v4454
  %5499 = vmatprep.subr.mxu0 0.0
  %5500 = vmatpush2.msra.mxu0 0.0
  %5501 = vmatprep.subr.mxu0 0.0
  %5502 = vmatpush2.msra.mxu0 0.0
  %5503 = vmatprep.subr.mxu0 0.0
  %5504 = vmatpush2.msra.mxu0 0.0
  %5505 = vmatprep.subr.mxu0 0.0
  %5506 = vmatpush2.msra.mxu0 0.0
  %5507 = vmatprep.subr.mxu0 0.0
  %5508 = vmatpush2.msra.mxu0 0.0
  %5509 = vmatprep.subr.mxu0 0.0
  %5510 = vmatpush2.msra.mxu0 0.0
  %5511 = vmatprep.subr.mxu0 0.0
  %5512 = vmatpush2.msra.mxu0 0.0
  %5513 = vmatprep.subr.mxu0 0.0
  %5514 = vmatpush2.msra.mxu0 0.0
  %5515 = vmatprep.subr.mxu0 0.0
  %5516 = vmatpush2.msra.mxu0 0.0
  %5517 = vmatprep.subr.mxu0 0.0
  %5518 = vmatpush2.msra.mxu0 0.0
  %5519 = vmatprep.subr.mxu0 0.0
  %5520 = vmatpush2.msra.mxu0 0.0
  %5521 = vmatprep.subr.mxu0 0.0
  %5522 = vmatpush2.msra.mxu0 0.0
  %5523 = vmatprep.subr.mxu0 0.0
  %5524 = vmatpush2.msra.mxu0 0.0
  %5525 = vmatprep.subr.mxu0 0.0
  %5526 = vmatpush2.msra.mxu0 0.0
  %5527 = vmatprep.subr.mxu0 0.0
  %5528 = vmatpush2.msra.mxu0 0.0
  %5529 = vmatprep.subr.mxu0 0.0
  %5530 = vmatpush2.msra.mxu0 0.0
  %5531 = vmatprep.mubr.f32.mxu0 0.0
  %5532 = vmatmul.mubr.f32.gmra.mxu0 %v5465
  %v5533 = vpop.f32.mrf.mxu0
  %v5534 = vadd.f32 0.0, %v5533
  %v5535 = vpop.f32.mrf.mxu0
  %5536 = vdwg.mxu0
  %v5538 = vsel %vm288, %v5169, 0
  %5540 = vmatprep.subr.mxu0 0.0
  %5541 = vmatpush1.msra.mxu0 0.0
  %5542 = vmatprep.subr.mxu0 0.0
  %5543 = vmatpush1.msra.mxu0 0.0
  %5544 = vmatprep.subr.mxu0 0.0
  %5545 = vmatpush1.msra.mxu0 0.0
  %5546 = vmatprep.subr.mxu0 0.0
  %5547 = vmatpush1.msra.mxu0 0.0
  %5548 = vmatprep.subr.mxu0 0.0
  %5549 = vmatpush1.msra.mxu0 0.0
  %5550 = vmatprep.subr.mxu0 0.0
  %5551 = vmatpush1.msra.mxu0 0.0
  %5552 = vmatprep.subr.mxu0 0.0
  %5553 = vmatpush1.msra.mxu0 0.0
  %5554 = vmatprep.subr.mxu0 0.0
  %5555 = vmatpush1.msra.mxu0 0.0
  %5556 = vmatprep.subr.mxu0 0.0
  %5557 = vmatpush1.msra.mxu0 0.0
  %5558 = vmatprep.subr.mxu0 0.0
  %5559 = vmatpush1.msra.mxu0 0.0
  %5560 = vmatprep.subr.mxu0 0.0
  %5561 = vmatpush1.msra.mxu0 0.0
  %5562 = vmatprep.subr.mxu0 0.0
  %5563 = vmatpush1.msra.mxu0 0.0
  %5564 = vmatprep.subr.mxu0 0.0
  %5565 = vmatpush1.msra.mxu0 0.0
  %5566 = vmatprep.subr.mxu0 0.0
  %5567 = vmatpush1.msra.mxu0 0.0
  %5568 = vmatprep.subr.mxu0 0.0
  %5569 = vmatpush1.msra.mxu0 0.0
  %5570 = vmatprep.subr.mxu0 0.0
  %5571 = vmatpush1.msra.mxu0 %v4457
  %5572 = vmatprep.subr.mxu0 0.0
  %5573 = vmatpush2.msra.mxu0 0.0
  %5574 = vmatprep.subr.mxu0 0.0
  %5575 = vmatpush2.msra.mxu0 0.0
  %5576 = vmatprep.subr.mxu0 0.0
  %5577 = vmatpush2.msra.mxu0 0.0
  %5578 = vmatprep.subr.mxu0 0.0
  %5579 = vmatpush2.msra.mxu0 0.0
  %5580 = vmatprep.subr.mxu0 0.0
  %5581 = vmatpush2.msra.mxu0 0.0
  %5582 = vmatprep.subr.mxu0 0.0
  %5583 = vmatpush2.msra.mxu0 0.0
  %5584 = vmatprep.subr.mxu0 0.0
  %5585 = vmatpush2.msra.mxu0 0.0
  %5586 = vmatprep.subr.mxu0 0.0
  %5587 = vmatpush2.msra.mxu0 0.0
  %5588 = vmatprep.subr.mxu0 0.0
  %5589 = vmatpush2.msra.mxu0 0.0
  %5590 = vmatprep.subr.mxu0 0.0
  %5591 = vmatpush2.msra.mxu0 0.0
  %5592 = vmatprep.subr.mxu0 0.0
  %5593 = vmatpush2.msra.mxu0 0.0
  %5594 = vmatprep.subr.mxu0 0.0
  %5595 = vmatpush2.msra.mxu0 0.0
  %5596 = vmatprep.subr.mxu0 0.0
  %5597 = vmatpush2.msra.mxu0 0.0
  %5598 = vmatprep.subr.mxu0 0.0
  %5599 = vmatpush2.msra.mxu0 0.0
  %5600 = vmatprep.subr.mxu0 0.0
  %5601 = vmatpush2.msra.mxu0 0.0
  %5602 = vmatprep.subr.mxu0 0.0
  %5603 = vmatpush2.msra.mxu0 0.0
  %5604 = vmatprep.mubr.f32.mxu0 0.0
  %5605 = vmatmul.mubr.f32.gmra.mxu0 %v5538
  %v5606 = vpop.f32.mrf.mxu0
  %v5607 = vadd.f32 0.0, %v5606
  %v5608 = vpop.f32.mrf.mxu0
  %5609 = vdwg.mxu0
  %v5611 = vsel %vm288, %v5170, 0
  %5613 = vmatprep.subr.mxu0 0.0
  %5614 = vmatpush1.msra.mxu0 0.0
  %5615 = vmatprep.subr.mxu0 0.0
  %5616 = vmatpush1.msra.mxu0 0.0
  %5617 = vmatprep.subr.mxu0 0.0
  %5618 = vmatpush1.msra.mxu0 0.0
  %5619 = vmatprep.subr.mxu0 0.0
  %5620 = vmatpush1.msra.mxu0 0.0
  %5621 = vmatprep.subr.mxu0 0.0
  %5622 = vmatpush1.msra.mxu0 0.0
  %5623 = vmatprep.subr.mxu0 0.0
  %5624 = vmatpush1.msra.mxu0 0.0
  %5625 = vmatprep.subr.mxu0 0.0
  %5626 = vmatpush1.msra.mxu0 0.0
  %5627 = vmatprep.subr.mxu0 0.0
  %5628 = vmatpush1.msra.mxu0 0.0
  %5629 = vmatprep.subr.mxu0 0.0
  %5630 = vmatpush1.msra.mxu0 0.0
  %5631 = vmatprep.subr.mxu0 0.0
  %5632 = vmatpush1.msra.mxu0 0.0
  %5633 = vmatprep.subr.mxu0 0.0
  %5634 = vmatpush1.msra.mxu0 0.0
  %5635 = vmatprep.subr.mxu0 0.0
  %5636 = vmatpush1.msra.mxu0 0.0
  %5637 = vmatprep.subr.mxu0 0.0
  %5638 = vmatpush1.msra.mxu0 0.0
  %5639 = vmatprep.subr.mxu0 0.0
  %5640 = vmatpush1.msra.mxu0 0.0
  %5641 = vmatprep.subr.mxu0 0.0
  %5642 = vmatpush1.msra.mxu0 0.0
  %5643 = vmatprep.subr.mxu0 0.0
  %5644 = vmatpush1.msra.mxu0 %v4462
  %5645 = vmatprep.subr.mxu0 0.0
  %5646 = vmatpush2.msra.mxu0 0.0
  %5647 = vmatprep.subr.mxu0 0.0
  %5648 = vmatpush2.msra.mxu0 0.0
  %5649 = vmatprep.subr.mxu0 0.0
  %5650 = vmatpush2.msra.mxu0 0.0
  %5651 = vmatprep.subr.mxu0 0.0
  %5652 = vmatpush2.msra.mxu0 0.0
  %5653 = vmatprep.subr.mxu0 0.0
  %5654 = vmatpush2.msra.mxu0 0.0
  %5655 = vmatprep.subr.mxu0 0.0
  %5656 = vmatpush2.msra.mxu0 0.0
  %5657 = vmatprep.subr.mxu0 0.0
  %5658 = vmatpush2.msra.mxu0 0.0
  %5659 = vmatprep.subr.mxu0 0.0
  %5660 = vmatpush2.msra.mxu0 0.0
  %5661 = vmatprep.subr.mxu0 0.0
  %5662 = vmatpush2.msra.mxu0 0.0
  %5663 = vmatprep.subr.mxu0 0.0
  %5664 = vmatpush2.msra.mxu0 0.0
  %5665 = vmatprep.subr.mxu0 0.0
  %5666 = vmatpush2.msra.mxu0 0.0
  %5667 = vmatprep.subr.mxu0 0.0
  %5668 = vmatpush2.msra.mxu0 0.0
  %5669 = vmatprep.subr.mxu0 0.0
  %5670 = vmatpush2.msra.mxu0 0.0
  %5671 = vmatprep.subr.mxu0 0.0
  %5672 = vmatpush2.msra.mxu0 0.0
  %5673 = vmatprep.subr.mxu0 0.0
  %5674 = vmatpush2.msra.mxu0 0.0
  %5675 = vmatprep.subr.mxu0 0.0
  %5676 = vmatpush2.msra.mxu0 0.0
  %5677 = vmatprep.mubr.f32.mxu0 0.0
  %5678 = vmatmul.mubr.f32.gmra.mxu0 %v5611
  %v5679 = vpop.f32.mrf.mxu0
  %v5680 = vadd.f32 0.0, %v5679
  %v5681 = vpop.f32.mrf.mxu0
  %5682 = vdwg.mxu0
  %v5684 = vsel %vm288, %v5171, 0
  %5686 = vmatprep.subr.mxu0 0.0
  %5687 = vmatpush1.msra.mxu0 0.0
  %5688 = vmatprep.subr.mxu0 0.0
  %5689 = vmatpush1.msra.mxu0 0.0
  %5690 = vmatprep.subr.mxu0 0.0
  %5691 = vmatpush1.msra.mxu0 0.0
  %5692 = vmatprep.subr.mxu0 0.0
  %5693 = vmatpush1.msra.mxu0 0.0
  %5694 = vmatprep.subr.mxu0 0.0
  %5695 = vmatpush1.msra.mxu0 0.0
  %5696 = vmatprep.subr.mxu0 0.0
  %5697 = vmatpush1.msra.mxu0 0.0
  %5698 = vmatprep.subr.mxu0 0.0
  %5699 = vmatpush1.msra.mxu0 0.0
  %5700 = vmatprep.subr.mxu0 0.0
  %5701 = vmatpush1.msra.mxu0 0.0
  %5702 = vmatprep.subr.mxu0 0.0
  %5703 = vmatpush1.msra.mxu0 0.0
  %5704 = vmatprep.subr.mxu0 0.0
  %5705 = vmatpush1.msra.mxu0 0.0
  %5706 = vmatprep.subr.mxu0 0.0
  %5707 = vmatpush1.msra.mxu0 0.0
  %5708 = vmatprep.subr.mxu0 0.0
  %5709 = vmatpush1.msra.mxu0 0.0
  %5710 = vmatprep.subr.mxu0 0.0
  %5711 = vmatpush1.msra.mxu0 0.0
  %5712 = vmatprep.subr.mxu0 0.0
  %5713 = vmatpush1.msra.mxu0 0.0
  %5714 = vmatprep.subr.mxu0 0.0
  %5715 = vmatpush1.msra.mxu0 0.0
  %5716 = vmatprep.subr.mxu0 0.0
  %5717 = vmatpush1.msra.mxu0 %v4465
  %5718 = vmatprep.subr.mxu0 0.0
  %5719 = vmatpush2.msra.mxu0 0.0
  %5720 = vmatprep.subr.mxu0 0.0
  %5721 = vmatpush2.msra.mxu0 0.0
  %5722 = vmatprep.subr.mxu0 0.0
  %5723 = vmatpush2.msra.mxu0 0.0
  %5724 = vmatprep.subr.mxu0 0.0
  %5725 = vmatpush2.msra.mxu0 0.0
  %5726 = vmatprep.subr.mxu0 0.0
  %5727 = vmatpush2.msra.mxu0 0.0
  %5728 = vmatprep.subr.mxu0 0.0
  %5729 = vmatpush2.msra.mxu0 0.0
  %5730 = vmatprep.subr.mxu0 0.0
  %5731 = vmatpush2.msra.mxu0 0.0
  %5732 = vmatprep.subr.mxu0 0.0
  %5733 = vmatpush2.msra.mxu0 0.0
  %5734 = vmatprep.subr.mxu0 0.0
  %5735 = vmatpush2.msra.mxu0 0.0
  %5736 = vmatprep.subr.mxu0 0.0
  %5737 = vmatpush2.msra.mxu0 0.0
  %5738 = vmatprep.subr.mxu0 0.0
  %5739 = vmatpush2.msra.mxu0 0.0
  %5740 = vmatprep.subr.mxu0 0.0
  %5741 = vmatpush2.msra.mxu0 0.0
  %5742 = vmatprep.subr.mxu0 0.0
  %5743 = vmatpush2.msra.mxu0 0.0
  %5744 = vmatprep.subr.mxu0 0.0
  %5745 = vmatpush2.msra.mxu0 0.0
  %5746 = vmatprep.subr.mxu0 0.0
  %5747 = vmatpush2.msra.mxu0 0.0
  %5748 = vmatprep.subr.mxu0 0.0
  %5749 = vmatpush2.msra.mxu0 0.0
  %5750 = vmatprep.mubr.f32.mxu0 0.0
  %5751 = vmatmul.mubr.f32.gmra.mxu0 %v5684
  %v5752 = vpop.f32.mrf.mxu0
  %v5753 = vadd.f32 0.0, %v5752
  %v5754 = vpop.f32.mrf.mxu0
  %5755 = vdwg.mxu0
  %v5756 = vpack.c.bf16 %v5315, %v5242
  %v5757 = vpack.c.bf16 %v5461, %v5388
  %v5758 = vpack.c.bf16 %v5607, %v5534
  %v5759 = vpack.c.bf16 %v5753, %v5680
  %s5760 = scalar_lea.vmem %s7, 16
  %v5761 = vld [vmem:[%s5760] sm:$0xf]
  %v5762 = vld [vmem:[%s5760 + $0x4] sm:$0xf]
  %s5763 = scalar_lea.vmem %s4, 48
  %v5764 = vld [vmem:[%s5763] sm:$0xf]
  %v5765 = vld [vmem:[%s5763 + $0x4] sm:$0xf]
  %v5766 = vld [vmem:[%s5763 + $0x8] sm:$0xf]
  %v5767 = vld [vmem:[%s5763 + $0xc] sm:$0xf]
  %v5772 = vunpack.c.l.b16 %v5764
  %v5773 = vunpack.c.l.b16 %v5765
  %v5774 = vunpack.c.l.b16 %v5766
  %v5775 = vunpack.c.l.b16 %v5767
  %v5776 = vpack.c.b16 %v5773, %v5772
  %v5777 = vpack.c.b16 %v5775, %v5774
  %5780 = vmatprep.subr.bf16.mxu0 0
  %5781 = vmatpush1.bf16.msra.mxu0 0
  %5782 = vmatprep.subr.bf16.mxu0 0
  %5783 = vmatpush1.bf16.msra.mxu0 0
  %5784 = vmatprep.subr.bf16.mxu0 0
  %5785 = vmatpush1.bf16.msra.mxu0 0
  %5786 = vmatprep.subr.bf16.mxu0 0
  %5787 = vmatpush1.bf16.msra.mxu0 0
  %5788 = vmatprep.subr.bf16.mxu0 0
  %5789 = vmatpush1.bf16.msra.mxu0 0
  %5790 = vmatprep.subr.bf16.mxu0 0
  %5791 = vmatpush1.bf16.msra.mxu0 0
  %5792 = vmatprep.subr.bf16.mxu0 0
  %5793 = vmatpush1.bf16.msra.mxu0 %v5777
  %5794 = vmatprep.subr.bf16.mxu0 0
  %5795 = vmatpush1.bf16.msra.mxu0 %v5776
  %5796 = vmatprep.subr.bf16.mxu0 0
  %5797 = vmatpush2.bf16.msra.mxu0 0
  %5798 = vmatprep.subr.bf16.mxu0 0
  %5799 = vmatpush2.bf16.msra.mxu0 0
  %5800 = vmatprep.subr.bf16.mxu0 0
  %5801 = vmatpush2.bf16.msra.mxu0 0
  %5802 = vmatprep.subr.bf16.mxu0 0
  %5803 = vmatpush2.bf16.msra.mxu0 0
  %5804 = vmatprep.subr.bf16.mxu0 0
  %5805 = vmatpush2.bf16.msra.mxu0 0
  %5806 = vmatprep.subr.bf16.mxu0 0
  %5807 = vmatpush2.bf16.msra.mxu0 0
  %5808 = vmatprep.subr.bf16.mxu0 0
  %5809 = vmatpush2.bf16.msra.mxu0 0
  %5810 = vmatprep.subr.bf16.mxu0 0
  %5811 = vmatpush2.bf16.msra.mxu0 0
  %5812 = vmatprep.mubr.bf16.mxu0 0
  %5813 = vmatmul.mubr.bf16.gmra.mxu0 %v4228
  %v5814 = vpop.f32.mrf.mxu0
  %v5815 = vadd.f32 0.0, %v5814
  %v5816 = vpop.f32.mrf.mxu0
  %v5817 = vpop.f32.mrf.mxu0
  %v5818 = vadd.f32 0.0, %v5817
  %v5819 = vpop.f32.mrf.mxu0
  %5820 = vmatprep.mubr.bf16.mxu0 0
  %5821 = vmatmul.mubr.bf16.gmra.mxu0 %v4231
  %v5822 = vpop.f32.mrf.mxu0
  %v5823 = vadd.f32 0.0, %v5822
  %v5824 = vpop.f32.mrf.mxu0
  %v5825 = vpop.f32.mrf.mxu0
  %v5826 = vadd.f32 0.0, %v5825
  %v5827 = vpop.f32.mrf.mxu0
  %5828 = vmatprep.mubr.bf16.mxu0 0
  %5829 = vmatmul.mubr.bf16.gmra.mxu0 %v4234
  %v5830 = vpop.f32.mrf.mxu0
  %v5831 = vadd.f32 0.0, %v5830
  %v5832 = vpop.f32.mrf.mxu0
  %v5833 = vpop.f32.mrf.mxu0
  %v5834 = vadd.f32 0.0, %v5833
  %v5835 = vpop.f32.mrf.mxu0
  %5836 = vmatprep.mubr.bf16.mxu0 0
  %5837 = vmatmul.mubr.bf16.gmra.mxu0 %v4237
  %v5838 = vpop.f32.mrf.mxu0
  %v5839 = vadd.f32 0.0, %v5838
  %v5840 = vpop.f32.mrf.mxu0
  %v5841 = vpop.f32.mrf.mxu0
  %v5842 = vadd.f32 0.0, %v5841
  %v5843 = vpop.f32.mrf.mxu0
  %5844 = vdwg.mxu0
  %s5845 = scalar_lea.vmem %s5, 48
  %v5846 = vld [vmem:[%s5845] sm:$0xf]
  %v5847 = vld [vmem:[%s5845 + $0x4] sm:$0xf]
  %v5848 = vld [vmem:[%s5845 + $0x8] sm:$0xf]
  %v5849 = vld [vmem:[%s5845 + $0xc] sm:$0xf]
  %v5854 = vunpack.c.l.b16 %v5846
  %v5855 = vunpack.c.l.b16 %v5847
  %v5856 = vunpack.c.l.b16 %v5848
  %v5857 = vunpack.c.l.b16 %v5849
  %v5858 = vpack.c.b16 %v5855, %v5854
  %v5859 = vpack.c.b16 %v5857, %v5856
  %5862 = vmatprep.subr.bf16.mxu0 0
  %5863 = vmatpush1.bf16.msra.mxu0 0
  %5864 = vmatprep.subr.bf16.mxu0 0
  %5865 = vmatpush1.bf16.msra.mxu0 0
  %5866 = vmatprep.subr.bf16.mxu0 0
  %5867 = vmatpush1.bf16.msra.mxu0 0
  %5868 = vmatprep.subr.bf16.mxu0 0
  %5869 = vmatpush1.bf16.msra.mxu0 0
  %5870 = vmatprep.subr.bf16.mxu0 0
  %5871 = vmatpush1.bf16.msra.mxu0 0
  %5872 = vmatprep.subr.bf16.mxu0 0
  %5873 = vmatpush1.bf16.msra.mxu0 0
  %5874 = vmatprep.subr.bf16.mxu0 0
  %5875 = vmatpush1.bf16.msra.mxu0 %v5859
  %5876 = vmatprep.subr.bf16.mxu0 0
  %5877 = vmatpush1.bf16.msra.mxu0 %v5858
  %5878 = vmatprep.subr.bf16.mxu0 0
  %5879 = vmatpush2.bf16.msra.mxu0 0
  %5880 = vmatprep.subr.bf16.mxu0 0
  %5881 = vmatpush2.bf16.msra.mxu0 0
  %5882 = vmatprep.subr.bf16.mxu0 0
  %5883 = vmatpush2.bf16.msra.mxu0 0
  %5884 = vmatprep.subr.bf16.mxu0 0
  %5885 = vmatpush2.bf16.msra.mxu0 0
  %5886 = vmatprep.subr.bf16.mxu0 0
  %5887 = vmatpush2.bf16.msra.mxu0 0
  %5888 = vmatprep.subr.bf16.mxu0 0
  %5889 = vmatpush2.bf16.msra.mxu0 0
  %5890 = vmatprep.subr.bf16.mxu0 0
  %5891 = vmatpush2.bf16.msra.mxu0 0
  %5892 = vmatprep.subr.bf16.mxu0 0
  %5893 = vmatpush2.bf16.msra.mxu0 0
  %5894 = vmatprep.mubr.bf16.mxu0 0
  %5895 = vmatmul.mubr.bf16.gmra.mxu0 %v4228
  %v5896 = vpop.f32.mrf.mxu0
  %v5897 = vadd.f32 0.0, %v5896
  %v5898 = vpop.f32.mrf.mxu0
  %v5899 = vpop.f32.mrf.mxu0
  %v5900 = vadd.f32 0.0, %v5899
  %v5901 = vpop.f32.mrf.mxu0
  %5902 = vmatprep.mubr.bf16.mxu0 0
  %5903 = vmatmul.mubr.bf16.gmra.mxu0 %v4231
  %v5904 = vpop.f32.mrf.mxu0
  %v5905 = vadd.f32 0.0, %v5904
  %v5906 = vpop.f32.mrf.mxu0
  %v5907 = vpop.f32.mrf.mxu0
  %v5908 = vadd.f32 0.0, %v5907
  %v5909 = vpop.f32.mrf.mxu0
  %5910 = vmatprep.mubr.bf16.mxu0 0
  %5911 = vmatmul.mubr.bf16.gmra.mxu0 %v4234
  %v5912 = vpop.f32.mrf.mxu0
  %v5913 = vadd.f32 0.0, %v5912
  %v5914 = vpop.f32.mrf.mxu0
  %v5915 = vpop.f32.mrf.mxu0
  %v5916 = vadd.f32 0.0, %v5915
  %v5917 = vpop.f32.mrf.mxu0
  %5918 = vmatprep.mubr.bf16.mxu0 0
  %5919 = vmatmul.mubr.bf16.gmra.mxu0 %v4237
  %v5920 = vpop.f32.mrf.mxu0
  %v5921 = vadd.f32 0.0, %v5920
  %v5922 = vpop.f32.mrf.mxu0
  %v5923 = vpop.f32.mrf.mxu0
  %v5924 = vadd.f32 0.0, %v5923
  %v5925 = vpop.f32.mrf.mxu0
  %5926 = vdwg.mxu0
  %s5927 = scalar_lea.vmem %s6, 48
  %v5928 = vld [vmem:[%s5927] sm:$0xf]
  %v5929 = vld [vmem:[%s5927 + $0x4] sm:$0xf]
  %v5930 = vld [vmem:[%s5927 + $0x8] sm:$0xf]
  %v5931 = vld [vmem:[%s5927 + $0xc] sm:$0xf]
  %v5936 = vunpack.c.l.b16 %v5928
  %v5937 = vunpack.c.l.b16 %v5929
  %v5938 = vunpack.c.l.b16 %v5930
  %v5939 = vunpack.c.l.b16 %v5931
  %v5940 = vpack.c.b16 %v5937, %v5936
  %v5941 = vpack.c.b16 %v5939, %v5938
  %5944 = vmatprep.subr.bf16.mxu0 0
  %5945 = vmatpush1.bf16.msra.mxu0 0
  %5946 = vmatprep.subr.bf16.mxu0 0
  %5947 = vmatpush1.bf16.msra.mxu0 0
  %5948 = vmatprep.subr.bf16.mxu0 0
  %5949 = vmatpush1.bf16.msra.mxu0 0
  %5950 = vmatprep.subr.bf16.mxu0 0
  %5951 = vmatpush1.bf16.msra.mxu0 0
  %5952 = vmatprep.subr.bf16.mxu0 0
  %5953 = vmatpush1.bf16.msra.mxu0 0
  %5954 = vmatprep.subr.bf16.mxu0 0
  %5955 = vmatpush1.bf16.msra.mxu0 0
  %5956 = vmatprep.subr.bf16.mxu0 0
  %5957 = vmatpush1.bf16.msra.mxu0 %v5941
  %5958 = vmatprep.subr.bf16.mxu0 0
  %5959 = vmatpush1.bf16.msra.mxu0 %v5940
  %5960 = vmatprep.subr.bf16.mxu0 0
  %5961 = vmatpush2.bf16.msra.mxu0 0
  %5962 = vmatprep.subr.bf16.mxu0 0
  %5963 = vmatpush2.bf16.msra.mxu0 0
  %5964 = vmatprep.subr.bf16.mxu0 0
  %5965 = vmatpush2.bf16.msra.mxu0 0
  %5966 = vmatprep.subr.bf16.mxu0 0
  %5967 = vmatpush2.bf16.msra.mxu0 0
  %5968 = vmatprep.subr.bf16.mxu0 0
  %5969 = vmatpush2.bf16.msra.mxu0 0
  %5970 = vmatprep.subr.bf16.mxu0 0
  %5971 = vmatpush2.bf16.msra.mxu0 0
  %5972 = vmatprep.subr.bf16.mxu0 0
  %5973 = vmatpush2.bf16.msra.mxu0 0
  %5974 = vmatprep.subr.bf16.mxu0 0
  %5975 = vmatpush2.bf16.msra.mxu0 0
  %5976 = vmatprep.mubr.bf16.mxu0 0
  %5977 = vmatmul.mubr.bf16.gmra.mxu0 %v4228
  %v5978 = vpop.f32.mrf.mxu0
  %v5979 = vadd.f32 0.0, %v5978
  %v5980 = vpop.f32.mrf.mxu0
  %v5981 = vpop.f32.mrf.mxu0
  %v5982 = vadd.f32 0.0, %v5981
  %v5983 = vpop.f32.mrf.mxu0
  %5984 = vmatprep.mubr.bf16.mxu0 0
  %5985 = vmatmul.mubr.bf16.gmra.mxu0 %v4231
  %v5986 = vpop.f32.mrf.mxu0
  %v5987 = vadd.f32 0.0, %v5986
  %v5988 = vpop.f32.mrf.mxu0
  %v5989 = vpop.f32.mrf.mxu0
  %v5990 = vadd.f32 0.0, %v5989
  %v5991 = vpop.f32.mrf.mxu0
  %5992 = vmatprep.mubr.bf16.mxu0 0
  %5993 = vmatmul.mubr.bf16.gmra.mxu0 %v4234
  %v5994 = vpop.f32.mrf.mxu0
  %v5995 = vadd.f32 0.0, %v5994
  %v5996 = vpop.f32.mrf.mxu0
  %v5997 = vpop.f32.mrf.mxu0
  %v5998 = vadd.f32 0.0, %v5997
  %v5999 = vpop.f32.mrf.mxu0
  %6000 = vmatprep.mubr.bf16.mxu0 0
  %6001 = vmatmul.mubr.bf16.gmra.mxu0 %v4237
  %v6002 = vpop.f32.mrf.mxu0
  %v6003 = vadd.f32 0.0, %v6002
  %v6004 = vpop.f32.mrf.mxu0
  %v6005 = vpop.f32.mrf.mxu0
  %v6006 = vadd.f32 0.0, %v6005
  %v6007 = vpop.f32.mrf.mxu0
  %6008 = vdwg.mxu0
  %v6010 = vsel %vm686, %v5815, 0
  %v6013 = vsel %vm686, %v5897, 0
  %6015 = vmatprep.subr.mxu0 0.0
  %6016 = vmatpush1.xpose.msra.mxu0 0.0
  %6017 = vmatprep.subr.mxu0 0.0
  %6018 = vmatpush1.xpose.msra.mxu0 0.0
  %6019 = vmatprep.subr.mxu0 0.0
  %6020 = vmatpush1.xpose.msra.mxu0 0.0
  %6021 = vmatprep.subr.mxu0 0.0
  %6022 = vmatpush1.xpose.msra.mxu0 0.0
  %6023 = vmatprep.subr.mxu0 0.0
  %6024 = vmatpush1.xpose.msra.mxu0 0.0
  %6025 = vmatprep.subr.mxu0 0.0
  %6026 = vmatpush1.xpose.msra.mxu0 0.0
  %6027 = vmatprep.subr.mxu0 0.0
  %6028 = vmatpush1.xpose.msra.mxu0 0.0
  %6029 = vmatprep.subr.mxu0 0.0
  %6030 = vmatpush1.xpose.msra.mxu0 0.0
  %6031 = vmatprep.subr.mxu0 0.0
  %6032 = vmatpush1.xpose.msra.mxu0 0.0
  %6033 = vmatprep.subr.mxu0 0.0
  %6034 = vmatpush1.xpose.msra.mxu0 0.0
  %6035 = vmatprep.subr.mxu0 0.0
  %6036 = vmatpush1.xpose.msra.mxu0 0.0
  %6037 = vmatprep.subr.mxu0 0.0
  %6038 = vmatpush1.xpose.msra.mxu0 0.0
  %6039 = vmatprep.subr.mxu0 0.0
  %6040 = vmatpush1.xpose.msra.mxu0 0.0
  %6041 = vmatprep.subr.mxu0 0.0
  %6042 = vmatpush1.xpose.msra.mxu0 0.0
  %6043 = vmatprep.subr.mxu0 0.0
  %6044 = vmatpush1.xpose.msra.mxu0 0.0
  %6045 = vmatprep.subr.mxu0 0.0
  %6046 = vmatpush1.xpose.msra.mxu0 %v6013
  %6047 = vmatprep.subr.mxu0 0.0
  %6048 = vmatpush2.xpose.msra.mxu0 0.0
  %6049 = vmatprep.subr.mxu0 0.0
  %6050 = vmatpush2.xpose.msra.mxu0 0.0
  %6051 = vmatprep.subr.mxu0 0.0
  %6052 = vmatpush2.xpose.msra.mxu0 0.0
  %6053 = vmatprep.subr.mxu0 0.0
  %6054 = vmatpush2.xpose.msra.mxu0 0.0
  %6055 = vmatprep.subr.mxu0 0.0
  %6056 = vmatpush2.xpose.msra.mxu0 0.0
  %6057 = vmatprep.subr.mxu0 0.0
  %6058 = vmatpush2.xpose.msra.mxu0 0.0
  %6059 = vmatprep.subr.mxu0 0.0
  %6060 = vmatpush2.xpose.msra.mxu0 0.0
  %6061 = vmatprep.subr.mxu0 0.0
  %6062 = vmatpush2.xpose.msra.mxu0 0.0
  %6063 = vmatprep.subr.mxu0 0.0
  %6064 = vmatpush2.xpose.msra.mxu0 0.0
  %6065 = vmatprep.subr.mxu0 0.0
  %6066 = vmatpush2.xpose.msra.mxu0 0.0
  %6067 = vmatprep.subr.mxu0 0.0
  %6068 = vmatpush2.xpose.msra.mxu0 0.0
  %6069 = vmatprep.subr.mxu0 0.0
  %6070 = vmatpush2.xpose.msra.mxu0 0.0
  %6071 = vmatprep.subr.mxu0 0.0
  %6072 = vmatpush2.xpose.msra.mxu0 0.0
  %6073 = vmatprep.subr.mxu0 0.0
  %6074 = vmatpush2.xpose.msra.mxu0 0.0
  %6075 = vmatprep.subr.mxu0 0.0
  %6076 = vmatpush2.xpose.msra.mxu0 0.0
  %6077 = vmatprep.subr.mxu0 0.0
  %6078 = vmatpush2.xpose.msra.mxu0 0.0
  %6079 = vmatprep.mubr.f32.mxu0 0.0
  %6080 = vmatmul.mubr.f32.gmra.mxu0 %v6010
  %v6081 = vpop.f32.mrf.mxu0
  %v6082 = vadd.f32 0.0, %v6081
  %v6083 = vpop.f32.mrf.mxu0
  %6084 = vdwg.mxu0
  %v6086 = vsel %vm686, %v5818, 0
  %v6089 = vsel %vm686, %v5900, 0
  %6091 = vmatprep.subr.mxu0 0.0
  %6092 = vmatpush1.xpose.msra.mxu0 0.0
  %6093 = vmatprep.subr.mxu0 0.0
  %6094 = vmatpush1.xpose.msra.mxu0 0.0
  %6095 = vmatprep.subr.mxu0 0.0
  %6096 = vmatpush1.xpose.msra.mxu0 0.0
  %6097 = vmatprep.subr.mxu0 0.0
  %6098 = vmatpush1.xpose.msra.mxu0 0.0
  %6099 = vmatprep.subr.mxu0 0.0
  %6100 = vmatpush1.xpose.msra.mxu0 0.0
  %6101 = vmatprep.subr.mxu0 0.0
  %6102 = vmatpush1.xpose.msra.mxu0 0.0
  %6103 = vmatprep.subr.mxu0 0.0
  %6104 = vmatpush1.xpose.msra.mxu0 0.0
  %6105 = vmatprep.subr.mxu0 0.0
  %6106 = vmatpush1.xpose.msra.mxu0 0.0
  %6107 = vmatprep.subr.mxu0 0.0
  %6108 = vmatpush1.xpose.msra.mxu0 0.0
  %6109 = vmatprep.subr.mxu0 0.0
  %6110 = vmatpush1.xpose.msra.mxu0 0.0
  %6111 = vmatprep.subr.mxu0 0.0
  %6112 = vmatpush1.xpose.msra.mxu0 0.0
  %6113 = vmatprep.subr.mxu0 0.0
  %6114 = vmatpush1.xpose.msra.mxu0 0.0
  %6115 = vmatprep.subr.mxu0 0.0
  %6116 = vmatpush1.xpose.msra.mxu0 0.0
  %6117 = vmatprep.subr.mxu0 0.0
  %6118 = vmatpush1.xpose.msra.mxu0 0.0
  %6119 = vmatprep.subr.mxu0 0.0
  %6120 = vmatpush1.xpose.msra.mxu0 0.0
  %6121 = vmatprep.subr.mxu0 0.0
  %6122 = vmatpush1.xpose.msra.mxu0 %v6089
  %6123 = vmatprep.subr.mxu0 0.0
  %6124 = vmatpush2.xpose.msra.mxu0 0.0
  %6125 = vmatprep.subr.mxu0 0.0
  %6126 = vmatpush2.xpose.msra.mxu0 0.0
  %6127 = vmatprep.subr.mxu0 0.0
  %6128 = vmatpush2.xpose.msra.mxu0 0.0
  %6129 = vmatprep.subr.mxu0 0.0
  %6130 = vmatpush2.xpose.msra.mxu0 0.0
  %6131 = vmatprep.subr.mxu0 0.0
  %6132 = vmatpush2.xpose.msra.mxu0 0.0
  %6133 = vmatprep.subr.mxu0 0.0
  %6134 = vmatpush2.xpose.msra.mxu0 0.0
  %6135 = vmatprep.subr.mxu0 0.0
  %6136 = vmatpush2.xpose.msra.mxu0 0.0
  %6137 = vmatprep.subr.mxu0 0.0
  %6138 = vmatpush2.xpose.msra.mxu0 0.0
  %6139 = vmatprep.subr.mxu0 0.0
  %6140 = vmatpush2.xpose.msra.mxu0 0.0
  %6141 = vmatprep.subr.mxu0 0.0
  %6142 = vmatpush2.xpose.msra.mxu0 0.0
  %6143 = vmatprep.subr.mxu0 0.0
  %6144 = vmatpush2.xpose.msra.mxu0 0.0
  %6145 = vmatprep.subr.mxu0 0.0
  %6146 = vmatpush2.xpose.msra.mxu0 0.0
  %6147 = vmatprep.subr.mxu0 0.0
  %6148 = vmatpush2.xpose.msra.mxu0 0.0
  %6149 = vmatprep.subr.mxu0 0.0
  %6150 = vmatpush2.xpose.msra.mxu0 0.0
  %6151 = vmatprep.subr.mxu0 0.0
  %6152 = vmatpush2.xpose.msra.mxu0 0.0
  %6153 = vmatprep.subr.mxu0 0.0
  %6154 = vmatpush2.xpose.msra.mxu0 0.0
  %6155 = vmatprep.mubr.f32.mxu0 0.0
  %6156 = vmatmul.mubr.f32.gmra.mxu0 %v6086
  %v6157 = vpop.f32.mrf.mxu0
  %v6158 = vadd.f32 0.0, %v6157
  %v6159 = vpop.f32.mrf.mxu0
  %6160 = vdwg.mxu0
  %v6162 = vsel %vm686, %v5823, 0
  %v6165 = vsel %vm686, %v5905, 0
  %6167 = vmatprep.subr.mxu0 0.0
  %6168 = vmatpush1.xpose.msra.mxu0 0.0
  %6169 = vmatprep.subr.mxu0 0.0
  %6170 = vmatpush1.xpose.msra.mxu0 0.0
  %6171 = vmatprep.subr.mxu0 0.0
  %6172 = vmatpush1.xpose.msra.mxu0 0.0
  %6173 = vmatprep.subr.mxu0 0.0
  %6174 = vmatpush1.xpose.msra.mxu0 0.0
  %6175 = vmatprep.subr.mxu0 0.0
  %6176 = vmatpush1.xpose.msra.mxu0 0.0
  %6177 = vmatprep.subr.mxu0 0.0
  %6178 = vmatpush1.xpose.msra.mxu0 0.0
  %6179 = vmatprep.subr.mxu0 0.0
  %6180 = vmatpush1.xpose.msra.mxu0 0.0
  %6181 = vmatprep.subr.mxu0 0.0
  %6182 = vmatpush1.xpose.msra.mxu0 0.0
  %6183 = vmatprep.subr.mxu0 0.0
  %6184 = vmatpush1.xpose.msra.mxu0 0.0
  %6185 = vmatprep.subr.mxu0 0.0
  %6186 = vmatpush1.xpose.msra.mxu0 0.0
  %6187 = vmatprep.subr.mxu0 0.0
  %6188 = vmatpush1.xpose.msra.mxu0 0.0
  %6189 = vmatprep.subr.mxu0 0.0
  %6190 = vmatpush1.xpose.msra.mxu0 0.0
  %6191 = vmatprep.subr.mxu0 0.0
  %6192 = vmatpush1.xpose.msra.mxu0 0.0
  %6193 = vmatprep.subr.mxu0 0.0
  %6194 = vmatpush1.xpose.msra.mxu0 0.0
  %6195 = vmatprep.subr.mxu0 0.0
  %6196 = vmatpush1.xpose.msra.mxu0 0.0
  %6197 = vmatprep.subr.mxu0 0.0
  %6198 = vmatpush1.xpose.msra.mxu0 %v6165
  %6199 = vmatprep.subr.mxu0 0.0
  %6200 = vmatpush2.xpose.msra.mxu0 0.0
  %6201 = vmatprep.subr.mxu0 0.0
  %6202 = vmatpush2.xpose.msra.mxu0 0.0
  %6203 = vmatprep.subr.mxu0 0.0
  %6204 = vmatpush2.xpose.msra.mxu0 0.0
  %6205 = vmatprep.subr.mxu0 0.0
  %6206 = vmatpush2.xpose.msra.mxu0 0.0
  %6207 = vmatprep.subr.mxu0 0.0
  %6208 = vmatpush2.xpose.msra.mxu0 0.0
  %6209 = vmatprep.subr.mxu0 0.0
  %6210 = vmatpush2.xpose.msra.mxu0 0.0
  %6211 = vmatprep.subr.mxu0 0.0
  %6212 = vmatpush2.xpose.msra.mxu0 0.0
  %6213 = vmatprep.subr.mxu0 0.0
  %6214 = vmatpush2.xpose.msra.mxu0 0.0
  %6215 = vmatprep.subr.mxu0 0.0
  %6216 = vmatpush2.xpose.msra.mxu0 0.0
  %6217 = vmatprep.subr.mxu0 0.0
  %6218 = vmatpush2.xpose.msra.mxu0 0.0
  %6219 = vmatprep.subr.mxu0 0.0
  %6220 = vmatpush2.xpose.msra.mxu0 0.0
  %6221 = vmatprep.subr.mxu0 0.0
  %6222 = vmatpush2.xpose.msra.mxu0 0.0
  %6223 = vmatprep.subr.mxu0 0.0
  %6224 = vmatpush2.xpose.msra.mxu0 0.0
  %6225 = vmatprep.subr.mxu0 0.0
  %6226 = vmatpush2.xpose.msra.mxu0 0.0
  %6227 = vmatprep.subr.mxu0 0.0
  %6228 = vmatpush2.xpose.msra.mxu0 0.0
  %6229 = vmatprep.subr.mxu0 0.0
  %6230 = vmatpush2.xpose.msra.mxu0 0.0
  %6231 = vmatprep.mubr.f32.mxu0 0.0
  %6232 = vmatmul.mubr.f32.gmra.mxu0 %v6162
  %v6233 = vpop.f32.mrf.mxu0
  %v6234 = vadd.f32 0.0, %v6233
  %v6235 = vpop.f32.mrf.mxu0
  %6236 = vdwg.mxu0
  %v6238 = vsel %vm686, %v5826, 0
  %v6241 = vsel %vm686, %v5908, 0
  %6243 = vmatprep.subr.mxu0 0.0
  %6244 = vmatpush1.xpose.msra.mxu0 0.0
  %6245 = vmatprep.subr.mxu0 0.0
  %6246 = vmatpush1.xpose.msra.mxu0 0.0
  %6247 = vmatprep.subr.mxu0 0.0
  %6248 = vmatpush1.xpose.msra.mxu0 0.0
  %6249 = vmatprep.subr.mxu0 0.0
  %6250 = vmatpush1.xpose.msra.mxu0 0.0
  %6251 = vmatprep.subr.mxu0 0.0
  %6252 = vmatpush1.xpose.msra.mxu0 0.0
  %6253 = vmatprep.subr.mxu0 0.0
  %6254 = vmatpush1.xpose.msra.mxu0 0.0
  %6255 = vmatprep.subr.mxu0 0.0
  %6256 = vmatpush1.xpose.msra.mxu0 0.0
  %6257 = vmatprep.subr.mxu0 0.0
  %6258 = vmatpush1.xpose.msra.mxu0 0.0
  %6259 = vmatprep.subr.mxu0 0.0
  %6260 = vmatpush1.xpose.msra.mxu0 0.0
  %6261 = vmatprep.subr.mxu0 0.0
  %6262 = vmatpush1.xpose.msra.mxu0 0.0
  %6263 = vmatprep.subr.mxu0 0.0
  %6264 = vmatpush1.xpose.msra.mxu0 0.0
  %6265 = vmatprep.subr.mxu0 0.0
  %6266 = vmatpush1.xpose.msra.mxu0 0.0
  %6267 = vmatprep.subr.mxu0 0.0
  %6268 = vmatpush1.xpose.msra.mxu0 0.0
  %6269 = vmatprep.subr.mxu0 0.0
  %6270 = vmatpush1.xpose.msra.mxu0 0.0
  %6271 = vmatprep.subr.mxu0 0.0
  %6272 = vmatpush1.xpose.msra.mxu0 0.0
  %6273 = vmatprep.subr.mxu0 0.0
  %6274 = vmatpush1.xpose.msra.mxu0 %v6241
  %6275 = vmatprep.subr.mxu0 0.0
  %6276 = vmatpush2.xpose.msra.mxu0 0.0
  %6277 = vmatprep.subr.mxu0 0.0
  %6278 = vmatpush2.xpose.msra.mxu0 0.0
  %6279 = vmatprep.subr.mxu0 0.0
  %6280 = vmatpush2.xpose.msra.mxu0 0.0
  %6281 = vmatprep.subr.mxu0 0.0
  %6282 = vmatpush2.xpose.msra.mxu0 0.0
  %6283 = vmatprep.subr.mxu0 0.0
  %6284 = vmatpush2.xpose.msra.mxu0 0.0
  %6285 = vmatprep.subr.mxu0 0.0
  %6286 = vmatpush2.xpose.msra.mxu0 0.0
  %6287 = vmatprep.subr.mxu0 0.0
  %6288 = vmatpush2.xpose.msra.mxu0 0.0
  %6289 = vmatprep.subr.mxu0 0.0
  %6290 = vmatpush2.xpose.msra.mxu0 0.0
  %6291 = vmatprep.subr.mxu0 0.0
  %6292 = vmatpush2.xpose.msra.mxu0 0.0
  %6293 = vmatprep.subr.mxu0 0.0
  %6294 = vmatpush2.xpose.msra.mxu0 0.0
  %6295 = vmatprep.subr.mxu0 0.0
  %6296 = vmatpush2.xpose.msra.mxu0 0.0
  %6297 = vmatprep.subr.mxu0 0.0
  %6298 = vmatpush2.xpose.msra.mxu0 0.0
  %6299 = vmatprep.subr.mxu0 0.0
  %6300 = vmatpush2.xpose.msra.mxu0 0.0
  %6301 = vmatprep.subr.mxu0 0.0
  %6302 = vmatpush2.xpose.msra.mxu0 0.0
  %6303 = vmatprep.subr.mxu0 0.0
  %6304 = vmatpush2.xpose.msra.mxu0 0.0
  %6305 = vmatprep.subr.mxu0 0.0
  %6306 = vmatpush2.xpose.msra.mxu0 0.0
  %6307 = vmatprep.mubr.f32.mxu0 0.0
  %6308 = vmatmul.mubr.f32.gmra.mxu0 %v6238
  %v6309 = vpop.f32.mrf.mxu0
  %v6310 = vadd.f32 0.0, %v6309
  %v6311 = vpop.f32.mrf.mxu0
  %6312 = vdwg.mxu0
  %v6314 = vsel %vm686, %v5831, 0
  %v6317 = vsel %vm686, %v5913, 0
  %6319 = vmatprep.subr.mxu0 0.0
  %6320 = vmatpush1.xpose.msra.mxu0 0.0
  %6321 = vmatprep.subr.mxu0 0.0
  %6322 = vmatpush1.xpose.msra.mxu0 0.0
  %6323 = vmatprep.subr.mxu0 0.0
  %6324 = vmatpush1.xpose.msra.mxu0 0.0
  %6325 = vmatprep.subr.mxu0 0.0
  %6326 = vmatpush1.xpose.msra.mxu0 0.0
  %6327 = vmatprep.subr.mxu0 0.0
  %6328 = vmatpush1.xpose.msra.mxu0 0.0
  %6329 = vmatprep.subr.mxu0 0.0
  %6330 = vmatpush1.xpose.msra.mxu0 0.0
  %6331 = vmatprep.subr.mxu0 0.0
  %6332 = vmatpush1.xpose.msra.mxu0 0.0
  %6333 = vmatprep.subr.mxu0 0.0
  %6334 = vmatpush1.xpose.msra.mxu0 0.0
  %6335 = vmatprep.subr.mxu0 0.0
  %6336 = vmatpush1.xpose.msra.mxu0 0.0
  %6337 = vmatprep.subr.mxu0 0.0
  %6338 = vmatpush1.xpose.msra.mxu0 0.0
  %6339 = vmatprep.subr.mxu0 0.0
  %6340 = vmatpush1.xpose.msra.mxu0 0.0
  %6341 = vmatprep.subr.mxu0 0.0
  %6342 = vmatpush1.xpose.msra.mxu0 0.0
  %6343 = vmatprep.subr.mxu0 0.0
  %6344 = vmatpush1.xpose.msra.mxu0 0.0
  %6345 = vmatprep.subr.mxu0 0.0
  %6346 = vmatpush1.xpose.msra.mxu0 0.0
  %6347 = vmatprep.subr.mxu0 0.0
  %6348 = vmatpush1.xpose.msra.mxu0 0.0
  %6349 = vmatprep.subr.mxu0 0.0
  %6350 = vmatpush1.xpose.msra.mxu0 %v6317
  %6351 = vmatprep.subr.mxu0 0.0
  %6352 = vmatpush2.xpose.msra.mxu0 0.0
  %6353 = vmatprep.subr.mxu0 0.0
  %6354 = vmatpush2.xpose.msra.mxu0 0.0
  %6355 = vmatprep.subr.mxu0 0.0
  %6356 = vmatpush2.xpose.msra.mxu0 0.0
  %6357 = vmatprep.subr.mxu0 0.0
  %6358 = vmatpush2.xpose.msra.mxu0 0.0
  %6359 = vmatprep.subr.mxu0 0.0
  %6360 = vmatpush2.xpose.msra.mxu0 0.0
  %6361 = vmatprep.subr.mxu0 0.0
  %6362 = vmatpush2.xpose.msra.mxu0 0.0
  %6363 = vmatprep.subr.mxu0 0.0
  %6364 = vmatpush2.xpose.msra.mxu0 0.0
  %6365 = vmatprep.subr.mxu0 0.0
  %6366 = vmatpush2.xpose.msra.mxu0 0.0
  %6367 = vmatprep.subr.mxu0 0.0
  %6368 = vmatpush2.xpose.msra.mxu0 0.0
  %6369 = vmatprep.subr.mxu0 0.0
  %6370 = vmatpush2.xpose.msra.mxu0 0.0
  %6371 = vmatprep.subr.mxu0 0.0
  %6372 = vmatpush2.xpose.msra.mxu0 0.0
  %6373 = vmatprep.subr.mxu0 0.0
  %6374 = vmatpush2.xpose.msra.mxu0 0.0
  %6375 = vmatprep.subr.mxu0 0.0
  %6376 = vmatpush2.xpose.msra.mxu0 0.0
  %6377 = vmatprep.subr.mxu0 0.0
  %6378 = vmatpush2.xpose.msra.mxu0 0.0
  %6379 = vmatprep.subr.mxu0 0.0
  %6380 = vmatpush2.xpose.msra.mxu0 0.0
  %6381 = vmatprep.subr.mxu0 0.0
  %6382 = vmatpush2.xpose.msra.mxu0 0.0
  %6383 = vmatprep.mubr.f32.mxu0 0.0
  %6384 = vmatmul.mubr.f32.gmra.mxu0 %v6314
  %v6385 = vpop.f32.mrf.mxu0
  %v6386 = vadd.f32 0.0, %v6385
  %v6387 = vpop.f32.mrf.mxu0
  %6388 = vdwg.mxu0
  %v6390 = vsel %vm686, %v5834, 0
  %v6393 = vsel %vm686, %v5916, 0
  %6395 = vmatprep.subr.mxu0 0.0
  %6396 = vmatpush1.xpose.msra.mxu0 0.0
  %6397 = vmatprep.subr.mxu0 0.0
  %6398 = vmatpush1.xpose.msra.mxu0 0.0
  %6399 = vmatprep.subr.mxu0 0.0
  %6400 = vmatpush1.xpose.msra.mxu0 0.0
  %6401 = vmatprep.subr.mxu0 0.0
  %6402 = vmatpush1.xpose.msra.mxu0 0.0
  %6403 = vmatprep.subr.mxu0 0.0
  %6404 = vmatpush1.xpose.msra.mxu0 0.0
  %6405 = vmatprep.subr.mxu0 0.0
  %6406 = vmatpush1.xpose.msra.mxu0 0.0
  %6407 = vmatprep.subr.mxu0 0.0
  %6408 = vmatpush1.xpose.msra.mxu0 0.0
  %6409 = vmatprep.subr.mxu0 0.0
  %6410 = vmatpush1.xpose.msra.mxu0 0.0
  %6411 = vmatprep.subr.mxu0 0.0
  %6412 = vmatpush1.xpose.msra.mxu0 0.0
  %6413 = vmatprep.subr.mxu0 0.0
  %6414 = vmatpush1.xpose.msra.mxu0 0.0
  %6415 = vmatprep.subr.mxu0 0.0
  %6416 = vmatpush1.xpose.msra.mxu0 0.0
  %6417 = vmatprep.subr.mxu0 0.0
  %6418 = vmatpush1.xpose.msra.mxu0 0.0
  %6419 = vmatprep.subr.mxu0 0.0
  %6420 = vmatpush1.xpose.msra.mxu0 0.0
  %6421 = vmatprep.subr.mxu0 0.0
  %6422 = vmatpush1.xpose.msra.mxu0 0.0
  %6423 = vmatprep.subr.mxu0 0.0
  %6424 = vmatpush1.xpose.msra.mxu0 0.0
  %6425 = vmatprep.subr.mxu0 0.0
  %6426 = vmatpush1.xpose.msra.mxu0 %v6393
  %6427 = vmatprep.subr.mxu0 0.0
  %6428 = vmatpush2.xpose.msra.mxu0 0.0
  %6429 = vmatprep.subr.mxu0 0.0
  %6430 = vmatpush2.xpose.msra.mxu0 0.0
  %6431 = vmatprep.subr.mxu0 0.0
  %6432 = vmatpush2.xpose.msra.mxu0 0.0
  %6433 = vmatprep.subr.mxu0 0.0
  %6434 = vmatpush2.xpose.msra.mxu0 0.0
  %6435 = vmatprep.subr.mxu0 0.0
  %6436 = vmatpush2.xpose.msra.mxu0 0.0
  %6437 = vmatprep.subr.mxu0 0.0
  %6438 = vmatpush2.xpose.msra.mxu0 0.0
  %6439 = vmatprep.subr.mxu0 0.0
  %6440 = vmatpush2.xpose.msra.mxu0 0.0
  %6441 = vmatprep.subr.mxu0 0.0
  %6442 = vmatpush2.xpose.msra.mxu0 0.0
  %6443 = vmatprep.subr.mxu0 0.0
  %6444 = vmatpush2.xpose.msra.mxu0 0.0
  %6445 = vmatprep.subr.mxu0 0.0
  %6446 = vmatpush2.xpose.msra.mxu0 0.0
  %6447 = vmatprep.subr.mxu0 0.0
  %6448 = vmatpush2.xpose.msra.mxu0 0.0
  %6449 = vmatprep.subr.mxu0 0.0
  %6450 = vmatpush2.xpose.msra.mxu0 0.0
  %6451 = vmatprep.subr.mxu0 0.0
  %6452 = vmatpush2.xpose.msra.mxu0 0.0
  %6453 = vmatprep.subr.mxu0 0.0
  %6454 = vmatpush2.xpose.msra.mxu0 0.0
  %6455 = vmatprep.subr.mxu0 0.0
  %6456 = vmatpush2.xpose.msra.mxu0 0.0
  %6457 = vmatprep.subr.mxu0 0.0
  %6458 = vmatpush2.xpose.msra.mxu0 0.0
  %6459 = vmatprep.mubr.f32.mxu0 0.0
  %6460 = vmatmul.mubr.f32.gmra.mxu0 %v6390
  %v6461 = vpop.f32.mrf.mxu0
  %v6462 = vadd.f32 0.0, %v6461
  %v6463 = vpop.f32.mrf.mxu0
  %6464 = vdwg.mxu0
  %v6466 = vsel %vm686, %v5839, 0
  %v6469 = vsel %vm686, %v5921, 0
  %6471 = vmatprep.subr.mxu0 0.0
  %6472 = vmatpush1.xpose.msra.mxu0 0.0
  %6473 = vmatprep.subr.mxu0 0.0
  %6474 = vmatpush1.xpose.msra.mxu0 0.0
  %6475 = vmatprep.subr.mxu0 0.0
  %6476 = vmatpush1.xpose.msra.mxu0 0.0
  %6477 = vmatprep.subr.mxu0 0.0
  %6478 = vmatpush1.xpose.msra.mxu0 0.0
  %6479 = vmatprep.subr.mxu0 0.0
  %6480 = vmatpush1.xpose.msra.mxu0 0.0
  %6481 = vmatprep.subr.mxu0 0.0
  %6482 = vmatpush1.xpose.msra.mxu0 0.0
  %6483 = vmatprep.subr.mxu0 0.0
  %6484 = vmatpush1.xpose.msra.mxu0 0.0
  %6485 = vmatprep.subr.mxu0 0.0
  %6486 = vmatpush1.xpose.msra.mxu0 0.0
  %6487 = vmatprep.subr.mxu0 0.0
  %6488 = vmatpush1.xpose.msra.mxu0 0.0
  %6489 = vmatprep.subr.mxu0 0.0
  %6490 = vmatpush1.xpose.msra.mxu0 0.0
  %6491 = vmatprep.subr.mxu0 0.0
  %6492 = vmatpush1.xpose.msra.mxu0 0.0
  %6493 = vmatprep.subr.mxu0 0.0
  %6494 = vmatpush1.xpose.msra.mxu0 0.0
  %6495 = vmatprep.subr.mxu0 0.0
  %6496 = vmatpush1.xpose.msra.mxu0 0.0
  %6497 = vmatprep.subr.mxu0 0.0
  %6498 = vmatpush1.xpose.msra.mxu0 0.0
  %6499 = vmatprep.subr.mxu0 0.0
  %6500 = vmatpush1.xpose.msra.mxu0 0.0
  %6501 = vmatprep.subr.mxu0 0.0
  %6502 = vmatpush1.xpose.msra.mxu0 %v6469
  %6503 = vmatprep.subr.mxu0 0.0
  %6504 = vmatpush2.xpose.msra.mxu0 0.0
  %6505 = vmatprep.subr.mxu0 0.0
  %6506 = vmatpush2.xpose.msra.mxu0 0.0
  %6507 = vmatprep.subr.mxu0 0.0
  %6508 = vmatpush2.xpose.msra.mxu0 0.0
  %6509 = vmatprep.subr.mxu0 0.0
  %6510 = vmatpush2.xpose.msra.mxu0 0.0
  %6511 = vmatprep.subr.mxu0 0.0
  %6512 = vmatpush2.xpose.msra.mxu0 0.0
  %6513 = vmatprep.subr.mxu0 0.0
  %6514 = vmatpush2.xpose.msra.mxu0 0.0
  %6515 = vmatprep.subr.mxu0 0.0
  %6516 = vmatpush2.xpose.msra.mxu0 0.0
  %6517 = vmatprep.subr.mxu0 0.0
  %6518 = vmatpush2.xpose.msra.mxu0 0.0
  %6519 = vmatprep.subr.mxu0 0.0
  %6520 = vmatpush2.xpose.msra.mxu0 0.0
  %6521 = vmatprep.subr.mxu0 0.0
  %6522 = vmatpush2.xpose.msra.mxu0 0.0
  %6523 = vmatprep.subr.mxu0 0.0
  %6524 = vmatpush2.xpose.msra.mxu0 0.0
  %6525 = vmatprep.subr.mxu0 0.0
  %6526 = vmatpush2.xpose.msra.mxu0 0.0
  %6527 = vmatprep.subr.mxu0 0.0
  %6528 = vmatpush2.xpose.msra.mxu0 0.0
  %6529 = vmatprep.subr.mxu0 0.0
  %6530 = vmatpush2.xpose.msra.mxu0 0.0
  %6531 = vmatprep.subr.mxu0 0.0
  %6532 = vmatpush2.xpose.msra.mxu0 0.0
  %6533 = vmatprep.subr.mxu0 0.0
  %6534 = vmatpush2.xpose.msra.mxu0 0.0
  %6535 = vmatprep.mubr.f32.mxu0 0.0
  %6536 = vmatmul.mubr.f32.gmra.mxu0 %v6466
  %v6537 = vpop.f32.mrf.mxu0
  %v6538 = vadd.f32 0.0, %v6537
  %v6539 = vpop.f32.mrf.mxu0
  %6540 = vdwg.mxu0
  %v6542 = vsel %vm686, %v5842, 0
  %v6545 = vsel %vm686, %v5924, 0
  %6547 = vmatprep.subr.mxu0 0.0
  %6548 = vmatpush1.xpose.msra.mxu0 0.0
  %6549 = vmatprep.subr.mxu0 0.0
  %6550 = vmatpush1.xpose.msra.mxu0 0.0
  %6551 = vmatprep.subr.mxu0 0.0
  %6552 = vmatpush1.xpose.msra.mxu0 0.0
  %6553 = vmatprep.subr.mxu0 0.0
  %6554 = vmatpush1.xpose.msra.mxu0 0.0
  %6555 = vmatprep.subr.mxu0 0.0
  %6556 = vmatpush1.xpose.msra.mxu0 0.0
  %6557 = vmatprep.subr.mxu0 0.0
  %6558 = vmatpush1.xpose.msra.mxu0 0.0
  %6559 = vmatprep.subr.mxu0 0.0
  %6560 = vmatpush1.xpose.msra.mxu0 0.0
  %6561 = vmatprep.subr.mxu0 0.0
  %6562 = vmatpush1.xpose.msra.mxu0 0.0
  %6563 = vmatprep.subr.mxu0 0.0
  %6564 = vmatpush1.xpose.msra.mxu0 0.0
  %6565 = vmatprep.subr.mxu0 0.0
  %6566 = vmatpush1.xpose.msra.mxu0 0.0
  %6567 = vmatprep.subr.mxu0 0.0
  %6568 = vmatpush1.xpose.msra.mxu0 0.0
  %6569 = vmatprep.subr.mxu0 0.0
  %6570 = vmatpush1.xpose.msra.mxu0 0.0
  %6571 = vmatprep.subr.mxu0 0.0
  %6572 = vmatpush1.xpose.msra.mxu0 0.0
  %6573 = vmatprep.subr.mxu0 0.0
  %6574 = vmatpush1.xpose.msra.mxu0 0.0
  %6575 = vmatprep.subr.mxu0 0.0
  %6576 = vmatpush1.xpose.msra.mxu0 0.0
  %6577 = vmatprep.subr.mxu0 0.0
  %6578 = vmatpush1.xpose.msra.mxu0 %v6545
  %6579 = vmatprep.subr.mxu0 0.0
  %6580 = vmatpush2.xpose.msra.mxu0 0.0
  %6581 = vmatprep.subr.mxu0 0.0
  %6582 = vmatpush2.xpose.msra.mxu0 0.0
  %6583 = vmatprep.subr.mxu0 0.0
  %6584 = vmatpush2.xpose.msra.mxu0 0.0
  %6585 = vmatprep.subr.mxu0 0.0
  %6586 = vmatpush2.xpose.msra.mxu0 0.0
  %6587 = vmatprep.subr.mxu0 0.0
  %6588 = vmatpush2.xpose.msra.mxu0 0.0
  %6589 = vmatprep.subr.mxu0 0.0
  %6590 = vmatpush2.xpose.msra.mxu0 0.0
  %6591 = vmatprep.subr.mxu0 0.0
  %6592 = vmatpush2.xpose.msra.mxu0 0.0
  %6593 = vmatprep.subr.mxu0 0.0
  %6594 = vmatpush2.xpose.msra.mxu0 0.0
  %6595 = vmatprep.subr.mxu0 0.0
  %6596 = vmatpush2.xpose.msra.mxu0 0.0
  %6597 = vmatprep.subr.mxu0 0.0
  %6598 = vmatpush2.xpose.msra.mxu0 0.0
  %6599 = vmatprep.subr.mxu0 0.0
  %6600 = vmatpush2.xpose.msra.mxu0 0.0
  %6601 = vmatprep.subr.mxu0 0.0
  %6602 = vmatpush2.xpose.msra.mxu0 0.0
  %6603 = vmatprep.subr.mxu0 0.0
  %6604 = vmatpush2.xpose.msra.mxu0 0.0
  %6605 = vmatprep.subr.mxu0 0.0
  %6606 = vmatpush2.xpose.msra.mxu0 0.0
  %6607 = vmatprep.subr.mxu0 0.0
  %6608 = vmatpush2.xpose.msra.mxu0 0.0
  %6609 = vmatprep.subr.mxu0 0.0
  %6610 = vmatpush2.xpose.msra.mxu0 0.0
  %6611 = vmatprep.mubr.f32.mxu0 0.0
  %6612 = vmatmul.mubr.f32.gmra.mxu0 %v6542
  %v6613 = vpop.f32.mrf.mxu0
  %v6614 = vadd.f32 0.0, %v6613
  %v6615 = vpop.f32.mrf.mxu0
  %6616 = vdwg.mxu0
  %v6617 = vmul.f32 %v6082, 0.25
  %v6618 = vmul.f32 %v6158, 0.25
  %v6619 = vmul.f32 %v6234, 0.25
  %v6620 = vmul.f32 %v6310, 0.25
  %v6621 = vmul.f32 %v6386, 0.25
  %v6622 = vmul.f32 %v6462, 0.25
  %v6623 = vmul.f32 %v6538, 0.25
  %v6624 = vmul.f32 %v6614, 0.25
  %v6625 = vsel %vm288, %v6617, -inf
  %6626 = vmax.xlane.f32.xlu0 %v6625
  %v6627 = vpop.xlane.xlu0 %6626
  %v6628 = vsel %vm288, %v6618, -inf
  %6629 = vmax.xlane.f32.xlu0 %v6628
  %v6630 = vpop.xlane.xlu0 %6629
  %v6631 = vsel %vm288, %v6619, -inf
  %6632 = vmax.xlane.f32.xlu0 %v6631
  %v6633 = vpop.xlane.xlu0 %6632
  %v6634 = vsel %vm288, %v6620, -inf
  %6635 = vmax.xlane.f32.xlu0 %v6634
  %v6636 = vpop.xlane.xlu0 %6635
  %v6637 = vsel %vm288, %v6621, -inf
  %6638 = vmax.xlane.f32.xlu0 %v6637
  %v6639 = vpop.xlane.xlu0 %6638
  %v6640 = vsel %vm288, %v6622, -inf
  %6641 = vmax.xlane.f32.xlu0 %v6640
  %v6642 = vpop.xlane.xlu0 %6641
  %v6643 = vsel %vm288, %v6623, -inf
  %6644 = vmax.xlane.f32.xlu0 %v6643
  %v6645 = vpop.xlane.xlu0 %6644
  %v6646 = vsel %vm288, %v6624, -inf
  %6647 = vmax.xlane.f32.xlu0 %v6646
  %v6648 = vpop.xlane.xlu0 %6647
  %v6649 = vsub.f32 %v6617, %v6627
  %v6650 = vsub.f32 %v6618, %v6630
  %v6651 = vsub.f32 %v6619, %v6633
  %v6652 = vsub.f32 %v6620, %v6636
  %v6653 = vsub.f32 %v6621, %v6639
  %v6654 = vsub.f32 %v6622, %v6642
  %v6655 = vsub.f32 %v6623, %v6645
  %v6656 = vsub.f32 %v6624, %v6648
  %v6657 = vmul.f32 %v6649, 1.442695
  %v6658 = vpow.pop %v6657
  %v6659 = vmul.f32 %v6650, 1.442695
  %v6660 = vpow.pop %v6659
  %v6661 = vmul.f32 %v6651, 1.442695
  %v6662 = vpow.pop %v6661
  %v6663 = vmul.f32 %v6652, 1.442695
  %v6664 = vpow.pop %v6663
  %v6665 = vmul.f32 %v6653, 1.442695
  %v6666 = vpow.pop %v6665
  %v6667 = vmul.f32 %v6654, 1.442695
  %v6668 = vpow.pop %v6667
  %v6669 = vmul.f32 %v6655, 1.442695
  %v6670 = vpow.pop %v6669
  %v6671 = vmul.f32 %v6656, 1.442695
  %v6672 = vpow.pop %v6671
  %v6673 = vsel %vm288, %v6658, 0.0
  %6674 = vadd.xlane.f32.xlu0 %v6673
  %v6675 = vpop.xlane.xlu0 %6674
  %v6676 = vsel %vm288, %v6660, 0.0
  %6677 = vadd.xlane.f32.xlu0 %v6676
  %v6678 = vpop.xlane.xlu0 %6677
  %v6679 = vsel %vm288, %v6662, 0.0
  %6680 = vadd.xlane.f32.xlu0 %v6679
  %v6681 = vpop.xlane.xlu0 %6680
  %v6682 = vsel %vm288, %v6664, 0.0
  %6683 = vadd.xlane.f32.xlu0 %v6682
  %v6684 = vpop.xlane.xlu0 %6683
  %v6685 = vsel %vm288, %v6666, 0.0
  %6686 = vadd.xlane.f32.xlu0 %v6685
  %v6687 = vpop.xlane.xlu0 %6686
  %v6688 = vsel %vm288, %v6668, 0.0
  %6689 = vadd.xlane.f32.xlu0 %v6688
  %v6690 = vpop.xlane.xlu0 %6689
  %v6691 = vsel %vm288, %v6670, 0.0
  %6692 = vadd.xlane.f32.xlu0 %v6691
  %v6693 = vpop.xlane.xlu0 %6692
  %v6694 = vsel %vm288, %v6672, 0.0
  %6695 = vadd.xlane.f32.xlu0 %v6694
  %v6696 = vpop.xlane.xlu0 %6695
  %v6697 = vrcp.pop %v6675
  %v6698 = vrcp.pop %v6678
  %v6699 = vrcp.pop %v6681
  %v6700 = vrcp.pop %v6684
  %v6701 = vrcp.pop %v6687
  %v6702 = vrcp.pop %v6690
  %v6703 = vrcp.pop %v6693
  %v6704 = vrcp.pop %v6696
  %v6705 = vmul.f32 %v6658, %v6697
  %v6706 = vmul.f32 %v6660, %v6698
  %v6707 = vmul.f32 %v6662, %v6699
  %v6708 = vmul.f32 %v6664, %v6700
  %v6709 = vmul.f32 %v6666, %v6701
  %v6710 = vmul.f32 %v6668, %v6702
  %v6711 = vmul.f32 %v6670, %v6703
  %v6712 = vmul.f32 %v6672, %v6704
  %v6714 = vsel %vm288, %v6705, 0
  %6716 = vmatprep.subr.mxu0 0.0
  %6717 = vmatpush1.msra.mxu0 0.0
  %6718 = vmatprep.subr.mxu0 0.0
  %6719 = vmatpush1.msra.mxu0 0.0
  %6720 = vmatprep.subr.mxu0 0.0
  %6721 = vmatpush1.msra.mxu0 0.0
  %6722 = vmatprep.subr.mxu0 0.0
  %6723 = vmatpush1.msra.mxu0 0.0
  %6724 = vmatprep.subr.mxu0 0.0
  %6725 = vmatpush1.msra.mxu0 0.0
  %6726 = vmatprep.subr.mxu0 0.0
  %6727 = vmatpush1.msra.mxu0 0.0
  %6728 = vmatprep.subr.mxu0 0.0
  %6729 = vmatpush1.msra.mxu0 0.0
  %6730 = vmatprep.subr.mxu0 0.0
  %6731 = vmatpush1.msra.mxu0 0.0
  %6732 = vmatprep.subr.mxu0 0.0
  %6733 = vmatpush1.msra.mxu0 0.0
  %6734 = vmatprep.subr.mxu0 0.0
  %6735 = vmatpush1.msra.mxu0 0.0
  %6736 = vmatprep.subr.mxu0 0.0
  %6737 = vmatpush1.msra.mxu0 0.0
  %6738 = vmatprep.subr.mxu0 0.0
  %6739 = vmatpush1.msra.mxu0 0.0
  %6740 = vmatprep.subr.mxu0 0.0
  %6741 = vmatpush1.msra.mxu0 0.0
  %6742 = vmatprep.subr.mxu0 0.0
  %6743 = vmatpush1.msra.mxu0 0.0
  %6744 = vmatprep.subr.mxu0 0.0
  %6745 = vmatpush1.msra.mxu0 0.0
  %6746 = vmatprep.subr.mxu0 0.0
  %6747 = vmatpush1.msra.mxu0 %v5979
  %6748 = vmatprep.subr.mxu0 0.0
  %6749 = vmatpush2.msra.mxu0 0.0
  %6750 = vmatprep.subr.mxu0 0.0
  %6751 = vmatpush2.msra.mxu0 0.0
  %6752 = vmatprep.subr.mxu0 0.0
  %6753 = vmatpush2.msra.mxu0 0.0
  %6754 = vmatprep.subr.mxu0 0.0
  %6755 = vmatpush2.msra.mxu0 0.0
  %6756 = vmatprep.subr.mxu0 0.0
  %6757 = vmatpush2.msra.mxu0 0.0
  %6758 = vmatprep.subr.mxu0 0.0
  %6759 = vmatpush2.msra.mxu0 0.0
  %6760 = vmatprep.subr.mxu0 0.0
  %6761 = vmatpush2.msra.mxu0 0.0
  %6762 = vmatprep.subr.mxu0 0.0
  %6763 = vmatpush2.msra.mxu0 0.0
  %6764 = vmatprep.subr.mxu0 0.0
  %6765 = vmatpush2.msra.mxu0 0.0
  %6766 = vmatprep.subr.mxu0 0.0
  %6767 = vmatpush2.msra.mxu0 0.0
  %6768 = vmatprep.subr.mxu0 0.0
  %6769 = vmatpush2.msra.mxu0 0.0
  %6770 = vmatprep.subr.mxu0 0.0
  %6771 = vmatpush2.msra.mxu0 0.0
  %6772 = vmatprep.subr.mxu0 0.0
  %6773 = vmatpush2.msra.mxu0 0.0
  %6774 = vmatprep.subr.mxu0 0.0
  %6775 = vmatpush2.msra.mxu0 0.0
  %6776 = vmatprep.subr.mxu0 0.0
  %6777 = vmatpush2.msra.mxu0 0.0
  %6778 = vmatprep.subr.mxu0 0.0
  %6779 = vmatpush2.msra.mxu0 0.0
  %6780 = vmatprep.mubr.f32.mxu0 0.0
  %6781 = vmatmul.mubr.f32.gmra.mxu0 %v6714
  %v6782 = vpop.f32.mrf.mxu0
  %v6783 = vadd.f32 0.0, %v6782
  %v6784 = vpop.f32.mrf.mxu0
  %6785 = vdwg.mxu0
  %v6787 = vsel %vm288, %v6706, 0
  %6789 = vmatprep.subr.mxu0 0.0
  %6790 = vmatpush1.msra.mxu0 0.0
  %6791 = vmatprep.subr.mxu0 0.0
  %6792 = vmatpush1.msra.mxu0 0.0
  %6793 = vmatprep.subr.mxu0 0.0
  %6794 = vmatpush1.msra.mxu0 0.0
  %6795 = vmatprep.subr.mxu0 0.0
  %6796 = vmatpush1.msra.mxu0 0.0
  %6797 = vmatprep.subr.mxu0 0.0
  %6798 = vmatpush1.msra.mxu0 0.0
  %6799 = vmatprep.subr.mxu0 0.0
  %6800 = vmatpush1.msra.mxu0 0.0
  %6801 = vmatprep.subr.mxu0 0.0
  %6802 = vmatpush1.msra.mxu0 0.0
  %6803 = vmatprep.subr.mxu0 0.0
  %6804 = vmatpush1.msra.mxu0 0.0
  %6805 = vmatprep.subr.mxu0 0.0
  %6806 = vmatpush1.msra.mxu0 0.0
  %6807 = vmatprep.subr.mxu0 0.0
  %6808 = vmatpush1.msra.mxu0 0.0
  %6809 = vmatprep.subr.mxu0 0.0
  %6810 = vmatpush1.msra.mxu0 0.0
  %6811 = vmatprep.subr.mxu0 0.0
  %6812 = vmatpush1.msra.mxu0 0.0
  %6813 = vmatprep.subr.mxu0 0.0
  %6814 = vmatpush1.msra.mxu0 0.0
  %6815 = vmatprep.subr.mxu0 0.0
  %6816 = vmatpush1.msra.mxu0 0.0
  %6817 = vmatprep.subr.mxu0 0.0
  %6818 = vmatpush1.msra.mxu0 0.0
  %6819 = vmatprep.subr.mxu0 0.0
  %6820 = vmatpush1.msra.mxu0 %v5982
  %6821 = vmatprep.subr.mxu0 0.0
  %6822 = vmatpush2.msra.mxu0 0.0
  %6823 = vmatprep.subr.mxu0 0.0
  %6824 = vmatpush2.msra.mxu0 0.0
  %6825 = vmatprep.subr.mxu0 0.0
  %6826 = vmatpush2.msra.mxu0 0.0
  %6827 = vmatprep.subr.mxu0 0.0
  %6828 = vmatpush2.msra.mxu0 0.0
  %6829 = vmatprep.subr.mxu0 0.0
  %6830 = vmatpush2.msra.mxu0 0.0
  %6831 = vmatprep.subr.mxu0 0.0
  %6832 = vmatpush2.msra.mxu0 0.0
  %6833 = vmatprep.subr.mxu0 0.0
  %6834 = vmatpush2.msra.mxu0 0.0
  %6835 = vmatprep.subr.mxu0 0.0
  %6836 = vmatpush2.msra.mxu0 0.0
  %6837 = vmatprep.subr.mxu0 0.0
  %6838 = vmatpush2.msra.mxu0 0.0
  %6839 = vmatprep.subr.mxu0 0.0
  %6840 = vmatpush2.msra.mxu0 0.0
  %6841 = vmatprep.subr.mxu0 0.0
  %6842 = vmatpush2.msra.mxu0 0.0
  %6843 = vmatprep.subr.mxu0 0.0
  %6844 = vmatpush2.msra.mxu0 0.0
  %6845 = vmatprep.subr.mxu0 0.0
  %6846 = vmatpush2.msra.mxu0 0.0
  %6847 = vmatprep.subr.mxu0 0.0
  %6848 = vmatpush2.msra.mxu0 0.0
  %6849 = vmatprep.subr.mxu0 0.0
  %6850 = vmatpush2.msra.mxu0 0.0
  %6851 = vmatprep.subr.mxu0 0.0
  %6852 = vmatpush2.msra.mxu0 0.0
  %6853 = vmatprep.mubr.f32.mxu0 0.0
  %6854 = vmatmul.mubr.f32.gmra.mxu0 %v6787
  %v6855 = vpop.f32.mrf.mxu0
  %v6856 = vadd.f32 0.0, %v6855
  %v6857 = vpop.f32.mrf.mxu0
  %6858 = vdwg.mxu0
  %v6860 = vsel %vm288, %v6707, 0
  %6862 = vmatprep.subr.mxu0 0.0
  %6863 = vmatpush1.msra.mxu0 0.0
  %6864 = vmatprep.subr.mxu0 0.0
  %6865 = vmatpush1.msra.mxu0 0.0
  %6866 = vmatprep.subr.mxu0 0.0
  %6867 = vmatpush1.msra.mxu0 0.0
  %6868 = vmatprep.subr.mxu0 0.0
  %6869 = vmatpush1.msra.mxu0 0.0
  %6870 = vmatprep.subr.mxu0 0.0
  %6871 = vmatpush1.msra.mxu0 0.0
  %6872 = vmatprep.subr.mxu0 0.0
  %6873 = vmatpush1.msra.mxu0 0.0
  %6874 = vmatprep.subr.mxu0 0.0
  %6875 = vmatpush1.msra.mxu0 0.0
  %6876 = vmatprep.subr.mxu0 0.0
  %6877 = vmatpush1.msra.mxu0 0.0
  %6878 = vmatprep.subr.mxu0 0.0
  %6879 = vmatpush1.msra.mxu0 0.0
  %6880 = vmatprep.subr.mxu0 0.0
  %6881 = vmatpush1.msra.mxu0 0.0
  %6882 = vmatprep.subr.mxu0 0.0
  %6883 = vmatpush1.msra.mxu0 0.0
  %6884 = vmatprep.subr.mxu0 0.0
  %6885 = vmatpush1.msra.mxu0 0.0
  %6886 = vmatprep.subr.mxu0 0.0
  %6887 = vmatpush1.msra.mxu0 0.0
  %6888 = vmatprep.subr.mxu0 0.0
  %6889 = vmatpush1.msra.mxu0 0.0
  %6890 = vmatprep.subr.mxu0 0.0
  %6891 = vmatpush1.msra.mxu0 0.0
  %6892 = vmatprep.subr.mxu0 0.0
  %6893 = vmatpush1.msra.mxu0 %v5987
  %6894 = vmatprep.subr.mxu0 0.0
  %6895 = vmatpush2.msra.mxu0 0.0
  %6896 = vmatprep.subr.mxu0 0.0
  %6897 = vmatpush2.msra.mxu0 0.0
  %6898 = vmatprep.subr.mxu0 0.0
  %6899 = vmatpush2.msra.mxu0 0.0
  %6900 = vmatprep.subr.mxu0 0.0
  %6901 = vmatpush2.msra.mxu0 0.0
  %6902 = vmatprep.subr.mxu0 0.0
  %6903 = vmatpush2.msra.mxu0 0.0
  %6904 = vmatprep.subr.mxu0 0.0
  %6905 = vmatpush2.msra.mxu0 0.0
  %6906 = vmatprep.subr.mxu0 0.0
  %6907 = vmatpush2.msra.mxu0 0.0
  %6908 = vmatprep.subr.mxu0 0.0
  %6909 = vmatpush2.msra.mxu0 0.0
  %6910 = vmatprep.subr.mxu0 0.0
  %6911 = vmatpush2.msra.mxu0 0.0
  %6912 = vmatprep.subr.mxu0 0.0
  %6913 = vmatpush2.msra.mxu0 0.0
  %6914 = vmatprep.subr.mxu0 0.0
  %6915 = vmatpush2.msra.mxu0 0.0
  %6916 = vmatprep.subr.mxu0 0.0
  %6917 = vmatpush2.msra.mxu0 0.0
  %6918 = vmatprep.subr.mxu0 0.0
  %6919 = vmatpush2.msra.mxu0 0.0
  %6920 = vmatprep.subr.mxu0 0.0
  %6921 = vmatpush2.msra.mxu0 0.0
  %6922 = vmatprep.subr.mxu0 0.0
  %6923 = vmatpush2.msra.mxu0 0.0
  %6924 = vmatprep.subr.mxu0 0.0
  %6925 = vmatpush2.msra.mxu0 0.0
  %6926 = vmatprep.mubr.f32.mxu0 0.0
  %6927 = vmatmul.mubr.f32.gmra.mxu0 %v6860
  %v6928 = vpop.f32.mrf.mxu0
  %v6929 = vadd.f32 0.0, %v6928
  %v6930 = vpop.f32.mrf.mxu0
  %6931 = vdwg.mxu0
  %v6933 = vsel %vm288, %v6708, 0
  %6935 = vmatprep.subr.mxu0 0.0
  %6936 = vmatpush1.msra.mxu0 0.0
  %6937 = vmatprep.subr.mxu0 0.0
  %6938 = vmatpush1.msra.mxu0 0.0
  %6939 = vmatprep.subr.mxu0 0.0
  %6940 = vmatpush1.msra.mxu0 0.0
  %6941 = vmatprep.subr.mxu0 0.0
  %6942 = vmatpush1.msra.mxu0 0.0
  %6943 = vmatprep.subr.mxu0 0.0
  %6944 = vmatpush1.msra.mxu0 0.0
  %6945 = vmatprep.subr.mxu0 0.0
  %6946 = vmatpush1.msra.mxu0 0.0
  %6947 = vmatprep.subr.mxu0 0.0
  %6948 = vmatpush1.msra.mxu0 0.0
  %6949 = vmatprep.subr.mxu0 0.0
  %6950 = vmatpush1.msra.mxu0 0.0
  %6951 = vmatprep.subr.mxu0 0.0
  %6952 = vmatpush1.msra.mxu0 0.0
  %6953 = vmatprep.subr.mxu0 0.0
  %6954 = vmatpush1.msra.mxu0 0.0
  %6955 = vmatprep.subr.mxu0 0.0
  %6956 = vmatpush1.msra.mxu0 0.0
  %6957 = vmatprep.subr.mxu0 0.0
  %6958 = vmatpush1.msra.mxu0 0.0
  %6959 = vmatprep.subr.mxu0 0.0
  %6960 = vmatpush1.msra.mxu0 0.0
  %6961 = vmatprep.subr.mxu0 0.0
  %6962 = vmatpush1.msra.mxu0 0.0
  %6963 = vmatprep.subr.mxu0 0.0
  %6964 = vmatpush1.msra.mxu0 0.0
  %6965 = vmatprep.subr.mxu0 0.0
  %6966 = vmatpush1.msra.mxu0 %v5990
  %6967 = vmatprep.subr.mxu0 0.0
  %6968 = vmatpush2.msra.mxu0 0.0
  %6969 = vmatprep.subr.mxu0 0.0
  %6970 = vmatpush2.msra.mxu0 0.0
  %6971 = vmatprep.subr.mxu0 0.0
  %6972 = vmatpush2.msra.mxu0 0.0
  %6973 = vmatprep.subr.mxu0 0.0
  %6974 = vmatpush2.msra.mxu0 0.0
  %6975 = vmatprep.subr.mxu0 0.0
  %6976 = vmatpush2.msra.mxu0 0.0
  %6977 = vmatprep.subr.mxu0 0.0
  %6978 = vmatpush2.msra.mxu0 0.0
  %6979 = vmatprep.subr.mxu0 0.0
  %6980 = vmatpush2.msra.mxu0 0.0
  %6981 = vmatprep.subr.mxu0 0.0
  %6982 = vmatpush2.msra.mxu0 0.0
  %6983 = vmatprep.subr.mxu0 0.0
  %6984 = vmatpush2.msra.mxu0 0.0
  %6985 = vmatprep.subr.mxu0 0.0
  %6986 = vmatpush2.msra.mxu0 0.0
  %6987 = vmatprep.subr.mxu0 0.0
  %6988 = vmatpush2.msra.mxu0 0.0
  %6989 = vmatprep.subr.mxu0 0.0
  %6990 = vmatpush2.msra.mxu0 0.0
  %6991 = vmatprep.subr.mxu0 0.0
  %6992 = vmatpush2.msra.mxu0 0.0
  %6993 = vmatprep.subr.mxu0 0.0
  %6994 = vmatpush2.msra.mxu0 0.0
  %6995 = vmatprep.subr.mxu0 0.0
  %6996 = vmatpush2.msra.mxu0 0.0
  %6997 = vmatprep.subr.mxu0 0.0
  %6998 = vmatpush2.msra.mxu0 0.0
  %6999 = vmatprep.mubr.f32.mxu0 0.0
  %7000 = vmatmul.mubr.f32.gmra.mxu0 %v6933
  %v7001 = vpop.f32.mrf.mxu0
  %v7002 = vadd.f32 0.0, %v7001
  %v7003 = vpop.f32.mrf.mxu0
  %7004 = vdwg.mxu0
  %v7006 = vsel %vm288, %v6709, 0
  %7008 = vmatprep.subr.mxu0 0.0
  %7009 = vmatpush1.msra.mxu0 0.0
  %7010 = vmatprep.subr.mxu0 0.0
  %7011 = vmatpush1.msra.mxu0 0.0
  %7012 = vmatprep.subr.mxu0 0.0
  %7013 = vmatpush1.msra.mxu0 0.0
  %7014 = vmatprep.subr.mxu0 0.0
  %7015 = vmatpush1.msra.mxu0 0.0
  %7016 = vmatprep.subr.mxu0 0.0
  %7017 = vmatpush1.msra.mxu0 0.0
  %7018 = vmatprep.subr.mxu0 0.0
  %7019 = vmatpush1.msra.mxu0 0.0
  %7020 = vmatprep.subr.mxu0 0.0
  %7021 = vmatpush1.msra.mxu0 0.0
  %7022 = vmatprep.subr.mxu0 0.0
  %7023 = vmatpush1.msra.mxu0 0.0
  %7024 = vmatprep.subr.mxu0 0.0
  %7025 = vmatpush1.msra.mxu0 0.0
  %7026 = vmatprep.subr.mxu0 0.0
  %7027 = vmatpush1.msra.mxu0 0.0
  %7028 = vmatprep.subr.mxu0 0.0
  %7029 = vmatpush1.msra.mxu0 0.0
  %7030 = vmatprep.subr.mxu0 0.0
  %7031 = vmatpush1.msra.mxu0 0.0
  %7032 = vmatprep.subr.mxu0 0.0
  %7033 = vmatpush1.msra.mxu0 0.0
  %7034 = vmatprep.subr.mxu0 0.0
  %7035 = vmatpush1.msra.mxu0 0.0
  %7036 = vmatprep.subr.mxu0 0.0
  %7037 = vmatpush1.msra.mxu0 0.0
  %7038 = vmatprep.subr.mxu0 0.0
  %7039 = vmatpush1.msra.mxu0 %v5995
  %7040 = vmatprep.subr.mxu0 0.0
  %7041 = vmatpush2.msra.mxu0 0.0
  %7042 = vmatprep.subr.mxu0 0.0
  %7043 = vmatpush2.msra.mxu0 0.0
  %7044 = vmatprep.subr.mxu0 0.0
  %7045 = vmatpush2.msra.mxu0 0.0
  %7046 = vmatprep.subr.mxu0 0.0
  %7047 = vmatpush2.msra.mxu0 0.0
  %7048 = vmatprep.subr.mxu0 0.0
  %7049 = vmatpush2.msra.mxu0 0.0
  %7050 = vmatprep.subr.mxu0 0.0
  %7051 = vmatpush2.msra.mxu0 0.0
  %7052 = vmatprep.subr.mxu0 0.0
  %7053 = vmatpush2.msra.mxu0 0.0
  %7054 = vmatprep.subr.mxu0 0.0
  %7055 = vmatpush2.msra.mxu0 0.0
  %7056 = vmatprep.subr.mxu0 0.0
  %7057 = vmatpush2.msra.mxu0 0.0
  %7058 = vmatprep.subr.mxu0 0.0
  %7059 = vmatpush2.msra.mxu0 0.0
  %7060 = vmatprep.subr.mxu0 0.0
  %7061 = vmatpush2.msra.mxu0 0.0
  %7062 = vmatprep.subr.mxu0 0.0
  %7063 = vmatpush2.msra.mxu0 0.0
  %7064 = vmatprep.subr.mxu0 0.0
  %7065 = vmatpush2.msra.mxu0 0.0
  %7066 = vmatprep.subr.mxu0 0.0
  %7067 = vmatpush2.msra.mxu0 0.0
  %7068 = vmatprep.subr.mxu0 0.0
  %7069 = vmatpush2.msra.mxu0 0.0
  %7070 = vmatprep.subr.mxu0 0.0
  %7071 = vmatpush2.msra.mxu0 0.0
  %7072 = vmatprep.mubr.f32.mxu0 0.0
  %7073 = vmatmul.mubr.f32.gmra.mxu0 %v7006
  %v7074 = vpop.f32.mrf.mxu0
  %v7075 = vadd.f32 0.0, %v7074
  %v7076 = vpop.f32.mrf.mxu0
  %7077 = vdwg.mxu0
  %v7079 = vsel %vm288, %v6710, 0
  %7081 = vmatprep.subr.mxu0 0.0
  %7082 = vmatpush1.msra.mxu0 0.0
  %7083 = vmatprep.subr.mxu0 0.0
  %7084 = vmatpush1.msra.mxu0 0.0
  %7085 = vmatprep.subr.mxu0 0.0
  %7086 = vmatpush1.msra.mxu0 0.0
  %7087 = vmatprep.subr.mxu0 0.0
  %7088 = vmatpush1.msra.mxu0 0.0
  %7089 = vmatprep.subr.mxu0 0.0
  %7090 = vmatpush1.msra.mxu0 0.0
  %7091 = vmatprep.subr.mxu0 0.0
  %7092 = vmatpush1.msra.mxu0 0.0
  %7093 = vmatprep.subr.mxu0 0.0
  %7094 = vmatpush1.msra.mxu0 0.0
  %7095 = vmatprep.subr.mxu0 0.0
  %7096 = vmatpush1.msra.mxu0 0.0
  %7097 = vmatprep.subr.mxu0 0.0
  %7098 = vmatpush1.msra.mxu0 0.0
  %7099 = vmatprep.subr.mxu0 0.0
  %7100 = vmatpush1.msra.mxu0 0.0
  %7101 = vmatprep.subr.mxu0 0.0
  %7102 = vmatpush1.msra.mxu0 0.0
  %7103 = vmatprep.subr.mxu0 0.0
  %7104 = vmatpush1.msra.mxu0 0.0
  %7105 = vmatprep.subr.mxu0 0.0
  %7106 = vmatpush1.msra.mxu0 0.0
  %7107 = vmatprep.subr.mxu0 0.0
  %7108 = vmatpush1.msra.mxu0 0.0
  %7109 = vmatprep.subr.mxu0 0.0
  %7110 = vmatpush1.msra.mxu0 0.0
  %7111 = vmatprep.subr.mxu0 0.0
  %7112 = vmatpush1.msra.mxu0 %v5998
  %7113 = vmatprep.subr.mxu0 0.0
  %7114 = vmatpush2.msra.mxu0 0.0
  %7115 = vmatprep.subr.mxu0 0.0
  %7116 = vmatpush2.msra.mxu0 0.0
  %7117 = vmatprep.subr.mxu0 0.0
  %7118 = vmatpush2.msra.mxu0 0.0
  %7119 = vmatprep.subr.mxu0 0.0
  %7120 = vmatpush2.msra.mxu0 0.0
  %7121 = vmatprep.subr.mxu0 0.0
  %7122 = vmatpush2.msra.mxu0 0.0
  %7123 = vmatprep.subr.mxu0 0.0
  %7124 = vmatpush2.msra.mxu0 0.0
  %7125 = vmatprep.subr.mxu0 0.0
  %7126 = vmatpush2.msra.mxu0 0.0
  %7127 = vmatprep.subr.mxu0 0.0
  %7128 = vmatpush2.msra.mxu0 0.0
  %7129 = vmatprep.subr.mxu0 0.0
  %7130 = vmatpush2.msra.mxu0 0.0
  %7131 = vmatprep.subr.mxu0 0.0
  %7132 = vmatpush2.msra.mxu0 0.0
  %7133 = vmatprep.subr.mxu0 0.0
  %7134 = vmatpush2.msra.mxu0 0.0
  %7135 = vmatprep.subr.mxu0 0.0
  %7136 = vmatpush2.msra.mxu0 0.0
  %7137 = vmatprep.subr.mxu0 0.0
  %7138 = vmatpush2.msra.mxu0 0.0
  %7139 = vmatprep.subr.mxu0 0.0
  %7140 = vmatpush2.msra.mxu0 0.0
  %7141 = vmatprep.subr.mxu0 0.0
  %7142 = vmatpush2.msra.mxu0 0.0
  %7143 = vmatprep.subr.mxu0 0.0
  %7144 = vmatpush2.msra.mxu0 0.0
  %7145 = vmatprep.mubr.f32.mxu0 0.0
  %7146 = vmatmul.mubr.f32.gmra.mxu0 %v7079
  %v7147 = vpop.f32.mrf.mxu0
  %v7148 = vadd.f32 0.0, %v7147
  %v7149 = vpop.f32.mrf.mxu0
  %7150 = vdwg.mxu0
  %v7152 = vsel %vm288, %v6711, 0
  %7154 = vmatprep.subr.mxu0 0.0
  %7155 = vmatpush1.msra.mxu0 0.0
  %7156 = vmatprep.subr.mxu0 0.0
  %7157 = vmatpush1.msra.mxu0 0.0
  %7158 = vmatprep.subr.mxu0 0.0
  %7159 = vmatpush1.msra.mxu0 0.0
  %7160 = vmatprep.subr.mxu0 0.0
  %7161 = vmatpush1.msra.mxu0 0.0
  %7162 = vmatprep.subr.mxu0 0.0
  %7163 = vmatpush1.msra.mxu0 0.0
  %7164 = vmatprep.subr.mxu0 0.0
  %7165 = vmatpush1.msra.mxu0 0.0
  %7166 = vmatprep.subr.mxu0 0.0
  %7167 = vmatpush1.msra.mxu0 0.0
  %7168 = vmatprep.subr.mxu0 0.0
  %7169 = vmatpush1.msra.mxu0 0.0
  %7170 = vmatprep.subr.mxu0 0.0
  %7171 = vmatpush1.msra.mxu0 0.0
  %7172 = vmatprep.subr.mxu0 0.0
  %7173 = vmatpush1.msra.mxu0 0.0
  %7174 = vmatprep.subr.mxu0 0.0
  %7175 = vmatpush1.msra.mxu0 0.0
  %7176 = vmatprep.subr.mxu0 0.0
  %7177 = vmatpush1.msra.mxu0 0.0
  %7178 = vmatprep.subr.mxu0 0.0
  %7179 = vmatpush1.msra.mxu0 0.0
  %7180 = vmatprep.subr.mxu0 0.0
  %7181 = vmatpush1.msra.mxu0 0.0
  %7182 = vmatprep.subr.mxu0 0.0
  %7183 = vmatpush1.msra.mxu0 0.0
  %7184 = vmatprep.subr.mxu0 0.0
  %7185 = vmatpush1.msra.mxu0 %v6003
  %7186 = vmatprep.subr.mxu0 0.0
  %7187 = vmatpush2.msra.mxu0 0.0
  %7188 = vmatprep.subr.mxu0 0.0
  %7189 = vmatpush2.msra.mxu0 0.0
  %7190 = vmatprep.subr.mxu0 0.0
  %7191 = vmatpush2.msra.mxu0 0.0
  %7192 = vmatprep.subr.mxu0 0.0
  %7193 = vmatpush2.msra.mxu0 0.0
  %7194 = vmatprep.subr.mxu0 0.0
  %7195 = vmatpush2.msra.mxu0 0.0
  %7196 = vmatprep.subr.mxu0 0.0
  %7197 = vmatpush2.msra.mxu0 0.0
  %7198 = vmatprep.subr.mxu0 0.0
  %7199 = vmatpush2.msra.mxu0 0.0
  %7200 = vmatprep.subr.mxu0 0.0
  %7201 = vmatpush2.msra.mxu0 0.0
  %7202 = vmatprep.subr.mxu0 0.0
  %7203 = vmatpush2.msra.mxu0 0.0
  %7204 = vmatprep.subr.mxu0 0.0
  %7205 = vmatpush2.msra.mxu0 0.0
  %7206 = vmatprep.subr.mxu0 0.0
  %7207 = vmatpush2.msra.mxu0 0.0
  %7208 = vmatprep.subr.mxu0 0.0
  %7209 = vmatpush2.msra.mxu0 0.0
  %7210 = vmatprep.subr.mxu0 0.0
  %7211 = vmatpush2.msra.mxu0 0.0
  %7212 = vmatprep.subr.mxu0 0.0
  %7213 = vmatpush2.msra.mxu0 0.0
  %7214 = vmatprep.subr.mxu0 0.0
  %7215 = vmatpush2.msra.mxu0 0.0
  %7216 = vmatprep.subr.mxu0 0.0
  %7217 = vmatpush2.msra.mxu0 0.0
  %7218 = vmatprep.mubr.f32.mxu0 0.0
  %7219 = vmatmul.mubr.f32.gmra.mxu0 %v7152
  %v7220 = vpop.f32.mrf.mxu0
  %v7221 = vadd.f32 0.0, %v7220
  %v7222 = vpop.f32.mrf.mxu0
  %7223 = vdwg.mxu0
  %v7225 = vsel %vm288, %v6712, 0
  %7227 = vmatprep.subr.mxu0 0.0
  %7228 = vmatpush1.msra.mxu0 0.0
  %7229 = vmatprep.subr.mxu0 0.0
  %7230 = vmatpush1.msra.mxu0 0.0
  %7231 = vmatprep.subr.mxu0 0.0
  %7232 = vmatpush1.msra.mxu0 0.0
  %7233 = vmatprep.subr.mxu0 0.0
  %7234 = vmatpush1.msra.mxu0 0.0
  %7235 = vmatprep.subr.mxu0 0.0
  %7236 = vmatpush1.msra.mxu0 0.0
  %7237 = vmatprep.subr.mxu0 0.0
  %7238 = vmatpush1.msra.mxu0 0.0
  %7239 = vmatprep.subr.mxu0 0.0
  %7240 = vmatpush1.msra.mxu0 0.0
  %7241 = vmatprep.subr.mxu0 0.0
  %7242 = vmatpush1.msra.mxu0 0.0
  %7243 = vmatprep.subr.mxu0 0.0
  %7244 = vmatpush1.msra.mxu0 0.0
  %7245 = vmatprep.subr.mxu0 0.0
  %7246 = vmatpush1.msra.mxu0 0.0
  %7247 = vmatprep.subr.mxu0 0.0
  %7248 = vmatpush1.msra.mxu0 0.0
  %7249 = vmatprep.subr.mxu0 0.0
  %7250 = vmatpush1.msra.mxu0 0.0
  %7251 = vmatprep.subr.mxu0 0.0
  %7252 = vmatpush1.msra.mxu0 0.0
  %7253 = vmatprep.subr.mxu0 0.0
  %7254 = vmatpush1.msra.mxu0 0.0
  %7255 = vmatprep.subr.mxu0 0.0
  %7256 = vmatpush1.msra.mxu0 0.0
  %7257 = vmatprep.subr.mxu0 0.0
  %7258 = vmatpush1.msra.mxu0 %v6006
  %7259 = vmatprep.subr.mxu0 0.0
  %7260 = vmatpush2.msra.mxu0 0.0
  %7261 = vmatprep.subr.mxu0 0.0
  %7262 = vmatpush2.msra.mxu0 0.0
  %7263 = vmatprep.subr.mxu0 0.0
  %7264 = vmatpush2.msra.mxu0 0.0
  %7265 = vmatprep.subr.mxu0 0.0
  %7266 = vmatpush2.msra.mxu0 0.0
  %7267 = vmatprep.subr.mxu0 0.0
  %7268 = vmatpush2.msra.mxu0 0.0
  %7269 = vmatprep.subr.mxu0 0.0
  %7270 = vmatpush2.msra.mxu0 0.0
  %7271 = vmatprep.subr.mxu0 0.0
  %7272 = vmatpush2.msra.mxu0 0.0
  %7273 = vmatprep.subr.mxu0 0.0
  %7274 = vmatpush2.msra.mxu0 0.0
  %7275 = vmatprep.subr.mxu0 0.0
  %7276 = vmatpush2.msra.mxu0 0.0
  %7277 = vmatprep.subr.mxu0 0.0
  %7278 = vmatpush2.msra.mxu0 0.0
  %7279 = vmatprep.subr.mxu0 0.0
  %7280 = vmatpush2.msra.mxu0 0.0
  %7281 = vmatprep.subr.mxu0 0.0
  %7282 = vmatpush2.msra.mxu0 0.0
  %7283 = vmatprep.subr.mxu0 0.0
  %7284 = vmatpush2.msra.mxu0 0.0
  %7285 = vmatprep.subr.mxu0 0.0
  %7286 = vmatpush2.msra.mxu0 0.0
  %7287 = vmatprep.subr.mxu0 0.0
  %7288 = vmatpush2.msra.mxu0 0.0
  %7289 = vmatprep.subr.mxu0 0.0
  %7290 = vmatpush2.msra.mxu0 0.0
  %7291 = vmatprep.mubr.f32.mxu0 0.0
  %7292 = vmatmul.mubr.f32.gmra.mxu0 %v7225
  %v7293 = vpop.f32.mrf.mxu0
  %v7294 = vadd.f32 0.0, %v7293
  %v7295 = vpop.f32.mrf.mxu0
  %7296 = vdwg.mxu0
  %v7297 = vpack.c.bf16 %v6856, %v6783
  %v7298 = vpack.c.bf16 %v7002, %v6929
  %v7299 = vpack.c.bf16 %v7148, %v7075
  %v7300 = vpack.c.bf16 %v7294, %v7221
  %s7301 = scalar_lea.vmem %s7, 24
  %v7302 = vld [vmem:[%s7301] sm:$0xf]
  %v7303 = vld [vmem:[%s7301 + $0x4] sm:$0xf]
  %v7306 = vunpack.c.l.b16 %v7302
  %v7307 = vunpack.c.l.b16 %v7303
  %v7308 = vpack.c.b16 %v7307, %v7306
  %v7311 = vsel %vm686, %v7297, 0
  %v7314 = vsel %vm686, %v7298, 0
  %v7317 = vsel %vm686, %v7299, 0
  %v7320 = vsel %vm686, %v7300, 0
  %7322 = vmatprep.subr.bf16.mxu0 0
  %7323 = vmatpush1.bf16.msra.mxu0 0
  %7324 = vmatprep.subr.bf16.mxu0 0
  %7325 = vmatpush1.bf16.msra.mxu0 0
  %7326 = vmatprep.subr.bf16.mxu0 0
  %7327 = vmatpush1.bf16.msra.mxu0 0
  %7328 = vmatprep.subr.bf16.mxu0 0
  %7329 = vmatpush1.bf16.msra.mxu0 0
  %7330 = vmatprep.subr.bf16.mxu0 0
  %7331 = vmatpush1.bf16.msra.mxu0 0
  %7332 = vmatprep.subr.bf16.mxu0 0
  %7333 = vmatpush1.bf16.msra.mxu0 0
  %7334 = vmatprep.subr.bf16.mxu0 0
  %7335 = vmatpush1.bf16.msra.mxu0 0
  %7336 = vmatprep.subr.bf16.mxu0 0
  %7337 = vmatpush1.bf16.msra.mxu0 %v7308
  %7338 = vmatprep.subr.bf16.mxu0 0
  %7339 = vmatpush2.bf16.msra.mxu0 0
  %7340 = vmatprep.subr.bf16.mxu0 0
  %7341 = vmatpush2.bf16.msra.mxu0 0
  %7342 = vmatprep.subr.bf16.mxu0 0
  %7343 = vmatpush2.bf16.msra.mxu0 0
  %7344 = vmatprep.subr.bf16.mxu0 0
  %7345 = vmatpush2.bf16.msra.mxu0 0
  %7346 = vmatprep.subr.bf16.mxu0 0
  %7347 = vmatpush2.bf16.msra.mxu0 0
  %7348 = vmatprep.subr.bf16.mxu0 0
  %7349 = vmatpush2.bf16.msra.mxu0 0
  %7350 = vmatprep.subr.bf16.mxu0 0
  %7351 = vmatpush2.bf16.msra.mxu0 0
  %7352 = vmatprep.subr.bf16.mxu0 0
  %7353 = vmatpush2.bf16.msra.mxu0 0
  %7354 = vmatprep.mubr.bf16.mxu0 0
  %7355 = vmatmul.mubr.bf16.gmra.mxu0 %v7311
  %v7356 = vpop.f32.mrf.mxu0
  %v7357 = vadd.f32 0.0, %v7356
  %v7358 = vpop.f32.mrf.mxu0
  %v7359 = vpop.f32.mrf.mxu0
  %v7360 = vadd.f32 0.0, %v7359
  %v7361 = vpop.f32.mrf.mxu0
  %7362 = vmatprep.mubr.bf16.mxu0 0
  %7363 = vmatmul.mubr.bf16.gmra.mxu0 %v7314
  %v7364 = vpop.f32.mrf.mxu0
  %v7365 = vadd.f32 0.0, %v7364
  %v7366 = vpop.f32.mrf.mxu0
  %v7367 = vpop.f32.mrf.mxu0
  %v7368 = vadd.f32 0.0, %v7367
  %v7369 = vpop.f32.mrf.mxu0
  %7370 = vmatprep.mubr.bf16.mxu0 0
  %7371 = vmatmul.mubr.bf16.gmra.mxu0 %v7317
  %v7372 = vpop.f32.mrf.mxu0
  %v7373 = vadd.f32 0.0, %v7372
  %v7374 = vpop.f32.mrf.mxu0
  %v7375 = vpop.f32.mrf.mxu0
  %v7376 = vadd.f32 0.0, %v7375
  %v7377 = vpop.f32.mrf.mxu0
  %7378 = vmatprep.mubr.bf16.mxu0 0
  %7379 = vmatmul.mubr.bf16.gmra.mxu0 %v7320
  %v7380 = vpop.f32.mrf.mxu0
  %v7381 = vadd.f32 0.0, %v7380
  %v7382 = vpop.f32.mrf.mxu0
  %v7383 = vpop.f32.mrf.mxu0
  %v7384 = vadd.f32 0.0, %v7383
  %v7385 = vpop.f32.mrf.mxu0
  %7386 = vdwg.mxu0
  %v7389 = vunpack.c.l.b16 %v5761
  %v7390 = vunpack.c.l.b16 %v5762
  %v7391 = vpack.c.b16 %v7390, %v7389
  %v7394 = vsel %vm686, %v5756, 0
  %v7397 = vsel %vm686, %v5757, 0
  %v7400 = vsel %vm686, %v5758, 0
  %v7403 = vsel %vm686, %v5759, 0
  %7405 = vmatprep.subr.bf16.mxu0 0
  %7406 = vmatpush1.bf16.msra.mxu0 0
  %7407 = vmatprep.subr.bf16.mxu0 0
  %7408 = vmatpush1.bf16.msra.mxu0 0
  %7409 = vmatprep.subr.bf16.mxu0 0
  %7410 = vmatpush1.bf16.msra.mxu0 0
  %7411 = vmatprep.subr.bf16.mxu0 0
  %7412 = vmatpush1.bf16.msra.mxu0 0
  %7413 = vmatprep.subr.bf16.mxu0 0
  %7414 = vmatpush1.bf16.msra.mxu0 0
  %7415 = vmatprep.subr.bf16.mxu0 0
  %7416 = vmatpush1.bf16.msra.mxu0 0
  %7417 = vmatprep.subr.bf16.mxu0 0
  %7418 = vmatpush1.bf16.msra.mxu0 0
  %7419 = vmatprep.subr.bf16.mxu0 0
  %7420 = vmatpush1.bf16.msra.mxu0 %v7391
  %7421 = vmatprep.subr.bf16.mxu0 0
  %7422 = vmatpush2.bf16.msra.mxu0 0
  %7423 = vmatprep.subr.bf16.mxu0 0
  %7424 = vmatpush2.bf16.msra.mxu0 0
  %7425 = vmatprep.subr.bf16.mxu0 0
  %7426 = vmatpush2.bf16.msra.mxu0 0
  %7427 = vmatprep.subr.bf16.mxu0 0
  %7428 = vmatpush2.bf16.msra.mxu0 0
  %7429 = vmatprep.subr.bf16.mxu0 0
  %7430 = vmatpush2.bf16.msra.mxu0 0
  %7431 = vmatprep.subr.bf16.mxu0 0
  %7432 = vmatpush2.bf16.msra.mxu0 0
  %7433 = vmatprep.subr.bf16.mxu0 0
  %7434 = vmatpush2.bf16.msra.mxu0 0
  %7435 = vmatprep.subr.bf16.mxu0 0
  %7436 = vmatpush2.bf16.msra.mxu0 0
  %7437 = vmatprep.mubr.bf16.mxu0 0
  %7438 = vmatmul.mubr.bf16.gmra.mxu0 %v7394
  %v7439 = vpop.f32.mrf.mxu0
  %v7440 = vadd.f32 %v7357, %v7439
  %v7441 = vpop.f32.mrf.mxu0
  %v7442 = vpop.f32.mrf.mxu0
  %v7443 = vadd.f32 %v7360, %v7442
  %v7444 = vpop.f32.mrf.mxu0
  %7445 = vmatprep.mubr.bf16.mxu0 0
  %7446 = vmatmul.mubr.bf16.gmra.mxu0 %v7397
  %v7447 = vpop.f32.mrf.mxu0
  %v7448 = vadd.f32 %v7365, %v7447
  %v7449 = vpop.f32.mrf.mxu0
  %v7450 = vpop.f32.mrf.mxu0
  %v7451 = vadd.f32 %v7368, %v7450
  %v7452 = vpop.f32.mrf.mxu0
  %7453 = vmatprep.mubr.bf16.mxu0 0
  %7454 = vmatmul.mubr.bf16.gmra.mxu0 %v7400
  %v7455 = vpop.f32.mrf.mxu0
  %v7456 = vadd.f32 %v7373, %v7455
  %v7457 = vpop.f32.mrf.mxu0
  %v7458 = vpop.f32.mrf.mxu0
  %v7459 = vadd.f32 %v7376, %v7458
  %v7460 = vpop.f32.mrf.mxu0
  %7461 = vmatprep.mubr.bf16.mxu0 0
  %7462 = vmatmul.mubr.bf16.gmra.mxu0 %v7403
  %v7463 = vpop.f32.mrf.mxu0
  %v7464 = vadd.f32 %v7381, %v7463
  %v7465 = vpop.f32.mrf.mxu0
  %v7466 = vpop.f32.mrf.mxu0
  %v7467 = vadd.f32 %v7384, %v7466
  %v7468 = vpop.f32.mrf.mxu0
  %7469 = vdwg.mxu0
  %v7470 = vadd.f32 %v4198, %v7440
  %v7471 = vadd.f32 %v4199, %v7443
  %v7472 = vadd.f32 %v4200, %v7448
  %v7473 = vadd.f32 %v4201, %v7451
  %v7474 = vadd.f32 %v4202, %v7456
  %v7475 = vadd.f32 %v4203, %v7459
  %v7476 = vadd.f32 %v4204, %v7464
  %v7477 = vadd.f32 %v4205, %v7467
  %s7478 = scalar_lea.vmem %s8, 1
  %v7479 = vld [vmem:[%s7478] sm:$0x1]
  %s7480 = scalar_lea.vmem %s9, 1
  %v7481 = vld [vmem:[%s7480] sm:$0x1]
  %v7482 = vsel %vm446, %v7470, 0.0
  %7483 = vadd.xlane.f32.xlu0 %v7482
  %v7484 = vpop.xlane.xlu0 %7483
  %v7485 = vsel %vm446, %v7471, 0.0
  %7486 = vadd.xlane.f32.xlu0 %v7485
  %v7487 = vpop.xlane.xlu0 %7486
  %v7488 = vsel %vm446, %v7472, 0.0
  %7489 = vadd.xlane.f32.xlu0 %v7488
  %v7490 = vpop.xlane.xlu0 %7489
  %v7491 = vsel %vm446, %v7473, 0.0
  %7492 = vadd.xlane.f32.xlu0 %v7491
  %v7493 = vpop.xlane.xlu0 %7492
  %v7494 = vsel %vm446, %v7474, 0.0
  %7495 = vadd.xlane.f32.xlu0 %v7494
  %v7496 = vpop.xlane.xlu0 %7495
  %v7497 = vsel %vm446, %v7475, 0.0
  %7498 = vadd.xlane.f32.xlu0 %v7497
  %v7499 = vpop.xlane.xlu0 %7498
  %v7500 = vsel %vm446, %v7476, 0.0
  %7501 = vadd.xlane.f32.xlu0 %v7500
  %v7502 = vpop.xlane.xlu0 %7501
  %v7503 = vsel %vm446, %v7477, 0.0
  %7504 = vadd.xlane.f32.xlu0 %v7503
  %v7505 = vpop.xlane.xlu0 %7504
  %v7506 = vmul.f32 %v7484, %v3722
  %v7507 = vmul.f32 %v7487, %v3722
  %v7508 = vmul.f32 %v7490, %v3722
  %v7509 = vmul.f32 %v7493, %v3722
  %v7510 = vmul.f32 %v7496, %v3722
  %v7511 = vmul.f32 %v7499, %v3722
  %v7512 = vmul.f32 %v7502, %v3722
  %v7513 = vmul.f32 %v7505, %v3722
  %v7514 = vsub.f32 %v7470, %v7506
  %v7515 = vsub.f32 %v7471, %v7507
  %v7516 = vsub.f32 %v7472, %v7508
  %v7517 = vsub.f32 %v7473, %v7509
  %v7518 = vsub.f32 %v7474, %v7510
  %v7519 = vsub.f32 %v7475, %v7511
  %v7520 = vsub.f32 %v7476, %v7512
  %v7521 = vsub.f32 %v7477, %v7513
  %v7522 = vmul.f32 %v7514, %v7514
  %v7523 = vmul.f32 %v7515, %v7515
  %v7524 = vmul.f32 %v7516, %v7516
  %v7525 = vmul.f32 %v7517, %v7517
  %v7526 = vmul.f32 %v7518, %v7518
  %v7527 = vmul.f32 %v7519, %v7519
  %v7528 = vmul.f32 %v7520, %v7520
  %v7529 = vmul.f32 %v7521, %v7521
  %v7530 = vsel %vm446, %v7522, 0.0
  %7531 = vadd.xlane.f32.xlu0 %v7530
  %v7532 = vpop.xlane.xlu0 %7531
  %v7533 = vsel %vm446, %v7523, 0.0
  %7534 = vadd.xlane.f32.xlu0 %v7533
  %v7535 = vpop.xlane.xlu0 %7534
  %v7536 = vsel %vm446, %v7524, 0.0
  %7537 = vadd.xlane.f32.xlu0 %v7536
  %v7538 = vpop.xlane.xlu0 %7537
  %v7539 = vsel %vm446, %v7525, 0.0
  %7540 = vadd.xlane.f32.xlu0 %v7539
  %v7541 = vpop.xlane.xlu0 %7540
  %v7542 = vsel %vm446, %v7526, 0.0
  %7543 = vadd.xlane.f32.xlu0 %v7542
  %v7544 = vpop.xlane.xlu0 %7543
  %v7545 = vsel %vm446, %v7527, 0.0
  %7546 = vadd.xlane.f32.xlu0 %v7545
  %v7547 = vpop.xlane.xlu0 %7546
  %v7548 = vsel %vm446, %v7528, 0.0
  %7549 = vadd.xlane.f32.xlu0 %v7548
  %v7550 = vpop.xlane.xlu0 %7549
  %v7551 = vsel %vm446, %v7529, 0.0
  %7552 = vadd.xlane.f32.xlu0 %v7551
  %v7553 = vpop.xlane.xlu0 %7552
  %v7554 = vmul.f32 %v7532, %v3722
  %v7555 = vmul.f32 %v7535, %v3722
  %v7556 = vmul.f32 %v7538, %v3722
  %v7557 = vmul.f32 %v7541, %v3722
  %v7558 = vmul.f32 %v7544, %v3722
  %v7559 = vmul.f32 %v7547, %v3722
  %v7560 = vmul.f32 %v7550, %v3722
  %v7561 = vmul.f32 %v7553, %v3722
  %v7562 = vadd.f32 %v7554, 1e-05
  %v7563 = vadd.f32 %v7555, 1e-05
  %v7564 = vadd.f32 %v7556, 1e-05
  %v7565 = vadd.f32 %v7557, 1e-05
  %v7566 = vadd.f32 %v7558, 1e-05
  %v7567 = vadd.f32 %v7559, 1e-05
  %v7568 = vadd.f32 %v7560, 1e-05
  %v7569 = vadd.f32 %v7561, 1e-05
  %v7570 = vrsqrt.pop %v7562
  %v7571 = vrsqrt.pop %v7563
  %v7572 = vrsqrt.pop %v7564
  %v7573 = vrsqrt.pop %v7565
  %v7574 = vrsqrt.pop %v7566
  %v7575 = vrsqrt.pop %v7567
  %v7576 = vrsqrt.pop %v7568
  %v7577 = vrsqrt.pop %v7569
  %v7578 = vmul.f32 %v7514, %v7570
  %v7579 = vmul.f32 %v7515, %v7571
  %v7580 = vmul.f32 %v7516, %v7572
  %v7581 = vmul.f32 %v7517, %v7573
  %v7582 = vmul.f32 %v7518, %v7574
  %v7583 = vmul.f32 %v7519, %v7575
  %v7584 = vmul.f32 %v7520, %v7576
  %v7585 = vmul.f32 %v7521, %v7577
  %v7587 = vlaneseq
  %v7588 = vshrl.u32 %v7587, 7
  %v7589 = vsub.s32 0, %v7588
  %v7590 = vrot.slane %v7479, %v7589
  %v7592 = vmul.f32 %v7578, %v7590
  %v7593 = vmul.f32 %v7579, %v7590
  %v7594 = vmul.f32 %v7580, %v7590
  %v7595 = vmul.f32 %v7581, %v7590
  %v7596 = vmul.f32 %v7582, %v7590
  %v7597 = vmul.f32 %v7583, %v7590
  %v7598 = vmul.f32 %v7584, %v7590
  %v7599 = vmul.f32 %v7585, %v7590
  %v7601 = vlaneseq
  %v7602 = vshrl.u32 %v7601, 7
  %v7603 = vsub.s32 0, %v7602
  %v7604 = vrot.slane %v7481, %v7603
  %v7606 = vadd.f32 %v7592, %v7604
  %v7607 = vadd.f32 %v7593, %v7604
  %v7608 = vadd.f32 %v7594, %v7604
  %v7609 = vadd.f32 %v7595, %v7604
  %v7610 = vadd.f32 %v7596, %v7604
  %v7611 = vadd.f32 %v7597, %v7604
  %v7612 = vadd.f32 %v7598, %v7604
  %v7613 = vadd.f32 %v7599, %v7604
  %v7614 = vpack.c.bf16 %v7607, %v7606
  %v7615 = vpack.c.bf16 %v7609, %v7608
  %v7616 = vpack.c.bf16 %v7611, %v7610
  %v7617 = vpack.c.bf16 %v7613, %v7612
  %s7618 = scalar_lea.vmem %s10, 16
  %v7619 = vld [vmem:[%s7618] sm:$0xf]
  %v7620 = vld [vmem:[%s7618 + $0x4] sm:$0xf]
  %v7621 = vld [vmem:[%s7618 + $0x8] sm:$0xf]
  %v7622 = vld [vmem:[%s7618 + $0xc] sm:$0xf]
  %s7623 = scalar_lea.vmem %s11, 1
  %v7624 = vld [vmem:[%s7623] sm:$0x1]
  %v7626 = vlaneseq
  %v7627 = vshrl.u32 %v7626, 7
  %v7628 = vsub.s32 0, %v7627
  %v7629 = vrot.slane %v7624, %v7628
  %v7635 = vunpack.c.l.b16 %v7619
  %v7636 = vunpack.c.l.b16 %v7620
  %v7637 = vunpack.c.l.b16 %v7621
  %v7638 = vunpack.c.l.b16 %v7622
  %v7639 = vpack.c.b16 %v7636, %v7635
  %v7640 = vpack.c.b16 %v7638, %v7637
  %v7644 = vsel %vm446, %v7614, 0
  %v7647 = vsel %vm446, %v7615, 0
  %v7650 = vsel %vm446, %v7616, 0
  %v7653 = vsel %vm446, %v7617, 0
  %7655 = vmatprep.subr.bf16.mxu0 0
  %7656 = vmatpush1.bf16.msra.mxu0 0
  %7657 = vmatprep.subr.bf16.mxu0 0
  %7658 = vmatpush1.bf16.msra.mxu0 0
  %7659 = vmatprep.subr.bf16.mxu0 0
  %7660 = vmatpush1.bf16.msra.mxu0 0
  %7661 = vmatprep.subr.bf16.mxu0 0
  %7662 = vmatpush1.bf16.msra.mxu0 0
  %7663 = vmatprep.subr.bf16.mxu0 0
  %7664 = vmatpush1.bf16.msra.mxu0 0
  %7665 = vmatprep.subr.bf16.mxu0 0
  %7666 = vmatpush1.bf16.msra.mxu0 0
  %7667 = vmatprep.subr.bf16.mxu0 0
  %7668 = vmatpush1.bf16.msra.mxu0 %v7640
  %7669 = vmatprep.subr.bf16.mxu0 0
  %7670 = vmatpush1.bf16.msra.mxu0 %v7639
  %7671 = vmatprep.subr.bf16.mxu0 0
  %7672 = vmatpush2.bf16.msra.mxu0 0
  %7673 = vmatprep.subr.bf16.mxu0 0
  %7674 = vmatpush2.bf16.msra.mxu0 0
  %7675 = vmatprep.subr.bf16.mxu0 0
  %7676 = vmatpush2.bf16.msra.mxu0 0
  %7677 = vmatprep.subr.bf16.mxu0 0
  %7678 = vmatpush2.bf16.msra.mxu0 0
  %7679 = vmatprep.subr.bf16.mxu0 0
  %7680 = vmatpush2.bf16.msra.mxu0 0
  %7681 = vmatprep.subr.bf16.mxu0 0
  %7682 = vmatpush2.bf16.msra.mxu0 0
  %7683 = vmatprep.subr.bf16.mxu0 0
  %7684 = vmatpush2.bf16.msra.mxu0 0
  %7685 = vmatprep.subr.bf16.mxu0 0
  %7686 = vmatpush2.bf16.msra.mxu0 0
  %7687 = vmatprep.mubr.bf16.mxu0 0
  %7688 = vmatmul.mubr.bf16.gmra.mxu0 %v7644
  %v7689 = vpop.f32.mrf.mxu0
  %v7690 = vadd.f32 %v7629, %v7689
  %v7691 = vpop.f32.mrf.mxu0
  %v7692 = vpop.f32.mrf.mxu0
  %v7693 = vadd.f32 %v7629, %v7692
  %v7694 = vpop.f32.mrf.mxu0
  %7695 = vmatprep.mubr.bf16.mxu0 0
  %7696 = vmatmul.mubr.bf16.gmra.mxu0 %v7647
  %v7697 = vpop.f32.mrf.mxu0
  %v7698 = vadd.f32 %v7629, %v7697
  %v7699 = vpop.f32.mrf.mxu0
  %v7700 = vpop.f32.mrf.mxu0
  %v7701 = vadd.f32 %v7629, %v7700
  %v7702 = vpop.f32.mrf.mxu0
  %7703 = vmatprep.mubr.bf16.mxu0 0
  %7704 = vmatmul.mubr.bf16.gmra.mxu0 %v7650
  %v7705 = vpop.f32.mrf.mxu0
  %v7706 = vadd.f32 %v7629, %v7705
  %v7707 = vpop.f32.mrf.mxu0
  %v7708 = vpop.f32.mrf.mxu0
  %v7709 = vadd.f32 %v7629, %v7708
  %v7710 = vpop.f32.mrf.mxu0
  %7711 = vmatprep.mubr.bf16.mxu0 0
  %7712 = vmatmul.mubr.bf16.gmra.mxu0 %v7653
  %v7713 = vpop.f32.mrf.mxu0
  %v7714 = vadd.f32 %v7629, %v7713
  %v7715 = vpop.f32.mrf.mxu0
  %v7716 = vpop.f32.mrf.mxu0
  %v7717 = vadd.f32 %v7629, %v7716
  %v7718 = vpop.f32.mrf.mxu0
  %7719 = vdwg.mxu0
  %v7720 = vmax.f32 %v7690, 0.0
  %v7721 = vmax.f32 %v7693, 0.0
  %v7722 = vmax.f32 %v7698, 0.0
  %v7723 = vmax.f32 %v7701, 0.0
  %v7724 = vmax.f32 %v7706, 0.0
  %v7725 = vmax.f32 %v7709, 0.0
  %v7726 = vmax.f32 %v7714, 0.0
  %v7727 = vmax.f32 %v7717, 0.0
  %v7728 = vpack.c.bf16 %v7721, %v7720
  %v7729 = vpack.c.bf16 %v7723, %v7722
  %v7730 = vpack.c.bf16 %v7725, %v7724
  %v7731 = vpack.c.bf16 %v7727, %v7726
  %s7732 = scalar_lea.vmem %s12, 32
  %v7733 = vld [vmem:[%s7732] sm:$0xf]
  %v7734 = vld [vmem:[%s7732 + $0x4] sm:$0xf]
  %v7735 = vld [vmem:[%s7732 + $0x8] sm:$0xf]
  %v7736 = vld [vmem:[%s7732 + $0xc] sm:$0xf]
  %v7737 = vld [vmem:[%s7732 + $0x10] sm:$0xf]
  %v7738 = vld [vmem:[%s7732 + $0x14] sm:$0xf]
  %v7739 = vld [vmem:[%s7732 + $0x18] sm:$0xf]
  %v7740 = vld [vmem:[%s7732 + $0x1c] sm:$0xf]
  %s7741 = scalar_lea.vmem %s13, 1
  %v7742 = vld [vmem:[%s7741] sm:$0x1]
  %v7744 = vlaneseq
  %v7745 = vshrl.u32 %v7744, 7
  %v7746 = vsub.s32 0, %v7745
  %v7747 = vrot.slane %v7742, %v7746
  %v7757 = vunpack.c.l.b16 %v7733
  %v7758 = vunpack.c.l.b16 %v7734
  %v7759 = vunpack.c.l.b16 %v7735
  %v7760 = vunpack.c.l.b16 %v7736
  %v7761 = vunpack.c.l.b16 %v7737
  %v7762 = vunpack.c.l.b16 %v7738
  %v7763 = vunpack.c.l.b16 %v7739
  %v7764 = vunpack.c.l.b16 %v7740
  %v7765 = vpack.c.b16 %v7758, %v7757
  %v7766 = vpack.c.b16 %v7760, %v7759
  %v7767 = vpack.c.b16 %v7762, %v7761
  %v7768 = vpack.c.b16 %v7764, %v7763
  %v7774 = vsel %vm3986, %v7728, 0
  %v7777 = vsel %vm3986, %v7729, 0
  %v7780 = vsel %vm3986, %v7730, 0
  %v7783 = vsel %vm3986, %v7731, 0
  %7785 = vmatprep.subr.bf16.mxu0 0
  %7786 = vmatpush1.bf16.msra.mxu0 0
  %7787 = vmatprep.subr.bf16.mxu0 0
  %7788 = vmatpush1.bf16.msra.mxu0 0
  %7789 = vmatprep.subr.bf16.mxu0 0
  %7790 = vmatpush1.bf16.msra.mxu0 0
  %7791 = vmatprep.subr.bf16.mxu0 0
  %7792 = vmatpush1.bf16.msra.mxu0 0
  %7793 = vmatprep.subr.bf16.mxu0 0
  %7794 = vmatpush1.bf16.msra.mxu0 %v7768
  %7795 = vmatprep.subr.bf16.mxu0 0
  %7796 = vmatpush1.bf16.msra.mxu0 %v7767
  %7797 = vmatprep.subr.bf16.mxu0 0
  %7798 = vmatpush1.bf16.msra.mxu0 %v7766
  %7799 = vmatprep.subr.bf16.mxu0 0
  %7800 = vmatpush1.bf16.msra.mxu0 %v7765
  %7801 = vmatprep.subr.bf16.mxu0 0
  %7802 = vmatpush2.bf16.msra.mxu0 0
  %7803 = vmatprep.subr.bf16.mxu0 0
  %7804 = vmatpush2.bf16.msra.mxu0 0
  %7805 = vmatprep.subr.bf16.mxu0 0
  %7806 = vmatpush2.bf16.msra.mxu0 0
  %7807 = vmatprep.subr.bf16.mxu0 0
  %7808 = vmatpush2.bf16.msra.mxu0 0
  %7809 = vmatprep.subr.bf16.mxu0 0
  %7810 = vmatpush2.bf16.msra.mxu0 0
  %7811 = vmatprep.subr.bf16.mxu0 0
  %7812 = vmatpush2.bf16.msra.mxu0 0
  %7813 = vmatprep.subr.bf16.mxu0 0
  %7814 = vmatpush2.bf16.msra.mxu0 0
  %7815 = vmatprep.subr.bf16.mxu0 0
  %7816 = vmatpush2.bf16.msra.mxu0 0
  %7817 = vmatprep.mubr.bf16.mxu0 0
  %7818 = vmatmul.mubr.bf16.gmra.mxu0 %v7774
  %v7819 = vpop.f32.mrf.mxu0
  %v7820 = vadd.f32 %v7747, %v7819
  %v7821 = vpop.f32.mrf.mxu0
  %v7822 = vpop.f32.mrf.mxu0
  %v7823 = vadd.f32 %v7747, %v7822
  %v7824 = vpop.f32.mrf.mxu0
  %7825 = vmatprep.mubr.bf16.mxu0 0
  %7826 = vmatmul.mubr.bf16.gmra.mxu0 %v7777
  %v7827 = vpop.f32.mrf.mxu0
  %v7828 = vadd.f32 %v7747, %v7827
  %v7829 = vpop.f32.mrf.mxu0
  %v7830 = vpop.f32.mrf.mxu0
  %v7831 = vadd.f32 %v7747, %v7830
  %v7832 = vpop.f32.mrf.mxu0
  %7833 = vmatprep.mubr.bf16.mxu0 0
  %7834 = vmatmul.mubr.bf16.gmra.mxu0 %v7780
  %v7835 = vpop.f32.mrf.mxu0
  %v7836 = vadd.f32 %v7747, %v7835
  %v7837 = vpop.f32.mrf.mxu0
  %v7838 = vpop.f32.mrf.mxu0
  %v7839 = vadd.f32 %v7747, %v7838
  %v7840 = vpop.f32.mrf.mxu0
  %7841 = vmatprep.mubr.bf16.mxu0 0
  %7842 = vmatmul.mubr.bf16.gmra.mxu0 %v7783
  %v7843 = vpop.f32.mrf.mxu0
  %v7844 = vadd.f32 %v7747, %v7843
  %v7845 = vpop.f32.mrf.mxu0
  %v7846 = vpop.f32.mrf.mxu0
  %v7847 = vadd.f32 %v7747, %v7846
  %v7848 = vpop.f32.mrf.mxu0
  %7849 = vdwg.mxu0
  %v7850 = vadd.f32 %v7606, %v7820
  %v7851 = vadd.f32 %v7607, %v7823
  %v7852 = vadd.f32 %v7608, %v7828
  %v7853 = vadd.f32 %v7609, %v7831
  %v7854 = vadd.f32 %v7610, %v7836
  %v7855 = vadd.f32 %v7611, %v7839
  %v7856 = vadd.f32 %v7612, %v7844
  %v7857 = vadd.f32 %v7613, %v7847
  %s7858 = scalar_lea.vmem %s14, 1
  %v7859 = vld [vmem:[%s7858] sm:$0x1]
  %s7860 = scalar_lea.vmem %s15, 1
  %v7861 = vld [vmem:[%s7860] sm:$0x1]
  %v7862 = vsel %vm446, %v7850, 0.0
  %7863 = vadd.xlane.f32.xlu0 %v7862
  %v7864 = vpop.xlane.xlu0 %7863
  %v7865 = vsel %vm446, %v7851, 0.0
  %7866 = vadd.xlane.f32.xlu0 %v7865
  %v7867 = vpop.xlane.xlu0 %7866
  %v7868 = vsel %vm446, %v7852, 0.0
  %7869 = vadd.xlane.f32.xlu0 %v7868
  %v7870 = vpop.xlane.xlu0 %7869
  %v7871 = vsel %vm446, %v7853, 0.0
  %7872 = vadd.xlane.f32.xlu0 %v7871
  %v7873 = vpop.xlane.xlu0 %7872
  %v7874 = vsel %vm446, %v7854, 0.0
  %7875 = vadd.xlane.f32.xlu0 %v7874
  %v7876 = vpop.xlane.xlu0 %7875
  %v7877 = vsel %vm446, %v7855, 0.0
  %7878 = vadd.xlane.f32.xlu0 %v7877
  %v7879 = vpop.xlane.xlu0 %7878
  %v7880 = vsel %vm446, %v7856, 0.0
  %7881 = vadd.xlane.f32.xlu0 %v7880
  %v7882 = vpop.xlane.xlu0 %7881
  %v7883 = vsel %vm446, %v7857, 0.0
  %7884 = vadd.xlane.f32.xlu0 %v7883
  %v7885 = vpop.xlane.xlu0 %7884
  %v7886 = vmul.f32 %v7864, %v3722
  %v7887 = vmul.f32 %v7867, %v3722
  %v7888 = vmul.f32 %v7870, %v3722
  %v7889 = vmul.f32 %v7873, %v3722
  %v7890 = vmul.f32 %v7876, %v3722
  %v7891 = vmul.f32 %v7879, %v3722
  %v7892 = vmul.f32 %v7882, %v3722
  %v7893 = vmul.f32 %v7885, %v3722
  %v7894 = vsub.f32 %v7850, %v7886
  %v7895 = vsub.f32 %v7851, %v7887
  %v7896 = vsub.f32 %v7852, %v7888
  %v7897 = vsub.f32 %v7853, %v7889
  %v7898 = vsub.f32 %v7854, %v7890
  %v7899 = vsub.f32 %v7855, %v7891
  %v7900 = vsub.f32 %v7856, %v7892
  %v7901 = vsub.f32 %v7857, %v7893
  %v7902 = vmul.f32 %v7894, %v7894
  %v7903 = vmul.f32 %v7895, %v7895
  %v7904 = vmul.f32 %v7896, %v7896
  %v7905 = vmul.f32 %v7897, %v7897
  %v7906 = vmul.f32 %v7898, %v7898
  %v7907 = vmul.f32 %v7899, %v7899
  %v7908 = vmul.f32 %v7900, %v7900
  %v7909 = vmul.f32 %v7901, %v7901
  %v7910 = vsel %vm446, %v7902, 0.0
  %7911 = vadd.xlane.f32.xlu0 %v7910
  %v7912 = vpop.xlane.xlu0 %7911
  %v7913 = vsel %vm446, %v7903, 0.0
  %7914 = vadd.xlane.f32.xlu0 %v7913
  %v7915 = vpop.xlane.xlu0 %7914
  %v7916 = vsel %vm446, %v7904, 0.0
  %7917 = vadd.xlane.f32.xlu0 %v7916
  %v7918 = vpop.xlane.xlu0 %7917
  %v7919 = vsel %vm446, %v7905, 0.0
  %7920 = vadd.xlane.f32.xlu0 %v7919
  %v7921 = vpop.xlane.xlu0 %7920
  %v7922 = vsel %vm446, %v7906, 0.0
  %7923 = vadd.xlane.f32.xlu0 %v7922
  %v7924 = vpop.xlane.xlu0 %7923
  %v7925 = vsel %vm446, %v7907, 0.0
  %7926 = vadd.xlane.f32.xlu0 %v7925
  %v7927 = vpop.xlane.xlu0 %7926
  %v7928 = vsel %vm446, %v7908, 0.0
  %7929 = vadd.xlane.f32.xlu0 %v7928
  %v7930 = vpop.xlane.xlu0 %7929
  %v7931 = vsel %vm446, %v7909, 0.0
  %7932 = vadd.xlane.f32.xlu0 %v7931
  %v7933 = vpop.xlane.xlu0 %7932
  %v7934 = vmul.f32 %v7912, %v3722
  %v7935 = vmul.f32 %v7915, %v3722
  %v7936 = vmul.f32 %v7918, %v3722
  %v7937 = vmul.f32 %v7921, %v3722
  %v7938 = vmul.f32 %v7924, %v3722
  %v7939 = vmul.f32 %v7927, %v3722
  %v7940 = vmul.f32 %v7930, %v3722
  %v7941 = vmul.f32 %v7933, %v3722
  %v7942 = vadd.f32 %v7934, 1e-05
  %v7943 = vadd.f32 %v7935, 1e-05
  %v7944 = vadd.f32 %v7936, 1e-05
  %v7945 = vadd.f32 %v7937, 1e-05
  %v7946 = vadd.f32 %v7938, 1e-05
  %v7947 = vadd.f32 %v7939, 1e-05
  %v7948 = vadd.f32 %v7940, 1e-05
  %v7949 = vadd.f32 %v7941, 1e-05
  %v7950 = vrsqrt.pop %v7942
  %v7951 = vrsqrt.pop %v7943
  %v7952 = vrsqrt.pop %v7944
  %v7953 = vrsqrt.pop %v7945
  %v7954 = vrsqrt.pop %v7946
  %v7955 = vrsqrt.pop %v7947
  %v7956 = vrsqrt.pop %v7948
  %v7957 = vrsqrt.pop %v7949
  %v7958 = vmul.f32 %v7894, %v7950
  %v7959 = vmul.f32 %v7895, %v7951
  %v7960 = vmul.f32 %v7896, %v7952
  %v7961 = vmul.f32 %v7897, %v7953
  %v7962 = vmul.f32 %v7898, %v7954
  %v7963 = vmul.f32 %v7899, %v7955
  %v7964 = vmul.f32 %v7900, %v7956
  %v7965 = vmul.f32 %v7901, %v7957
  %v7967 = vlaneseq
  %v7968 = vshrl.u32 %v7967, 7
  %v7969 = vsub.s32 0, %v7968
  %v7970 = vrot.slane %v7859, %v7969
  %v7972 = vmul.f32 %v7958, %v7970
  %v7973 = vmul.f32 %v7959, %v7970
  %v7974 = vmul.f32 %v7960, %v7970
  %v7975 = vmul.f32 %v7961, %v7970
  %v7976 = vmul.f32 %v7962, %v7970
  %v7977 = vmul.f32 %v7963, %v7970
  %v7978 = vmul.f32 %v7964, %v7970
  %v7979 = vmul.f32 %v7965, %v7970
  %v7981 = vlaneseq
  %v7982 = vshrl.u32 %v7981, 7
  %v7983 = vsub.s32 0, %v7982
  %v7984 = vrot.slane %v7861, %v7983
  %v7986 = vadd.f32 %v7972, %v7984
  %v7987 = vadd.f32 %v7973, %v7984
  %v7988 = vadd.f32 %v7974, %v7984
  %v7989 = vadd.f32 %v7975, %v7984
  %v7990 = vadd.f32 %v7976, %v7984
  %v7991 = vadd.f32 %v7977, %v7984
  %v7992 = vadd.f32 %v7978, %v7984
  %v7993 = vadd.f32 %v7979, %v7984
  %v7994 = vsel %vm446, %v7986, -inf
  %v7995 = vrot.slane %v7994, 4
  %v7996 = vmax.f32 %v7994, %v7995
  %v7997 = vrot.slane %v7996, 2
  %v7998 = vmax.f32 %v7996, %v7997
  %v7999 = vrot.slane %v7998, 1
  %v8000 = vmax.f32 %v7998, %v7999
  %v8001 = vsel %vm446, %v7987, -inf
  %v8002 = vrot.slane %v8001, 4
  %v8003 = vmax.f32 %v8001, %v8002
  %v8004 = vrot.slane %v8003, 2
  %v8005 = vmax.f32 %v8003, %v8004
  %v8006 = vrot.slane %v8005, 1
  %v8007 = vmax.f32 %v8005, %v8006
  %v8008 = vsel %vm446, %v7988, -inf
  %v8009 = vrot.slane %v8008, 4
  %v8010 = vmax.f32 %v8008, %v8009
  %v8011 = vrot.slane %v8010, 2
  %v8012 = vmax.f32 %v8010, %v8011
  %v8013 = vrot.slane %v8012, 1
  %v8014 = vmax.f32 %v8012, %v8013
  %v8015 = vsel %vm446, %v7989, -inf
  %v8016 = vrot.slane %v8015, 4
  %v8017 = vmax.f32 %v8015, %v8016
  %v8018 = vrot.slane %v8017, 2
  %v8019 = vmax.f32 %v8017, %v8018
  %v8020 = vrot.slane %v8019, 1
  %v8021 = vmax.f32 %v8019, %v8020
  %v8022 = vsel %vm446, %v7990, -inf
  %v8023 = vrot.slane %v8022, 4
  %v8024 = vmax.f32 %v8022, %v8023
  %v8025 = vrot.slane %v8024, 2
  %v8026 = vmax.f32 %v8024, %v8025
  %v8027 = vrot.slane %v8026, 1
  %v8028 = vmax.f32 %v8026, %v8027
  %v8029 = vsel %vm446, %v7991, -inf
  %v8030 = vrot.slane %v8029, 4
  %v8031 = vmax.f32 %v8029, %v8030
  %v8032 = vrot.slane %v8031, 2
  %v8033 = vmax.f32 %v8031, %v8032
  %v8034 = vrot.slane %v8033, 1
  %v8035 = vmax.f32 %v8033, %v8034
  %v8036 = vsel %vm446, %v7992, -inf
  %v8037 = vrot.slane %v8036, 4
  %v8038 = vmax.f32 %v8036, %v8037
  %v8039 = vrot.slane %v8038, 2
  %v8040 = vmax.f32 %v8038, %v8039
  %v8041 = vrot.slane %v8040, 1
  %v8042 = vmax.f32 %v8040, %v8041
  %v8043 = vsel %vm446, %v7993, -inf
  %v8044 = vrot.slane %v8043, 4
  %v8045 = vmax.f32 %v8043, %v8044
  %v8046 = vrot.slane %v8045, 2
  %v8047 = vmax.f32 %v8045, %v8046
  %v8048 = vrot.slane %v8047, 1
  %v8049 = vmax.f32 %v8047, %v8048
  %v8050 = vpack.c.bf16 %v8000, %v8000
  %v8051 = vpack.c.bf16 %v8007, %v8007
  %v8052 = vpack.c.bf16 %v8014, %v8014
  %v8053 = vpack.c.bf16 %v8021, %v8021
  %v8054 = vpack.c.bf16 %v8028, %v8028
  %v8055 = vpack.c.bf16 %v8035, %v8035
  %v8056 = vpack.c.bf16 %v8042, %v8042
  %v8057 = vpack.c.bf16 %v8049, %v8049
  %v8058 = vld [vmem:[%s16] sm:$0xf]
  %v8059 = vld [vmem:[%s16 + $0x4] sm:$0xf]
  %v8060 = vld [vmem:[%s16 + $0x8] sm:$0xf]
  %v8061 = vld [vmem:[%s16 + $0xc] sm:$0xf]
  %v8070 = vunpack.c.l.b16 %v8050
  %v8071 = vunpack.c.l.b16 %v8051
  %v8072 = vunpack.c.l.b16 %v8052
  %v8073 = vunpack.c.l.b16 %v8053
  %v8074 = vunpack.c.l.b16 %v8054
  %v8075 = vunpack.c.l.b16 %v8055
  %v8076 = vunpack.c.l.b16 %v8056
  %v8077 = vunpack.c.l.b16 %v8057
  %vm8078 = vcmask 1041409
  %v8079 = vsel %vm8078, %v8071, %v8070
  %vm8080 = vcmask 1042434
  %v8081 = vsel %vm8080, %v8072, %v8079
  %vm8082 = vcmask 1043459
  %v8083 = vsel %vm8082, %v8073, %v8081
  %vm8084 = vcmask 1044484
  %v8085 = vsel %vm8084, %v8074, %v8083
  %vm8086 = vcmask 1045509
  %v8087 = vsel %vm8086, %v8075, %v8085
  %vm8088 = vcmask 1046534
  %v8089 = vsel %vm8088, %v8076, %v8087
  %vm8090 = vcmask 1047559
  %v8091 = vsel %vm8090, %v8077, %v8089
  %v8092 = vpack.c.b16 %v8091, %v8091
  %v8097 = vunpack.c.l.b16 %v8058
  %v8098 = vunpack.c.l.b16 %v8059
  %v8099 = vunpack.c.l.b16 %v8060
  %v8100 = vunpack.c.l.b16 %v8061
  %v8101 = vpack.c.b16 %v8098, %v8097
  %v8102 = vpack.c.b16 %v8100, %v8099
  %v8106 = vsel %vm446, %v8092, 0
  %8108 = vmatprep.subr.bf16.mxu0 0
  %8109 = vmatpush1.bf16.msra.mxu0 0
  %8110 = vmatprep.subr.bf16.mxu0 0
  %8111 = vmatpush1.bf16.msra.mxu0 0
  %8112 = vmatprep.subr.bf16.mxu0 0
  %8113 = vmatpush1.bf16.msra.mxu0 0
  %8114 = vmatprep.subr.bf16.mxu0 0
  %8115 = vmatpush1.bf16.msra.mxu0 0
  %8116 = vmatprep.subr.bf16.mxu0 0
  %8117 = vmatpush1.bf16.msra.mxu0 0
  %8118 = vmatprep.subr.bf16.mxu0 0
  %8119 = vmatpush1.bf16.msra.mxu0 0
  %8120 = vmatprep.subr.bf16.mxu0 0
  %8121 = vmatpush1.bf16.msra.mxu0 %v8102
  %8122 = vmatprep.subr.bf16.mxu0 0
  %8123 = vmatpush1.bf16.msra.mxu0 %v8101
  %8124 = vmatprep.subr.bf16.mxu0 0
  %8125 = vmatpush2.bf16.msra.mxu0 0
  %8126 = vmatprep.subr.bf16.mxu0 0
  %8127 = vmatpush2.bf16.msra.mxu0 0
  %8128 = vmatprep.subr.bf16.mxu0 0
  %8129 = vmatpush2.bf16.msra.mxu0 0
  %8130 = vmatprep.subr.bf16.mxu0 0
  %8131 = vmatpush2.bf16.msra.mxu0 0
  %8132 = vmatprep.subr.bf16.mxu0 0
  %8133 = vmatpush2.bf16.msra.mxu0 0
  %8134 = vmatprep.subr.bf16.mxu0 0
  %8135 = vmatpush2.bf16.msra.mxu0 0
  %8136 = vmatprep.subr.bf16.mxu0 0
  %8137 = vmatpush2.bf16.msra.mxu0 0
  %8138 = vmatprep.subr.bf16.mxu0 0
  %8139 = vmatpush2.bf16.msra.mxu0 0
  %8140 = vmatprep.mubr.bf16.mxu0 0
  %8141 = vmatmul.mubr.bf16.gmra.mxu0 %v8106
  %v8142 = vpop.f32.mrf.mxu0
  %v8143 = vadd.f32 0.0, %v8142
  %v8144 = vpop.f32.mrf.mxu0
  %v8145 = vpop.f32.mrf.mxu0
  %v8146 = vpop.f32.mrf.mxu0
  %8147 = vdwg.mxu0
  %v8148 = vpack.c.bf16 %v7987, %v7986
  %v8149 = vpack.c.bf16 %v7989, %v7988
  %v8150 = vpack.c.bf16 %v7991, %v7990
  %v8151 = vpack.c.bf16 %v7993, %v7992
  %v8152 = vld [vmem:[%s17] sm:$0xf]
  %v8153 = vld [vmem:[%s17 + $0x4] sm:$0xf]
  %v8154 = vld [vmem:[%s17 + $0x8] sm:$0xf]
  %v8155 = vld [vmem:[%s17 + $0xc] sm:$0xf]
  %v8160 = vunpack.c.l.b16 %v8152
  %v8161 = vunpack.c.l.b16 %v8153
  %v8162 = vunpack.c.l.b16 %v8154
  %v8163 = vunpack.c.l.b16 %v8155
  %v8164 = vpack.c.b16 %v8161, %v8160
  %v8165 = vpack.c.b16 %v8163, %v8162
  %v8169 = vsel %vm446, %v8148, 0
  %v8172 = vsel %vm446, %v8149, 0
  %v8175 = vsel %vm446, %v8150, 0
  %v8178 = vsel %vm446, %v8151, 0
  %8180 = vmatprep.subr.bf16.mxu0 0
  %8181 = vmatpush1.bf16.msra.mxu0 0
  %8182 = vmatprep.subr.bf16.mxu0 0
  %8183 = vmatpush1.bf16.msra.mxu0 0
  %8184 = vmatprep.subr.bf16.mxu0 0
  %8185 = vmatpush1.bf16.msra.mxu0 0
  %8186 = vmatprep.subr.bf16.mxu0 0
  %8187 = vmatpush1.bf16.msra.mxu0 0
  %8188 = vmatprep.subr.bf16.mxu0 0
  %8189 = vmatpush1.bf16.msra.mxu0 0
  %8190 = vmatprep.subr.bf16.mxu0 0
  %8191 = vmatpush1.bf16.msra.mxu0 0
  %8192 = vmatprep.subr.bf16.mxu0 0
  %8193 = vmatpush1.bf16.msra.mxu0 %v8165
  %8194 = vmatprep.subr.bf16.mxu0 0
  %8195 = vmatpush1.bf16.msra.mxu0 %v8164
  %8196 = vmatprep.subr.bf16.mxu0 0
  %8197 = vmatpush2.bf16.msra.mxu0 0
  %8198 = vmatprep.subr.bf16.mxu0 0
  %8199 = vmatpush2.bf16.msra.mxu0 0
  %8200 = vmatprep.subr.bf16.mxu0 0
  %8201 = vmatpush2.bf16.msra.mxu0 0
  %8202 = vmatprep.subr.bf16.mxu0 0
  %8203 = vmatpush2.bf16.msra.mxu0 0
  %8204 = vmatprep.subr.bf16.mxu0 0
  %8205 = vmatpush2.bf16.msra.mxu0 0
  %8206 = vmatprep.subr.bf16.mxu0 0
  %8207 = vmatpush2.bf16.msra.mxu0 0
  %8208 = vmatprep.subr.bf16.mxu0 0
  %8209 = vmatpush2.bf16.msra.mxu0 0
  %8210 = vmatprep.subr.bf16.mxu0 0
  %8211 = vmatpush2.bf16.msra.mxu0 0
  %8212 = vmatprep.mubr.bf16.mxu0 0
  %8213 = vmatmul.mubr.bf16.gmra.mxu0 %v8169
  %v8214 = vpop.f32.mrf.mxu0
  %v8215 = vadd.f32 0.0, %v8214
  %v8216 = vpop.f32.mrf.mxu0
  %v8217 = vpop.f32.mrf.mxu0
  %v8218 = vadd.f32 0.0, %v8217
  %v8219 = vpop.f32.mrf.mxu0
  %8220 = vmatprep.mubr.bf16.mxu0 0
  %8221 = vmatmul.mubr.bf16.gmra.mxu0 %v8172
  %v8222 = vpop.f32.mrf.mxu0
  %v8223 = vadd.f32 0.0, %v8222
  %v8224 = vpop.f32.mrf.mxu0
  %v8225 = vpop.f32.mrf.mxu0
  %v8226 = vadd.f32 0.0, %v8225
  %v8227 = vpop.f32.mrf.mxu0
  %8228 = vmatprep.mubr.bf16.mxu0 0
  %8229 = vmatmul.mubr.bf16.gmra.mxu0 %v8175
  %v8230 = vpop.f32.mrf.mxu0
  %v8231 = vadd.f32 0.0, %v8230
  %v8232 = vpop.f32.mrf.mxu0
  %v8233 = vpop.f32.mrf.mxu0
  %v8234 = vadd.f32 0.0, %v8233
  %v8235 = vpop.f32.mrf.mxu0
  %8236 = vmatprep.mubr.bf16.mxu0 0
  %8237 = vmatmul.mubr.bf16.gmra.mxu0 %v8178
  %v8238 = vpop.f32.mrf.mxu0
  %v8239 = vadd.f32 0.0, %v8238
  %v8240 = vpop.f32.mrf.mxu0
  %v8241 = vpop.f32.mrf.mxu0
  %v8242 = vadd.f32 0.0, %v8241
  %v8243 = vpop.f32.mrf.mxu0
  %8244 = vdwg.mxu0
  %v8246 = vcombine.high %v8143, %v8143
  %v8248 = vunpack.c.l.s4 1966171168
  %v8249 = vunpack.c.0.s8 %v8248
  %v8250 = vlaneseq
  %v8251 = vshrl.u32 %v8250, 7
  %v8252 = vsub.s32 %v8249, %v8251
  %v8253 = vrot.slane %v8143, %v8252
  %v8255 = vunpack.c.l.s4 1966171168
  %v8256 = vunpack.c.0.s8 %v8255
  %v8257 = vlaneseq
  %v8258 = vshrl.u32 %v8257, 7
  %v8259 = vsub.s32 %v8256, %v8258
  %v8260 = vrot.slane %v8246, %v8259
  %v8261 = vcombine.high %v8253, %v8253
  %v8262 = vcombine.high %v8260, %v8260
  %v8264 = vunpack.c.l.s4 1966171168
  %v8265 = vunpack.c.0.s8 %v8264
  %v8266 = vlaneseq
  %v8267 = vshrl.u32 %v8266, 7
  %v8268 = vsub.s32 %v8265, %v8267
  %v8269 = vrot.slane %v8253, %v8268
  %v8271 = vunpack.c.l.s4 1966171168
  %v8272 = vunpack.c.0.s8 %v8271
  %v8273 = vlaneseq
  %v8274 = vshrl.u32 %v8273, 7
  %v8275 = vsub.s32 %v8272, %v8274
  %v8276 = vrot.slane %v8260, %v8275
  %v8278 = vunpack.c.l.s4 1966171168
  %v8279 = vunpack.c.0.s8 %v8278
  %v8280 = vlaneseq
  %v8281 = vshrl.u32 %v8280, 7
  %v8282 = vsub.s32 %v8279, %v8281
  %v8283 = vrot.slane %v8261, %v8282
  %v8285 = vunpack.c.l.s4 1966171168
  %v8286 = vunpack.c.0.s8 %v8285
  %v8287 = vlaneseq
  %v8288 = vshrl.u32 %v8287, 7
  %v8289 = vsub.s32 %v8286, %v8288
  %v8290 = vrot.slane %v8262, %v8289
  %v8291 = vcombine.high %v8269, %v8269
  %v8292 = vcombine.high %v8276, %v8276
  %v8293 = vcombine.high %v8283, %v8283
  %v8294 = vcombine.high %v8290, %v8290
  %v8295 = vlaneseq
  %v8296 = vshrl.u32 %v8295, 7
  %v8297 = vsub.s32 0, %v8296
  %v8298 = vrot.slane %v8269, %v8297
  %v8299 = vlaneseq
  %v8300 = vshrl.u32 %v8299, 7
  %v8301 = vsub.s32 0, %v8300
  %v8302 = vrot.slane %v8283, %v8301
  %v8303 = vlaneseq
  %v8304 = vshrl.u32 %v8303, 7
  %v8305 = vsub.s32 0, %v8304
  %v8306 = vrot.slane %v8291, %v8305
  %v8307 = vlaneseq
  %v8308 = vshrl.u32 %v8307, 7
  %v8309 = vsub.s32 0, %v8308
  %v8310 = vrot.slane %v8293, %v8309
  %v8311 = vlaneseq
  %v8312 = vshrl.u32 %v8311, 7
  %v8313 = vsub.s32 0, %v8312
  %v8314 = vrot.slane %v8276, %v8313
  %v8315 = vlaneseq
  %v8316 = vshrl.u32 %v8315, 7
  %v8317 = vsub.s32 0, %v8316
  %v8318 = vrot.slane %v8290, %v8317
  %v8319 = vlaneseq
  %v8320 = vshrl.u32 %v8319, 7
  %v8321 = vsub.s32 0, %v8320
  %v8322 = vrot.slane %v8292, %v8321
  %v8323 = vlaneseq
  %v8324 = vshrl.u32 %v8323, 7
  %v8325 = vsub.s32 0, %v8324
  %v8326 = vrot.slane %v8294, %v8325
  %v8335 = vadd.f32 %v8215, %v8298
  %v8336 = vadd.f32 %v8218, %v8302
  %v8337 = vadd.f32 %v8223, %v8306
  %v8338 = vadd.f32 %v8226, %v8310
  %v8339 = vadd.f32 %v8231, %v8314
  %v8340 = vadd.f32 %v8234, %v8318
  %v8341 = vadd.f32 %v8239, %v8322
  %v8342 = vadd.f32 %v8242, %v8326
  %v8343 = vsel %vm446, %v8335, 0.0
  %v8344 = vrot.slane %v8343, 4
  %v8345 = vadd.f32 %v8343, %v8344
  %v8346 = vrot.slane %v8345, 2
  %v8347 = vadd.f32 %v8345, %v8346
  %v8348 = vrot.slane %v8347, 1
  %v8349 = vadd.f32 %v8347, %v8348
  %v8350 = vsel %vm446, %v8336, 0.0
  %v8351 = vrot.slane %v8350, 4
  %v8352 = vadd.f32 %v8350, %v8351
  %v8353 = vrot.slane %v8352, 2
  %v8354 = vadd.f32 %v8352, %v8353
  %v8355 = vrot.slane %v8354, 1
  %v8356 = vadd.f32 %v8354, %v8355
  %v8357 = vsel %vm446, %v8337, 0.0
  %v8358 = vrot.slane %v8357, 4
  %v8359 = vadd.f32 %v8357, %v8358
  %v8360 = vrot.slane %v8359, 2
  %v8361 = vadd.f32 %v8359, %v8360
  %v8362 = vrot.slane %v8361, 1
  %v8363 = vadd.f32 %v8361, %v8362
  %v8364 = vsel %vm446, %v8338, 0.0
  %v8365 = vrot.slane %v8364, 4
  %v8366 = vadd.f32 %v8364, %v8365
  %v8367 = vrot.slane %v8366, 2
  %v8368 = vadd.f32 %v8366, %v8367
  %v8369 = vrot.slane %v8368, 1
  %v8370 = vadd.f32 %v8368, %v8369
  %v8371 = vsel %vm446, %v8339, 0.0
  %v8372 = vrot.slane %v8371, 4
  %v8373 = vadd.f32 %v8371, %v8372
  %v8374 = vrot.slane %v8373, 2
  %v8375 = vadd.f32 %v8373, %v8374
  %v8376 = vrot.slane %v8375, 1
  %v8377 = vadd.f32 %v8375, %v8376
  %v8378 = vsel %vm446, %v8340, 0.0
  %v8379 = vrot.slane %v8378, 4
  %v8380 = vadd.f32 %v8378, %v8379
  %v8381 = vrot.slane %v8380, 2
  %v8382 = vadd.f32 %v8380, %v8381
  %v8383 = vrot.slane %v8382, 1
  %v8384 = vadd.f32 %v8382, %v8383
  %v8385 = vsel %vm446, %v8341, 0.0
  %v8386 = vrot.slane %v8385, 4
  %v8387 = vadd.f32 %v8385, %v8386
  %v8388 = vrot.slane %v8387, 2
  %v8389 = vadd.f32 %v8387, %v8388
  %v8390 = vrot.slane %v8389, 1
  %v8391 = vadd.f32 %v8389, %v8390
  %v8392 = vsel %vm446, %v8342, 0.0
  %v8393 = vrot.slane %v8392, 4
  %v8394 = vadd.f32 %v8392, %v8393
  %v8395 = vrot.slane %v8394, 2
  %v8396 = vadd.f32 %v8394, %v8395
  %v8397 = vrot.slane %v8396, 1
  %v8398 = vadd.f32 %v8396, %v8397
  %v8399 = vrcp.pop 8.0
  %v8400 = vmul.f32 %v8349, %v8399
  %v8401 = vmul.f32 %v8356, %v8399
  %v8402 = vmul.f32 %v8363, %v8399
  %v8403 = vmul.f32 %v8370, %v8399
  %v8404 = vmul.f32 %v8377, %v8399
  %v8405 = vmul.f32 %v8384, %v8399
  %v8406 = vmul.f32 %v8391, %v8399
  %v8407 = vmul.f32 %v8398, %v8399
  %v8408 = vpack.c.bf16 %v8400, %v8400
  %v8409 = vpack.c.bf16 %v8401, %v8401
  %v8410 = vpack.c.bf16 %v8402, %v8402
  %v8411 = vpack.c.bf16 %v8403, %v8403
  %v8412 = vpack.c.bf16 %v8404, %v8404
  %v8413 = vpack.c.bf16 %v8405, %v8405
  %v8414 = vpack.c.bf16 %v8406, %v8406
  %v8415 = vpack.c.bf16 %v8407, %v8407
  %v8416 = vld [vmem:[%s18] sm:$0xf]
  %v8417 = vld [vmem:[%s18 + $0x4] sm:$0xf]
  %v8418 = vld [vmem:[%s18 + $0x8] sm:$0xf]
  %v8419 = vld [vmem:[%s18 + $0xc] sm:$0xf]
  %v8428 = vunpack.c.l.b16 %v8408
  %v8429 = vunpack.c.l.b16 %v8409
  %v8430 = vunpack.c.l.b16 %v8410
  %v8431 = vunpack.c.l.b16 %v8411
  %v8432 = vunpack.c.l.b16 %v8412
  %v8433 = vunpack.c.l.b16 %v8413
  %v8434 = vunpack.c.l.b16 %v8414
  %v8435 = vunpack.c.l.b16 %v8415
  %v8436 = vsel %vm8078, %v8429, %v8428
  %v8437 = vsel %vm8080, %v8430, %v8436
  %v8438 = vsel %vm8082, %v8431, %v8437
  %v8439 = vsel %vm8084, %v8432, %v8438
  %v8440 = vsel %vm8086, %v8433, %v8439
  %v8441 = vsel %vm8088, %v8434, %v8440
  %v8442 = vsel %vm8090, %v8435, %v8441
  %v8443 = vpack.c.b16 %v8442, %v8442
  %v8448 = vunpack.c.l.b16 %v8416
  %v8449 = vunpack.c.l.b16 %v8417
  %v8450 = vunpack.c.l.b16 %v8418
  %v8451 = vunpack.c.l.b16 %v8419
  %v8452 = vpack.c.b16 %v8449, %v8448
  %v8453 = vpack.c.b16 %v8451, %v8450
  %v8457 = vsel %vm446, %v8443, 0
  %8459 = vmatprep.subr.bf16.mxu0 0
  %8460 = vmatpush1.bf16.msra.mxu0 0
  %8461 = vmatprep.subr.bf16.mxu0 0
  %8462 = vmatpush1.bf16.msra.mxu0 0
  %8463 = vmatprep.subr.bf16.mxu0 0
  %8464 = vmatpush1.bf16.msra.mxu0 0
  %8465 = vmatprep.subr.bf16.mxu0 0
  %8466 = vmatpush1.bf16.msra.mxu0 0
  %8467 = vmatprep.subr.bf16.mxu0 0
  %8468 = vmatpush1.bf16.msra.mxu0 0
  %8469 = vmatprep.subr.bf16.mxu0 0
  %8470 = vmatpush1.bf16.msra.mxu0 0
  %8471 = vmatprep.subr.bf16.mxu0 0
  %8472 = vmatpush1.bf16.msra.mxu0 %v8453
  %8473 = vmatprep.subr.bf16.mxu0 0
  %8474 = vmatpush1.bf16.msra.mxu0 %v8452
  %8475 = vmatprep.subr.bf16.mxu0 0
  %8476 = vmatpush2.bf16.msra.mxu0 0
  %8477 = vmatprep.subr.bf16.mxu0 0
  %8478 = vmatpush2.bf16.msra.mxu0 0
  %8479 = vmatprep.subr.bf16.mxu0 0
  %8480 = vmatpush2.bf16.msra.mxu0 0
  %8481 = vmatprep.subr.bf16.mxu0 0
  %8482 = vmatpush2.bf16.msra.mxu0 0
  %8483 = vmatprep.subr.bf16.mxu0 0
  %8484 = vmatpush2.bf16.msra.mxu0 0
  %8485 = vmatprep.subr.bf16.mxu0 0
  %8486 = vmatpush2.bf16.msra.mxu0 0
  %8487 = vmatprep.subr.bf16.mxu0 0
  %8488 = vmatpush2.bf16.msra.mxu0 0
  %8489 = vmatprep.subr.bf16.mxu0 0
  %8490 = vmatpush2.bf16.msra.mxu0 0
  %8491 = vmatprep.mubr.bf16.mxu0 0
  %8492 = vmatmul.mubr.bf16.gmra.mxu0 %v8457
  %v8493 = vpop.f32.mrf.mxu0
  %v8494 = vadd.f32 0.0, %v8493
  %v8495 = vpop.f32.mrf.mxu0
  %v8496 = vpop.f32.mrf.mxu0
  %v8497 = vpop.f32.mrf.mxu0
  %8498 = vdwg.mxu0
  %v8499 = vmax.f32 %v8494, 0.0
  %v8500 = vld [vmem:[%s19] sm:$0x1]
  %v8502 = vlaneseq
  %v8503 = vshrl.u32 %v8502, 7
  %v8504 = vsub.s32 0, %v8503
  %v8505 = vrot.slane %v8500, %v8504
  %v8507 = vmul.f32 %v8499, %v8505
  %v8508 = vsel %vm3986, %v8507, 0.0
  %8509 = vadd.xlane.f32.xlu0 %v8508
  %v8510 = vpop.xlane.xlu0 %8509
  %vm8511 = vcmask 7168
  %8512 = vst.msk [vmem:[%s20] sm:$0xff] %vm8511, %v8510
  // Predicated region
  $region82: #{tpu_custom_call.1} parent=0 // pred_check
    _
  $region83: #{tpu_custom_call.1} parent=0 // pred_check_branch
    %8514 = sbr.rel (0) target = $region85
  $region84: #{tpu_custom_call.1} parent=0 // pred_region
    _
  $region85: #{tpu_custom_call.1} parent=0 // pred_fallthru
    _
  // Predicated region
  $region86: #{tpu_custom_call.1} parent=0 // pred_check
    _
  $region87: #{tpu_custom_call.1} parent=0 // pred_check_branch
    %8516 = sbr.rel (0) target = $region89
  $region88: #{tpu_custom_call.1} parent=0 // pred_region
    _
  $region89: #{tpu_custom_call.1} parent=0 // pred_fallthru
    _

</llo_original>
